<compile_context>
chip_gen: v7x
topology: tpu7x:2x2x1
jax: 0.10.0
libtpu: 0.0.40
codegen_flags: <defaults>
</compile_context>

<pallas_src>
import numpy as np

import jax
import jax.numpy as jnp
from jax import lax
from jax.experimental import pallas as pl
from jax.experimental.pallas import tpu as pltpu

LANE = 128      # padded output-channel / hidden width (lane axis)
C1P = 8         # padded conv1 output / conv2 input channel count (6 -> 8)
BLOCK_B = 8     # images per features-kernel grid step


def _rup(x, m):
    return (x + m - 1) // m * m


# ---------------------------------------------------------------------------
# Constant linear operators (built once, on host)
# ---------------------------------------------------------------------------
def _pool_matrix(h, w):
    """(h//2*w//2, h*w) matrix implementing AvgPool2d(2) on row-major flattened maps."""
    hp, wp = h // 2, w // 2
    mat = np.zeros((hp * wp, h * w), np.float32)
    for p in range(hp):
        for q in range(wp):
            r = p * wp + q
            for a in range(2):
                for b in range(2):
                    mat[r, (2 * p + a) * w + (2 * q + b)] = 0.25
    return mat


def _gather_matrices(in_h, in_w, out_h, out_w, kh, kw):
    """(kh*kw, out_h*out_w, in_h*in_w) 0/1 matrices: G[t] @ x gathers the shifted
    window for conv tap t on row-major flattened feature maps."""
    mats = np.zeros((kh * kw, out_h * out_w, in_h * in_w), np.float32)
    for di in range(kh):
        for dj in range(kw):
            t = di * kw + dj
            for i in range(out_h):
                for j in range(out_w):
                    mats[t, i * out_w + j, (i + di) * in_w + (j + dj)] = 1.0
    return mats


# ---------------------------------------------------------------------------
# Pallas kernels
# ---------------------------------------------------------------------------
def _features_kernel(cols_ref, w1_ref, b1_ref, p1t_ref, g2t_ref,
                     w2_ref, b2_ref, p2_ref, out_ref):
    """Per block of BLOCK_B images: conv1+ReLU+pool1+conv2+ReLU+pool2 on the MXU."""
    bf16, f32 = jnp.bfloat16, jnp.float32
    B, C = BLOCK_B, C1P

    # conv1 + ReLU for the whole block: block-diagonal weight -> ONE matmul
    # (B*8, B*25) @ (B*25, 784); spatial (784) stays on lanes.
    y1 = jnp.dot(w1_ref[...], cols_ref[...], preferred_element_type=f32)
    y1 = jnp.maximum(y1 + b1_ref[...], 0.0).astype(bf16)                 # (64, 784)

    # avgpool1 as one constant matmul: (64, 784) @ (784, 196).
    p1 = jnp.dot(y1, p1t_ref[...], preferred_element_type=f32).astype(bf16)

    # conv2 5x5 patch gather, batched over all (image, channel) rows:
    # 25 matmuls (64, 196) @ (196, 100).  Kept f32 so the per-image 8-row
    # slices below are native-sublane-tile aligned (values are exact copies).
    gathered = [jnp.dot(p1, g2t_ref[t], preferred_element_type=f32)
                for t in range(25)]                                       # 25 x (64, 100)

    # Per image: single K=200 conv2 contraction + bias + ReLU + pool2 + store.
    for b in range(B):
        # Stack the 25 taps along sublanes (8-aligned -> cheap concat): (200, 100).
        c2b = jnp.concatenate([g[b * C:(b + 1) * C, :] for g in gathered],
                              axis=0).astype(bf16)
        # ONE merged contraction over (tap, channel): (200,100)^T . (200,128).
        y2 = lax.dot_general(c2b, w2_ref[...], (((0,), (0,)), ((), ())),
                             preferred_element_type=f32)                  # (100, 128)
        y2 = jnp.maximum(y2 + b2_ref[...], 0.0).astype(bf16)
        # avgpool2 as a constant matmul, lane-dense (25, 128) store.
        out_ref[b] = jnp.dot(p2_ref[...], y2,
                             preferred_element_type=f32).astype(bf16)


def _tail_kernel(x_ref, w3_ref, b3_ref, wl1_ref, bl1_ref, wl2_ref, bl2_ref, out_ref):
    """Fused conv3 (dense over flattened pool2) + linear1 + linear2 for a row tile."""
    bf16, f32 = jnp.bfloat16, jnp.float32
    h = jnp.dot(x_ref[...], w3_ref[...], preferred_element_type=f32)      # (TM,3200)@(3200,128)
    h = jnp.maximum(h + b3_ref[...], 0.0)                                 # conv3 + ReLU
    h = jnp.dot(h.astype(bf16), wl1_ref[...], preferred_element_type=f32)
    h = jnp.maximum(h + bl1_ref[...], 0.0)                                # linear1 + ReLU
    h = jnp.dot(h.astype(bf16), wl2_ref[...], preferred_element_type=f32)
    out_ref[...] = h + bl2_ref[...]                                       # linear2 (no ReLU)


# ---------------------------------------------------------------------------
# One-time parameter packing (outside the jitted forward)
# ---------------------------------------------------------------------------
def prepare_params(p):
    f32, bf16 = jnp.float32, jnp.bfloat16
    B = BLOCK_B

    # conv1 (6,1,5,5) -> per-image (8, 25), block-diagonal over B images.
    w1 = np.zeros((C1P, 25), np.float32)
    w1[:6, :] = np.asarray(p["w1"], np.float32).reshape(6, 25)
    w1_big = np.zeros((B * C1P, B * 25), np.float32)
    for b in range(B):
        w1_big[b * C1P:(b + 1) * C1P, b * 25:(b + 1) * 25] = w1
    w1p = jnp.asarray(w1_big, bf16)                                       # (64, 200)
    b1 = np.zeros((C1P, 1), np.float32)
    b1[:6, 0] = np.asarray(p["b1"], np.float32)
    b1p = jnp.asarray(np.tile(b1, (B, 1)), f32)                           # (64, 1)

    # conv2 (16,6,5,5) -> flat (25 taps * 8 padded in-ch, 128 padded out-ch).
    w2 = np.transpose(np.asarray(p["w2"], np.float32), (2, 3, 1, 0)).reshape(25, 6, 16)
    w2_np = np.zeros((25, C1P, LANE), np.float32)
    w2_np[:, :6, :16] = w2
    w2p = jnp.asarray(w2_np.reshape(25 * C1P, LANE), bf16)                # (200, 128)
    b2 = np.zeros((1, LANE), np.float32)
    b2[0, :16] = np.asarray(p["b2"], np.float32)
    b2p = jnp.asarray(b2, f32)

    # conv3 == dense layer over the flattened (25 spatial, 128 padded ch) pool2 output.
    w3 = np.transpose(np.asarray(p["w3"], np.float32), (2, 3, 1, 0)).reshape(25, 16, 120)
    w3_np = np.zeros((25, LANE, LANE), np.float32)
    w3_np[:, :16, :120] = w3
    w3p = jnp.asarray(w3_np.reshape(25 * LANE, LANE), bf16)               # (3200, 128)
    b3 = np.zeros((1, LANE), np.float32)
    b3[0, :120] = np.asarray(p["b3"], np.float32)
    b3p = jnp.asarray(b3, f32)

    # fc layers padded to 128x128 (padded input lanes are exactly zero upstream).
    wl1 = np.zeros((LANE, LANE), np.float32)
    wl1[:120, :84] = np.asarray(p["wl1"], np.float32).T
    bl1 = np.zeros((1, LANE), np.float32)
    bl1[0, :84] = np.asarray(p["bl1"], np.float32)
    wl2 = np.zeros((LANE, LANE), np.float32)
    wl2[:84, :10] = np.asarray(p["wl2"], np.float32).T
    bl2 = np.zeros((1, LANE), np.float32)
    bl2[0, :10] = np.asarray(p["bl2"], np.float32)

    # Constant pooling / gather operators (0.25 and 1.0 are exact in bf16).
    p1t = jnp.asarray(_pool_matrix(28, 28).T, bf16)                       # (784, 196)
    p2 = jnp.asarray(_pool_matrix(10, 10), bf16)                          # (25, 100)
    g2t = jnp.asarray(np.transpose(_gather_matrices(14, 14, 10, 10, 5, 5),
                                   (0, 2, 1)), bf16)                      # (25, 196, 100)

    return dict(w1=w1p, b1=b1p, w2=w2p, b2=b2p, w3=w3p, b3=b3p,
                wl1=jnp.asarray(wl1, bf16), bl1=jnp.asarray(bl1, f32),
                wl2=jnp.asarray(wl2, bf16), bl2=jnp.asarray(bl2, f32),
                p1t=p1t, p2=p2, g2t=g2t)


# ---------------------------------------------------------------------------
# LeNet forward
# ---------------------------------------------------------------------------
def lenet_forward(x_nchw, q):
    N = x_nchw.shape[0]
    bf16, f32 = jnp.bfloat16, jnp.float32

    n_pad = _rup(N, BLOCK_B)

    # --- conv1 patch extraction glue: (n_pad*25, 784), tap-major, lane-dense ---
    # Batch is zero-padded first so every feats row is written (no uninit reads).
    img = x_nchw.reshape(N, 32, 32).astype(bf16)
    img = jnp.pad(img, ((0, n_pad - N), (0, 0), (0, 0)))
    patches = [img[:, di:di + 28, dj:dj + 28].reshape(n_pad, 1, 784)
               for di in range(5) for dj in range(5)]
    cols1 = jnp.concatenate(patches, axis=1).reshape(n_pad * 25, 784)

    # --- kernel 1: fused conv1/pool1/conv2/pool2, BLOCK_B images per step ----
    feats = pl.pallas_call(
        _features_kernel,
        out_shape=jax.ShapeDtypeStruct((n_pad, 25, LANE), bf16),
        grid=(n_pad // BLOCK_B,),
        in_specs=[
            pl.BlockSpec((BLOCK_B * 25, 784), lambda n: (n, 0)),          # im2col'd block
            pl.BlockSpec((BLOCK_B * C1P, BLOCK_B * 25), lambda n: (0, 0)),  # conv1 blockdiag W
            pl.BlockSpec((BLOCK_B * C1P, 1), lambda n: (0, 0)),           # conv1 bias
            pl.BlockSpec((784, 196), lambda n: (0, 0)),                   # pool1^T
            pl.BlockSpec((25, 196, 100), lambda n: (0, 0, 0)),            # conv2 gathers^T
            pl.BlockSpec((25 * C1P, LANE), lambda n: (0, 0)),             # conv2 weight (200,128)
            pl.BlockSpec((1, LANE), lambda n: (0, 0)),                    # conv2 bias
            pl.BlockSpec((25, 100), lambda n: (0, 0)),                    # pool2
        ],
        out_specs=pl.BlockSpec((BLOCK_B, 25, LANE), lambda n: (n, 0, 0)),
        compiler_params=pltpu.CompilerParams(
            dimension_semantics=("parallel",),
            vmem_limit_bytes=32 * 1024 * 1024),
    )(cols1, q["w1"], q["b1"], q["p1t"], q["g2t"], q["w2"], q["b2"], q["p2"])

    # free row-major reshape: (n_pad, 25, 128) -> (n_pad, 3200)
    x_tail = feats.reshape(n_pad, 25 * LANE)

    # Tail row tile: cap at 256 (512 for very large batches) so the grid has
    # >=2 programs when possible (v7x megacore + double buffering).
    if n_pad <= 256:
        tile_m = n_pad
    else:
        tile_m = max(c for c in (8, 16, 32, 64, 128, 256, 512)
                     if n_pad % c == 0 and n_pad // c >= 2)

    # --- kernel 2: fused conv3 + linear1 + linear2, tiled over batch rows ---
    logits = pl.pallas_call(
        _tail_kernel,
        out_shape=jax.ShapeDtypeStruct((n_pad, LANE), f32),
        grid=(n_pad // tile_m,),
        in_specs=[
            pl.BlockSpec((tile_m, 25 * LANE), lambda i: (i, 0)),
            pl.BlockSpec((25 * LANE, LANE), lambda i: (0, 0)),
            pl.BlockSpec((1, LANE), lambda i: (0, 0)),
            pl.BlockSpec((LANE, LANE), lambda i: (0, 0)),
            pl.BlockSpec((1, LANE), lambda i: (0, 0)),
            pl.BlockSpec((LANE, LANE), lambda i: (0, 0)),
            pl.BlockSpec((1, LANE), lambda i: (0, 0)),
        ],
        out_specs=pl.BlockSpec((tile_m, LANE), lambda i: (i, 0)),
        compiler_params=pltpu.CompilerParams(
            dimension_semantics=("parallel",),
            vmem_limit_bytes=32 * 1024 * 1024),
    )(x_tail, q["w3"], q["b3"], q["wl1"], q["bl1"], q["wl2"], q["bl2"])

    return logits[:N, :10]


# ---------------------------------------------------------------------------
# Pure-JAX f32 reference (for a loose-tolerance correctness check)
# ---------------------------------------------------------------------------
def _reference_forward(x, p):
    def conv(h, w, b):
        y = lax.conv_general_dilated(h, w, (1, 1), "VALID",
                                     dimension_numbers=("NCHW", "OIHW", "NCHW"))
        return y + b.reshape(1, -1, 1, 1)

    def pool(h):
        return lax.reduce_window(h, 0.0, lax.add,
                                 (1, 1, 2, 2), (1, 1, 2, 2), "VALID") * 0.25

    h = jax.nn.relu(conv(x, p["w1"], p["b1"]))
    h = pool(h)
    h = jax.nn.relu(conv(h, p["w2"], p["b2"]))
    h = pool(h)
    h = jax.nn.relu(conv(h, p["w3"], p["b3"]))
    h = h.reshape(h.shape[0], -1)
    h = jax.nn.relu(h @ p["wl1"].T + p["bl1"])
    return h @ p["wl2"].T + p["bl2"]


# ---------------------------------------------------------------------------
# PyTorch-style init (same as the original reference)
# ---------------------------------------------------------------------------
def init_params(key):
    ks = jax.random.split(key, 10)

    def u(k, shape, fan_in):
        bound = 1.0 / jnp.sqrt(fan_in)
        return jax.random.uniform(k, shape, jnp.float32, -bound, bound)

    return {
        "w1": u(ks[0], (6, 1, 5, 5), 1 * 25),     "b1": u(ks[1], (6,), 1 * 25),
        "w2": u(ks[2], (16, 6, 5, 5), 6 * 25),    "b2": u(ks[3], (16,), 6 * 25),
        "w3": u(ks[4], (120, 16, 5, 5), 16 * 25), "b3": u(ks[5], (120,), 16 * 25),
        "wl1": u(ks[6], (84, 120), 120),          "bl1": u(ks[7], (84,), 120),
        "wl2": u(ks[8], (10, 84), 84),            "bl2": u(ks[9], (10,), 84),
    }


if __name__ == "__main__":
    key = jax.random.PRNGKey(0)
    k_x, k_p = jax.random.split(key)
    x = jax.random.normal(k_x, (2, 1, 32, 32), dtype=jnp.float32)  # LeNet needs 1x32x32
    params = init_params(k_p)
    packed = prepare_params(params)          # one-time weight packing, outside the hot path

    fwd = jax.jit(lenet_forward)
    out = jax.block_until_ready(fwd(x, packed))

    assert out.shape == (2, 10), out.shape
    assert bool(jnp.all(jnp.isfinite(out)))

    # bf16 activations vs f32 reference -> loose tolerance.
    ref = _reference_forward(x, params)
    err = float(jnp.max(jnp.abs(out - ref)))
    assert err < 0.1, f"max abs diff vs f32 reference: {err}"
    print("KERNEL_OK")
</pallas_src>

<mosaic_0001>
module attributes {stable_mosaic.version = 11 : i64} {
  func.func @_features_kernel(%arg0: i32, %arg1: memref<200x784xbf16, #tpu.memory_space<vmem>>, %arg2: memref<64x200xbf16, #tpu.memory_space<vmem>>, %arg3: memref<64x1xf32, #tpu.memory_space<vmem>>, %arg4: memref<784x196xbf16, #tpu.memory_space<vmem>>, %arg5: memref<25x196x100xbf16, #tpu.memory_space<vmem>>, %arg6: memref<200x128xbf16, #tpu.memory_space<vmem>>, %arg7: memref<1x128xf32, #tpu.memory_space<vmem>>, %arg8: memref<25x100xbf16, #tpu.memory_space<vmem>>, %arg9: memref<8x25x128xbf16, #tpu.memory_space<vmem>>) attributes {dimension_semantics = [#tpu.dimension_semantics<parallel>], iteration_bounds = array<i64: 1>, scalar_prefetch = 0 : i64, scratch_operands = 0 : i64, tpu.core_type = #tpu.core_type<tc>, window_params = [{transform_indices = @transform_0, window_bounds = array<i64: 200, 784>}, {pipeline_mode = #tpu.pipeline_mode<synchronous>, transform_indices = @transform_1, window_bounds = array<i64: 64, 200>}, {pipeline_mode = #tpu.pipeline_mode<synchronous>, transform_indices = @transform_2, window_bounds = array<i64: 64, 1>}, {pipeline_mode = #tpu.pipeline_mode<synchronous>, transform_indices = @transform_3, window_bounds = array<i64: 784, 196>}, {pipeline_mode = #tpu.pipeline_mode<synchronous>, transform_indices = @transform_4, window_bounds = array<i64: 25, 196, 100>}, {pipeline_mode = #tpu.pipeline_mode<synchronous>, transform_indices = @transform_5, window_bounds = array<i64: 200, 128>}, {pipeline_mode = #tpu.pipeline_mode<synchronous>, transform_indices = @transform_6, window_bounds = array<i64: 1, 128>}, {pipeline_mode = #tpu.pipeline_mode<synchronous>, transform_indices = @transform_7, window_bounds = array<i64: 25, 100>}, {transform_indices = @transform_8, window_bounds = array<i64: 8, 25, 128>}]} {
    %c0 = arith.constant 0 : index
    %c0_0 = arith.constant 0 : index
    %0 = vector.load %arg2[%c0, %c0_0] : memref<64x200xbf16, #tpu.memory_space<vmem>>, vector<64x200xbf16>
    %c0_1 = arith.constant 0 : index
    %c0_2 = arith.constant 0 : index
    %1 = vector.load %arg1[%c0_1, %c0_2] : memref<200x784xbf16, #tpu.memory_space<vmem>>, vector<200x784xbf16>
    %cst = arith.constant dense<0.000000e+00> : vector<64x784xf32>
    %2 = tpu.matmul %0, %1, %cst {dimension_numbers = #tpu.dot_dimension_numbers<[1], [0], [0], [1], [0, 0, 1, 1], [], []>} : vector<64x200xbf16>, vector<200x784xbf16>, vector<64x784xf32> -> vector<64x784xf32>
    %c0_3 = arith.constant 0 : index
    %c0_4 = arith.constant 0 : index
    %3 = vector.load %arg3[%c0_3, %c0_4] : memref<64x1xf32, #tpu.memory_space<vmem>>, vector<64x1xf32>
    %4 = vector.broadcast %3 : vector<64x1xf32> to vector<64x784xf32>
    %5 = arith.addf %2, %4 : vector<64x784xf32>
    %cst_5 = arith.constant 0.000000e+00 : f32
    %6 = vector.broadcast %cst_5 : f32 to vector<64x784xf32>
    %7 = arith.maximumf %5, %6 : vector<64x784xf32>
    %8 = arith.truncf %7 : vector<64x784xf32> to vector<64x784xbf16>
    %c0_6 = arith.constant 0 : index
    %c0_7 = arith.constant 0 : index
    %9 = vector.load %arg4[%c0_6, %c0_7] : memref<784x196xbf16, #tpu.memory_space<vmem>>, vector<784x196xbf16>
    %cst_8 = arith.constant dense<0.000000e+00> : vector<64x196xf32>
    %10 = tpu.matmul %8, %9, %cst_8 {dimension_numbers = #tpu.dot_dimension_numbers<[1], [0], [0], [1], [0, 0, 1, 1], [], []>} : vector<64x784xbf16>, vector<784x196xbf16>, vector<64x196xf32> -> vector<64x196xf32>
    %11 = arith.truncf %10 : vector<64x196xf32> to vector<64x196xbf16>
    %c0_9 = arith.constant 0 : index
    %c0_10 = arith.constant 0 : index
    %c0_11 = arith.constant 0 : index
    %12 = vector.load %arg5[%c0_9, %c0_10, %c0_11] : memref<25x196x100xbf16, #tpu.memory_space<vmem>>, vector<1x196x100xbf16>
    %13 = vector.shape_cast %12 : vector<1x196x100xbf16> to vector<196x100xbf16>
    %cst_12 = arith.constant dense<0.000000e+00> : vector<64x100xf32>
    %14 = tpu.matmul %11, %13, %cst_12 {dimension_numbers = #tpu.dot_dimension_numbers<[1], [0], [0], [1], [0, 0, 1, 1], [], []>} : vector<64x196xbf16>, vector<196x100xbf16>, vector<64x100xf32> -> vector<64x100xf32>
    %c1 = arith.constant 1 : index
    %c0_13 = arith.constant 0 : index
    %c0_14 = arith.constant 0 : index
    %15 = vector.load %arg5[%c1, %c0_13, %c0_14] : memref<25x196x100xbf16, #tpu.memory_space<vmem>>, vector<1x196x100xbf16>
    %16 = vector.shape_cast %15 : vector<1x196x100xbf16> to vector<196x100xbf16>
    %cst_15 = arith.constant dense<0.000000e+00> : vector<64x100xf32>
    %17 = tpu.matmul %11, %16, %cst_15 {dimension_numbers = #tpu.dot_dimension_numbers<[1], [0], [0], [1], [0, 0, 1, 1], [], []>} : vector<64x196xbf16>, vector<196x100xbf16>, vector<64x100xf32> -> vector<64x100xf32>
    %c2 = arith.constant 2 : index
    %c0_16 = arith.constant 0 : index
    %c0_17 = arith.constant 0 : index
    %18 = vector.load %arg5[%c2, %c0_16, %c0_17] : memref<25x196x100xbf16, #tpu.memory_space<vmem>>, vector<1x196x100xbf16>
    %19 = vector.shape_cast %18 : vector<1x196x100xbf16> to vector<196x100xbf16>
    %cst_18 = arith.constant dense<0.000000e+00> : vector<64x100xf32>
    %20 = tpu.matmul %11, %19, %cst_18 {dimension_numbers = #tpu.dot_dimension_numbers<[1], [0], [0], [1], [0, 0, 1, 1], [], []>} : vector<64x196xbf16>, vector<196x100xbf16>, vector<64x100xf32> -> vector<64x100xf32>
    %c3 = arith.constant 3 : index
    %c0_19 = arith.constant 0 : index
    %c0_20 = arith.constant 0 : index
    %21 = vector.load %arg5[%c3, %c0_19, %c0_20] : memref<25x196x100xbf16, #tpu.memory_space<vmem>>, vector<1x196x100xbf16>
    %22 = vector.shape_cast %21 : vector<1x196x100xbf16> to vector<196x100xbf16>
    %cst_21 = arith.constant dense<0.000000e+00> : vector<64x100xf32>
    %23 = tpu.matmul %11, %22, %cst_21 {dimension_numbers = #tpu.dot_dimension_numbers<[1], [0], [0], [1], [0, 0, 1, 1], [], []>} : vector<64x196xbf16>, vector<196x100xbf16>, vector<64x100xf32> -> vector<64x100xf32>
    %c4 = arith.constant 4 : index
    %c0_22 = arith.constant 0 : index
    %c0_23 = arith.constant 0 : index
    %24 = vector.load %arg5[%c4, %c0_22, %c0_23] : memref<25x196x100xbf16, #tpu.memory_space<vmem>>, vector<1x196x100xbf16>
    %25 = vector.shape_cast %24 : vector<1x196x100xbf16> to vector<196x100xbf16>
    %cst_24 = arith.constant dense<0.000000e+00> : vector<64x100xf32>
    %26 = tpu.matmul %11, %25, %cst_24 {dimension_numbers = #tpu.dot_dimension_numbers<[1], [0], [0], [1], [0, 0, 1, 1], [], []>} : vector<64x196xbf16>, vector<196x100xbf16>, vector<64x100xf32> -> vector<64x100xf32>
    %c5 = arith.constant 5 : index
    %c0_25 = arith.constant 0 : index
    %c0_26 = arith.constant 0 : index
    %27 = vector.load %arg5[%c5, %c0_25, %c0_26] : memref<25x196x100xbf16, #tpu.memory_space<vmem>>, vector<1x196x100xbf16>
    %28 = vector.shape_cast %27 : vector<1x196x100xbf16> to vector<196x100xbf16>
    %cst_27 = arith.constant dense<0.000000e+00> : vector<64x100xf32>
    %29 = tpu.matmul %11, %28, %cst_27 {dimension_numbers = #tpu.dot_dimension_numbers<[1], [0], [0], [1], [0, 0, 1, 1], [], []>} : vector<64x196xbf16>, vector<196x100xbf16>, vector<64x100xf32> -> vector<64x100xf32>
    %c6 = arith.constant 6 : index
    %c0_28 = arith.constant 0 : index
    %c0_29 = arith.constant 0 : index
    %30 = vector.load %arg5[%c6, %c0_28, %c0_29] : memref<25x196x100xbf16, #tpu.memory_space<vmem>>, vector<1x196x100xbf16>
    %31 = vector.shape_cast %30 : vector<1x196x100xbf16> to vector<196x100xbf16>
    %cst_30 = arith.constant dense<0.000000e+00> : vector<64x100xf32>
    %32 = tpu.matmul %11, %31, %cst_30 {dimension_numbers = #tpu.dot_dimension_numbers<[1], [0], [0], [1], [0, 0, 1, 1], [], []>} : vector<64x196xbf16>, vector<196x100xbf16>, vector<64x100xf32> -> vector<64x100xf32>
    %c7 = arith.constant 7 : index
    %c0_31 = arith.constant 0 : index
    %c0_32 = arith.constant 0 : index
    %33 = vector.load %arg5[%c7, %c0_31, %c0_32] : memref<25x196x100xbf16, #tpu.memory_space<vmem>>, vector<1x196x100xbf16>
    %34 = vector.shape_cast %33 : vector<1x196x100xbf16> to vector<196x100xbf16>
    %cst_33 = arith.constant dense<0.000000e+00> : vector<64x100xf32>
    %35 = tpu.matmul %11, %34, %cst_33 {dimension_numbers = #tpu.dot_dimension_numbers<[1], [0], [0], [1], [0, 0, 1, 1], [], []>} : vector<64x196xbf16>, vector<196x100xbf16>, vector<64x100xf32> -> vector<64x100xf32>
    %c8 = arith.constant 8 : index
    %c0_34 = arith.constant 0 : index
    %c0_35 = arith.constant 0 : index
    %36 = vector.load %arg5[%c8, %c0_34, %c0_35] : memref<25x196x100xbf16, #tpu.memory_space<vmem>>, vector<1x196x100xbf16>
    %37 = vector.shape_cast %36 : vector<1x196x100xbf16> to vector<196x100xbf16>
    %cst_36 = arith.constant dense<0.000000e+00> : vector<64x100xf32>
    %38 = tpu.matmul %11, %37, %cst_36 {dimension_numbers = #tpu.dot_dimension_numbers<[1], [0], [0], [1], [0, 0, 1, 1], [], []>} : vector<64x196xbf16>, vector<196x100xbf16>, vector<64x100xf32> -> vector<64x100xf32>
    %c9 = arith.constant 9 : index
    %c0_37 = arith.constant 0 : index
    %c0_38 = arith.constant 0 : index
    %39 = vector.load %arg5[%c9, %c0_37, %c0_38] : memref<25x196x100xbf16, #tpu.memory_space<vmem>>, vector<1x196x100xbf16>
    %40 = vector.shape_cast %39 : vector<1x196x100xbf16> to vector<196x100xbf16>
    %cst_39 = arith.constant dense<0.000000e+00> : vector<64x100xf32>
    %41 = tpu.matmul %11, %40, %cst_39 {dimension_numbers = #tpu.dot_dimension_numbers<[1], [0], [0], [1], [0, 0, 1, 1], [], []>} : vector<64x196xbf16>, vector<196x100xbf16>, vector<64x100xf32> -> vector<64x100xf32>
    %c10 = arith.constant 10 : index
    %c0_40 = arith.constant 0 : index
    %c0_41 = arith.constant 0 : index
    %42 = vector.load %arg5[%c10, %c0_40, %c0_41] : memref<25x196x100xbf16, #tpu.memory_space<vmem>>, vector<1x196x100xbf16>
    %43 = vector.shape_cast %42 : vector<1x196x100xbf16> to vector<196x100xbf16>
    %cst_42 = arith.constant dense<0.000000e+00> : vector<64x100xf32>
    %44 = tpu.matmul %11, %43, %cst_42 {dimension_numbers = #tpu.dot_dimension_numbers<[1], [0], [0], [1], [0, 0, 1, 1], [], []>} : vector<64x196xbf16>, vector<196x100xbf16>, vector<64x100xf32> -> vector<64x100xf32>
    %c11 = arith.constant 11 : index
    %c0_43 = arith.constant 0 : index
    %c0_44 = arith.constant 0 : index
    %45 = vector.load %arg5[%c11, %c0_43, %c0_44] : memref<25x196x100xbf16, #tpu.memory_space<vmem>>, vector<1x196x100xbf16>
    %46 = vector.shape_cast %45 : vector<1x196x100xbf16> to vector<196x100xbf16>
    %cst_45 = arith.constant dense<0.000000e+00> : vector<64x100xf32>
    %47 = tpu.matmul %11, %46, %cst_45 {dimension_numbers = #tpu.dot_dimension_numbers<[1], [0], [0], [1], [0, 0, 1, 1], [], []>} : vector<64x196xbf16>, vector<196x100xbf16>, vector<64x100xf32> -> vector<64x100xf32>
    %c12 = arith.constant 12 : index
    %c0_46 = arith.constant 0 : index
    %c0_47 = arith.constant 0 : index
    %48 = vector.load %arg5[%c12, %c0_46, %c0_47] : memref<25x196x100xbf16, #tpu.memory_space<vmem>>, vector<1x196x100xbf16>
    %49 = vector.shape_cast %48 : vector<1x196x100xbf16> to vector<196x100xbf16>
    %cst_48 = arith.constant dense<0.000000e+00> : vector<64x100xf32>
    %50 = tpu.matmul %11, %49, %cst_48 {dimension_numbers = #tpu.dot_dimension_numbers<[1], [0], [0], [1], [0, 0, 1, 1], [], []>} : vector<64x196xbf16>, vector<196x100xbf16>, vector<64x100xf32> -> vector<64x100xf32>
    %c13 = arith.constant 13 : index
    %c0_49 = arith.constant 0 : index
    %c0_50 = arith.constant 0 : index
    %51 = vector.load %arg5[%c13, %c0_49, %c0_50] : memref<25x196x100xbf16, #tpu.memory_space<vmem>>, vector<1x196x100xbf16>
    %52 = vector.shape_cast %51 : vector<1x196x100xbf16> to vector<196x100xbf16>
    %cst_51 = arith.constant dense<0.000000e+00> : vector<64x100xf32>
    %53 = tpu.matmul %11, %52, %cst_51 {dimension_numbers = #tpu.dot_dimension_numbers<[1], [0], [0], [1], [0, 0, 1, 1], [], []>} : vector<64x196xbf16>, vector<196x100xbf16>, vector<64x100xf32> -> vector<64x100xf32>
    %c14 = arith.constant 14 : index
    %c0_52 = arith.constant 0 : index
    %c0_53 = arith.constant 0 : index
    %54 = vector.load %arg5[%c14, %c0_52, %c0_53] : memref<25x196x100xbf16, #tpu.memory_space<vmem>>, vector<1x196x100xbf16>
    %55 = vector.shape_cast %54 : vector<1x196x100xbf16> to vector<196x100xbf16>
    %cst_54 = arith.constant dense<0.000000e+00> : vector<64x100xf32>
    %56 = tpu.matmul %11, %55, %cst_54 {dimension_numbers = #tpu.dot_dimension_numbers<[1], [0], [0], [1], [0, 0, 1, 1], [], []>} : vector<64x196xbf16>, vector<196x100xbf16>, vector<64x100xf32> -> vector<64x100xf32>
    %c15 = arith.constant 15 : index
    %c0_55 = arith.constant 0 : index
    %c0_56 = arith.constant 0 : index
    %57 = vector.load %arg5[%c15, %c0_55, %c0_56] : memref<25x196x100xbf16, #tpu.memory_space<vmem>>, vector<1x196x100xbf16>
    %58 = vector.shape_cast %57 : vector<1x196x100xbf16> to vector<196x100xbf16>
    %cst_57 = arith.constant dense<0.000000e+00> : vector<64x100xf32>
    %59 = tpu.matmul %11, %58, %cst_57 {dimension_numbers = #tpu.dot_dimension_numbers<[1], [0], [0], [1], [0, 0, 1, 1], [], []>} : vector<64x196xbf16>, vector<196x100xbf16>, vector<64x100xf32> -> vector<64x100xf32>
    %c16 = arith.constant 16 : index
    %c0_58 = arith.constant 0 : index
    %c0_59 = arith.constant 0 : index
    %60 = vector.load %arg5[%c16, %c0_58, %c0_59] : memref<25x196x100xbf16, #tpu.memory_space<vmem>>, vector<1x196x100xbf16>
    %61 = vector.shape_cast %60 : vector<1x196x100xbf16> to vector<196x100xbf16>
    %cst_60 = arith.constant dense<0.000000e+00> : vector<64x100xf32>
    %62 = tpu.matmul %11, %61, %cst_60 {dimension_numbers = #tpu.dot_dimension_numbers<[1], [0], [0], [1], [0, 0, 1, 1], [], []>} : vector<64x196xbf16>, vector<196x100xbf16>, vector<64x100xf32> -> vector<64x100xf32>
    %c17 = arith.constant 17 : index
    %c0_61 = arith.constant 0 : index
    %c0_62 = arith.constant 0 : index
    %63 = vector.load %arg5[%c17, %c0_61, %c0_62] : memref<25x196x100xbf16, #tpu.memory_space<vmem>>, vector<1x196x100xbf16>
    %64 = vector.shape_cast %63 : vector<1x196x100xbf16> to vector<196x100xbf16>
    %cst_63 = arith.constant dense<0.000000e+00> : vector<64x100xf32>
    %65 = tpu.matmul %11, %64, %cst_63 {dimension_numbers = #tpu.dot_dimension_numbers<[1], [0], [0], [1], [0, 0, 1, 1], [], []>} : vector<64x196xbf16>, vector<196x100xbf16>, vector<64x100xf32> -> vector<64x100xf32>
    %c18 = arith.constant 18 : index
    %c0_64 = arith.constant 0 : index
    %c0_65 = arith.constant 0 : index
    %66 = vector.load %arg5[%c18, %c0_64, %c0_65] : memref<25x196x100xbf16, #tpu.memory_space<vmem>>, vector<1x196x100xbf16>
    %67 = vector.shape_cast %66 : vector<1x196x100xbf16> to vector<196x100xbf16>
    %cst_66 = arith.constant dense<0.000000e+00> : vector<64x100xf32>
    %68 = tpu.matmul %11, %67, %cst_66 {dimension_numbers = #tpu.dot_dimension_numbers<[1], [0], [0], [1], [0, 0, 1, 1], [], []>} : vector<64x196xbf16>, vector<196x100xbf16>, vector<64x100xf32> -> vector<64x100xf32>
    %c19 = arith.constant 19 : index
    %c0_67 = arith.constant 0 : index
    %c0_68 = arith.constant 0 : index
    %69 = vector.load %arg5[%c19, %c0_67, %c0_68] : memref<25x196x100xbf16, #tpu.memory_space<vmem>>, vector<1x196x100xbf16>
    %70 = vector.shape_cast %69 : vector<1x196x100xbf16> to vector<196x100xbf16>
    %cst_69 = arith.constant dense<0.000000e+00> : vector<64x100xf32>
    %71 = tpu.matmul %11, %70, %cst_69 {dimension_numbers = #tpu.dot_dimension_numbers<[1], [0], [0], [1], [0, 0, 1, 1], [], []>} : vector<64x196xbf16>, vector<196x100xbf16>, vector<64x100xf32> -> vector<64x100xf32>
    %c20 = arith.constant 20 : index
    %c0_70 = arith.constant 0 : index
    %c0_71 = arith.constant 0 : index
    %72 = vector.load %arg5[%c20, %c0_70, %c0_71] : memref<25x196x100xbf16, #tpu.memory_space<vmem>>, vector<1x196x100xbf16>
    %73 = vector.shape_cast %72 : vector<1x196x100xbf16> to vector<196x100xbf16>
    %cst_72 = arith.constant dense<0.000000e+00> : vector<64x100xf32>
    %74 = tpu.matmul %11, %73, %cst_72 {dimension_numbers = #tpu.dot_dimension_numbers<[1], [0], [0], [1], [0, 0, 1, 1], [], []>} : vector<64x196xbf16>, vector<196x100xbf16>, vector<64x100xf32> -> vector<64x100xf32>
    %c21 = arith.constant 21 : index
    %c0_73 = arith.constant 0 : index
    %c0_74 = arith.constant 0 : index
    %75 = vector.load %arg5[%c21, %c0_73, %c0_74] : memref<25x196x100xbf16, #tpu.memory_space<vmem>>, vector<1x196x100xbf16>
    %76 = vector.shape_cast %75 : vector<1x196x100xbf16> to vector<196x100xbf16>
    %cst_75 = arith.constant dense<0.000000e+00> : vector<64x100xf32>
    %77 = tpu.matmul %11, %76, %cst_75 {dimension_numbers = #tpu.dot_dimension_numbers<[1], [0], [0], [1], [0, 0, 1, 1], [], []>} : vector<64x196xbf16>, vector<196x100xbf16>, vector<64x100xf32> -> vector<64x100xf32>
    %c22 = arith.constant 22 : index
    %c0_76 = arith.constant 0 : index
    %c0_77 = arith.constant 0 : index
    %78 = vector.load %arg5[%c22, %c0_76, %c0_77] : memref<25x196x100xbf16, #tpu.memory_space<vmem>>, vector<1x196x100xbf16>
    %79 = vector.shape_cast %78 : vector<1x196x100xbf16> to vector<196x100xbf16>
    %cst_78 = arith.constant dense<0.000000e+00> : vector<64x100xf32>
    %80 = tpu.matmul %11, %79, %cst_78 {dimension_numbers = #tpu.dot_dimension_numbers<[1], [0], [0], [1], [0, 0, 1, 1], [], []>} : vector<64x196xbf16>, vector<196x100xbf16>, vector<64x100xf32> -> vector<64x100xf32>
    %c23 = arith.constant 23 : index
    %c0_79 = arith.constant 0 : index
    %c0_80 = arith.constant 0 : index
    %81 = vector.load %arg5[%c23, %c0_79, %c0_80] : memref<25x196x100xbf16, #tpu.memory_space<vmem>>, vector<1x196x100xbf16>
    %82 = vector.shape_cast %81 : vector<1x196x100xbf16> to vector<196x100xbf16>
    %cst_81 = arith.constant dense<0.000000e+00> : vector<64x100xf32>
    %83 = tpu.matmul %11, %82, %cst_81 {dimension_numbers = #tpu.dot_dimension_numbers<[1], [0], [0], [1], [0, 0, 1, 1], [], []>} : vector<64x196xbf16>, vector<196x100xbf16>, vector<64x100xf32> -> vector<64x100xf32>
    %c24 = arith.constant 24 : index
    %c0_82 = arith.constant 0 : index
    %c0_83 = arith.constant 0 : index
    %84 = vector.load %arg5[%c24, %c0_82, %c0_83] : memref<25x196x100xbf16, #tpu.memory_space<vmem>>, vector<1x196x100xbf16>
    %85 = vector.shape_cast %84 : vector<1x196x100xbf16> to vector<196x100xbf16>
    %cst_84 = arith.constant dense<0.000000e+00> : vector<64x100xf32>
    %86 = tpu.matmul %11, %85, %cst_84 {dimension_numbers = #tpu.dot_dimension_numbers<[1], [0], [0], [1], [0, 0, 1, 1], [], []>} : vector<64x196xbf16>, vector<196x100xbf16>, vector<64x100xf32> -> vector<64x100xf32>
    %87 = vector.extract_strided_slice %14 {offsets = [0, 0], sizes = [8, 100], strides = [1, 1]} : vector<64x100xf32> to vector<8x100xf32>
    %88 = vector.extract_strided_slice %17 {offsets = [0, 0], sizes = [8, 100], strides = [1, 1]} : vector<64x100xf32> to vector<8x100xf32>
    %89 = vector.extract_strided_slice %20 {offsets = [0, 0], sizes = [8, 100], strides = [1, 1]} : vector<64x100xf32> to vector<8x100xf32>
    %90 = vector.extract_strided_slice %23 {offsets = [0, 0], sizes = [8, 100], strides = [1, 1]} : vector<64x100xf32> to vector<8x100xf32>
    %91 = vector.extract_strided_slice %26 {offsets = [0, 0], sizes = [8, 100], strides = [1, 1]} : vector<64x100xf32> to vector<8x100xf32>
    %92 = vector.extract_strided_slice %29 {offsets = [0, 0], sizes = [8, 100], strides = [1, 1]} : vector<64x100xf32> to vector<8x100xf32>
    %93 = vector.extract_strided_slice %32 {offsets = [0, 0], sizes = [8, 100], strides = [1, 1]} : vector<64x100xf32> to vector<8x100xf32>
    %94 = vector.extract_strided_slice %35 {offsets = [0, 0], sizes = [8, 100], strides = [1, 1]} : vector<64x100xf32> to vector<8x100xf32>
    %95 = vector.extract_strided_slice %38 {offsets = [0, 0], sizes = [8, 100], strides = [1, 1]} : vector<64x100xf32> to vector<8x100xf32>
    %96 = vector.extract_strided_slice %41 {offsets = [0, 0], sizes = [8, 100], strides = [1, 1]} : vector<64x100xf32> to vector<8x100xf32>
    %97 = vector.extract_strided_slice %44 {offsets = [0, 0], sizes = [8, 100], strides = [1, 1]} : vector<64x100xf32> to vector<8x100xf32>
    %98 = vector.extract_strided_slice %47 {offsets = [0, 0], sizes = [8, 100], strides = [1, 1]} : vector<64x100xf32> to vector<8x100xf32>
    %99 = vector.extract_strided_slice %50 {offsets = [0, 0], sizes = [8, 100], strides = [1, 1]} : vector<64x100xf32> to vector<8x100xf32>
    %100 = vector.extract_strided_slice %53 {offsets = [0, 0], sizes = [8, 100], strides = [1, 1]} : vector<64x100xf32> to vector<8x100xf32>
    %101 = vector.extract_strided_slice %56 {offsets = [0, 0], sizes = [8, 100], strides = [1, 1]} : vector<64x100xf32> to vector<8x100xf32>
    %102 = vector.extract_strided_slice %59 {offsets = [0, 0], sizes = [8, 100], strides = [1, 1]} : vector<64x100xf32> to vector<8x100xf32>
    %103 = vector.extract_strided_slice %62 {offsets = [0, 0], sizes = [8, 100], strides = [1, 1]} : vector<64x100xf32> to vector<8x100xf32>
    %104 = vector.extract_strided_slice %65 {offsets = [0, 0], sizes = [8, 100], strides = [1, 1]} : vector<64x100xf32> to vector<8x100xf32>
    %105 = vector.extract_strided_slice %68 {offsets = [0, 0], sizes = [8, 100], strides = [1, 1]} : vector<64x100xf32> to vector<8x100xf32>
    %106 = vector.extract_strided_slice %71 {offsets = [0, 0], sizes = [8, 100], strides = [1, 1]} : vector<64x100xf32> to vector<8x100xf32>
    %107 = vector.extract_strided_slice %74 {offsets = [0, 0], sizes = [8, 100], strides = [1, 1]} : vector<64x100xf32> to vector<8x100xf32>
    %108 = vector.extract_strided_slice %77 {offsets = [0, 0], sizes = [8, 100], strides = [1, 1]} : vector<64x100xf32> to vector<8x100xf32>
    %109 = vector.extract_strided_slice %80 {offsets = [0, 0], sizes = [8, 100], strides = [1, 1]} : vector<64x100xf32> to vector<8x100xf32>
    %110 = vector.extract_strided_slice %83 {offsets = [0, 0], sizes = [8, 100], strides = [1, 1]} : vector<64x100xf32> to vector<8x100xf32>
    %111 = vector.extract_strided_slice %86 {offsets = [0, 0], sizes = [8, 100], strides = [1, 1]} : vector<64x100xf32> to vector<8x100xf32>
    %112 = tpu.concatenate %87, %88, %89, %90, %91, %92, %93, %94, %95, %96, %97, %98, %99, %100, %101, %102 in 0 : vector<8x100xf32>, vector<8x100xf32>, vector<8x100xf32>, vector<8x100xf32>, vector<8x100xf32>, vector<8x100xf32>, vector<8x100xf32>, vector<8x100xf32>, vector<8x100xf32>, vector<8x100xf32>, vector<8x100xf32>, vector<8x100xf32>, vector<8x100xf32>, vector<8x100xf32>, vector<8x100xf32>, vector<8x100xf32> -> vector<128x100xf32>
    %113 = tpu.concatenate %103, %104, %105, %106, %107, %108, %109, %110, %111 in 0 : vector<8x100xf32>, vector<8x100xf32>, vector<8x100xf32>, vector<8x100xf32>, vector<8x100xf32>, vector<8x100xf32>, vector<8x100xf32>, vector<8x100xf32>, vector<8x100xf32> -> vector<72x100xf32>
    %114 = tpu.concatenate %112, %113 in 0 : vector<128x100xf32>, vector<72x100xf32> -> vector<200x100xf32>
    %115 = arith.truncf %114 : vector<200x100xf32> to vector<200x100xbf16>
    %c0_85 = arith.constant 0 : index
    %c0_86 = arith.constant 0 : index
    %116 = vector.load %arg6[%c0_85, %c0_86] : memref<200x128xbf16, #tpu.memory_space<vmem>>, vector<200x128xbf16>
    %cst_87 = arith.constant dense<0.000000e+00> : vector<100x128xf32>
    %117 = tpu.matmul %115, %116, %cst_87 {dimension_numbers = #tpu.dot_dimension_numbers<[0], [0], [1], [1], [0, 1, 1, 1], [], []>} : vector<200x100xbf16>, vector<200x128xbf16>, vector<100x128xf32> -> vector<100x128xf32>
    %c0_88 = arith.constant 0 : index
    %c0_89 = arith.constant 0 : index
    %118 = vector.load %arg7[%c0_88, %c0_89] : memref<1x128xf32, #tpu.memory_space<vmem>>, vector<1x128xf32>
    %119 = vector.broadcast %118 : vector<1x128xf32> to vector<100x128xf32>
    %120 = arith.addf %117, %119 : vector<100x128xf32>
    %cst_90 = arith.constant 0.000000e+00 : f32
    %121 = vector.broadcast %cst_90 : f32 to vector<100x128xf32>
    %122 = arith.maximumf %120, %121 : vector<100x128xf32>
    %123 = arith.truncf %122 : vector<100x128xf32> to vector<100x128xbf16>
    %c0_91 = arith.constant 0 : index
    %c0_92 = arith.constant 0 : index
    %124 = vector.load %arg8[%c0_91, %c0_92] : memref<25x100xbf16, #tpu.memory_space<vmem>>, vector<25x100xbf16>
    %cst_93 = arith.constant dense<0.000000e+00> : vector<25x128xf32>
    %125 = tpu.matmul %124, %123, %cst_93 {dimension_numbers = #tpu.dot_dimension_numbers<[1], [0], [0], [1], [0, 0, 1, 1], [], []>} : vector<25x100xbf16>, vector<100x128xbf16>, vector<25x128xf32> -> vector<25x128xf32>
    %126 = arith.truncf %125 : vector<25x128xf32> to vector<25x128xbf16>
    %c0_94 = arith.constant 0 : index
    %c0_95 = arith.constant 0 : index
    %c0_96 = arith.constant 0 : index
    %127 = vector.load %arg9[%c0_94, %c0_95, %c0_96] : memref<8x25x128xbf16, #tpu.memory_space<vmem>>, vector<1x25x128xbf16>
    %128 = vector.shape_cast %127 : vector<1x25x128xbf16> to vector<25x128xbf16>
    %129 = vector.shape_cast %126 : vector<25x128xbf16> to vector<1x25x128xbf16>
    tpu.vector_store %arg9[%c0_94, %c0_95, %c0_96], %129 {strides = array<i32>} : memref<8x25x128xbf16, #tpu.memory_space<vmem>>, vector<1x25x128xbf16>,
    %130 = vector.extract_strided_slice %14 {offsets = [8, 0], sizes = [8, 100], strides = [1, 1]} : vector<64x100xf32> to vector<8x100xf32>
    %131 = vector.extract_strided_slice %17 {offsets = [8, 0], sizes = [8, 100], strides = [1, 1]} : vector<64x100xf32> to vector<8x100xf32>
    %132 = vector.extract_strided_slice %20 {offsets = [8, 0], sizes = [8, 100], strides = [1, 1]} : vector<64x100xf32> to vector<8x100xf32>
    %133 = vector.extract_strided_slice %23 {offsets = [8, 0], sizes = [8, 100], strides = [1, 1]} : vector<64x100xf32> to vector<8x100xf32>
    %134 = vector.extract_strided_slice %26 {offsets = [8, 0], sizes = [8, 100], strides = [1, 1]} : vector<64x100xf32> to vector<8x100xf32>
    %135 = vector.extract_strided_slice %29 {offsets = [8, 0], sizes = [8, 100], strides = [1, 1]} : vector<64x100xf32> to vector<8x100xf32>
    %136 = vector.extract_strided_slice %32 {offsets = [8, 0], sizes = [8, 100], strides = [1, 1]} : vector<64x100xf32> to vector<8x100xf32>
    %137 = vector.extract_strided_slice %35 {offsets = [8, 0], sizes = [8, 100], strides = [1, 1]} : vector<64x100xf32> to vector<8x100xf32>
    %138 = vector.extract_strided_slice %38 {offsets = [8, 0], sizes = [8, 100], strides = [1, 1]} : vector<64x100xf32> to vector<8x100xf32>
    %139 = vector.extract_strided_slice %41 {offsets = [8, 0], sizes = [8, 100], strides = [1, 1]} : vector<64x100xf32> to vector<8x100xf32>
    %140 = vector.extract_strided_slice %44 {offsets = [8, 0], sizes = [8, 100], strides = [1, 1]} : vector<64x100xf32> to vector<8x100xf32>
    %141 = vector.extract_strided_slice %47 {offsets = [8, 0], sizes = [8, 100], strides = [1, 1]} : vector<64x100xf32> to vector<8x100xf32>
    %142 = vector.extract_strided_slice %50 {offsets = [8, 0], sizes = [8, 100], strides = [1, 1]} : vector<64x100xf32> to vector<8x100xf32>
    %143 = vector.extract_strided_slice %53 {offsets = [8, 0], sizes = [8, 100], strides = [1, 1]} : vector<64x100xf32> to vector<8x100xf32>
    %144 = vector.extract_strided_slice %56 {offsets = [8, 0], sizes = [8, 100], strides = [1, 1]} : vector<64x100xf32> to vector<8x100xf32>
    %145 = vector.extract_strided_slice %59 {offsets = [8, 0], sizes = [8, 100], strides = [1, 1]} : vector<64x100xf32> to vector<8x100xf32>
    %146 = vector.extract_strided_slice %62 {offsets = [8, 0], sizes = [8, 100], strides = [1, 1]} : vector<64x100xf32> to vector<8x100xf32>
    %147 = vector.extract_strided_slice %65 {offsets = [8, 0], sizes = [8, 100], strides = [1, 1]} : vector<64x100xf32> to vector<8x100xf32>
    %148 = vector.extract_strided_slice %68 {offsets = [8, 0], sizes = [8, 100], strides = [1, 1]} : vector<64x100xf32> to vector<8x100xf32>
    %149 = vector.extract_strided_slice %71 {offsets = [8, 0], sizes = [8, 100], strides = [1, 1]} : vector<64x100xf32> to vector<8x100xf32>
    %150 = vector.extract_strided_slice %74 {offsets = [8, 0], sizes = [8, 100], strides = [1, 1]} : vector<64x100xf32> to vector<8x100xf32>
    %151 = vector.extract_strided_slice %77 {offsets = [8, 0], sizes = [8, 100], strides = [1, 1]} : vector<64x100xf32> to vector<8x100xf32>
    %152 = vector.extract_strided_slice %80 {offsets = [8, 0], sizes = [8, 100], strides = [1, 1]} : vector<64x100xf32> to vector<8x100xf32>
    %153 = vector.extract_strided_slice %83 {offsets = [8, 0], sizes = [8, 100], strides = [1, 1]} : vector<64x100xf32> to vector<8x100xf32>
    %154 = vector.extract_strided_slice %86 {offsets = [8, 0], sizes = [8, 100], strides = [1, 1]} : vector<64x100xf32> to vector<8x100xf32>
    %155 = tpu.concatenate %130, %131, %132, %133, %134, %135, %136, %137, %138, %139, %140, %141, %142, %143, %144, %145 in 0 : vector<8x100xf32>, vector<8x100xf32>, vector<8x100xf32>, vector<8x100xf32>, vector<8x100xf32>, vector<8x100xf32>, vector<8x100xf32>, vector<8x100xf32>, vector<8x100xf32>, vector<8x100xf32>, vector<8x100xf32>, vector<8x100xf32>, vector<8x100xf32>, vector<8x100xf32>, vector<8x100xf32>, vector<8x100xf32> -> vector<128x100xf32>
    %156 = tpu.concatenate %146, %147, %148, %149, %150, %151, %152, %153, %154 in 0 : vector<8x100xf32>, vector<8x100xf32>, vector<8x100xf32>, vector<8x100xf32>, vector<8x100xf32>, vector<8x100xf32>, vector<8x100xf32>, vector<8x100xf32>, vector<8x100xf32> -> vector<72x100xf32>
    %157 = tpu.concatenate %155, %156 in 0 : vector<128x100xf32>, vector<72x100xf32> -> vector<200x100xf32>
    %158 = arith.truncf %157 : vector<200x100xf32> to vector<200x100xbf16>
    %c0_97 = arith.constant 0 : index
    %c0_98 = arith.constant 0 : index
    %159 = vector.load %arg6[%c0_97, %c0_98] : memref<200x128xbf16, #tpu.memory_space<vmem>>, vector<200x128xbf16>
    %cst_99 = arith.constant dense<0.000000e+00> : vector<100x128xf32>
    %160 = tpu.matmul %158, %159, %cst_99 {dimension_numbers = #tpu.dot_dimension_numbers<[0], [0], [1], [1], [0, 1, 1, 1], [], []>} : vector<200x100xbf16>, vector<200x128xbf16>, vector<100x128xf32> -> vector<100x128xf32>
    %c0_100 = arith.constant 0 : index
    %c0_101 = arith.constant 0 : index
    %161 = vector.load %arg7[%c0_100, %c0_101] : memref<1x128xf32, #tpu.memory_space<vmem>>, vector<1x128xf32>
    %162 = vector.broadcast %161 : vector<1x128xf32> to vector<100x128xf32>
    %163 = arith.addf %160, %162 : vector<100x128xf32>
    %cst_102 = arith.constant 0.000000e+00 : f32
    %164 = vector.broadcast %cst_102 : f32 to vector<100x128xf32>
    %165 = arith.maximumf %163, %164 : vector<100x128xf32>
    %166 = arith.truncf %165 : vector<100x128xf32> to vector<100x128xbf16>
    %c0_103 = arith.constant 0 : index
    %c0_104 = arith.constant 0 : index
    %167 = vector.load %arg8[%c0_103, %c0_104] : memref<25x100xbf16, #tpu.memory_space<vmem>>, vector<25x100xbf16>
    %cst_105 = arith.constant dense<0.000000e+00> : vector<25x128xf32>
    %168 = tpu.matmul %167, %166, %cst_105 {dimension_numbers = #tpu.dot_dimension_numbers<[1], [0], [0], [1], [0, 0, 1, 1], [], []>} : vector<25x100xbf16>, vector<100x128xbf16>, vector<25x128xf32> -> vector<25x128xf32>
    %169 = arith.truncf %168 : vector<25x128xf32> to vector<25x128xbf16>
    %c1_106 = arith.constant 1 : index
    %c0_107 = arith.constant 0 : index
    %c0_108 = arith.constant 0 : index
    %170 = vector.load %arg9[%c1_106, %c0_107, %c0_108] : memref<8x25x128xbf16, #tpu.memory_space<vmem>>, vector<1x25x128xbf16>
    %171 = vector.shape_cast %170 : vector<1x25x128xbf16> to vector<25x128xbf16>
    %172 = vector.shape_cast %169 : vector<25x128xbf16> to vector<1x25x128xbf16>
    tpu.vector_store %arg9[%c1_106, %c0_107, %c0_108], %172 {strides = array<i32>} : memref<8x25x128xbf16, #tpu.memory_space<vmem>>, vector<1x25x128xbf16>,
    %173 = vector.extract_strided_slice %14 {offsets = [16, 0], sizes = [8, 100], strides = [1, 1]} : vector<64x100xf32> to vector<8x100xf32>
    %174 = vector.extract_strided_slice %17 {offsets = [16, 0], sizes = [8, 100], strides = [1, 1]} : vector<64x100xf32> to vector<8x100xf32>
    %175 = vector.extract_strided_slice %20 {offsets = [16, 0], sizes = [8, 100], strides = [1, 1]} : vector<64x100xf32> to vector<8x100xf32>
    %176 = vector.extract_strided_slice %23 {offsets = [16, 0], sizes = [8, 100], strides = [1, 1]} : vector<64x100xf32> to vector<8x100xf32>
    %177 = vector.extract_strided_slice %26 {offsets = [16, 0], sizes = [8, 100], strides = [1, 1]} : vector<64x100xf32> to vector<8x100xf32>
    %178 = vector.extract_strided_slice %29 {offsets = [16, 0], sizes = [8, 100], strides = [1, 1]} : vector<64x100xf32> to vector<8x100xf32>
    %179 = vector.extract_strided_slice %32 {offsets = [16, 0], sizes = [8, 100], strides = [1, 1]} : vector<64x100xf32> to vector<8x100xf32>
    %180 = vector.extract_strided_slice %35 {offsets = [16, 0], sizes = [8, 100], strides = [1, 1]} : vector<64x100xf32> to vector<8x100xf32>
    %181 = vector.extract_strided_slice %38 {offsets = [16, 0], sizes = [8, 100], strides = [1, 1]} : vector<64x100xf32> to vector<8x100xf32>
    %182 = vector.extract_strided_slice %41 {offsets = [16, 0], sizes = [8, 100], strides = [1, 1]} : vector<64x100xf32> to vector<8x100xf32>
    %183 = vector.extract_strided_slice %44 {offsets = [16, 0], sizes = [8, 100], strides = [1, 1]} : vector<64x100xf32> to vector<8x100xf32>
    %184 = vector.extract_strided_slice %47 {offsets = [16, 0], sizes = [8, 100], strides = [1, 1]} : vector<64x100xf32> to vector<8x100xf32>
    %185 = vector.extract_strided_slice %50 {offsets = [16, 0], sizes = [8, 100], strides = [1, 1]} : vector<64x100xf32> to vector<8x100xf32>
    %186 = vector.extract_strided_slice %53 {offsets = [16, 0], sizes = [8, 100], strides = [1, 1]} : vector<64x100xf32> to vector<8x100xf32>
    %187 = vector.extract_strided_slice %56 {offsets = [16, 0], sizes = [8, 100], strides = [1, 1]} : vector<64x100xf32> to vector<8x100xf32>
    %188 = vector.extract_strided_slice %59 {offsets = [16, 0], sizes = [8, 100], strides = [1, 1]} : vector<64x100xf32> to vector<8x100xf32>
    %189 = vector.extract_strided_slice %62 {offsets = [16, 0], sizes = [8, 100], strides = [1, 1]} : vector<64x100xf32> to vector<8x100xf32>
    %190 = vector.extract_strided_slice %65 {offsets = [16, 0], sizes = [8, 100], strides = [1, 1]} : vector<64x100xf32> to vector<8x100xf32>
    %191 = vector.extract_strided_slice %68 {offsets = [16, 0], sizes = [8, 100], strides = [1, 1]} : vector<64x100xf32> to vector<8x100xf32>
    %192 = vector.extract_strided_slice %71 {offsets = [16, 0], sizes = [8, 100], strides = [1, 1]} : vector<64x100xf32> to vector<8x100xf32>
    %193 = vector.extract_strided_slice %74 {offsets = [16, 0], sizes = [8, 100], strides = [1, 1]} : vector<64x100xf32> to vector<8x100xf32>
    %194 = vector.extract_strided_slice %77 {offsets = [16, 0], sizes = [8, 100], strides = [1, 1]} : vector<64x100xf32> to vector<8x100xf32>
    %195 = vector.extract_strided_slice %80 {offsets = [16, 0], sizes = [8, 100], strides = [1, 1]} : vector<64x100xf32> to vector<8x100xf32>
    %196 = vector.extract_strided_slice %83 {offsets = [16, 0], sizes = [8, 100], strides = [1, 1]} : vector<64x100xf32> to vector<8x100xf32>
    %197 = vector.extract_strided_slice %86 {offsets = [16, 0], sizes = [8, 100], strides = [1, 1]} : vector<64x100xf32> to vector<8x100xf32>
    %198 = tpu.concatenate %173, %174, %175, %176, %177, %178, %179, %180, %181, %182, %183, %184, %185, %186, %187, %188 in 0 : vector<8x100xf32>, vector<8x100xf32>, vector<8x100xf32>, vector<8x100xf32>, vector<8x100xf32>, vector<8x100xf32>, vector<8x100xf32>, vector<8x100xf32>, vector<8x100xf32>, vector<8x100xf32>, vector<8x100xf32>, vector<8x100xf32>, vector<8x100xf32>, vector<8x100xf32>, vector<8x100xf32>, vector<8x100xf32> -> vector<128x100xf32>
    %199 = tpu.concatenate %189, %190, %191, %192, %193, %194, %195, %196, %197 in 0 : vector<8x100xf32>, vector<8x100xf32>, vector<8x100xf32>, vector<8x100xf32>, vector<8x100xf32>, vector<8x100xf32>, vector<8x100xf32>, vector<8x100xf32>, vector<8x100xf32> -> vector<72x100xf32>
    %200 = tpu.concatenate %198, %199 in 0 : vector<128x100xf32>, vector<72x100xf32> -> vector<200x100xf32>
    %201 = arith.truncf %200 : vector<200x100xf32> to vector<200x100xbf16>
    %c0_109 = arith.constant 0 : index
    %c0_110 = arith.constant 0 : index
    %202 = vector.load %arg6[%c0_109, %c0_110] : memref<200x128xbf16, #tpu.memory_space<vmem>>, vector<200x128xbf16>
    %cst_111 = arith.constant dense<0.000000e+00> : vector<100x128xf32>
    %203 = tpu.matmul %201, %202, %cst_111 {dimension_numbers = #tpu.dot_dimension_numbers<[0], [0], [1], [1], [0, 1, 1, 1], [], []>} : vector<200x100xbf16>, vector<200x128xbf16>, vector<100x128xf32> -> vector<100x128xf32>
    %c0_112 = arith.constant 0 : index
    %c0_113 = arith.constant 0 : index
    %204 = vector.load %arg7[%c0_112, %c0_113] : memref<1x128xf32, #tpu.memory_space<vmem>>, vector<1x128xf32>
    %205 = vector.broadcast %204 : vector<1x128xf32> to vector<100x128xf32>
    %206 = arith.addf %203, %205 : vector<100x128xf32>
    %cst_114 = arith.constant 0.000000e+00 : f32
    %207 = vector.broadcast %cst_114 : f32 to vector<100x128xf32>
    %208 = arith.maximumf %206, %207 : vector<100x128xf32>
    %209 = arith.truncf %208 : vector<100x128xf32> to vector<100x128xbf16>
    %c0_115 = arith.constant 0 : index
    %c0_116 = arith.constant 0 : index
    %210 = vector.load %arg8[%c0_115, %c0_116] : memref<25x100xbf16, #tpu.memory_space<vmem>>, vector<25x100xbf16>
    %cst_117 = arith.constant dense<0.000000e+00> : vector<25x128xf32>
    %211 = tpu.matmul %210, %209, %cst_117 {dimension_numbers = #tpu.dot_dimension_numbers<[1], [0], [0], [1], [0, 0, 1, 1], [], []>} : vector<25x100xbf16>, vector<100x128xbf16>, vector<25x128xf32> -> vector<25x128xf32>
    %212 = arith.truncf %211 : vector<25x128xf32> to vector<25x128xbf16>
    %c2_118 = arith.constant 2 : index
    %c0_119 = arith.constant 0 : index
    %c0_120 = arith.constant 0 : index
    %213 = vector.load %arg9[%c2_118, %c0_119, %c0_120] : memref<8x25x128xbf16, #tpu.memory_space<vmem>>, vector<1x25x128xbf16>
    %214 = vector.shape_cast %213 : vector<1x25x128xbf16> to vector<25x128xbf16>
    %215 = vector.shape_cast %212 : vector<25x128xbf16> to vector<1x25x128xbf16>
    tpu.vector_store %arg9[%c2_118, %c0_119, %c0_120], %215 {strides = array<i32>} : memref<8x25x128xbf16, #tpu.memory_space<vmem>>, vector<1x25x128xbf16>,
    %216 = vector.extract_strided_slice %14 {offsets = [24, 0], sizes = [8, 100], strides = [1, 1]} : vector<64x100xf32> to vector<8x100xf32>
    %217 = vector.extract_strided_slice %17 {offsets = [24, 0], sizes = [8, 100], strides = [1, 1]} : vector<64x100xf32> to vector<8x100xf32>
    %218 = vector.extract_strided_slice %20 {offsets = [24, 0], sizes = [8, 100], strides = [1, 1]} : vector<64x100xf32> to vector<8x100xf32>
    %219 = vector.extract_strided_slice %23 {offsets = [24, 0], sizes = [8, 100], strides = [1, 1]} : vector<64x100xf32> to vector<8x100xf32>
    %220 = vector.extract_strided_slice %26 {offsets = [24, 0], sizes = [8, 100], strides = [1, 1]} : vector<64x100xf32> to vector<8x100xf32>
    %221 = vector.extract_strided_slice %29 {offsets = [24, 0], sizes = [8, 100], strides = [1, 1]} : vector<64x100xf32> to vector<8x100xf32>
    %222 = vector.extract_strided_slice %32 {offsets = [24, 0], sizes = [8, 100], strides = [1, 1]} : vector<64x100xf32> to vector<8x100xf32>
    %223 = vector.extract_strided_slice %35 {offsets = [24, 0], sizes = [8, 100], strides = [1, 1]} : vector<64x100xf32> to vector<8x100xf32>
    %224 = vector.extract_strided_slice %38 {offsets = [24, 0], sizes = [8, 100], strides = [1, 1]} : vector<64x100xf32> to vector<8x100xf32>
    %225 = vector.extract_strided_slice %41 {offsets = [24, 0], sizes = [8, 100], strides = [1, 1]} : vector<64x100xf32> to vector<8x100xf32>
    %226 = vector.extract_strided_slice %44 {offsets = [24, 0], sizes = [8, 100], strides = [1, 1]} : vector<64x100xf32> to vector<8x100xf32>
    %227 = vector.extract_strided_slice %47 {offsets = [24, 0], sizes = [8, 100], strides = [1, 1]} : vector<64x100xf32> to vector<8x100xf32>
    %228 = vector.extract_strided_slice %50 {offsets = [24, 0], sizes = [8, 100], strides = [1, 1]} : vector<64x100xf32> to vector<8x100xf32>
    %229 = vector.extract_strided_slice %53 {offsets = [24, 0], sizes = [8, 100], strides = [1, 1]} : vector<64x100xf32> to vector<8x100xf32>
    %230 = vector.extract_strided_slice %56 {offsets = [24, 0], sizes = [8, 100], strides = [1, 1]} : vector<64x100xf32> to vector<8x100xf32>
    %231 = vector.extract_strided_slice %59 {offsets = [24, 0], sizes = [8, 100], strides = [1, 1]} : vector<64x100xf32> to vector<8x100xf32>
    %232 = vector.extract_strided_slice %62 {offsets = [24, 0], sizes = [8, 100], strides = [1, 1]} : vector<64x100xf32> to vector<8x100xf32>
    %233 = vector.extract_strided_slice %65 {offsets = [24, 0], sizes = [8, 100], strides = [1, 1]} : vector<64x100xf32> to vector<8x100xf32>
    %234 = vector.extract_strided_slice %68 {offsets = [24, 0], sizes = [8, 100], strides = [1, 1]} : vector<64x100xf32> to vector<8x100xf32>
    %235 = vector.extract_strided_slice %71 {offsets = [24, 0], sizes = [8, 100], strides = [1, 1]} : vector<64x100xf32> to vector<8x100xf32>
    %236 = vector.extract_strided_slice %74 {offsets = [24, 0], sizes = [8, 100], strides = [1, 1]} : vector<64x100xf32> to vector<8x100xf32>
    %237 = vector.extract_strided_slice %77 {offsets = [24, 0], sizes = [8, 100], strides = [1, 1]} : vector<64x100xf32> to vector<8x100xf32>
    %238 = vector.extract_strided_slice %80 {offsets = [24, 0], sizes = [8, 100], strides = [1, 1]} : vector<64x100xf32> to vector<8x100xf32>
    %239 = vector.extract_strided_slice %83 {offsets = [24, 0], sizes = [8, 100], strides = [1, 1]} : vector<64x100xf32> to vector<8x100xf32>
    %240 = vector.extract_strided_slice %86 {offsets = [24, 0], sizes = [8, 100], strides = [1, 1]} : vector<64x100xf32> to vector<8x100xf32>
    %241 = tpu.concatenate %216, %217, %218, %219, %220, %221, %222, %223, %224, %225, %226, %227, %228, %229, %230, %231 in 0 : vector<8x100xf32>, vector<8x100xf32>, vector<8x100xf32>, vector<8x100xf32>, vector<8x100xf32>, vector<8x100xf32>, vector<8x100xf32>, vector<8x100xf32>, vector<8x100xf32>, vector<8x100xf32>, vector<8x100xf32>, vector<8x100xf32>, vector<8x100xf32>, vector<8x100xf32>, vector<8x100xf32>, vector<8x100xf32> -> vector<128x100xf32>
    %242 = tpu.concatenate %232, %233, %234, %235, %236, %237, %238, %239, %240 in 0 : vector<8x100xf32>, vector<8x100xf32>, vector<8x100xf32>, vector<8x100xf32>, vector<8x100xf32>, vector<8x100xf32>, vector<8x100xf32>, vector<8x100xf32>, vector<8x100xf32> -> vector<72x100xf32>
    %243 = tpu.concatenate %241, %242 in 0 : vector<128x100xf32>, vector<72x100xf32> -> vector<200x100xf32>
    %244 = arith.truncf %243 : vector<200x100xf32> to vector<200x100xbf16>
    %c0_121 = arith.constant 0 : index
    %c0_122 = arith.constant 0 : index
    %245 = vector.load %arg6[%c0_121, %c0_122] : memref<200x128xbf16, #tpu.memory_space<vmem>>, vector<200x128xbf16>
    %cst_123 = arith.constant dense<0.000000e+00> : vector<100x128xf32>
    %246 = tpu.matmul %244, %245, %cst_123 {dimension_numbers = #tpu.dot_dimension_numbers<[0], [0], [1], [1], [0, 1, 1, 1], [], []>} : vector<200x100xbf16>, vector<200x128xbf16>, vector<100x128xf32> -> vector<100x128xf32>
    %c0_124 = arith.constant 0 : index
    %c0_125 = arith.constant 0 : index
    %247 = vector.load %arg7[%c0_124, %c0_125] : memref<1x128xf32, #tpu.memory_space<vmem>>, vector<1x128xf32>
    %248 = vector.broadcast %247 : vector<1x128xf32> to vector<100x128xf32>
    %249 = arith.addf %246, %248 : vector<100x128xf32>
    %cst_126 = arith.constant 0.000000e+00 : f32
    %250 = vector.broadcast %cst_126 : f32 to vector<100x128xf32>
    %251 = arith.maximumf %249, %250 : vector<100x128xf32>
    %252 = arith.truncf %251 : vector<100x128xf32> to vector<100x128xbf16>
    %c0_127 = arith.constant 0 : index
    %c0_128 = arith.constant 0 : index
    %253 = vector.load %arg8[%c0_127, %c0_128] : memref<25x100xbf16, #tpu.memory_space<vmem>>, vector<25x100xbf16>
    %cst_129 = arith.constant dense<0.000000e+00> : vector<25x128xf32>
    %254 = tpu.matmul %253, %252, %cst_129 {dimension_numbers = #tpu.dot_dimension_numbers<[1], [0], [0], [1], [0, 0, 1, 1], [], []>} : vector<25x100xbf16>, vector<100x128xbf16>, vector<25x128xf32> -> vector<25x128xf32>
    %255 = arith.truncf %254 : vector<25x128xf32> to vector<25x128xbf16>
    %c3_130 = arith.constant 3 : index
    %c0_131 = arith.constant 0 : index
    %c0_132 = arith.constant 0 : index
    %256 = vector.load %arg9[%c3_130, %c0_131, %c0_132] : memref<8x25x128xbf16, #tpu.memory_space<vmem>>, vector<1x25x128xbf16>
    %257 = vector.shape_cast %256 : vector<1x25x128xbf16> to vector<25x128xbf16>
    %258 = vector.shape_cast %255 : vector<25x128xbf16> to vector<1x25x128xbf16>
    tpu.vector_store %arg9[%c3_130, %c0_131, %c0_132], %258 {strides = array<i32>} : memref<8x25x128xbf16, #tpu.memory_space<vmem>>, vector<1x25x128xbf16>,
    %259 = vector.extract_strided_slice %14 {offsets = [32, 0], sizes = [8, 100], strides = [1, 1]} : vector<64x100xf32> to vector<8x100xf32>
    %260 = vector.extract_strided_slice %17 {offsets = [32, 0], sizes = [8, 100], strides = [1, 1]} : vector<64x100xf32> to vector<8x100xf32>
    %261 = vector.extract_strided_slice %20 {offsets = [32, 0], sizes = [8, 100], strides = [1, 1]} : vector<64x100xf32> to vector<8x100xf32>
    %262 = vector.extract_strided_slice %23 {offsets = [32, 0], sizes = [8, 100], strides = [1, 1]} : vector<64x100xf32> to vector<8x100xf32>
    %263 = vector.extract_strided_slice %26 {offsets = [32, 0], sizes = [8, 100], strides = [1, 1]} : vector<64x100xf32> to vector<8x100xf32>
    %264 = vector.extract_strided_slice %29 {offsets = [32, 0], sizes = [8, 100], strides = [1, 1]} : vector<64x100xf32> to vector<8x100xf32>
    %265 = vector.extract_strided_slice %32 {offsets = [32, 0], sizes = [8, 100], strides = [1, 1]} : vector<64x100xf32> to vector<8x100xf32>
    %266 = vector.extract_strided_slice %35 {offsets = [32, 0], sizes = [8, 100], strides = [1, 1]} : vector<64x100xf32> to vector<8x100xf32>
    %267 = vector.extract_strided_slice %38 {offsets = [32, 0], sizes = [8, 100], strides = [1, 1]} : vector<64x100xf32> to vector<8x100xf32>
    %268 = vector.extract_strided_slice %41 {offsets = [32, 0], sizes = [8, 100], strides = [1, 1]} : vector<64x100xf32> to vector<8x100xf32>
    %269 = vector.extract_strided_slice %44 {offsets = [32, 0], sizes = [8, 100], strides = [1, 1]} : vector<64x100xf32> to vector<8x100xf32>
    %270 = vector.extract_strided_slice %47 {offsets = [32, 0], sizes = [8, 100], strides = [1, 1]} : vector<64x100xf32> to vector<8x100xf32>
    %271 = vector.extract_strided_slice %50 {offsets = [32, 0], sizes = [8, 100], strides = [1, 1]} : vector<64x100xf32> to vector<8x100xf32>
    %272 = vector.extract_strided_slice %53 {offsets = [32, 0], sizes = [8, 100], strides = [1, 1]} : vector<64x100xf32> to vector<8x100xf32>
    %273 = vector.extract_strided_slice %56 {offsets = [32, 0], sizes = [8, 100], strides = [1, 1]} : vector<64x100xf32> to vector<8x100xf32>
    %274 = vector.extract_strided_slice %59 {offsets = [32, 0], sizes = [8, 100], strides = [1, 1]} : vector<64x100xf32> to vector<8x100xf32>
    %275 = vector.extract_strided_slice %62 {offsets = [32, 0], sizes = [8, 100], strides = [1, 1]} : vector<64x100xf32> to vector<8x100xf32>
    %276 = vector.extract_strided_slice %65 {offsets = [32, 0], sizes = [8, 100], strides = [1, 1]} : vector<64x100xf32> to vector<8x100xf32>
    %277 = vector.extract_strided_slice %68 {offsets = [32, 0], sizes = [8, 100], strides = [1, 1]} : vector<64x100xf32> to vector<8x100xf32>
    %278 = vector.extract_strided_slice %71 {offsets = [32, 0], sizes = [8, 100], strides = [1, 1]} : vector<64x100xf32> to vector<8x100xf32>
    %279 = vector.extract_strided_slice %74 {offsets = [32, 0], sizes = [8, 100], strides = [1, 1]} : vector<64x100xf32> to vector<8x100xf32>
    %280 = vector.extract_strided_slice %77 {offsets = [32, 0], sizes = [8, 100], strides = [1, 1]} : vector<64x100xf32> to vector<8x100xf32>
    %281 = vector.extract_strided_slice %80 {offsets = [32, 0], sizes = [8, 100], strides = [1, 1]} : vector<64x100xf32> to vector<8x100xf32>
    %282 = vector.extract_strided_slice %83 {offsets = [32, 0], sizes = [8, 100], strides = [1, 1]} : vector<64x100xf32> to vector<8x100xf32>
    %283 = vector.extract_strided_slice %86 {offsets = [32, 0], sizes = [8, 100], strides = [1, 1]} : vector<64x100xf32> to vector<8x100xf32>
    %284 = tpu.concatenate %259, %260, %261, %262, %263, %264, %265, %266, %267, %268, %269, %270, %271, %272, %273, %274 in 0 : vector<8x100xf32>, vector<8x100xf32>, vector<8x100xf32>, vector<8x100xf32>, vector<8x100xf32>, vector<8x100xf32>, vector<8x100xf32>, vector<8x100xf32>, vector<8x100xf32>, vector<8x100xf32>, vector<8x100xf32>, vector<8x100xf32>, vector<8x100xf32>, vector<8x100xf32>, vector<8x100xf32>, vector<8x100xf32> -> vector<128x100xf32>
    %285 = tpu.concatenate %275, %276, %277, %278, %279, %280, %281, %282, %283 in 0 : vector<8x100xf32>, vector<8x100xf32>, vector<8x100xf32>, vector<8x100xf32>, vector<8x100xf32>, vector<8x100xf32>, vector<8x100xf32>, vector<8x100xf32>, vector<8x100xf32> -> vector<72x100xf32>
    %286 = tpu.concatenate %284, %285 in 0 : vector<128x100xf32>, vector<72x100xf32> -> vector<200x100xf32>
    %287 = arith.truncf %286 : vector<200x100xf32> to vector<200x100xbf16>
    %c0_133 = arith.constant 0 : index
    %c0_134 = arith.constant 0 : index
    %288 = vector.load %arg6[%c0_133, %c0_134] : memref<200x128xbf16, #tpu.memory_space<vmem>>, vector<200x128xbf16>
    %cst_135 = arith.constant dense<0.000000e+00> : vector<100x128xf32>
    %289 = tpu.matmul %287, %288, %cst_135 {dimension_numbers = #tpu.dot_dimension_numbers<[0], [0], [1], [1], [0, 1, 1, 1], [], []>} : vector<200x100xbf16>, vector<200x128xbf16>, vector<100x128xf32> -> vector<100x128xf32>
    %c0_136 = arith.constant 0 : index
    %c0_137 = arith.constant 0 : index
    %290 = vector.load %arg7[%c0_136, %c0_137] : memref<1x128xf32, #tpu.memory_space<vmem>>, vector<1x128xf32>
    %291 = vector.broadcast %290 : vector<1x128xf32> to vector<100x128xf32>
    %292 = arith.addf %289, %291 : vector<100x128xf32>
    %cst_138 = arith.constant 0.000000e+00 : f32
    %293 = vector.broadcast %cst_138 : f32 to vector<100x128xf32>
    %294 = arith.maximumf %292, %293 : vector<100x128xf32>
    %295 = arith.truncf %294 : vector<100x128xf32> to vector<100x128xbf16>
    %c0_139 = arith.constant 0 : index
    %c0_140 = arith.constant 0 : index
    %296 = vector.load %arg8[%c0_139, %c0_140] : memref<25x100xbf16, #tpu.memory_space<vmem>>, vector<25x100xbf16>
    %cst_141 = arith.constant dense<0.000000e+00> : vector<25x128xf32>
    %297 = tpu.matmul %296, %295, %cst_141 {dimension_numbers = #tpu.dot_dimension_numbers<[1], [0], [0], [1], [0, 0, 1, 1], [], []>} : vector<25x100xbf16>, vector<100x128xbf16>, vector<25x128xf32> -> vector<25x128xf32>
    %298 = arith.truncf %297 : vector<25x128xf32> to vector<25x128xbf16>
    %c4_142 = arith.constant 4 : index
    %c0_143 = arith.constant 0 : index
    %c0_144 = arith.constant 0 : index
    %299 = vector.load %arg9[%c4_142, %c0_143, %c0_144] : memref<8x25x128xbf16, #tpu.memory_space<vmem>>, vector<1x25x128xbf16>
    %300 = vector.shape_cast %299 : vector<1x25x128xbf16> to vector<25x128xbf16>
    %301 = vector.shape_cast %298 : vector<25x128xbf16> to vector<1x25x128xbf16>
    tpu.vector_store %arg9[%c4_142, %c0_143, %c0_144], %301 {strides = array<i32>} : memref<8x25x128xbf16, #tpu.memory_space<vmem>>, vector<1x25x128xbf16>,
    %302 = vector.extract_strided_slice %14 {offsets = [40, 0], sizes = [8, 100], strides = [1, 1]} : vector<64x100xf32> to vector<8x100xf32>
    %303 = vector.extract_strided_slice %17 {offsets = [40, 0], sizes = [8, 100], strides = [1, 1]} : vector<64x100xf32> to vector<8x100xf32>
    %304 = vector.extract_strided_slice %20 {offsets = [40, 0], sizes = [8, 100], strides = [1, 1]} : vector<64x100xf32> to vector<8x100xf32>
    %305 = vector.extract_strided_slice %23 {offsets = [40, 0], sizes = [8, 100], strides = [1, 1]} : vector<64x100xf32> to vector<8x100xf32>
    %306 = vector.extract_strided_slice %26 {offsets = [40, 0], sizes = [8, 100], strides = [1, 1]} : vector<64x100xf32> to vector<8x100xf32>
    %307 = vector.extract_strided_slice %29 {offsets = [40, 0], sizes = [8, 100], strides = [1, 1]} : vector<64x100xf32> to vector<8x100xf32>
    %308 = vector.extract_strided_slice %32 {offsets = [40, 0], sizes = [8, 100], strides = [1, 1]} : vector<64x100xf32> to vector<8x100xf32>
    %309 = vector.extract_strided_slice %35 {offsets = [40, 0], sizes = [8, 100], strides = [1, 1]} : vector<64x100xf32> to vector<8x100xf32>
    %310 = vector.extract_strided_slice %38 {offsets = [40, 0], sizes = [8, 100], strides = [1, 1]} : vector<64x100xf32> to vector<8x100xf32>
    %311 = vector.extract_strided_slice %41 {offsets = [40, 0], sizes = [8, 100], strides = [1, 1]} : vector<64x100xf32> to vector<8x100xf32>
    %312 = vector.extract_strided_slice %44 {offsets = [40, 0], sizes = [8, 100], strides = [1, 1]} : vector<64x100xf32> to vector<8x100xf32>
    %313 = vector.extract_strided_slice %47 {offsets = [40, 0], sizes = [8, 100], strides = [1, 1]} : vector<64x100xf32> to vector<8x100xf32>
    %314 = vector.extract_strided_slice %50 {offsets = [40, 0], sizes = [8, 100], strides = [1, 1]} : vector<64x100xf32> to vector<8x100xf32>
    %315 = vector.extract_strided_slice %53 {offsets = [40, 0], sizes = [8, 100], strides = [1, 1]} : vector<64x100xf32> to vector<8x100xf32>
    %316 = vector.extract_strided_slice %56 {offsets = [40, 0], sizes = [8, 100], strides = [1, 1]} : vector<64x100xf32> to vector<8x100xf32>
    %317 = vector.extract_strided_slice %59 {offsets = [40, 0], sizes = [8, 100], strides = [1, 1]} : vector<64x100xf32> to vector<8x100xf32>
    %318 = vector.extract_strided_slice %62 {offsets = [40, 0], sizes = [8, 100], strides = [1, 1]} : vector<64x100xf32> to vector<8x100xf32>
    %319 = vector.extract_strided_slice %65 {offsets = [40, 0], sizes = [8, 100], strides = [1, 1]} : vector<64x100xf32> to vector<8x100xf32>
    %320 = vector.extract_strided_slice %68 {offsets = [40, 0], sizes = [8, 100], strides = [1, 1]} : vector<64x100xf32> to vector<8x100xf32>
    %321 = vector.extract_strided_slice %71 {offsets = [40, 0], sizes = [8, 100], strides = [1, 1]} : vector<64x100xf32> to vector<8x100xf32>
    %322 = vector.extract_strided_slice %74 {offsets = [40, 0], sizes = [8, 100], strides = [1, 1]} : vector<64x100xf32> to vector<8x100xf32>
    %323 = vector.extract_strided_slice %77 {offsets = [40, 0], sizes = [8, 100], strides = [1, 1]} : vector<64x100xf32> to vector<8x100xf32>
    %324 = vector.extract_strided_slice %80 {offsets = [40, 0], sizes = [8, 100], strides = [1, 1]} : vector<64x100xf32> to vector<8x100xf32>
    %325 = vector.extract_strided_slice %83 {offsets = [40, 0], sizes = [8, 100], strides = [1, 1]} : vector<64x100xf32> to vector<8x100xf32>
    %326 = vector.extract_strided_slice %86 {offsets = [40, 0], sizes = [8, 100], strides = [1, 1]} : vector<64x100xf32> to vector<8x100xf32>
    %327 = tpu.concatenate %302, %303, %304, %305, %306, %307, %308, %309, %310, %311, %312, %313, %314, %315, %316, %317 in 0 : vector<8x100xf32>, vector<8x100xf32>, vector<8x100xf32>, vector<8x100xf32>, vector<8x100xf32>, vector<8x100xf32>, vector<8x100xf32>, vector<8x100xf32>, vector<8x100xf32>, vector<8x100xf32>, vector<8x100xf32>, vector<8x100xf32>, vector<8x100xf32>, vector<8x100xf32>, vector<8x100xf32>, vector<8x100xf32> -> vector<128x100xf32>
    %328 = tpu.concatenate %318, %319, %320, %321, %322, %323, %324, %325, %326 in 0 : vector<8x100xf32>, vector<8x100xf32>, vector<8x100xf32>, vector<8x100xf32>, vector<8x100xf32>, vector<8x100xf32>, vector<8x100xf32>, vector<8x100xf32>, vector<8x100xf32> -> vector<72x100xf32>
    %329 = tpu.concatenate %327, %328 in 0 : vector<128x100xf32>, vector<72x100xf32> -> vector<200x100xf32>
    %330 = arith.truncf %329 : vector<200x100xf32> to vector<200x100xbf16>
    %c0_145 = arith.constant 0 : index
    %c0_146 = arith.constant 0 : index
    %331 = vector.load %arg6[%c0_145, %c0_146] : memref<200x128xbf16, #tpu.memory_space<vmem>>, vector<200x128xbf16>
    %cst_147 = arith.constant dense<0.000000e+00> : vector<100x128xf32>
    %332 = tpu.matmul %330, %331, %cst_147 {dimension_numbers = #tpu.dot_dimension_numbers<[0], [0], [1], [1], [0, 1, 1, 1], [], []>} : vector<200x100xbf16>, vector<200x128xbf16>, vector<100x128xf32> -> vector<100x128xf32>
    %c0_148 = arith.constant 0 : index
    %c0_149 = arith.constant 0 : index
    %333 = vector.load %arg7[%c0_148, %c0_149] : memref<1x128xf32, #tpu.memory_space<vmem>>, vector<1x128xf32>
    %334 = vector.broadcast %333 : vector<1x128xf32> to vector<100x128xf32>
    %335 = arith.addf %332, %334 : vector<100x128xf32>
    %cst_150 = arith.constant 0.000000e+00 : f32
    %336 = vector.broadcast %cst_150 : f32 to vector<100x128xf32>
    %337 = arith.maximumf %335, %336 : vector<100x128xf32>
    %338 = arith.truncf %337 : vector<100x128xf32> to vector<100x128xbf16>
    %c0_151 = arith.constant 0 : index
    %c0_152 = arith.constant 0 : index
    %339 = vector.load %arg8[%c0_151, %c0_152] : memref<25x100xbf16, #tpu.memory_space<vmem>>, vector<25x100xbf16>
    %cst_153 = arith.constant dense<0.000000e+00> : vector<25x128xf32>
    %340 = tpu.matmul %339, %338, %cst_153 {dimension_numbers = #tpu.dot_dimension_numbers<[1], [0], [0], [1], [0, 0, 1, 1], [], []>} : vector<25x100xbf16>, vector<100x128xbf16>, vector<25x128xf32> -> vector<25x128xf32>
    %341 = arith.truncf %340 : vector<25x128xf32> to vector<25x128xbf16>
    %c5_154 = arith.constant 5 : index
    %c0_155 = arith.constant 0 : index
    %c0_156 = arith.constant 0 : index
    %342 = vector.load %arg9[%c5_154, %c0_155, %c0_156] : memref<8x25x128xbf16, #tpu.memory_space<vmem>>, vector<1x25x128xbf16>
    %343 = vector.shape_cast %342 : vector<1x25x128xbf16> to vector<25x128xbf16>
    %344 = vector.shape_cast %341 : vector<25x128xbf16> to vector<1x25x128xbf16>
    tpu.vector_store %arg9[%c5_154, %c0_155, %c0_156], %344 {strides = array<i32>} : memref<8x25x128xbf16, #tpu.memory_space<vmem>>, vector<1x25x128xbf16>,
    %345 = vector.extract_strided_slice %14 {offsets = [48, 0], sizes = [8, 100], strides = [1, 1]} : vector<64x100xf32> to vector<8x100xf32>
    %346 = vector.extract_strided_slice %17 {offsets = [48, 0], sizes = [8, 100], strides = [1, 1]} : vector<64x100xf32> to vector<8x100xf32>
    %347 = vector.extract_strided_slice %20 {offsets = [48, 0], sizes = [8, 100], strides = [1, 1]} : vector<64x100xf32> to vector<8x100xf32>
    %348 = vector.extract_strided_slice %23 {offsets = [48, 0], sizes = [8, 100], strides = [1, 1]} : vector<64x100xf32> to vector<8x100xf32>
    %349 = vector.extract_strided_slice %26 {offsets = [48, 0], sizes = [8, 100], strides = [1, 1]} : vector<64x100xf32> to vector<8x100xf32>
    %350 = vector.extract_strided_slice %29 {offsets = [48, 0], sizes = [8, 100], strides = [1, 1]} : vector<64x100xf32> to vector<8x100xf32>
    %351 = vector.extract_strided_slice %32 {offsets = [48, 0], sizes = [8, 100], strides = [1, 1]} : vector<64x100xf32> to vector<8x100xf32>
    %352 = vector.extract_strided_slice %35 {offsets = [48, 0], sizes = [8, 100], strides = [1, 1]} : vector<64x100xf32> to vector<8x100xf32>
    %353 = vector.extract_strided_slice %38 {offsets = [48, 0], sizes = [8, 100], strides = [1, 1]} : vector<64x100xf32> to vector<8x100xf32>
    %354 = vector.extract_strided_slice %41 {offsets = [48, 0], sizes = [8, 100], strides = [1, 1]} : vector<64x100xf32> to vector<8x100xf32>
    %355 = vector.extract_strided_slice %44 {offsets = [48, 0], sizes = [8, 100], strides = [1, 1]} : vector<64x100xf32> to vector<8x100xf32>
    %356 = vector.extract_strided_slice %47 {offsets = [48, 0], sizes = [8, 100], strides = [1, 1]} : vector<64x100xf32> to vector<8x100xf32>
    %357 = vector.extract_strided_slice %50 {offsets = [48, 0], sizes = [8, 100], strides = [1, 1]} : vector<64x100xf32> to vector<8x100xf32>
    %358 = vector.extract_strided_slice %53 {offsets = [48, 0], sizes = [8, 100], strides = [1, 1]} : vector<64x100xf32> to vector<8x100xf32>
    %359 = vector.extract_strided_slice %56 {offsets = [48, 0], sizes = [8, 100], strides = [1, 1]} : vector<64x100xf32> to vector<8x100xf32>
    %360 = vector.extract_strided_slice %59 {offsets = [48, 0], sizes = [8, 100], strides = [1, 1]} : vector<64x100xf32> to vector<8x100xf32>
    %361 = vector.extract_strided_slice %62 {offsets = [48, 0], sizes = [8, 100], strides = [1, 1]} : vector<64x100xf32> to vector<8x100xf32>
    %362 = vector.extract_strided_slice %65 {offsets = [48, 0], sizes = [8, 100], strides = [1, 1]} : vector<64x100xf32> to vector<8x100xf32>
    %363 = vector.extract_strided_slice %68 {offsets = [48, 0], sizes = [8, 100], strides = [1, 1]} : vector<64x100xf32> to vector<8x100xf32>
    %364 = vector.extract_strided_slice %71 {offsets = [48, 0], sizes = [8, 100], strides = [1, 1]} : vector<64x100xf32> to vector<8x100xf32>
    %365 = vector.extract_strided_slice %74 {offsets = [48, 0], sizes = [8, 100], strides = [1, 1]} : vector<64x100xf32> to vector<8x100xf32>
    %366 = vector.extract_strided_slice %77 {offsets = [48, 0], sizes = [8, 100], strides = [1, 1]} : vector<64x100xf32> to vector<8x100xf32>
    %367 = vector.extract_strided_slice %80 {offsets = [48, 0], sizes = [8, 100], strides = [1, 1]} : vector<64x100xf32> to vector<8x100xf32>
    %368 = vector.extract_strided_slice %83 {offsets = [48, 0], sizes = [8, 100], strides = [1, 1]} : vector<64x100xf32> to vector<8x100xf32>
    %369 = vector.extract_strided_slice %86 {offsets = [48, 0], sizes = [8, 100], strides = [1, 1]} : vector<64x100xf32> to vector<8x100xf32>
    %370 = tpu.concatenate %345, %346, %347, %348, %349, %350, %351, %352, %353, %354, %355, %356, %357, %358, %359, %360 in 0 : vector<8x100xf32>, vector<8x100xf32>, vector<8x100xf32>, vector<8x100xf32>, vector<8x100xf32>, vector<8x100xf32>, vector<8x100xf32>, vector<8x100xf32>, vector<8x100xf32>, vector<8x100xf32>, vector<8x100xf32>, vector<8x100xf32>, vector<8x100xf32>, vector<8x100xf32>, vector<8x100xf32>, vector<8x100xf32> -> vector<128x100xf32>
    %371 = tpu.concatenate %361, %362, %363, %364, %365, %366, %367, %368, %369 in 0 : vector<8x100xf32>, vector<8x100xf32>, vector<8x100xf32>, vector<8x100xf32>, vector<8x100xf32>, vector<8x100xf32>, vector<8x100xf32>, vector<8x100xf32>, vector<8x100xf32> -> vector<72x100xf32>
    %372 = tpu.concatenate %370, %371 in 0 : vector<128x100xf32>, vector<72x100xf32> -> vector<200x100xf32>
    %373 = arith.truncf %372 : vector<200x100xf32> to vector<200x100xbf16>
    %c0_157 = arith.constant 0 : index
    %c0_158 = arith.constant 0 : index
    %374 = vector.load %arg6[%c0_157, %c0_158] : memref<200x128xbf16, #tpu.memory_space<vmem>>, vector<200x128xbf16>
    %cst_159 = arith.constant dense<0.000000e+00> : vector<100x128xf32>
    %375 = tpu.matmul %373, %374, %cst_159 {dimension_numbers = #tpu.dot_dimension_numbers<[0], [0], [1], [1], [0, 1, 1, 1], [], []>} : vector<200x100xbf16>, vector<200x128xbf16>, vector<100x128xf32> -> vector<100x128xf32>
    %c0_160 = arith.constant 0 : index
    %c0_161 = arith.constant 0 : index
    %376 = vector.load %arg7[%c0_160, %c0_161] : memref<1x128xf32, #tpu.memory_space<vmem>>, vector<1x128xf32>
    %377 = vector.broadcast %376 : vector<1x128xf32> to vector<100x128xf32>
    %378 = arith.addf %375, %377 : vector<100x128xf32>
    %cst_162 = arith.constant 0.000000e+00 : f32
    %379 = vector.broadcast %cst_162 : f32 to vector<100x128xf32>
    %380 = arith.maximumf %378, %379 : vector<100x128xf32>
    %381 = arith.truncf %380 : vector<100x128xf32> to vector<100x128xbf16>
    %c0_163 = arith.constant 0 : index
    %c0_164 = arith.constant 0 : index
    %382 = vector.load %arg8[%c0_163, %c0_164] : memref<25x100xbf16, #tpu.memory_space<vmem>>, vector<25x100xbf16>
    %cst_165 = arith.constant dense<0.000000e+00> : vector<25x128xf32>
    %383 = tpu.matmul %382, %381, %cst_165 {dimension_numbers = #tpu.dot_dimension_numbers<[1], [0], [0], [1], [0, 0, 1, 1], [], []>} : vector<25x100xbf16>, vector<100x128xbf16>, vector<25x128xf32> -> vector<25x128xf32>
    %384 = arith.truncf %383 : vector<25x128xf32> to vector<25x128xbf16>
    %c6_166 = arith.constant 6 : index
    %c0_167 = arith.constant 0 : index
    %c0_168 = arith.constant 0 : index
    %385 = vector.load %arg9[%c6_166, %c0_167, %c0_168] : memref<8x25x128xbf16, #tpu.memory_space<vmem>>, vector<1x25x128xbf16>
    %386 = vector.shape_cast %385 : vector<1x25x128xbf16> to vector<25x128xbf16>
    %387 = vector.shape_cast %384 : vector<25x128xbf16> to vector<1x25x128xbf16>
    tpu.vector_store %arg9[%c6_166, %c0_167, %c0_168], %387 {strides = array<i32>} : memref<8x25x128xbf16, #tpu.memory_space<vmem>>, vector<1x25x128xbf16>,
    %388 = vector.extract_strided_slice %14 {offsets = [56, 0], sizes = [8, 100], strides = [1, 1]} : vector<64x100xf32> to vector<8x100xf32>
    %389 = vector.extract_strided_slice %17 {offsets = [56, 0], sizes = [8, 100], strides = [1, 1]} : vector<64x100xf32> to vector<8x100xf32>
    %390 = vector.extract_strided_slice %20 {offsets = [56, 0], sizes = [8, 100], strides = [1, 1]} : vector<64x100xf32> to vector<8x100xf32>
    %391 = vector.extract_strided_slice %23 {offsets = [56, 0], sizes = [8, 100], strides = [1, 1]} : vector<64x100xf32> to vector<8x100xf32>
    %392 = vector.extract_strided_slice %26 {offsets = [56, 0], sizes = [8, 100], strides = [1, 1]} : vector<64x100xf32> to vector<8x100xf32>
    %393 = vector.extract_strided_slice %29 {offsets = [56, 0], sizes = [8, 100], strides = [1, 1]} : vector<64x100xf32> to vector<8x100xf32>
    %394 = vector.extract_strided_slice %32 {offsets = [56, 0], sizes = [8, 100], strides = [1, 1]} : vector<64x100xf32> to vector<8x100xf32>
    %395 = vector.extract_strided_slice %35 {offsets = [56, 0], sizes = [8, 100], strides = [1, 1]} : vector<64x100xf32> to vector<8x100xf32>
    %396 = vector.extract_strided_slice %38 {offsets = [56, 0], sizes = [8, 100], strides = [1, 1]} : vector<64x100xf32> to vector<8x100xf32>
    %397 = vector.extract_strided_slice %41 {offsets = [56, 0], sizes = [8, 100], strides = [1, 1]} : vector<64x100xf32> to vector<8x100xf32>
    %398 = vector.extract_strided_slice %44 {offsets = [56, 0], sizes = [8, 100], strides = [1, 1]} : vector<64x100xf32> to vector<8x100xf32>
    %399 = vector.extract_strided_slice %47 {offsets = [56, 0], sizes = [8, 100], strides = [1, 1]} : vector<64x100xf32> to vector<8x100xf32>
    %400 = vector.extract_strided_slice %50 {offsets = [56, 0], sizes = [8, 100], strides = [1, 1]} : vector<64x100xf32> to vector<8x100xf32>
    %401 = vector.extract_strided_slice %53 {offsets = [56, 0], sizes = [8, 100], strides = [1, 1]} : vector<64x100xf32> to vector<8x100xf32>
    %402 = vector.extract_strided_slice %56 {offsets = [56, 0], sizes = [8, 100], strides = [1, 1]} : vector<64x100xf32> to vector<8x100xf32>
    %403 = vector.extract_strided_slice %59 {offsets = [56, 0], sizes = [8, 100], strides = [1, 1]} : vector<64x100xf32> to vector<8x100xf32>
    %404 = vector.extract_strided_slice %62 {offsets = [56, 0], sizes = [8, 100], strides = [1, 1]} : vector<64x100xf32> to vector<8x100xf32>
    %405 = vector.extract_strided_slice %65 {offsets = [56, 0], sizes = [8, 100], strides = [1, 1]} : vector<64x100xf32> to vector<8x100xf32>
    %406 = vector.extract_strided_slice %68 {offsets = [56, 0], sizes = [8, 100], strides = [1, 1]} : vector<64x100xf32> to vector<8x100xf32>
    %407 = vector.extract_strided_slice %71 {offsets = [56, 0], sizes = [8, 100], strides = [1, 1]} : vector<64x100xf32> to vector<8x100xf32>
    %408 = vector.extract_strided_slice %74 {offsets = [56, 0], sizes = [8, 100], strides = [1, 1]} : vector<64x100xf32> to vector<8x100xf32>
    %409 = vector.extract_strided_slice %77 {offsets = [56, 0], sizes = [8, 100], strides = [1, 1]} : vector<64x100xf32> to vector<8x100xf32>
    %410 = vector.extract_strided_slice %80 {offsets = [56, 0], sizes = [8, 100], strides = [1, 1]} : vector<64x100xf32> to vector<8x100xf32>
    %411 = vector.extract_strided_slice %83 {offsets = [56, 0], sizes = [8, 100], strides = [1, 1]} : vector<64x100xf32> to vector<8x100xf32>
    %412 = vector.extract_strided_slice %86 {offsets = [56, 0], sizes = [8, 100], strides = [1, 1]} : vector<64x100xf32> to vector<8x100xf32>
    %413 = tpu.concatenate %388, %389, %390, %391, %392, %393, %394, %395, %396, %397, %398, %399, %400, %401, %402, %403 in 0 : vector<8x100xf32>, vector<8x100xf32>, vector<8x100xf32>, vector<8x100xf32>, vector<8x100xf32>, vector<8x100xf32>, vector<8x100xf32>, vector<8x100xf32>, vector<8x100xf32>, vector<8x100xf32>, vector<8x100xf32>, vector<8x100xf32>, vector<8x100xf32>, vector<8x100xf32>, vector<8x100xf32>, vector<8x100xf32> -> vector<128x100xf32>
    %414 = tpu.concatenate %404, %405, %406, %407, %408, %409, %410, %411, %412 in 0 : vector<8x100xf32>, vector<8x100xf32>, vector<8x100xf32>, vector<8x100xf32>, vector<8x100xf32>, vector<8x100xf32>, vector<8x100xf32>, vector<8x100xf32>, vector<8x100xf32> -> vector<72x100xf32>
    %415 = tpu.concatenate %413, %414 in 0 : vector<128x100xf32>, vector<72x100xf32> -> vector<200x100xf32>
    %416 = arith.truncf %415 : vector<200x100xf32> to vector<200x100xbf16>
    %c0_169 = arith.constant 0 : index
    %c0_170 = arith.constant 0 : index
    %417 = vector.load %arg6[%c0_169, %c0_170] : memref<200x128xbf16, #tpu.memory_space<vmem>>, vector<200x128xbf16>
    %cst_171 = arith.constant dense<0.000000e+00> : vector<100x128xf32>
    %418 = tpu.matmul %416, %417, %cst_171 {dimension_numbers = #tpu.dot_dimension_numbers<[0], [0], [1], [1], [0, 1, 1, 1], [], []>} : vector<200x100xbf16>, vector<200x128xbf16>, vector<100x128xf32> -> vector<100x128xf32>
    %c0_172 = arith.constant 0 : index
    %c0_173 = arith.constant 0 : index
    %419 = vector.load %arg7[%c0_172, %c0_173] : memref<1x128xf32, #tpu.memory_space<vmem>>, vector<1x128xf32>
    %420 = vector.broadcast %419 : vector<1x128xf32> to vector<100x128xf32>
    %421 = arith.addf %418, %420 : vector<100x128xf32>
    %cst_174 = arith.constant 0.000000e+00 : f32
    %422 = vector.broadcast %cst_174 : f32 to vector<100x128xf32>
    %423 = arith.maximumf %421, %422 : vector<100x128xf32>
    %424 = arith.truncf %423 : vector<100x128xf32> to vector<100x128xbf16>
    %c0_175 = arith.constant 0 : index
    %c0_176 = arith.constant 0 : index
    %425 = vector.load %arg8[%c0_175, %c0_176] : memref<25x100xbf16, #tpu.memory_space<vmem>>, vector<25x100xbf16>
    %cst_177 = arith.constant dense<0.000000e+00> : vector<25x128xf32>
    %426 = tpu.matmul %425, %424, %cst_177 {dimension_numbers = #tpu.dot_dimension_numbers<[1], [0], [0], [1], [0, 0, 1, 1], [], []>} : vector<25x100xbf16>, vector<100x128xbf16>, vector<25x128xf32> -> vector<25x128xf32>
    %427 = arith.truncf %426 : vector<25x128xf32> to vector<25x128xbf16>
    %c7_178 = arith.constant 7 : index
    %c0_179 = arith.constant 0 : index
    %c0_180 = arith.constant 0 : index
    %428 = vector.load %arg9[%c7_178, %c0_179, %c0_180] : memref<8x25x128xbf16, #tpu.memory_space<vmem>>, vector<1x25x128xbf16>
    %429 = vector.shape_cast %428 : vector<1x25x128xbf16> to vector<25x128xbf16>
    %430 = vector.shape_cast %427 : vector<25x128xbf16> to vector<1x25x128xbf16>
    tpu.vector_store %arg9[%c7_178, %c0_179, %c0_180], %430 {strides = array<i32>} : memref<8x25x128xbf16, #tpu.memory_space<vmem>>, vector<1x25x128xbf16>,
    return
  }
  func.func @transform_0(%arg0: i32) -> (i32, i32) {
    %c0_i32 = arith.constant 0 : i32
    %c0_i32_0 = arith.constant 0 : i32
    return %arg0, %c0_i32 : i32, i32
  }
  func.func @transform_1(%arg0: i32) -> (i32, i32) {
    %c0_i32 = arith.constant 0 : i32
    %c0_i32_0 = arith.constant 0 : i32
    %c0_i32_1 = arith.constant 0 : i32
    return %c0_i32, %c0_i32_0 : i32, i32
  }
  func.func @transform_2(%arg0: i32) -> (i32, i32) {
    %c0_i32 = arith.constant 0 : i32
    %c0_i32_0 = arith.constant 0 : i32
    %c0_i32_1 = arith.constant 0 : i32
    return %c0_i32, %c0_i32_0 : i32, i32
  }
  func.func @transform_3(%arg0: i32) -> (i32, i32) {
    %c0_i32 = arith.constant 0 : i32
    %c0_i32_0 = arith.constant 0 : i32
    %c0_i32_1 = arith.constant 0 : i32
    return %c0_i32, %c0_i32_0 : i32, i32
  }
  func.func @transform_4(%arg0: i32) -> (i32, i32, i32) {
    %c0_i32 = arith.constant 0 : i32
    %c0_i32_0 = arith.constant 0 : i32
    %c0_i32_1 = arith.constant 0 : i32
    %c0_i32_2 = arith.constant 0 : i32
    return %c0_i32, %c0_i32_0, %c0_i32_1 : i32, i32, i32
  }
  func.func @transform_5(%arg0: i32) -> (i32, i32) {
    %c0_i32 = arith.constant 0 : i32
    %c0_i32_0 = arith.constant 0 : i32
    %c0_i32_1 = arith.constant 0 : i32
    return %c0_i32, %c0_i32_0 : i32, i32
  }
  func.func @transform_6(%arg0: i32) -> (i32, i32) {
    %c0_i32 = arith.constant 0 : i32
    %c0_i32_0 = arith.constant 0 : i32
    %c0_i32_1 = arith.constant 0 : i32
    return %c0_i32, %c0_i32_0 : i32, i32
  }
  func.func @transform_7(%arg0: i32) -> (i32, i32) {
    %c0_i32 = arith.constant 0 : i32
    %c0_i32_0 = arith.constant 0 : i32
    %c0_i32_1 = arith.constant 0 : i32
    return %c0_i32, %c0_i32_0 : i32, i32
  }
  func.func @transform_8(%arg0: i32) -> (i32, i32, i32) {
    %c0_i32 = arith.constant 0 : i32
    %c0_i32_0 = arith.constant 0 : i32
    %c0_i32_1 = arith.constant 0 : i32
    return %arg0, %c0_i32, %c0_i32_0 : i32, i32, i32
  }
}

module attributes {stable_mosaic.version = 11 : i64} {
  func.func @_tail_kernel(%arg0: i32, %arg1: memref<8x3200xbf16, #tpu.memory_space<vmem>>, %arg2: memref<3200x128xbf16, #tpu.memory_space<vmem>>, %arg3: memref<1x128xf32, #tpu.memory_space<vmem>>, %arg4: memref<128x128xbf16, #tpu.memory_space<vmem>>, %arg5: memref<1x128xf32, #tpu.memory_space<vmem>>, %arg6: memref<128x128xbf16, #tpu.memory_space<vmem>>, %arg7: memref<1x128xf32, #tpu.memory_space<vmem>>, %arg8: memref<8x128xf32, #tpu.memory_space<vmem>>) attributes {dimension_semantics = [#tpu.dimension_semantics<parallel>], iteration_bounds = array<i64: 1>, scalar_prefetch = 0 : i64, scratch_operands = 0 : i64, tpu.core_type = #tpu.core_type<tc>, window_params = [{transform_indices = @transform_0, window_bounds = array<i64: 8, 3200>}, {pipeline_mode = #tpu.pipeline_mode<synchronous>, transform_indices = @transform_1, window_bounds = array<i64: 3200, 128>}, {pipeline_mode = #tpu.pipeline_mode<synchronous>, transform_indices = @transform_2, window_bounds = array<i64: 1, 128>}, {pipeline_mode = #tpu.pipeline_mode<synchronous>, transform_indices = @transform_3, window_bounds = array<i64: 128, 128>}, {pipeline_mode = #tpu.pipeline_mode<synchronous>, transform_indices = @transform_4, window_bounds = array<i64: 1, 128>}, {pipeline_mode = #tpu.pipeline_mode<synchronous>, transform_indices = @transform_5, window_bounds = array<i64: 128, 128>}, {pipeline_mode = #tpu.pipeline_mode<synchronous>, transform_indices = @transform_6, window_bounds = array<i64: 1, 128>}, {transform_indices = @transform_7, window_bounds = array<i64: 8, 128>}]} {
    %c0 = arith.constant 0 : index
    %c0_0 = arith.constant 0 : index
    %0 = vector.load %arg1[%c0, %c0_0] : memref<8x3200xbf16, #tpu.memory_space<vmem>>, vector<8x3200xbf16>
    %c0_1 = arith.constant 0 : index
    %c0_2 = arith.constant 0 : index
    %1 = vector.load %arg2[%c0_1, %c0_2] : memref<3200x128xbf16, #tpu.memory_space<vmem>>, vector<3200x128xbf16>
    %cst = arith.constant dense<0.000000e+00> : vector<8x128xf32>
    %2 = tpu.matmul %0, %1, %cst {dimension_numbers = #tpu.dot_dimension_numbers<[1], [0], [0], [1], [0, 0, 1, 1], [], []>} : vector<8x3200xbf16>, vector<3200x128xbf16>, vector<8x128xf32> -> vector<8x128xf32>
    %c0_3 = arith.constant 0 : index
    %c0_4 = arith.constant 0 : index
    %3 = vector.load %arg3[%c0_3, %c0_4] : memref<1x128xf32, #tpu.memory_space<vmem>>, vector<1x128xf32>
    %4 = vector.broadcast %3 : vector<1x128xf32> to vector<8x128xf32>
    %5 = arith.addf %2, %4 : vector<8x128xf32>
    %cst_5 = arith.constant 0.000000e+00 : f32
    %6 = vector.broadcast %cst_5 : f32 to vector<8x128xf32>
    %7 = arith.maximumf %5, %6 : vector<8x128xf32>
    %8 = arith.truncf %7 : vector<8x128xf32> to vector<8x128xbf16>
    %c0_6 = arith.constant 0 : index
    %c0_7 = arith.constant 0 : index
    %9 = vector.load %arg4[%c0_6, %c0_7] : memref<128x128xbf16, #tpu.memory_space<vmem>>, vector<128x128xbf16>
    %cst_8 = arith.constant dense<0.000000e+00> : vector<8x128xf32>
    %10 = tpu.matmul %8, %9, %cst_8 {dimension_numbers = #tpu.dot_dimension_numbers<[1], [0], [0], [1], [0, 0, 1, 1], [], []>} : vector<8x128xbf16>, vector<128x128xbf16>, vector<8x128xf32> -> vector<8x128xf32>
    %c0_9 = arith.constant 0 : index
    %c0_10 = arith.constant 0 : index
    %11 = vector.load %arg5[%c0_9, %c0_10] : memref<1x128xf32, #tpu.memory_space<vmem>>, vector<1x128xf32>
    %12 = vector.broadcast %11 : vector<1x128xf32> to vector<8x128xf32>
    %13 = arith.addf %10, %12 : vector<8x128xf32>
    %cst_11 = arith.constant 0.000000e+00 : f32
    %14 = vector.broadcast %cst_11 : f32 to vector<8x128xf32>
    %15 = arith.maximumf %13, %14 : vector<8x128xf32>
    %16 = arith.truncf %15 : vector<8x128xf32> to vector<8x128xbf16>
    %c0_12 = arith.constant 0 : index
    %c0_13 = arith.constant 0 : index
    %17 = vector.load %arg6[%c0_12, %c0_13] : memref<128x128xbf16, #tpu.memory_space<vmem>>, vector<128x128xbf16>
    %cst_14 = arith.constant dense<0.000000e+00> : vector<8x128xf32>
    %18 = tpu.matmul %16, %17, %cst_14 {dimension_numbers = #tpu.dot_dimension_numbers<[1], [0], [0], [1], [0, 0, 1, 1], [], []>} : vector<8x128xbf16>, vector<128x128xbf16>, vector<8x128xf32> -> vector<8x128xf32>
    %c0_15 = arith.constant 0 : index
    %c0_16 = arith.constant 0 : index
    %19 = vector.load %arg7[%c0_15, %c0_16] : memref<1x128xf32, #tpu.memory_space<vmem>>, vector<1x128xf32>
    %20 = vector.broadcast %19 : vector<1x128xf32> to vector<8x128xf32>
    %21 = arith.addf %18, %20 : vector<8x128xf32>
    %c0_17 = arith.constant 0 : index
    %c0_18 = arith.constant 0 : index
    %22 = vector.load %arg8[%c0_17, %c0_18] : memref<8x128xf32, #tpu.memory_space<vmem>>, vector<8x128xf32>
    tpu.vector_store %arg8[%c0_17, %c0_18], %21 {strides = array<i32>} : memref<8x128xf32, #tpu.memory_space<vmem>>, vector<8x128xf32>,
    return
  }
  func.func @transform_0(%arg0: i32) -> (i32, i32) {
    %c0_i32 = arith.constant 0 : i32
    %c0_i32_0 = arith.constant 0 : i32
    return %arg0, %c0_i32 : i32, i32
  }
  func.func @transform_1(%arg0: i32) -> (i32, i32) {
    %c0_i32 = arith.constant 0 : i32
    %c0_i32_0 = arith.constant 0 : i32
    %c0_i32_1 = arith.constant 0 : i32
    return %c0_i32, %c0_i32_0 : i32, i32
  }
  func.func @transform_2(%arg0: i32) -> (i32, i32) {
    %c0_i32 = arith.constant 0 : i32
    %c0_i32_0 = arith.constant 0 : i32
    %c0_i32_1 = arith.constant 0 : i32
    return %c0_i32, %c0_i32_0 : i32, i32
  }
  func.func @transform_3(%arg0: i32) -> (i32, i32) {
    %c0_i32 = arith.constant 0 : i32
    %c0_i32_0 = arith.constant 0 : i32
    %c0_i32_1 = arith.constant 0 : i32
    return %c0_i32, %c0_i32_0 : i32, i32
  }
  func.func @transform_4(%arg0: i32) -> (i32, i32) {
    %c0_i32 = arith.constant 0 : i32
    %c0_i32_0 = arith.constant 0 : i32
    %c0_i32_1 = arith.constant 0 : i32
    return %c0_i32, %c0_i32_0 : i32, i32
  }
  func.func @transform_5(%arg0: i32) -> (i32, i32) {
    %c0_i32 = arith.constant 0 : i32
    %c0_i32_0 = arith.constant 0 : i32
    %c0_i32_1 = arith.constant 0 : i32
    return %c0_i32, %c0_i32_0 : i32, i32
  }
  func.func @transform_6(%arg0: i32) -> (i32, i32) {
    %c0_i32 = arith.constant 0 : i32
    %c0_i32_0 = arith.constant 0 : i32
    %c0_i32_1 = arith.constant 0 : i32
    return %c0_i32, %c0_i32_0 : i32, i32
  }
  func.func @transform_7(%arg0: i32) -> (i32, i32) {
    %c0_i32 = arith.constant 0 : i32
    %c0_i32_0 = arith.constant 0 : i32
    return %arg0, %c0_i32 : i32, i32
  }
}

</mosaic_0001>

<llo_original>
// kernel: lenet_forward.3
$region0: #{lenet_forward.3}
  #allocation0 [shape = 'u32[]', space=smem, size = 0x4, offset = 0x4, fixed_abs, tag = 'smem constant byte address 0x4 - core index']
  #allocation1 [shape = 'u32[144,128]{1,0:T(1,128)}', space=vmem, size = 0x12000, scoped, tag = 'internal scratch']
  %s0 = inlined_call_operand.vmem [shape: bf16[8,3200], index: 0, kind: input, shape index: {}]
  %s1 = inlined_call_operand.vmem [shape: bf16[3200,128], index: 1, kind: input, shape index: {}]
  %s2 = inlined_call_operand.vmem [shape: f32[1,128], index: 2, kind: input, shape index: {}]
  %s3 = inlined_call_operand.vmem [shape: bf16[128,128], index: 3, kind: input, shape index: {}]
  %s4 = inlined_call_operand.vmem [shape: f32[1,128], index: 4, kind: input, shape index: {}]
  %s5 = inlined_call_operand.vmem [shape: bf16[128,128], index: 5, kind: input, shape index: {}]
  %s6 = inlined_call_operand.vmem [shape: f32[1,128], index: 6, kind: input, shape index: {}]
  %s7 = inlined_call_operand.vmem [shape: f32[8,128], index: 7, kind: output, shape index: {}]
  %s8 = sld [smem:[#allocation0]]
  $region38: #{lenet_forward.3} parent=0
    _
  %s10 = ssub.s32 1, %s8
  %s11 = scalar_select 0, %s10, %s8
  // Predicated region
  $region2: #{lenet_forward.3} parent=0 // pred_check
    _
  $region3: #{lenet_forward.3} parent=0 // pred_check_branch
    %13 = sbr.rel (0) target = $region5
  $region4: #{lenet_forward.3} parent=0 // pred_region
    _
  $region5: #{lenet_forward.3} parent=0 // pred_fallthru
    _
  // Predicated region
  $region6: #{lenet_forward.3} parent=0 // pred_check
    _
  $region7: #{lenet_forward.3} parent=0 // pred_check_branch
    %15 = sbr.rel (0) target = $region9
  $region8: #{lenet_forward.3} parent=0 // pred_region
    _
  $region9: #{lenet_forward.3} parent=0 // pred_fallthru
    _
  // Predicated region
  $region10: #{lenet_forward.3} parent=0 // pred_check
    _
  $region11: #{lenet_forward.3} parent=0 // pred_check_branch
    %17 = sbr.rel (0) target = $region13
  $region12: #{lenet_forward.3} parent=0 // pred_region
    _
  $region13: #{lenet_forward.3} parent=0 // pred_fallthru
    _
  // Predicated region
  $region14: #{lenet_forward.3} parent=0 // pred_check
    _
  $region15: #{lenet_forward.3} parent=0 // pred_check_branch
    %19 = sbr.rel (0) target = $region17
  $region16: #{lenet_forward.3} parent=0 // pred_region
    _
  $region17: #{lenet_forward.3} parent=0 // pred_fallthru
    _
  // Predicated region
  $region18: #{lenet_forward.3} parent=0 // pred_check
    _
  $region19: #{lenet_forward.3} parent=0 // pred_check_branch
    %21 = sbr.rel (0) target = $region21
  $region20: #{lenet_forward.3} parent=0 // pred_region
    _
  $region21: #{lenet_forward.3} parent=0 // pred_fallthru
    _
  // Predicated region
  $region22: #{lenet_forward.3} parent=0 // pred_check
    _
  $region23: #{lenet_forward.3} parent=0 // pred_check_branch
    %23 = sbr.rel (0) target = $region25
  $region24: #{lenet_forward.3} parent=0 // pred_region
    _
  $region25: #{lenet_forward.3} parent=0 // pred_fallthru
    _
  // Predicated region
  $region26: #{lenet_forward.3} parent=0 // pred_check
    _
  $region27: #{lenet_forward.3} parent=0 // pred_check_branch
    %25 = sbr.rel (0) target = $region29
  $region28: #{lenet_forward.3} parent=0 // pred_region
    _
  $region29: #{lenet_forward.3} parent=0 // pred_fallthru
    _
  %v27 = vld [vmem:[%s0] sm:$0xff]
  %v28 = vld [vmem:[%s0 + $0x8] sm:$0xff]
  %v29 = vld [vmem:[%s0 + $0x10] sm:$0xff]
  %v30 = vld [vmem:[%s0 + $0x18] sm:$0xff]
  %v31 = vld [vmem:[%s0 + $0x20] sm:$0xff]
  %v32 = vld [vmem:[%s0 + $0x28] sm:$0xff]
  %v33 = vld [vmem:[%s0 + $0x30] sm:$0xff]
  %v34 = vld [vmem:[%s0 + $0x38] sm:$0xff]
  %v35 = vld [vmem:[%s0 + $0x40] sm:$0xff]
  %v36 = vld [vmem:[%s0 + $0x48] sm:$0xff]
  %v37 = vld [vmem:[%s0 + $0x50] sm:$0xff]
  %v38 = vld [vmem:[%s0 + $0x58] sm:$0xff]
  %v39 = vld [vmem:[%s0 + $0x60] sm:$0xf]
  %v40 = vld [vmem:[%s1] sm:$0xf]
  %v41 = vld [vmem:[%s1 + $0x4] sm:$0xf]
  %v42 = vld [vmem:[%s1 + $0x8] sm:$0xf]
  %v43 = vld [vmem:[%s1 + $0xc] sm:$0xf]
  %v44 = vld [vmem:[%s1 + $0x10] sm:$0xf]
  %v45 = vld [vmem:[%s1 + $0x14] sm:$0xf]
  %v46 = vld [vmem:[%s1 + $0x18] sm:$0xf]
  %v47 = vld [vmem:[%s1 + $0x1c] sm:$0xf]
  %v48 = vld [vmem:[%s1 + $0x20] sm:$0xf]
  %v49 = vld [vmem:[%s1 + $0x24] sm:$0xf]
  %v50 = vld [vmem:[%s1 + $0x28] sm:$0xf]
  %v51 = vld [vmem:[%s1 + $0x2c] sm:$0xf]
  %v52 = vld [vmem:[%s1 + $0x30] sm:$0xf]
  %v53 = vld [vmem:[%s1 + $0x34] sm:$0xf]
  %v54 = vld [vmem:[%s1 + $0x38] sm:$0xf]
  %v55 = vld [vmem:[%s1 + $0x3c] sm:$0xf]
  %v56 = vld [vmem:[%s1 + $0x40] sm:$0xf]
  %v57 = vld [vmem:[%s1 + $0x44] sm:$0xf]
  %v58 = vld [vmem:[%s1 + $0x48] sm:$0xf]
  %v59 = vld [vmem:[%s1 + $0x4c] sm:$0xf]
  %v60 = vld [vmem:[%s1 + $0x50] sm:$0xf]
  %v61 = vld [vmem:[%s1 + $0x54] sm:$0xf]
  %v62 = vld [vmem:[%s1 + $0x58] sm:$0xf]
  %v63 = vld [vmem:[%s1 + $0x5c] sm:$0xf]
  %v64 = vld [vmem:[%s1 + $0x60] sm:$0xf]
  %v65 = vld [vmem:[%s1 + $0x64] sm:$0xf]
  %v66 = vld [vmem:[%s1 + $0x68] sm:$0xf]
  %v67 = vld [vmem:[%s1 + $0x6c] sm:$0xf]
  %v68 = vld [vmem:[%s1 + $0x70] sm:$0xf]
  %v69 = vld [vmem:[%s1 + $0x74] sm:$0xf]
  %v70 = vld [vmem:[%s1 + $0x78] sm:$0xf]
  %v71 = vld [vmem:[%s1 + $0x7c] sm:$0xf]
  %v72 = vld [vmem:[%s1 + $0x80] sm:$0xf]
  %v73 = vld [vmem:[%s1 + $0x84] sm:$0xf]
  %v74 = vld [vmem:[%s1 + $0x88] sm:$0xf]
  %v75 = vld [vmem:[%s1 + $0x8c] sm:$0xf]
  %v76 = vld [vmem:[%s1 + $0x90] sm:$0xf]
  %v77 = vld [vmem:[%s1 + $0x94] sm:$0xf]
  %v78 = vld [vmem:[%s1 + $0x98] sm:$0xf]
  %v79 = vld [vmem:[%s1 + $0x9c] sm:$0xf]
  %v80 = vld [vmem:[%s1 + $0xa0] sm:$0xf]
  %v81 = vld [vmem:[%s1 + $0xa4] sm:$0xf]
  %v82 = vld [vmem:[%s1 + $0xa8] sm:$0xf]
  %v83 = vld [vmem:[%s1 + $0xac] sm:$0xf]
  %v84 = vld [vmem:[%s1 + $0xb0] sm:$0xf]
  %v85 = vld [vmem:[%s1 + $0xb4] sm:$0xf]
  %v86 = vld [vmem:[%s1 + $0xb8] sm:$0xf]
  %v87 = vld [vmem:[%s1 + $0xbc] sm:$0xf]
  %v88 = vld [vmem:[%s1 + $0xc0] sm:$0xf]
  %v89 = vld [vmem:[%s1 + $0xc4] sm:$0xf]
  %v90 = vld [vmem:[%s1 + $0xc8] sm:$0xf]
  %v91 = vld [vmem:[%s1 + $0xcc] sm:$0xf]
  %v92 = vld [vmem:[%s1 + $0xd0] sm:$0xf]
  %v93 = vld [vmem:[%s1 + $0xd4] sm:$0xf]
  %v94 = vld [vmem:[%s1 + $0xd8] sm:$0xf]
  %v95 = vld [vmem:[%s1 + $0xdc] sm:$0xf]
  %v96 = vld [vmem:[%s1 + $0xe0] sm:$0xf]
  %v97 = vld [vmem:[%s1 + $0xe4] sm:$0xf]
  %v98 = vld [vmem:[%s1 + $0xe8] sm:$0xf]
  %v99 = vld [vmem:[%s1 + $0xec] sm:$0xf]
  %v100 = vld [vmem:[%s1 + $0xf0] sm:$0xf]
  %v101 = vld [vmem:[%s1 + $0xf4] sm:$0xf]
  %v102 = vld [vmem:[%s1 + $0xf8] sm:$0xf]
  %v103 = vld [vmem:[%s1 + $0xfc] sm:$0xf]
  %v104 = vld [vmem:[%s1 + $0x100] sm:$0xf]
  %v105 = vld [vmem:[%s1 + $0x104] sm:$0xf]
  %v106 = vld [vmem:[%s1 + $0x108] sm:$0xf]
  %v107 = vld [vmem:[%s1 + $0x10c] sm:$0xf]
  %v108 = vld [vmem:[%s1 + $0x110] sm:$0xf]
  %v109 = vld [vmem:[%s1 + $0x114] sm:$0xf]
  %v110 = vld [vmem:[%s1 + $0x118] sm:$0xf]
  %v111 = vld [vmem:[%s1 + $0x11c] sm:$0xf]
  %v112 = vld [vmem:[%s1 + $0x120] sm:$0xf]
  %v113 = vld [vmem:[%s1 + $0x124] sm:$0xf]
  %v114 = vld [vmem:[%s1 + $0x128] sm:$0xf]
  %v115 = vld [vmem:[%s1 + $0x12c] sm:$0xf]
  %v116 = vld [vmem:[%s1 + $0x130] sm:$0xf]
  %v117 = vld [vmem:[%s1 + $0x134] sm:$0xf]
  %v118 = vld [vmem:[%s1 + $0x138] sm:$0xf]
  %v119 = vld [vmem:[%s1 + $0x13c] sm:$0xf]
  %v120 = vld [vmem:[%s1 + $0x140] sm:$0xf]
  %v121 = vld [vmem:[%s1 + $0x144] sm:$0xf]
  %v122 = vld [vmem:[%s1 + $0x148] sm:$0xf]
  %v123 = vld [vmem:[%s1 + $0x14c] sm:$0xf]
  %v124 = vld [vmem:[%s1 + $0x150] sm:$0xf]
  %v125 = vld [vmem:[%s1 + $0x154] sm:$0xf]
  %v126 = vld [vmem:[%s1 + $0x158] sm:$0xf]
  %v127 = vld [vmem:[%s1 + $0x15c] sm:$0xf]
  %v128 = vld [vmem:[%s1 + $0x160] sm:$0xf]
  %v129 = vld [vmem:[%s1 + $0x164] sm:$0xf]
  %v130 = vld [vmem:[%s1 + $0x168] sm:$0xf]
  %v131 = vld [vmem:[%s1 + $0x16c] sm:$0xf]
  %v132 = vld [vmem:[%s1 + $0x170] sm:$0xf]
  %v133 = vld [vmem:[%s1 + $0x174] sm:$0xf]
  %v134 = vld [vmem:[%s1 + $0x178] sm:$0xf]
  %v135 = vld [vmem:[%s1 + $0x17c] sm:$0xf]
  %v136 = vld [vmem:[%s1 + $0x180] sm:$0xf]
  %v137 = vld [vmem:[%s1 + $0x184] sm:$0xf]
  %v138 = vld [vmem:[%s1 + $0x188] sm:$0xf]
  %v139 = vld [vmem:[%s1 + $0x18c] sm:$0xf]
  %v140 = vld [vmem:[%s1 + $0x190] sm:$0xf]
  %v141 = vld [vmem:[%s1 + $0x194] sm:$0xf]
  %v142 = vld [vmem:[%s1 + $0x198] sm:$0xf]
  %v143 = vld [vmem:[%s1 + $0x19c] sm:$0xf]
  %v144 = vld [vmem:[%s1 + $0x1a0] sm:$0xf]
  %v145 = vld [vmem:[%s1 + $0x1a4] sm:$0xf]
  %v146 = vld [vmem:[%s1 + $0x1a8] sm:$0xf]
  %v147 = vld [vmem:[%s1 + $0x1ac] sm:$0xf]
  %v148 = vld [vmem:[%s1 + $0x1b0] sm:$0xf]
  %v149 = vld [vmem:[%s1 + $0x1b4] sm:$0xf]
  %v150 = vld [vmem:[%s1 + $0x1b8] sm:$0xf]
  %v151 = vld [vmem:[%s1 + $0x1bc] sm:$0xf]
  %v152 = vld [vmem:[%s1 + $0x1c0] sm:$0xf]
  %v153 = vld [vmem:[%s1 + $0x1c4] sm:$0xf]
  %v154 = vld [vmem:[%s1 + $0x1c8] sm:$0xf]
  %v155 = vld [vmem:[%s1 + $0x1cc] sm:$0xf]
  %v156 = vld [vmem:[%s1 + $0x1d0] sm:$0xf]
  %v157 = vld [vmem:[%s1 + $0x1d4] sm:$0xf]
  %v158 = vld [vmem:[%s1 + $0x1d8] sm:$0xf]
  %v159 = vld [vmem:[%s1 + $0x1dc] sm:$0xf]
  %v160 = vld [vmem:[%s1 + $0x1e0] sm:$0xf]
  %v161 = vld [vmem:[%s1 + $0x1e4] sm:$0xf]
  %v162 = vld [vmem:[%s1 + $0x1e8] sm:$0xf]
  %v163 = vld [vmem:[%s1 + $0x1ec] sm:$0xf]
  %v164 = vld [vmem:[%s1 + $0x1f0] sm:$0xf]
  %v165 = vld [vmem:[%s1 + $0x1f4] sm:$0xf]
  %v166 = vld [vmem:[%s1 + $0x1f8] sm:$0xf]
  %v167 = vld [vmem:[%s1 + $0x1fc] sm:$0xf]
  %v168 = vld [vmem:[%s1 + $0x200] sm:$0xf]
  %v169 = vld [vmem:[%s1 + $0x204] sm:$0xf]
  %v170 = vld [vmem:[%s1 + $0x208] sm:$0xf]
  %v171 = vld [vmem:[%s1 + $0x20c] sm:$0xf]
  %v172 = vld [vmem:[%s1 + $0x210] sm:$0xf]
  %v173 = vld [vmem:[%s1 + $0x214] sm:$0xf]
  %v174 = vld [vmem:[%s1 + $0x218] sm:$0xf]
  %v175 = vld [vmem:[%s1 + $0x21c] sm:$0xf]
  %v176 = vld [vmem:[%s1 + $0x220] sm:$0xf]
  %v177 = vld [vmem:[%s1 + $0x224] sm:$0xf]
  %v178 = vld [vmem:[%s1 + $0x228] sm:$0xf]
  %v179 = vld [vmem:[%s1 + $0x22c] sm:$0xf]
  %v180 = vld [vmem:[%s1 + $0x230] sm:$0xf]
  %v181 = vld [vmem:[%s1 + $0x234] sm:$0xf]
  %v182 = vld [vmem:[%s1 + $0x238] sm:$0xf]
  %v183 = vld [vmem:[%s1 + $0x23c] sm:$0xf]
  %v184 = vld [vmem:[%s1 + $0x240] sm:$0xf]
  %v185 = vld [vmem:[%s1 + $0x244] sm:$0xf]
  %v186 = vld [vmem:[%s1 + $0x248] sm:$0xf]
  %v187 = vld [vmem:[%s1 + $0x24c] sm:$0xf]
  %v188 = vld [vmem:[%s1 + $0x250] sm:$0xf]
  %v189 = vld [vmem:[%s1 + $0x254] sm:$0xf]
  %v190 = vld [vmem:[%s1 + $0x258] sm:$0xf]
  %v191 = vld [vmem:[%s1 + $0x25c] sm:$0xf]
  %v192 = vld [vmem:[%s1 + $0x260] sm:$0xf]
  %v193 = vld [vmem:[%s1 + $0x264] sm:$0xf]
  %v194 = vld [vmem:[%s1 + $0x268] sm:$0xf]
  %v195 = vld [vmem:[%s1 + $0x26c] sm:$0xf]
  %v196 = vld [vmem:[%s1 + $0x270] sm:$0xf]
  %v197 = vld [vmem:[%s1 + $0x274] sm:$0xf]
  %v198 = vld [vmem:[%s1 + $0x278] sm:$0xf]
  %v199 = vld [vmem:[%s1 + $0x27c] sm:$0xf]
  %v200 = vld [vmem:[%s1 + $0x280] sm:$0xf]
  %v201 = vld [vmem:[%s1 + $0x284] sm:$0xf]
  %v202 = vld [vmem:[%s1 + $0x288] sm:$0xf]
  %v203 = vld [vmem:[%s1 + $0x28c] sm:$0xf]
  %v204 = vld [vmem:[%s1 + $0x290] sm:$0xf]
  %v205 = vld [vmem:[%s1 + $0x294] sm:$0xf]
  %v206 = vld [vmem:[%s1 + $0x298] sm:$0xf]
  %v207 = vld [vmem:[%s1 + $0x29c] sm:$0xf]
  %v208 = vld [vmem:[%s1 + $0x2a0] sm:$0xf]
  %v209 = vld [vmem:[%s1 + $0x2a4] sm:$0xf]
  %v210 = vld [vmem:[%s1 + $0x2a8] sm:$0xf]
  %v211 = vld [vmem:[%s1 + $0x2ac] sm:$0xf]
  %v212 = vld [vmem:[%s1 + $0x2b0] sm:$0xf]
  %v213 = vld [vmem:[%s1 + $0x2b4] sm:$0xf]
  %v214 = vld [vmem:[%s1 + $0x2b8] sm:$0xf]
  %v215 = vld [vmem:[%s1 + $0x2bc] sm:$0xf]
  %v216 = vld [vmem:[%s1 + $0x2c0] sm:$0xf]
  %v217 = vld [vmem:[%s1 + $0x2c4] sm:$0xf]
  %v218 = vld [vmem:[%s1 + $0x2c8] sm:$0xf]
  %v219 = vld [vmem:[%s1 + $0x2cc] sm:$0xf]
  %v220 = vld [vmem:[%s1 + $0x2d0] sm:$0xf]
  %v221 = vld [vmem:[%s1 + $0x2d4] sm:$0xf]
  %v222 = vld [vmem:[%s1 + $0x2d8] sm:$0xf]
  %v223 = vld [vmem:[%s1 + $0x2dc] sm:$0xf]
  %v224 = vld [vmem:[%s1 + $0x2e0] sm:$0xf]
  %v225 = vld [vmem:[%s1 + $0x2e4] sm:$0xf]
  %v226 = vld [vmem:[%s1 + $0x2e8] sm:$0xf]
  %v227 = vld [vmem:[%s1 + $0x2ec] sm:$0xf]
  %v228 = vld [vmem:[%s1 + $0x2f0] sm:$0xf]
  %v229 = vld [vmem:[%s1 + $0x2f4] sm:$0xf]
  %v230 = vld [vmem:[%s1 + $0x2f8] sm:$0xf]
  %v231 = vld [vmem:[%s1 + $0x2fc] sm:$0xf]
  %v232 = vld [vmem:[%s1 + $0x300] sm:$0xf]
  %v233 = vld [vmem:[%s1 + $0x304] sm:$0xf]
  %v234 = vld [vmem:[%s1 + $0x308] sm:$0xf]
  %v235 = vld [vmem:[%s1 + $0x30c] sm:$0xf]
  %v236 = vld [vmem:[%s1 + $0x310] sm:$0xf]
  %v237 = vld [vmem:[%s1 + $0x314] sm:$0xf]
  %v238 = vld [vmem:[%s1 + $0x318] sm:$0xf]
  %v239 = vld [vmem:[%s1 + $0x31c] sm:$0xf]
  %v240 = vld [vmem:[%s1 + $0x320] sm:$0xf]
  %v241 = vld [vmem:[%s1 + $0x324] sm:$0xf]
  %v242 = vld [vmem:[%s1 + $0x328] sm:$0xf]
  %v243 = vld [vmem:[%s1 + $0x32c] sm:$0xf]
  %v244 = vld [vmem:[%s1 + $0x330] sm:$0xf]
  %v245 = vld [vmem:[%s1 + $0x334] sm:$0xf]
  %v246 = vld [vmem:[%s1 + $0x338] sm:$0xf]
  %v247 = vld [vmem:[%s1 + $0x33c] sm:$0xf]
  %v248 = vld [vmem:[%s1 + $0x340] sm:$0xf]
  %v249 = vld [vmem:[%s1 + $0x344] sm:$0xf]
  %v250 = vld [vmem:[%s1 + $0x348] sm:$0xf]
  %v251 = vld [vmem:[%s1 + $0x34c] sm:$0xf]
  %v252 = vld [vmem:[%s1 + $0x350] sm:$0xf]
  %v253 = vld [vmem:[%s1 + $0x354] sm:$0xf]
  %v254 = vld [vmem:[%s1 + $0x358] sm:$0xf]
  %v255 = vld [vmem:[%s1 + $0x35c] sm:$0xf]
  %v256 = vld [vmem:[%s1 + $0x360] sm:$0xf]
  %v257 = vld [vmem:[%s1 + $0x364] sm:$0xf]
  %v258 = vld [vmem:[%s1 + $0x368] sm:$0xf]
  %v259 = vld [vmem:[%s1 + $0x36c] sm:$0xf]
  %v260 = vld [vmem:[%s1 + $0x370] sm:$0xf]
  %v261 = vld [vmem:[%s1 + $0x374] sm:$0xf]
  %v262 = vld [vmem:[%s1 + $0x378] sm:$0xf]
  %v263 = vld [vmem:[%s1 + $0x37c] sm:$0xf]
  %v264 = vld [vmem:[%s1 + $0x380] sm:$0xf]
  %v265 = vld [vmem:[%s1 + $0x384] sm:$0xf]
  %v266 = vld [vmem:[%s1 + $0x388] sm:$0xf]
  %v267 = vld [vmem:[%s1 + $0x38c] sm:$0xf]
  %v268 = vld [vmem:[%s1 + $0x390] sm:$0xf]
  %v269 = vld [vmem:[%s1 + $0x394] sm:$0xf]
  %v270 = vld [vmem:[%s1 + $0x398] sm:$0xf]
  %v271 = vld [vmem:[%s1 + $0x39c] sm:$0xf]
  %v272 = vld [vmem:[%s1 + $0x3a0] sm:$0xf]
  %v273 = vld [vmem:[%s1 + $0x3a4] sm:$0xf]
  %v274 = vld [vmem:[%s1 + $0x3a8] sm:$0xf]
  %v275 = vld [vmem:[%s1 + $0x3ac] sm:$0xf]
  %v276 = vld [vmem:[%s1 + $0x3b0] sm:$0xf]
  %v277 = vld [vmem:[%s1 + $0x3b4] sm:$0xf]
  %v278 = vld [vmem:[%s1 + $0x3b8] sm:$0xf]
  %v279 = vld [vmem:[%s1 + $0x3bc] sm:$0xf]
  %v280 = vld [vmem:[%s1 + $0x3c0] sm:$0xf]
  %v281 = vld [vmem:[%s1 + $0x3c4] sm:$0xf]
  %v282 = vld [vmem:[%s1 + $0x3c8] sm:$0xf]
  %v283 = vld [vmem:[%s1 + $0x3cc] sm:$0xf]
  %v284 = vld [vmem:[%s1 + $0x3d0] sm:$0xf]
  %v285 = vld [vmem:[%s1 + $0x3d4] sm:$0xf]
  %v286 = vld [vmem:[%s1 + $0x3d8] sm:$0xf]
  %v287 = vld [vmem:[%s1 + $0x3dc] sm:$0xf]
  %v288 = vld [vmem:[%s1 + $0x3e0] sm:$0xf]
  %v289 = vld [vmem:[%s1 + $0x3e4] sm:$0xf]
  %v290 = vld [vmem:[%s1 + $0x3e8] sm:$0xf]
  %v291 = vld [vmem:[%s1 + $0x3ec] sm:$0xf]
  %v292 = vld [vmem:[%s1 + $0x3f0] sm:$0xf]
  %v293 = vld [vmem:[%s1 + $0x3f4] sm:$0xf]
  %v294 = vld [vmem:[%s1 + $0x3f8] sm:$0xf]
  %v295 = vld [vmem:[%s1 + $0x3fc] sm:$0xf]
  %v296 = vld [vmem:[%s1 + $0x400] sm:$0xf]
  %v297 = vld [vmem:[%s1 + $0x404] sm:$0xf]
  %v298 = vld [vmem:[%s1 + $0x408] sm:$0xf]
  %v299 = vld [vmem:[%s1 + $0x40c] sm:$0xf]
  %v300 = vld [vmem:[%s1 + $0x410] sm:$0xf]
  %v301 = vld [vmem:[%s1 + $0x414] sm:$0xf]
  %v302 = vld [vmem:[%s1 + $0x418] sm:$0xf]
  %v303 = vld [vmem:[%s1 + $0x41c] sm:$0xf]
  %v304 = vld [vmem:[%s1 + $0x420] sm:$0xf]
  %v305 = vld [vmem:[%s1 + $0x424] sm:$0xf]
  %v306 = vld [vmem:[%s1 + $0x428] sm:$0xf]
  %v307 = vld [vmem:[%s1 + $0x42c] sm:$0xf]
  %v308 = vld [vmem:[%s1 + $0x430] sm:$0xf]
  %v309 = vld [vmem:[%s1 + $0x434] sm:$0xf]
  %v310 = vld [vmem:[%s1 + $0x438] sm:$0xf]
  %v311 = vld [vmem:[%s1 + $0x43c] sm:$0xf]
  %v312 = vld [vmem:[%s1 + $0x440] sm:$0xf]
  %v313 = vld [vmem:[%s1 + $0x444] sm:$0xf]
  %v314 = vld [vmem:[%s1 + $0x448] sm:$0xf]
  %v315 = vld [vmem:[%s1 + $0x44c] sm:$0xf]
  %v316 = vld [vmem:[%s1 + $0x450] sm:$0xf]
  %v317 = vld [vmem:[%s1 + $0x454] sm:$0xf]
  %v318 = vld [vmem:[%s1 + $0x458] sm:$0xf]
  %v319 = vld [vmem:[%s1 + $0x45c] sm:$0xf]
  %v320 = vld [vmem:[%s1 + $0x460] sm:$0xf]
  %v321 = vld [vmem:[%s1 + $0x464] sm:$0xf]
  %v322 = vld [vmem:[%s1 + $0x468] sm:$0xf]
  %v323 = vld [vmem:[%s1 + $0x46c] sm:$0xf]
  %v324 = vld [vmem:[%s1 + $0x470] sm:$0xf]
  %v325 = vld [vmem:[%s1 + $0x474] sm:$0xf]
  %v326 = vld [vmem:[%s1 + $0x478] sm:$0xf]
  %v327 = vld [vmem:[%s1 + $0x47c] sm:$0xf]
  %v328 = vld [vmem:[%s1 + $0x480] sm:$0xf]
  %v329 = vld [vmem:[%s1 + $0x484] sm:$0xf]
  %v330 = vld [vmem:[%s1 + $0x488] sm:$0xf]
  %v331 = vld [vmem:[%s1 + $0x48c] sm:$0xf]
  %v332 = vld [vmem:[%s1 + $0x490] sm:$0xf]
  %v333 = vld [vmem:[%s1 + $0x494] sm:$0xf]
  %v334 = vld [vmem:[%s1 + $0x498] sm:$0xf]
  %v335 = vld [vmem:[%s1 + $0x49c] sm:$0xf]
  %v336 = vld [vmem:[%s1 + $0x4a0] sm:$0xf]
  %v337 = vld [vmem:[%s1 + $0x4a4] sm:$0xf]
  %v338 = vld [vmem:[%s1 + $0x4a8] sm:$0xf]
  %v339 = vld [vmem:[%s1 + $0x4ac] sm:$0xf]
  %v340 = vld [vmem:[%s1 + $0x4b0] sm:$0xf]
  %v341 = vld [vmem:[%s1 + $0x4b4] sm:$0xf]
  %v342 = vld [vmem:[%s1 + $0x4b8] sm:$0xf]
  %v343 = vld [vmem:[%s1 + $0x4bc] sm:$0xf]
  %v344 = vld [vmem:[%s1 + $0x4c0] sm:$0xf]
  %v345 = vld [vmem:[%s1 + $0x4c4] sm:$0xf]
  %v346 = vld [vmem:[%s1 + $0x4c8] sm:$0xf]
  %v347 = vld [vmem:[%s1 + $0x4cc] sm:$0xf]
  %v348 = vld [vmem:[%s1 + $0x4d0] sm:$0xf]
  %v349 = vld [vmem:[%s1 + $0x4d4] sm:$0xf]
  %v350 = vld [vmem:[%s1 + $0x4d8] sm:$0xf]
  %v351 = vld [vmem:[%s1 + $0x4dc] sm:$0xf]
  %v352 = vld [vmem:[%s1 + $0x4e0] sm:$0xf]
  %v353 = vld [vmem:[%s1 + $0x4e4] sm:$0xf]
  %v354 = vld [vmem:[%s1 + $0x4e8] sm:$0xf]
  %v355 = vld [vmem:[%s1 + $0x4ec] sm:$0xf]
  %v356 = vld [vmem:[%s1 + $0x4f0] sm:$0xf]
  %v357 = vld [vmem:[%s1 + $0x4f4] sm:$0xf]
  %v358 = vld [vmem:[%s1 + $0x4f8] sm:$0xf]
  %v359 = vld [vmem:[%s1 + $0x4fc] sm:$0xf]
  %v360 = vld [vmem:[%s1 + $0x500] sm:$0xf]
  %v361 = vld [vmem:[%s1 + $0x504] sm:$0xf]
  %v362 = vld [vmem:[%s1 + $0x508] sm:$0xf]
  %v363 = vld [vmem:[%s1 + $0x50c] sm:$0xf]
  %v364 = vld [vmem:[%s1 + $0x510] sm:$0xf]
  %v365 = vld [vmem:[%s1 + $0x514] sm:$0xf]
  %v366 = vld [vmem:[%s1 + $0x518] sm:$0xf]
  %v367 = vld [vmem:[%s1 + $0x51c] sm:$0xf]
  %v368 = vld [vmem:[%s1 + $0x520] sm:$0xf]
  %v369 = vld [vmem:[%s1 + $0x524] sm:$0xf]
  %v370 = vld [vmem:[%s1 + $0x528] sm:$0xf]
  %v371 = vld [vmem:[%s1 + $0x52c] sm:$0xf]
  %v372 = vld [vmem:[%s1 + $0x530] sm:$0xf]
  %v373 = vld [vmem:[%s1 + $0x534] sm:$0xf]
  %v374 = vld [vmem:[%s1 + $0x538] sm:$0xf]
  %v375 = vld [vmem:[%s1 + $0x53c] sm:$0xf]
  %v376 = vld [vmem:[%s1 + $0x540] sm:$0xf]
  %v377 = vld [vmem:[%s1 + $0x544] sm:$0xf]
  %v378 = vld [vmem:[%s1 + $0x548] sm:$0xf]
  %v379 = vld [vmem:[%s1 + $0x54c] sm:$0xf]
  %v380 = vld [vmem:[%s1 + $0x550] sm:$0xf]
  %v381 = vld [vmem:[%s1 + $0x554] sm:$0xf]
  %v382 = vld [vmem:[%s1 + $0x558] sm:$0xf]
  %v383 = vld [vmem:[%s1 + $0x55c] sm:$0xf]
  %v384 = vld [vmem:[%s1 + $0x560] sm:$0xf]
  %v385 = vld [vmem:[%s1 + $0x564] sm:$0xf]
  %v386 = vld [vmem:[%s1 + $0x568] sm:$0xf]
  %v387 = vld [vmem:[%s1 + $0x56c] sm:$0xf]
  %v388 = vld [vmem:[%s1 + $0x570] sm:$0xf]
  %v389 = vld [vmem:[%s1 + $0x574] sm:$0xf]
  %v390 = vld [vmem:[%s1 + $0x578] sm:$0xf]
  %v391 = vld [vmem:[%s1 + $0x57c] sm:$0xf]
  %v392 = vld [vmem:[%s1 + $0x580] sm:$0xf]
  %v393 = vld [vmem:[%s1 + $0x584] sm:$0xf]
  %v394 = vld [vmem:[%s1 + $0x588] sm:$0xf]
  %v395 = vld [vmem:[%s1 + $0x58c] sm:$0xf]
  %v396 = vld [vmem:[%s1 + $0x590] sm:$0xf]
  %v397 = vld [vmem:[%s1 + $0x594] sm:$0xf]
  %v398 = vld [vmem:[%s1 + $0x598] sm:$0xf]
  %v399 = vld [vmem:[%s1 + $0x59c] sm:$0xf]
  %v400 = vld [vmem:[%s1 + $0x5a0] sm:$0xf]
  %v401 = vld [vmem:[%s1 + $0x5a4] sm:$0xf]
  %v402 = vld [vmem:[%s1 + $0x5a8] sm:$0xf]
  %v403 = vld [vmem:[%s1 + $0x5ac] sm:$0xf]
  %v404 = vld [vmem:[%s1 + $0x5b0] sm:$0xf]
  %v405 = vld [vmem:[%s1 + $0x5b4] sm:$0xf]
  %v406 = vld [vmem:[%s1 + $0x5b8] sm:$0xf]
  %v407 = vld [vmem:[%s1 + $0x5bc] sm:$0xf]
  %v408 = vld [vmem:[%s1 + $0x5c0] sm:$0xf]
  %v409 = vld [vmem:[%s1 + $0x5c4] sm:$0xf]
  %v410 = vld [vmem:[%s1 + $0x5c8] sm:$0xf]
  %v411 = vld [vmem:[%s1 + $0x5cc] sm:$0xf]
  %v412 = vld [vmem:[%s1 + $0x5d0] sm:$0xf]
  %v413 = vld [vmem:[%s1 + $0x5d4] sm:$0xf]
  %v414 = vld [vmem:[%s1 + $0x5d8] sm:$0xf]
  %v415 = vld [vmem:[%s1 + $0x5dc] sm:$0xf]
  %v416 = vld [vmem:[%s1 + $0x5e0] sm:$0xf]
  %v417 = vld [vmem:[%s1 + $0x5e4] sm:$0xf]
  %v418 = vld [vmem:[%s1 + $0x5e8] sm:$0xf]
  %v419 = vld [vmem:[%s1 + $0x5ec] sm:$0xf]
  %v420 = vld [vmem:[%s1 + $0x5f0] sm:$0xf]
  %v421 = vld [vmem:[%s1 + $0x5f4] sm:$0xf]
  %v422 = vld [vmem:[%s1 + $0x5f8] sm:$0xf]
  %v423 = vld [vmem:[%s1 + $0x5fc] sm:$0xf]
  %v424 = vld [vmem:[%s1 + $0x600] sm:$0xf]
  %v425 = vld [vmem:[%s1 + $0x604] sm:$0xf]
  %v426 = vld [vmem:[%s1 + $0x608] sm:$0xf]
  %v427 = vld [vmem:[%s1 + $0x60c] sm:$0xf]
  %v428 = vld [vmem:[%s1 + $0x610] sm:$0xf]
  %v429 = vld [vmem:[%s1 + $0x614] sm:$0xf]
  %v430 = vld [vmem:[%s1 + $0x618] sm:$0xf]
  %v431 = vld [vmem:[%s1 + $0x61c] sm:$0xf]
  %v432 = vld [vmem:[%s1 + $0x620] sm:$0xf]
  %v433 = vld [vmem:[%s1 + $0x624] sm:$0xf]
  %v434 = vld [vmem:[%s1 + $0x628] sm:$0xf]
  %v435 = vld [vmem:[%s1 + $0x62c] sm:$0xf]
  %v436 = vld [vmem:[%s1 + $0x630] sm:$0xf]
  %v437 = vld [vmem:[%s1 + $0x634] sm:$0xf]
  %v438 = vld [vmem:[%s1 + $0x638] sm:$0xf]
  %v439 = vld [vmem:[%s1 + $0x63c] sm:$0xf]
  %v440 = vld [vmem:[%s2] sm:$0x1]
  %v442 = vlaneseq
  %v443 = vshrl.u32 %v442, 7
  %v444 = vsub.s32 0, %v443
  %v445 = vrot.slane %v440, %v444
  %v460 = vunpack.c.l.b16 %v27
  %v461 = vunpack.c.h.b16 %v27
  %v462 = vunpack.c.l.b16 %v28
  %v463 = vunpack.c.h.b16 %v28
  %v464 = vunpack.c.l.b16 %v29
  %v465 = vunpack.c.h.b16 %v29
  %v466 = vunpack.c.l.b16 %v30
  %v467 = vunpack.c.h.b16 %v30
  %v468 = vunpack.c.l.b16 %v31
  %v469 = vunpack.c.h.b16 %v31
  %v470 = vunpack.c.l.b16 %v32
  %v471 = vunpack.c.h.b16 %v32
  %v472 = vunpack.c.l.b16 %v33
  %v473 = vunpack.c.h.b16 %v33
  %v474 = vunpack.c.l.b16 %v34
  %v475 = vunpack.c.h.b16 %v34
  %v476 = vunpack.c.l.b16 %v35
  %v477 = vunpack.c.h.b16 %v35
  %v478 = vunpack.c.l.b16 %v36
  %v479 = vunpack.c.h.b16 %v36
  %v480 = vunpack.c.l.b16 %v37
  %v481 = vunpack.c.h.b16 %v37
  %v482 = vunpack.c.l.b16 %v38
  %v483 = vunpack.c.h.b16 %v38
  %v484 = vunpack.c.l.b16 %v39
  %v485 = vpack.c.b16 %v460, %v460
  %v486 = vpack.c.b16 %v461, %v461
  %v487 = vpack.c.b16 %v462, %v462
  %v488 = vpack.c.b16 %v463, %v463
  %v489 = vpack.c.b16 %v464, %v464
  %v490 = vpack.c.b16 %v465, %v465
  %v491 = vpack.c.b16 %v466, %v466
  %v492 = vpack.c.b16 %v467, %v467
  %v493 = vpack.c.b16 %v468, %v468
  %v494 = vpack.c.b16 %v469, %v469
  %v495 = vpack.c.b16 %v470, %v470
  %v496 = vpack.c.b16 %v471, %v471
  %v497 = vpack.c.b16 %v472, %v472
  %v498 = vpack.c.b16 %v473, %v473
  %v499 = vpack.c.b16 %v474, %v474
  %v500 = vpack.c.b16 %v475, %v475
  %v501 = vpack.c.b16 %v476, %v476
  %v502 = vpack.c.b16 %v477, %v477
  %v503 = vpack.c.b16 %v478, %v478
  %v504 = vpack.c.b16 %v479, %v479
  %v505 = vpack.c.b16 %v480, %v480
  %v506 = vpack.c.b16 %v481, %v481
  %v507 = vpack.c.b16 %v482, %v482
  %v508 = vpack.c.b16 %v483, %v483
  %v509 = vpack.c.b16 %v484, %v484
  %v935 = vunpack.c.l.b16 %v40
  %v936 = vunpack.c.l.b16 %v41
  %v937 = vunpack.c.l.b16 %v42
  %v938 = vunpack.c.l.b16 %v43
  %v939 = vunpack.c.l.b16 %v44
  %v940 = vunpack.c.l.b16 %v45
  %v941 = vunpack.c.l.b16 %v46
  %v942 = vunpack.c.l.b16 %v47
  %v943 = vunpack.c.l.b16 %v48
  %v944 = vunpack.c.l.b16 %v49
  %v945 = vunpack.c.l.b16 %v50
  %v946 = vunpack.c.l.b16 %v51
  %v947 = vunpack.c.l.b16 %v52
  %v948 = vunpack.c.l.b16 %v53
  %v949 = vunpack.c.l.b16 %v54
  %v950 = vunpack.c.l.b16 %v55
  %v951 = vunpack.c.l.b16 %v56
  %v952 = vunpack.c.l.b16 %v57
  %v953 = vunpack.c.l.b16 %v58
  %v954 = vunpack.c.l.b16 %v59
  %v955 = vunpack.c.l.b16 %v60
  %v956 = vunpack.c.l.b16 %v61
  %v957 = vunpack.c.l.b16 %v62
  %v958 = vunpack.c.l.b16 %v63
  %v959 = vunpack.c.l.b16 %v64
  %v960 = vunpack.c.l.b16 %v65
  %v961 = vunpack.c.l.b16 %v66
  %v962 = vunpack.c.l.b16 %v67
  %v963 = vunpack.c.l.b16 %v68
  %v964 = vunpack.c.l.b16 %v69
  %v965 = vunpack.c.l.b16 %v70
  %v966 = vunpack.c.l.b16 %v71
  %v967 = vunpack.c.l.b16 %v72
  %v968 = vunpack.c.l.b16 %v73
  %v969 = vunpack.c.l.b16 %v74
  %v970 = vunpack.c.l.b16 %v75
  %v971 = vunpack.c.l.b16 %v76
  %v972 = vunpack.c.l.b16 %v77
  %v973 = vunpack.c.l.b16 %v78
  %v974 = vunpack.c.l.b16 %v79
  %v975 = vunpack.c.l.b16 %v80
  %v976 = vunpack.c.l.b16 %v81
  %v977 = vunpack.c.l.b16 %v82
  %v978 = vunpack.c.l.b16 %v83
  %v979 = vunpack.c.l.b16 %v84
  %v980 = vunpack.c.l.b16 %v85
  %v981 = vunpack.c.l.b16 %v86
  %v982 = vunpack.c.l.b16 %v87
  %v983 = vunpack.c.l.b16 %v88
  %v984 = vunpack.c.l.b16 %v89
  %v985 = vunpack.c.l.b16 %v90
  %v986 = vunpack.c.l.b16 %v91
  %v987 = vunpack.c.l.b16 %v92
  %v988 = vunpack.c.l.b16 %v93
  %v989 = vunpack.c.l.b16 %v94
  %v990 = vunpack.c.l.b16 %v95
  %v991 = vunpack.c.l.b16 %v96
  %v992 = vunpack.c.l.b16 %v97
  %v993 = vunpack.c.l.b16 %v98
  %v994 = vunpack.c.l.b16 %v99
  %v995 = vunpack.c.l.b16 %v100
  %v996 = vunpack.c.l.b16 %v101
  %v997 = vunpack.c.l.b16 %v102
  %v998 = vunpack.c.l.b16 %v103
  %v999 = vunpack.c.l.b16 %v104
  %v1000 = vunpack.c.l.b16 %v105
  %v1001 = vunpack.c.l.b16 %v106
  %v1002 = vunpack.c.l.b16 %v107
  %v1003 = vunpack.c.l.b16 %v108
  %v1004 = vunpack.c.l.b16 %v109
  %v1005 = vunpack.c.l.b16 %v110
  %v1006 = vunpack.c.l.b16 %v111
  %v1007 = vunpack.c.l.b16 %v112
  %v1008 = vunpack.c.l.b16 %v113
  %v1009 = vunpack.c.l.b16 %v114
  %v1010 = vunpack.c.l.b16 %v115
  %v1011 = vunpack.c.l.b16 %v116
  %v1012 = vunpack.c.l.b16 %v117
  %v1013 = vunpack.c.l.b16 %v118
  %v1014 = vunpack.c.l.b16 %v119
  %v1015 = vunpack.c.l.b16 %v120
  %v1016 = vunpack.c.l.b16 %v121
  %v1017 = vunpack.c.l.b16 %v122
  %v1018 = vunpack.c.l.b16 %v123
  %v1019 = vunpack.c.l.b16 %v124
  %v1020 = vunpack.c.l.b16 %v125
  %v1021 = vunpack.c.l.b16 %v126
  %v1022 = vunpack.c.l.b16 %v127
  %v1023 = vunpack.c.l.b16 %v128
  %v1024 = vunpack.c.l.b16 %v129
  %v1025 = vunpack.c.l.b16 %v130
  %v1026 = vunpack.c.l.b16 %v131
  %v1027 = vunpack.c.l.b16 %v132
  %v1028 = vunpack.c.l.b16 %v133
  %v1029 = vunpack.c.l.b16 %v134
  %v1030 = vunpack.c.l.b16 %v135
  %v1031 = vunpack.c.l.b16 %v136
  %v1032 = vunpack.c.l.b16 %v137
  %v1033 = vunpack.c.l.b16 %v138
  %v1034 = vunpack.c.l.b16 %v139
  %v1035 = vunpack.c.l.b16 %v140
  %v1036 = vunpack.c.l.b16 %v141
  %v1037 = vunpack.c.l.b16 %v142
  %v1038 = vunpack.c.l.b16 %v143
  %v1039 = vunpack.c.l.b16 %v144
  %v1040 = vunpack.c.l.b16 %v145
  %v1041 = vunpack.c.l.b16 %v146
  %v1042 = vunpack.c.l.b16 %v147
  %v1043 = vunpack.c.l.b16 %v148
  %v1044 = vunpack.c.l.b16 %v149
  %v1045 = vunpack.c.l.b16 %v150
  %v1046 = vunpack.c.l.b16 %v151
  %v1047 = vunpack.c.l.b16 %v152
  %v1048 = vunpack.c.l.b16 %v153
  %v1049 = vunpack.c.l.b16 %v154
  %v1050 = vunpack.c.l.b16 %v155
  %v1051 = vunpack.c.l.b16 %v156
  %v1052 = vunpack.c.l.b16 %v157
  %v1053 = vunpack.c.l.b16 %v158
  %v1054 = vunpack.c.l.b16 %v159
  %v1055 = vunpack.c.l.b16 %v160
  %v1056 = vunpack.c.l.b16 %v161
  %v1057 = vunpack.c.l.b16 %v162
  %v1058 = vunpack.c.l.b16 %v163
  %v1059 = vunpack.c.l.b16 %v164
  %v1060 = vunpack.c.l.b16 %v165
  %v1061 = vunpack.c.l.b16 %v166
  %v1062 = vunpack.c.l.b16 %v167
  %v1063 = vunpack.c.l.b16 %v168
  %v1064 = vunpack.c.l.b16 %v169
  %v1065 = vunpack.c.l.b16 %v170
  %v1066 = vunpack.c.l.b16 %v171
  %v1067 = vunpack.c.l.b16 %v172
  %v1068 = vunpack.c.l.b16 %v173
  %v1069 = vunpack.c.l.b16 %v174
  %v1070 = vunpack.c.l.b16 %v175
  %v1071 = vunpack.c.l.b16 %v176
  %v1072 = vunpack.c.l.b16 %v177
  %v1073 = vunpack.c.l.b16 %v178
  %v1074 = vunpack.c.l.b16 %v179
  %v1075 = vunpack.c.l.b16 %v180
  %v1076 = vunpack.c.l.b16 %v181
  %v1077 = vunpack.c.l.b16 %v182
  %v1078 = vunpack.c.l.b16 %v183
  %v1079 = vunpack.c.l.b16 %v184
  %v1080 = vunpack.c.l.b16 %v185
  %v1081 = vunpack.c.l.b16 %v186
  %v1082 = vunpack.c.l.b16 %v187
  %v1083 = vunpack.c.l.b16 %v188
  %v1084 = vunpack.c.l.b16 %v189
  %v1085 = vunpack.c.l.b16 %v190
  %v1086 = vunpack.c.l.b16 %v191
  %v1087 = vunpack.c.l.b16 %v192
  %v1088 = vunpack.c.l.b16 %v193
  %v1089 = vunpack.c.l.b16 %v194
  %v1090 = vunpack.c.l.b16 %v195
  %v1091 = vunpack.c.l.b16 %v196
  %v1092 = vunpack.c.l.b16 %v197
  %v1093 = vunpack.c.l.b16 %v198
  %v1094 = vunpack.c.l.b16 %v199
  %v1095 = vunpack.c.l.b16 %v200
  %v1096 = vunpack.c.l.b16 %v201
  %v1097 = vunpack.c.l.b16 %v202
  %v1098 = vunpack.c.l.b16 %v203
  %v1099 = vunpack.c.l.b16 %v204
  %v1100 = vunpack.c.l.b16 %v205
  %v1101 = vunpack.c.l.b16 %v206
  %v1102 = vunpack.c.l.b16 %v207
  %v1103 = vunpack.c.l.b16 %v208
  %v1104 = vunpack.c.l.b16 %v209
  %v1105 = vunpack.c.l.b16 %v210
  %v1106 = vunpack.c.l.b16 %v211
  %v1107 = vunpack.c.l.b16 %v212
  %v1108 = vunpack.c.l.b16 %v213
  %v1109 = vunpack.c.l.b16 %v214
  %v1110 = vunpack.c.l.b16 %v215
  %v1111 = vunpack.c.l.b16 %v216
  %v1112 = vunpack.c.l.b16 %v217
  %v1113 = vunpack.c.l.b16 %v218
  %v1114 = vunpack.c.l.b16 %v219
  %v1115 = vunpack.c.l.b16 %v220
  %v1116 = vunpack.c.l.b16 %v221
  %v1117 = vunpack.c.l.b16 %v222
  %v1118 = vunpack.c.l.b16 %v223
  %v1119 = vunpack.c.l.b16 %v224
  %v1120 = vunpack.c.l.b16 %v225
  %v1121 = vunpack.c.l.b16 %v226
  %v1122 = vunpack.c.l.b16 %v227
  %v1123 = vunpack.c.l.b16 %v228
  %v1124 = vunpack.c.l.b16 %v229
  %v1125 = vunpack.c.l.b16 %v230
  %v1126 = vunpack.c.l.b16 %v231
  %v1127 = vunpack.c.l.b16 %v232
  %v1128 = vunpack.c.l.b16 %v233
  %v1129 = vunpack.c.l.b16 %v234
  %v1130 = vunpack.c.l.b16 %v235
  %v1131 = vunpack.c.l.b16 %v236
  %v1132 = vunpack.c.l.b16 %v237
  %v1133 = vunpack.c.l.b16 %v238
  %v1134 = vunpack.c.l.b16 %v239
  %v1135 = vunpack.c.l.b16 %v240
  %v1136 = vunpack.c.l.b16 %v241
  %v1137 = vunpack.c.l.b16 %v242
  %v1138 = vunpack.c.l.b16 %v243
  %v1139 = vunpack.c.l.b16 %v244
  %v1140 = vunpack.c.l.b16 %v245
  %v1141 = vunpack.c.l.b16 %v246
  %v1142 = vunpack.c.l.b16 %v247
  %v1143 = vunpack.c.l.b16 %v248
  %v1144 = vunpack.c.l.b16 %v249
  %v1145 = vunpack.c.l.b16 %v250
  %v1146 = vunpack.c.l.b16 %v251
  %v1147 = vunpack.c.l.b16 %v252
  %v1148 = vunpack.c.l.b16 %v253
  %v1149 = vunpack.c.l.b16 %v254
  %v1150 = vunpack.c.l.b16 %v255
  %v1151 = vunpack.c.l.b16 %v256
  %v1152 = vunpack.c.l.b16 %v257
  %v1153 = vunpack.c.l.b16 %v258
  %v1154 = vunpack.c.l.b16 %v259
  %v1155 = vunpack.c.l.b16 %v260
  %v1156 = vunpack.c.l.b16 %v261
  %v1157 = vunpack.c.l.b16 %v262
  %v1158 = vunpack.c.l.b16 %v263
  %v1159 = vunpack.c.l.b16 %v264
  %v1160 = vunpack.c.l.b16 %v265
  %v1161 = vunpack.c.l.b16 %v266
  %v1162 = vunpack.c.l.b16 %v267
  %v1163 = vunpack.c.l.b16 %v268
  %v1164 = vunpack.c.l.b16 %v269
  %v1165 = vunpack.c.l.b16 %v270
  %v1166 = vunpack.c.l.b16 %v271
  %v1167 = vunpack.c.l.b16 %v272
  %v1168 = vunpack.c.l.b16 %v273
  %v1169 = vunpack.c.l.b16 %v274
  %v1170 = vunpack.c.l.b16 %v275
  %v1171 = vunpack.c.l.b16 %v276
  %v1172 = vunpack.c.l.b16 %v277
  %v1173 = vunpack.c.l.b16 %v278
  %v1174 = vunpack.c.l.b16 %v279
  %v1175 = vunpack.c.l.b16 %v280
  %v1176 = vunpack.c.l.b16 %v281
  %v1177 = vunpack.c.l.b16 %v282
  %v1178 = vunpack.c.l.b16 %v283
  %v1179 = vunpack.c.l.b16 %v284
  %v1180 = vunpack.c.l.b16 %v285
  %v1181 = vunpack.c.l.b16 %v286
  %v1182 = vunpack.c.l.b16 %v287
  %v1183 = vunpack.c.l.b16 %v288
  %v1184 = vunpack.c.l.b16 %v289
  %v1185 = vunpack.c.l.b16 %v290
  %v1186 = vunpack.c.l.b16 %v291
  %v1187 = vunpack.c.l.b16 %v292
  %v1188 = vunpack.c.l.b16 %v293
  %v1189 = vunpack.c.l.b16 %v294
  %v1190 = vunpack.c.l.b16 %v295
  %v1191 = vunpack.c.l.b16 %v296
  %v1192 = vunpack.c.l.b16 %v297
  %v1193 = vunpack.c.l.b16 %v298
  %v1194 = vunpack.c.l.b16 %v299
  %v1195 = vunpack.c.l.b16 %v300
  %v1196 = vunpack.c.l.b16 %v301
  %v1197 = vunpack.c.l.b16 %v302
  %v1198 = vunpack.c.l.b16 %v303
  %v1199 = vunpack.c.l.b16 %v304
  %v1200 = vunpack.c.l.b16 %v305
  %v1201 = vunpack.c.l.b16 %v306
  %v1202 = vunpack.c.l.b16 %v307
  %v1203 = vunpack.c.l.b16 %v308
  %v1204 = vunpack.c.l.b16 %v309
  %v1205 = vunpack.c.l.b16 %v310
  %v1206 = vunpack.c.l.b16 %v311
  %v1207 = vunpack.c.l.b16 %v312
  %v1208 = vunpack.c.l.b16 %v313
  %v1209 = vunpack.c.l.b16 %v314
  %v1210 = vunpack.c.l.b16 %v315
  %v1211 = vunpack.c.l.b16 %v316
  %v1212 = vunpack.c.l.b16 %v317
  %v1213 = vunpack.c.l.b16 %v318
  %v1214 = vunpack.c.l.b16 %v319
  %v1215 = vunpack.c.l.b16 %v320
  %v1216 = vunpack.c.l.b16 %v321
  %v1217 = vunpack.c.l.b16 %v322
  %v1218 = vunpack.c.l.b16 %v323
  %v1219 = vunpack.c.l.b16 %v324
  %v1220 = vunpack.c.l.b16 %v325
  %v1221 = vunpack.c.l.b16 %v326
  %v1222 = vunpack.c.l.b16 %v327
  %v1223 = vunpack.c.l.b16 %v328
  %v1224 = vunpack.c.l.b16 %v329
  %v1225 = vunpack.c.l.b16 %v330
  %v1226 = vunpack.c.l.b16 %v331
  %v1227 = vunpack.c.l.b16 %v332
  %v1228 = vunpack.c.l.b16 %v333
  %v1229 = vunpack.c.l.b16 %v334
  %v1230 = vunpack.c.l.b16 %v335
  %v1231 = vunpack.c.l.b16 %v336
  %v1232 = vunpack.c.l.b16 %v337
  %v1233 = vunpack.c.l.b16 %v338
  %v1234 = vunpack.c.l.b16 %v339
  %v1235 = vunpack.c.l.b16 %v340
  %v1236 = vunpack.c.l.b16 %v341
  %v1237 = vunpack.c.l.b16 %v342
  %v1238 = vunpack.c.l.b16 %v343
  %v1239 = vunpack.c.l.b16 %v344
  %v1240 = vunpack.c.l.b16 %v345
  %v1241 = vunpack.c.l.b16 %v346
  %v1242 = vunpack.c.l.b16 %v347
  %v1243 = vunpack.c.l.b16 %v348
  %v1244 = vunpack.c.l.b16 %v349
  %v1245 = vunpack.c.l.b16 %v350
  %v1246 = vunpack.c.l.b16 %v351
  %v1247 = vunpack.c.l.b16 %v352
  %v1248 = vunpack.c.l.b16 %v353
  %v1249 = vunpack.c.l.b16 %v354
  %v1250 = vunpack.c.l.b16 %v355
  %v1251 = vunpack.c.l.b16 %v356
  %v1252 = vunpack.c.l.b16 %v357
  %v1253 = vunpack.c.l.b16 %v358
  %v1254 = vunpack.c.l.b16 %v359
  %v1255 = vunpack.c.l.b16 %v360
  %v1256 = vunpack.c.l.b16 %v361
  %v1257 = vunpack.c.l.b16 %v362
  %v1258 = vunpack.c.l.b16 %v363
  %v1259 = vunpack.c.l.b16 %v364
  %v1260 = vunpack.c.l.b16 %v365
  %v1261 = vunpack.c.l.b16 %v366
  %v1262 = vunpack.c.l.b16 %v367
  %v1263 = vunpack.c.l.b16 %v368
  %v1264 = vunpack.c.l.b16 %v369
  %v1265 = vunpack.c.l.b16 %v370
  %v1266 = vunpack.c.l.b16 %v371
  %v1267 = vunpack.c.l.b16 %v372
  %v1268 = vunpack.c.l.b16 %v373
  %v1269 = vunpack.c.l.b16 %v374
  %v1270 = vunpack.c.l.b16 %v375
  %v1271 = vunpack.c.l.b16 %v376
  %v1272 = vunpack.c.l.b16 %v377
  %v1273 = vunpack.c.l.b16 %v378
  %v1274 = vunpack.c.l.b16 %v379
  %v1275 = vunpack.c.l.b16 %v380
  %v1276 = vunpack.c.l.b16 %v381
  %v1277 = vunpack.c.l.b16 %v382
  %v1278 = vunpack.c.l.b16 %v383
  %v1279 = vunpack.c.l.b16 %v384
  %v1280 = vunpack.c.l.b16 %v385
  %v1281 = vunpack.c.l.b16 %v386
  %v1282 = vunpack.c.l.b16 %v387
  %v1283 = vunpack.c.l.b16 %v388
  %v1284 = vunpack.c.l.b16 %v389
  %v1285 = vunpack.c.l.b16 %v390
  %v1286 = vunpack.c.l.b16 %v391
  %v1287 = vunpack.c.l.b16 %v392
  %v1288 = vunpack.c.l.b16 %v393
  %v1289 = vunpack.c.l.b16 %v394
  %v1290 = vunpack.c.l.b16 %v395
  %v1291 = vunpack.c.l.b16 %v396
  %v1292 = vunpack.c.l.b16 %v397
  %v1293 = vunpack.c.l.b16 %v398
  %v1294 = vunpack.c.l.b16 %v399
  %v1295 = vunpack.c.l.b16 %v400
  %v1296 = vunpack.c.l.b16 %v401
  %v1297 = vunpack.c.l.b16 %v402
  %v1298 = vunpack.c.l.b16 %v403
  %v1299 = vunpack.c.l.b16 %v404
  %v1300 = vunpack.c.l.b16 %v405
  %v1301 = vunpack.c.l.b16 %v406
  %v1302 = vunpack.c.l.b16 %v407
  %v1303 = vunpack.c.l.b16 %v408
  %v1304 = vunpack.c.l.b16 %v409
  %v1305 = vunpack.c.l.b16 %v410
  %v1306 = vunpack.c.l.b16 %v411
  %v1307 = vunpack.c.l.b16 %v412
  %v1308 = vunpack.c.l.b16 %v413
  %v1309 = vunpack.c.l.b16 %v414
  %v1310 = vunpack.c.l.b16 %v415
  %v1311 = vunpack.c.l.b16 %v416
  %v1312 = vunpack.c.l.b16 %v417
  %v1313 = vunpack.c.l.b16 %v418
  %v1314 = vunpack.c.l.b16 %v419
  %v1315 = vunpack.c.l.b16 %v420
  %v1316 = vunpack.c.l.b16 %v421
  %v1317 = vunpack.c.l.b16 %v422
  %v1318 = vunpack.c.l.b16 %v423
  %v1319 = vunpack.c.l.b16 %v424
  %v1320 = vunpack.c.l.b16 %v425
  %v1321 = vunpack.c.l.b16 %v426
  %v1322 = vunpack.c.l.b16 %v427
  %v1323 = vunpack.c.l.b16 %v428
  %v1324 = vunpack.c.l.b16 %v429
  %v1325 = vunpack.c.l.b16 %v430
  %v1326 = vunpack.c.l.b16 %v431
  %v1327 = vunpack.c.l.b16 %v432
  %v1328 = vunpack.c.l.b16 %v433
  %v1329 = vunpack.c.l.b16 %v434
  %v1330 = vunpack.c.l.b16 %v435
  %v1331 = vunpack.c.l.b16 %v436
  %v1332 = vunpack.c.l.b16 %v437
  %v1333 = vunpack.c.l.b16 %v438
  %v1334 = vunpack.c.l.b16 %v439
  %v1335 = vpack.c.b16 %v936, %v935
  %v1336 = vpack.c.b16 %v938, %v937
  %v1337 = vpack.c.b16 %v940, %v939
  %v1338 = vpack.c.b16 %v942, %v941
  %v1339 = vpack.c.b16 %v944, %v943
  %v1340 = vpack.c.b16 %v946, %v945
  %v1341 = vpack.c.b16 %v948, %v947
  %v1342 = vpack.c.b16 %v950, %v949
  %v1343 = vpack.c.b16 %v952, %v951
  %v1344 = vpack.c.b16 %v954, %v953
  %v1345 = vpack.c.b16 %v956, %v955
  %v1346 = vpack.c.b16 %v958, %v957
  %v1347 = vpack.c.b16 %v960, %v959
  %v1348 = vpack.c.b16 %v962, %v961
  %v1349 = vpack.c.b16 %v964, %v963
  %v1350 = vpack.c.b16 %v966, %v965
  %v1351 = vpack.c.b16 %v968, %v967
  %v1352 = vpack.c.b16 %v970, %v969
  %v1353 = vpack.c.b16 %v972, %v971
  %v1354 = vpack.c.b16 %v974, %v973
  %v1355 = vpack.c.b16 %v976, %v975
  %v1356 = vpack.c.b16 %v978, %v977
  %v1357 = vpack.c.b16 %v980, %v979
  %v1358 = vpack.c.b16 %v982, %v981
  %v1359 = vpack.c.b16 %v984, %v983
  %v1360 = vpack.c.b16 %v986, %v985
  %v1361 = vpack.c.b16 %v988, %v987
  %v1362 = vpack.c.b16 %v990, %v989
  %v1363 = vpack.c.b16 %v992, %v991
  %v1364 = vpack.c.b16 %v994, %v993
  %v1365 = vpack.c.b16 %v996, %v995
  %v1366 = vpack.c.b16 %v998, %v997
  %v1367 = vpack.c.b16 %v1000, %v999
  %v1368 = vpack.c.b16 %v1002, %v1001
  %v1369 = vpack.c.b16 %v1004, %v1003
  %v1370 = vpack.c.b16 %v1006, %v1005
  %v1371 = vpack.c.b16 %v1008, %v1007
  %v1372 = vpack.c.b16 %v1010, %v1009
  %v1373 = vpack.c.b16 %v1012, %v1011
  %v1374 = vpack.c.b16 %v1014, %v1013
  %v1375 = vpack.c.b16 %v1016, %v1015
  %v1376 = vpack.c.b16 %v1018, %v1017
  %v1377 = vpack.c.b16 %v1020, %v1019
  %v1378 = vpack.c.b16 %v1022, %v1021
  %v1379 = vpack.c.b16 %v1024, %v1023
  %v1380 = vpack.c.b16 %v1026, %v1025
  %v1381 = vpack.c.b16 %v1028, %v1027
  %v1382 = vpack.c.b16 %v1030, %v1029
  %v1383 = vpack.c.b16 %v1032, %v1031
  %v1384 = vpack.c.b16 %v1034, %v1033
  %v1385 = vpack.c.b16 %v1036, %v1035
  %v1386 = vpack.c.b16 %v1038, %v1037
  %v1387 = vpack.c.b16 %v1040, %v1039
  %v1388 = vpack.c.b16 %v1042, %v1041
  %v1389 = vpack.c.b16 %v1044, %v1043
  %v1390 = vpack.c.b16 %v1046, %v1045
  %v1391 = vpack.c.b16 %v1048, %v1047
  %v1392 = vpack.c.b16 %v1050, %v1049
  %v1393 = vpack.c.b16 %v1052, %v1051
  %v1394 = vpack.c.b16 %v1054, %v1053
  %v1395 = vpack.c.b16 %v1056, %v1055
  %v1396 = vpack.c.b16 %v1058, %v1057
  %v1397 = vpack.c.b16 %v1060, %v1059
  %v1398 = vpack.c.b16 %v1062, %v1061
  %v1399 = vpack.c.b16 %v1064, %v1063
  %v1400 = vpack.c.b16 %v1066, %v1065
  %v1401 = vpack.c.b16 %v1068, %v1067
  %v1402 = vpack.c.b16 %v1070, %v1069
  %v1403 = vpack.c.b16 %v1072, %v1071
  %v1404 = vpack.c.b16 %v1074, %v1073
  %v1405 = vpack.c.b16 %v1076, %v1075
  %v1406 = vpack.c.b16 %v1078, %v1077
  %v1407 = vpack.c.b16 %v1080, %v1079
  %v1408 = vpack.c.b16 %v1082, %v1081
  %v1409 = vpack.c.b16 %v1084, %v1083
  %v1410 = vpack.c.b16 %v1086, %v1085
  %v1411 = vpack.c.b16 %v1088, %v1087
  %v1412 = vpack.c.b16 %v1090, %v1089
  %v1413 = vpack.c.b16 %v1092, %v1091
  %v1414 = vpack.c.b16 %v1094, %v1093
  %v1415 = vpack.c.b16 %v1096, %v1095
  %v1416 = vpack.c.b16 %v1098, %v1097
  %v1417 = vpack.c.b16 %v1100, %v1099
  %v1418 = vpack.c.b16 %v1102, %v1101
  %v1419 = vpack.c.b16 %v1104, %v1103
  %v1420 = vpack.c.b16 %v1106, %v1105
  %v1421 = vpack.c.b16 %v1108, %v1107
  %v1422 = vpack.c.b16 %v1110, %v1109
  %v1423 = vpack.c.b16 %v1112, %v1111
  %v1424 = vpack.c.b16 %v1114, %v1113
  %v1425 = vpack.c.b16 %v1116, %v1115
  %v1426 = vpack.c.b16 %v1118, %v1117
  %v1427 = vpack.c.b16 %v1120, %v1119
  %v1428 = vpack.c.b16 %v1122, %v1121
  %v1429 = vpack.c.b16 %v1124, %v1123
  %v1430 = vpack.c.b16 %v1126, %v1125
  %v1431 = vpack.c.b16 %v1128, %v1127
  %v1432 = vpack.c.b16 %v1130, %v1129
  %v1433 = vpack.c.b16 %v1132, %v1131
  %v1434 = vpack.c.b16 %v1134, %v1133
  %v1435 = vpack.c.b16 %v1136, %v1135
  %v1436 = vpack.c.b16 %v1138, %v1137
  %v1437 = vpack.c.b16 %v1140, %v1139
  %v1438 = vpack.c.b16 %v1142, %v1141
  %v1439 = vpack.c.b16 %v1144, %v1143
  %v1440 = vpack.c.b16 %v1146, %v1145
  %v1441 = vpack.c.b16 %v1148, %v1147
  %v1442 = vpack.c.b16 %v1150, %v1149
  %v1443 = vpack.c.b16 %v1152, %v1151
  %v1444 = vpack.c.b16 %v1154, %v1153
  %v1445 = vpack.c.b16 %v1156, %v1155
  %v1446 = vpack.c.b16 %v1158, %v1157
  %v1447 = vpack.c.b16 %v1160, %v1159
  %v1448 = vpack.c.b16 %v1162, %v1161
  %v1449 = vpack.c.b16 %v1164, %v1163
  %v1450 = vpack.c.b16 %v1166, %v1165
  %v1451 = vpack.c.b16 %v1168, %v1167
  %v1452 = vpack.c.b16 %v1170, %v1169
  %v1453 = vpack.c.b16 %v1172, %v1171
  %v1454 = vpack.c.b16 %v1174, %v1173
  %v1455 = vpack.c.b16 %v1176, %v1175
  %v1456 = vpack.c.b16 %v1178, %v1177
  %v1457 = vpack.c.b16 %v1180, %v1179
  %v1458 = vpack.c.b16 %v1182, %v1181
  %v1459 = vpack.c.b16 %v1184, %v1183
  %v1460 = vpack.c.b16 %v1186, %v1185
  %v1461 = vpack.c.b16 %v1188, %v1187
  %v1462 = vpack.c.b16 %v1190, %v1189
  %v1463 = vpack.c.b16 %v1192, %v1191
  %v1464 = vpack.c.b16 %v1194, %v1193
  %v1465 = vpack.c.b16 %v1196, %v1195
  %v1466 = vpack.c.b16 %v1198, %v1197
  %v1467 = vpack.c.b16 %v1200, %v1199
  %v1468 = vpack.c.b16 %v1202, %v1201
  %v1469 = vpack.c.b16 %v1204, %v1203
  %v1470 = vpack.c.b16 %v1206, %v1205
  %v1471 = vpack.c.b16 %v1208, %v1207
  %v1472 = vpack.c.b16 %v1210, %v1209
  %v1473 = vpack.c.b16 %v1212, %v1211
  %v1474 = vpack.c.b16 %v1214, %v1213
  %v1475 = vpack.c.b16 %v1216, %v1215
  %v1476 = vpack.c.b16 %v1218, %v1217
  %v1477 = vpack.c.b16 %v1220, %v1219
  %v1478 = vpack.c.b16 %v1222, %v1221
  %v1479 = vpack.c.b16 %v1224, %v1223
  %v1480 = vpack.c.b16 %v1226, %v1225
  %v1481 = vpack.c.b16 %v1228, %v1227
  %v1482 = vpack.c.b16 %v1230, %v1229
  %v1483 = vpack.c.b16 %v1232, %v1231
  %v1484 = vpack.c.b16 %v1234, %v1233
  %v1485 = vpack.c.b16 %v1236, %v1235
  %v1486 = vpack.c.b16 %v1238, %v1237
  %v1487 = vpack.c.b16 %v1240, %v1239
  %v1488 = vpack.c.b16 %v1242, %v1241
  %v1489 = vpack.c.b16 %v1244, %v1243
  %v1490 = vpack.c.b16 %v1246, %v1245
  %v1491 = vpack.c.b16 %v1248, %v1247
  %v1492 = vpack.c.b16 %v1250, %v1249
  %v1493 = vpack.c.b16 %v1252, %v1251
  %v1494 = vpack.c.b16 %v1254, %v1253
  %v1495 = vpack.c.b16 %v1256, %v1255
  %v1496 = vpack.c.b16 %v1258, %v1257
  %v1497 = vpack.c.b16 %v1260, %v1259
  %v1498 = vpack.c.b16 %v1262, %v1261
  %v1499 = vpack.c.b16 %v1264, %v1263
  %v1500 = vpack.c.b16 %v1266, %v1265
  %v1501 = vpack.c.b16 %v1268, %v1267
  %v1502 = vpack.c.b16 %v1270, %v1269
  %v1503 = vpack.c.b16 %v1272, %v1271
  %v1504 = vpack.c.b16 %v1274, %v1273
  %v1505 = vpack.c.b16 %v1276, %v1275
  %v1506 = vpack.c.b16 %v1278, %v1277
  %v1507 = vpack.c.b16 %v1280, %v1279
  %v1508 = vpack.c.b16 %v1282, %v1281
  %v1509 = vpack.c.b16 %v1284, %v1283
  %v1510 = vpack.c.b16 %v1286, %v1285
  %v1511 = vpack.c.b16 %v1288, %v1287
  %v1512 = vpack.c.b16 %v1290, %v1289
  %v1513 = vpack.c.b16 %v1292, %v1291
  %v1514 = vpack.c.b16 %v1294, %v1293
  %v1515 = vpack.c.b16 %v1296, %v1295
  %v1516 = vpack.c.b16 %v1298, %v1297
  %v1517 = vpack.c.b16 %v1300, %v1299
  %v1518 = vpack.c.b16 %v1302, %v1301
  %v1519 = vpack.c.b16 %v1304, %v1303
  %v1520 = vpack.c.b16 %v1306, %v1305
  %v1521 = vpack.c.b16 %v1308, %v1307
  %v1522 = vpack.c.b16 %v1310, %v1309
  %v1523 = vpack.c.b16 %v1312, %v1311
  %v1524 = vpack.c.b16 %v1314, %v1313
  %v1525 = vpack.c.b16 %v1316, %v1315
  %v1526 = vpack.c.b16 %v1318, %v1317
  %v1527 = vpack.c.b16 %v1320, %v1319
  %v1528 = vpack.c.b16 %v1322, %v1321
  %v1529 = vpack.c.b16 %v1324, %v1323
  %v1530 = vpack.c.b16 %v1326, %v1325
  %v1531 = vpack.c.b16 %v1328, %v1327
  %v1532 = vpack.c.b16 %v1330, %v1329
  %v1533 = vpack.c.b16 %v1332, %v1331
  %v1534 = vpack.c.b16 %v1334, %v1333
  %1735 = vmatprep.subr.bf16.mxu0 0
  %1736 = vmatpush1.bf16.msra.mxu0 %v1335
  %1737 = vmatprep.subr.bf16.mxu0 0
  %1738 = vmatpush1.bf16.msra.mxu0 %v1336
  %1739 = vmatprep.subr.bf16.mxu0 0
  %1740 = vmatpush1.bf16.msra.mxu0 %v1337
  %1741 = vmatprep.subr.bf16.mxu0 0
  %1742 = vmatpush1.bf16.msra.mxu0 %v1338
  %1743 = vmatprep.subr.bf16.mxu0 0
  %1744 = vmatpush1.bf16.msra.mxu0 %v1339
  %1745 = vmatprep.subr.bf16.mxu0 0
  %1746 = vmatpush1.bf16.msra.mxu0 %v1340
  %1747 = vmatprep.subr.bf16.mxu0 0
  %1748 = vmatpush1.bf16.msra.mxu0 %v1341
  %1749 = vmatprep.subr.bf16.mxu0 0
  %1750 = vmatpush1.bf16.msra.mxu0 %v1342
  %1751 = vmatprep.subr.bf16.mxu0 0
  %1752 = vmatpush1.bf16.msra.mxu0 %v1343
  %1753 = vmatprep.subr.bf16.mxu0 0
  %1754 = vmatpush1.bf16.msra.mxu0 %v1344
  %1755 = vmatprep.subr.bf16.mxu0 0
  %1756 = vmatpush1.bf16.msra.mxu0 %v1345
  %1757 = vmatprep.subr.bf16.mxu0 0
  %1758 = vmatpush1.bf16.msra.mxu0 %v1346
  %1759 = vmatprep.subr.bf16.mxu0 0
  %1760 = vmatpush1.bf16.msra.mxu0 %v1347
  %1761 = vmatprep.subr.bf16.mxu0 0
  %1762 = vmatpush1.bf16.msra.mxu0 %v1348
  %1763 = vmatprep.subr.bf16.mxu0 0
  %1764 = vmatpush1.bf16.msra.mxu0 %v1349
  %1765 = vmatprep.subr.bf16.mxu0 0
  %1766 = vmatpush1.bf16.msra.mxu0 %v1350
  %1767 = vmatprep.mubr.bf16.mxu0 %v486
  %1768 = vmatmul.mubr.bf16.gmra.mrb[0].mxu0 %v485
  %v1769 = vpop.f32.mrb[0].mxu0
  %v1770 = vadd.f32 %v445, %v1769
  %v1771 = vpop.f32.mrb[0].mxu0
  %v1772 = vpop.f32.mrb[0].mxu0
  %v1773 = vpop.f32.mrb[0].mxu0
  %1774 = vdwg.mxu0
  %1775 = vmatprep.subr.bf16.mxu0 0
  %1776 = vmatpush1.bf16.msra.mxu0 %v1351
  %1777 = vmatprep.subr.bf16.mxu0 0
  %1778 = vmatpush1.bf16.msra.mxu0 %v1352
  %1779 = vmatprep.subr.bf16.mxu0 0
  %1780 = vmatpush1.bf16.msra.mxu0 %v1353
  %1781 = vmatprep.subr.bf16.mxu0 0
  %1782 = vmatpush1.bf16.msra.mxu0 %v1354
  %1783 = vmatprep.subr.bf16.mxu0 0
  %1784 = vmatpush1.bf16.msra.mxu0 %v1355
  %1785 = vmatprep.subr.bf16.mxu0 0
  %1786 = vmatpush1.bf16.msra.mxu0 %v1356
  %1787 = vmatprep.subr.bf16.mxu0 0
  %1788 = vmatpush1.bf16.msra.mxu0 %v1357
  %1789 = vmatprep.subr.bf16.mxu0 0
  %1790 = vmatpush1.bf16.msra.mxu0 %v1358
  %1791 = vmatprep.subr.bf16.mxu0 0
  %1792 = vmatpush1.bf16.msra.mxu0 %v1359
  %1793 = vmatprep.subr.bf16.mxu0 0
  %1794 = vmatpush1.bf16.msra.mxu0 %v1360
  %1795 = vmatprep.subr.bf16.mxu0 0
  %1796 = vmatpush1.bf16.msra.mxu0 %v1361
  %1797 = vmatprep.subr.bf16.mxu0 0
  %1798 = vmatpush1.bf16.msra.mxu0 %v1362
  %1799 = vmatprep.subr.bf16.mxu0 0
  %1800 = vmatpush1.bf16.msra.mxu0 %v1363
  %1801 = vmatprep.subr.bf16.mxu0 0
  %1802 = vmatpush1.bf16.msra.mxu0 %v1364
  %1803 = vmatprep.subr.bf16.mxu0 0
  %1804 = vmatpush1.bf16.msra.mxu0 %v1365
  %1805 = vmatprep.subr.bf16.mxu0 0
  %1806 = vmatpush1.bf16.msra.mxu0 %v1366
  %1807 = vmatprep.mubr.bf16.mxu0 %v488
  %1808 = vmatmul.mubr.bf16.gmra.mrb[0].mxu0 %v487
  %v1809 = vpop.f32.mrb[0].mxu0
  %v1810 = vadd.f32 %v1770, %v1809
  %v1811 = vpop.f32.mrb[0].mxu0
  %v1812 = vpop.f32.mrb[0].mxu0
  %v1813 = vpop.f32.mrb[0].mxu0
  %1814 = vdwg.mxu0
  %1815 = vmatprep.subr.bf16.mxu0 0
  %1816 = vmatpush1.bf16.msra.mxu0 %v1367
  %1817 = vmatprep.subr.bf16.mxu0 0
  %1818 = vmatpush1.bf16.msra.mxu0 %v1368
  %1819 = vmatprep.subr.bf16.mxu0 0
  %1820 = vmatpush1.bf16.msra.mxu0 %v1369
  %1821 = vmatprep.subr.bf16.mxu0 0
  %1822 = vmatpush1.bf16.msra.mxu0 %v1370
  %1823 = vmatprep.subr.bf16.mxu0 0
  %1824 = vmatpush1.bf16.msra.mxu0 %v1371
  %1825 = vmatprep.subr.bf16.mxu0 0
  %1826 = vmatpush1.bf16.msra.mxu0 %v1372
  %1827 = vmatprep.subr.bf16.mxu0 0
  %1828 = vmatpush1.bf16.msra.mxu0 %v1373
  %1829 = vmatprep.subr.bf16.mxu0 0
  %1830 = vmatpush1.bf16.msra.mxu0 %v1374
  %1831 = vmatprep.subr.bf16.mxu0 0
  %1832 = vmatpush1.bf16.msra.mxu0 %v1375
  %1833 = vmatprep.subr.bf16.mxu0 0
  %1834 = vmatpush1.bf16.msra.mxu0 %v1376
  %1835 = vmatprep.subr.bf16.mxu0 0
  %1836 = vmatpush1.bf16.msra.mxu0 %v1377
  %1837 = vmatprep.subr.bf16.mxu0 0
  %1838 = vmatpush1.bf16.msra.mxu0 %v1378
  %1839 = vmatprep.subr.bf16.mxu0 0
  %1840 = vmatpush1.bf16.msra.mxu0 %v1379
  %1841 = vmatprep.subr.bf16.mxu0 0
  %1842 = vmatpush1.bf16.msra.mxu0 %v1380
  %1843 = vmatprep.subr.bf16.mxu0 0
  %1844 = vmatpush1.bf16.msra.mxu0 %v1381
  %1845 = vmatprep.subr.bf16.mxu0 0
  %1846 = vmatpush1.bf16.msra.mxu0 %v1382
  %1847 = vmatprep.mubr.bf16.mxu0 %v490
  %1848 = vmatmul.mubr.bf16.gmra.mrb[0].mxu0 %v489
  %v1849 = vpop.f32.mrb[0].mxu0
  %v1850 = vadd.f32 %v1810, %v1849
  %v1851 = vpop.f32.mrb[0].mxu0
  %v1852 = vpop.f32.mrb[0].mxu0
  %v1853 = vpop.f32.mrb[0].mxu0
  %1854 = vdwg.mxu0
  %1855 = vmatprep.subr.bf16.mxu0 0
  %1856 = vmatpush1.bf16.msra.mxu0 %v1383
  %1857 = vmatprep.subr.bf16.mxu0 0
  %1858 = vmatpush1.bf16.msra.mxu0 %v1384
  %1859 = vmatprep.subr.bf16.mxu0 0
  %1860 = vmatpush1.bf16.msra.mxu0 %v1385
  %1861 = vmatprep.subr.bf16.mxu0 0
  %1862 = vmatpush1.bf16.msra.mxu0 %v1386
  %1863 = vmatprep.subr.bf16.mxu0 0
  %1864 = vmatpush1.bf16.msra.mxu0 %v1387
  %1865 = vmatprep.subr.bf16.mxu0 0
  %1866 = vmatpush1.bf16.msra.mxu0 %v1388
  %1867 = vmatprep.subr.bf16.mxu0 0
  %1868 = vmatpush1.bf16.msra.mxu0 %v1389
  %1869 = vmatprep.subr.bf16.mxu0 0
  %1870 = vmatpush1.bf16.msra.mxu0 %v1390
  %1871 = vmatprep.subr.bf16.mxu0 0
  %1872 = vmatpush1.bf16.msra.mxu0 %v1391
  %1873 = vmatprep.subr.bf16.mxu0 0
  %1874 = vmatpush1.bf16.msra.mxu0 %v1392
  %1875 = vmatprep.subr.bf16.mxu0 0
  %1876 = vmatpush1.bf16.msra.mxu0 %v1393
  %1877 = vmatprep.subr.bf16.mxu0 0
  %1878 = vmatpush1.bf16.msra.mxu0 %v1394
  %1879 = vmatprep.subr.bf16.mxu0 0
  %1880 = vmatpush1.bf16.msra.mxu0 %v1395
  %1881 = vmatprep.subr.bf16.mxu0 0
  %1882 = vmatpush1.bf16.msra.mxu0 %v1396
  %1883 = vmatprep.subr.bf16.mxu0 0
  %1884 = vmatpush1.bf16.msra.mxu0 %v1397
  %1885 = vmatprep.subr.bf16.mxu0 0
  %1886 = vmatpush1.bf16.msra.mxu0 %v1398
  %1887 = vmatprep.mubr.bf16.mxu0 %v492
  %1888 = vmatmul.mubr.bf16.gmra.mrb[0].mxu0 %v491
  %v1889 = vpop.f32.mrb[0].mxu0
  %v1890 = vadd.f32 %v1850, %v1889
  %v1891 = vpop.f32.mrb[0].mxu0
  %v1892 = vpop.f32.mrb[0].mxu0
  %v1893 = vpop.f32.mrb[0].mxu0
  %1894 = vdwg.mxu0
  %1895 = vmatprep.subr.bf16.mxu0 0
  %1896 = vmatpush1.bf16.msra.mxu0 %v1399
  %1897 = vmatprep.subr.bf16.mxu0 0
  %1898 = vmatpush1.bf16.msra.mxu0 %v1400
  %1899 = vmatprep.subr.bf16.mxu0 0
  %1900 = vmatpush1.bf16.msra.mxu0 %v1401
  %1901 = vmatprep.subr.bf16.mxu0 0
  %1902 = vmatpush1.bf16.msra.mxu0 %v1402
  %1903 = vmatprep.subr.bf16.mxu0 0
  %1904 = vmatpush1.bf16.msra.mxu0 %v1403
  %1905 = vmatprep.subr.bf16.mxu0 0
  %1906 = vmatpush1.bf16.msra.mxu0 %v1404
  %1907 = vmatprep.subr.bf16.mxu0 0
  %1908 = vmatpush1.bf16.msra.mxu0 %v1405
  %1909 = vmatprep.subr.bf16.mxu0 0
  %1910 = vmatpush1.bf16.msra.mxu0 %v1406
  %1911 = vmatprep.subr.bf16.mxu0 0
  %1912 = vmatpush1.bf16.msra.mxu0 %v1407
  %1913 = vmatprep.subr.bf16.mxu0 0
  %1914 = vmatpush1.bf16.msra.mxu0 %v1408
  %1915 = vmatprep.subr.bf16.mxu0 0
  %1916 = vmatpush1.bf16.msra.mxu0 %v1409
  %1917 = vmatprep.subr.bf16.mxu0 0
  %1918 = vmatpush1.bf16.msra.mxu0 %v1410
  %1919 = vmatprep.subr.bf16.mxu0 0
  %1920 = vmatpush1.bf16.msra.mxu0 %v1411
  %1921 = vmatprep.subr.bf16.mxu0 0
  %1922 = vmatpush1.bf16.msra.mxu0 %v1412
  %1923 = vmatprep.subr.bf16.mxu0 0
  %1924 = vmatpush1.bf16.msra.mxu0 %v1413
  %1925 = vmatprep.subr.bf16.mxu0 0
  %1926 = vmatpush1.bf16.msra.mxu0 %v1414
  %1927 = vmatprep.mubr.bf16.mxu0 %v494
  %1928 = vmatmul.mubr.bf16.gmra.mrb[0].mxu0 %v493
  %v1929 = vpop.f32.mrb[0].mxu0
  %v1930 = vadd.f32 %v1890, %v1929
  %v1931 = vpop.f32.mrb[0].mxu0
  %v1932 = vpop.f32.mrb[0].mxu0
  %v1933 = vpop.f32.mrb[0].mxu0
  %1934 = vdwg.mxu0
  %1935 = vmatprep.subr.bf16.mxu0 0
  %1936 = vmatpush1.bf16.msra.mxu0 %v1415
  %1937 = vmatprep.subr.bf16.mxu0 0
  %1938 = vmatpush1.bf16.msra.mxu0 %v1416
  %1939 = vmatprep.subr.bf16.mxu0 0
  %1940 = vmatpush1.bf16.msra.mxu0 %v1417
  %1941 = vmatprep.subr.bf16.mxu0 0
  %1942 = vmatpush1.bf16.msra.mxu0 %v1418
  %1943 = vmatprep.subr.bf16.mxu0 0
  %1944 = vmatpush1.bf16.msra.mxu0 %v1419
  %1945 = vmatprep.subr.bf16.mxu0 0
  %1946 = vmatpush1.bf16.msra.mxu0 %v1420
  %1947 = vmatprep.subr.bf16.mxu0 0
  %1948 = vmatpush1.bf16.msra.mxu0 %v1421
  %1949 = vmatprep.subr.bf16.mxu0 0
  %1950 = vmatpush1.bf16.msra.mxu0 %v1422
  %1951 = vmatprep.subr.bf16.mxu0 0
  %1952 = vmatpush1.bf16.msra.mxu0 %v1423
  %1953 = vmatprep.subr.bf16.mxu0 0
  %1954 = vmatpush1.bf16.msra.mxu0 %v1424
  %1955 = vmatprep.subr.bf16.mxu0 0
  %1956 = vmatpush1.bf16.msra.mxu0 %v1425
  %1957 = vmatprep.subr.bf16.mxu0 0
  %1958 = vmatpush1.bf16.msra.mxu0 %v1426
  %1959 = vmatprep.subr.bf16.mxu0 0
  %1960 = vmatpush1.bf16.msra.mxu0 %v1427
  %1961 = vmatprep.subr.bf16.mxu0 0
  %1962 = vmatpush1.bf16.msra.mxu0 %v1428
  %1963 = vmatprep.subr.bf16.mxu0 0
  %1964 = vmatpush1.bf16.msra.mxu0 %v1429
  %1965 = vmatprep.subr.bf16.mxu0 0
  %1966 = vmatpush1.bf16.msra.mxu0 %v1430
  %1967 = vmatprep.mubr.bf16.mxu0 %v496
  %1968 = vmatmul.mubr.bf16.gmra.mrb[0].mxu0 %v495
  %v1969 = vpop.f32.mrb[0].mxu0
  %v1970 = vadd.f32 %v1930, %v1969
  %v1971 = vpop.f32.mrb[0].mxu0
  %v1972 = vpop.f32.mrb[0].mxu0
  %v1973 = vpop.f32.mrb[0].mxu0
  %1974 = vdwg.mxu0
  %1975 = vmatprep.subr.bf16.mxu0 0
  %1976 = vmatpush1.bf16.msra.mxu0 %v1431
  %1977 = vmatprep.subr.bf16.mxu0 0
  %1978 = vmatpush1.bf16.msra.mxu0 %v1432
  %1979 = vmatprep.subr.bf16.mxu0 0
  %1980 = vmatpush1.bf16.msra.mxu0 %v1433
  %1981 = vmatprep.subr.bf16.mxu0 0
  %1982 = vmatpush1.bf16.msra.mxu0 %v1434
  %1983 = vmatprep.subr.bf16.mxu0 0
  %1984 = vmatpush1.bf16.msra.mxu0 %v1435
  %1985 = vmatprep.subr.bf16.mxu0 0
  %1986 = vmatpush1.bf16.msra.mxu0 %v1436
  %1987 = vmatprep.subr.bf16.mxu0 0
  %1988 = vmatpush1.bf16.msra.mxu0 %v1437
  %1989 = vmatprep.subr.bf16.mxu0 0
  %1990 = vmatpush1.bf16.msra.mxu0 %v1438
  %1991 = vmatprep.subr.bf16.mxu0 0
  %1992 = vmatpush1.bf16.msra.mxu0 %v1439
  %1993 = vmatprep.subr.bf16.mxu0 0
  %1994 = vmatpush1.bf16.msra.mxu0 %v1440
  %1995 = vmatprep.subr.bf16.mxu0 0
  %1996 = vmatpush1.bf16.msra.mxu0 %v1441
  %1997 = vmatprep.subr.bf16.mxu0 0
  %1998 = vmatpush1.bf16.msra.mxu0 %v1442
  %1999 = vmatprep.subr.bf16.mxu0 0
  %2000 = vmatpush1.bf16.msra.mxu0 %v1443
  %2001 = vmatprep.subr.bf16.mxu0 0
  %2002 = vmatpush1.bf16.msra.mxu0 %v1444
  %2003 = vmatprep.subr.bf16.mxu0 0
  %2004 = vmatpush1.bf16.msra.mxu0 %v1445
  %2005 = vmatprep.subr.bf16.mxu0 0
  %2006 = vmatpush1.bf16.msra.mxu0 %v1446
  %2007 = vmatprep.mubr.bf16.mxu0 %v498
  %2008 = vmatmul.mubr.bf16.gmra.mrb[0].mxu0 %v497
  %v2009 = vpop.f32.mrb[0].mxu0
  %v2010 = vadd.f32 %v1970, %v2009
  %v2011 = vpop.f32.mrb[0].mxu0
  %v2012 = vpop.f32.mrb[0].mxu0
  %v2013 = vpop.f32.mrb[0].mxu0
  %2014 = vdwg.mxu0
  %2015 = vmatprep.subr.bf16.mxu0 0
  %2016 = vmatpush1.bf16.msra.mxu0 %v1447
  %2017 = vmatprep.subr.bf16.mxu0 0
  %2018 = vmatpush1.bf16.msra.mxu0 %v1448
  %2019 = vmatprep.subr.bf16.mxu0 0
  %2020 = vmatpush1.bf16.msra.mxu0 %v1449
  %2021 = vmatprep.subr.bf16.mxu0 0
  %2022 = vmatpush1.bf16.msra.mxu0 %v1450
  %2023 = vmatprep.subr.bf16.mxu0 0
  %2024 = vmatpush1.bf16.msra.mxu0 %v1451
  %2025 = vmatprep.subr.bf16.mxu0 0
  %2026 = vmatpush1.bf16.msra.mxu0 %v1452
  %2027 = vmatprep.subr.bf16.mxu0 0
  %2028 = vmatpush1.bf16.msra.mxu0 %v1453
  %2029 = vmatprep.subr.bf16.mxu0 0
  %2030 = vmatpush1.bf16.msra.mxu0 %v1454
  %2031 = vmatprep.subr.bf16.mxu0 0
  %2032 = vmatpush1.bf16.msra.mxu0 %v1455
  %2033 = vmatprep.subr.bf16.mxu0 0
  %2034 = vmatpush1.bf16.msra.mxu0 %v1456
  %2035 = vmatprep.subr.bf16.mxu0 0
  %2036 = vmatpush1.bf16.msra.mxu0 %v1457
  %2037 = vmatprep.subr.bf16.mxu0 0
  %2038 = vmatpush1.bf16.msra.mxu0 %v1458
  %2039 = vmatprep.subr.bf16.mxu0 0
  %2040 = vmatpush1.bf16.msra.mxu0 %v1459
  %2041 = vmatprep.subr.bf16.mxu0 0
  %2042 = vmatpush1.bf16.msra.mxu0 %v1460
  %2043 = vmatprep.subr.bf16.mxu0 0
  %2044 = vmatpush1.bf16.msra.mxu0 %v1461
  %2045 = vmatprep.subr.bf16.mxu0 0
  %2046 = vmatpush1.bf16.msra.mxu0 %v1462
  %2047 = vmatprep.mubr.bf16.mxu0 %v500
  %2048 = vmatmul.mubr.bf16.gmra.mrb[0].mxu0 %v499
  %v2049 = vpop.f32.mrb[0].mxu0
  %v2050 = vadd.f32 %v2010, %v2049
  %v2051 = vpop.f32.mrb[0].mxu0
  %v2052 = vpop.f32.mrb[0].mxu0
  %v2053 = vpop.f32.mrb[0].mxu0
  %2054 = vdwg.mxu0
  %2055 = vmatprep.subr.bf16.mxu0 0
  %2056 = vmatpush1.bf16.msra.mxu0 %v1463
  %2057 = vmatprep.subr.bf16.mxu0 0
  %2058 = vmatpush1.bf16.msra.mxu0 %v1464
  %2059 = vmatprep.subr.bf16.mxu0 0
  %2060 = vmatpush1.bf16.msra.mxu0 %v1465
  %2061 = vmatprep.subr.bf16.mxu0 0
  %2062 = vmatpush1.bf16.msra.mxu0 %v1466
  %2063 = vmatprep.subr.bf16.mxu0 0
  %2064 = vmatpush1.bf16.msra.mxu0 %v1467
  %2065 = vmatprep.subr.bf16.mxu0 0
  %2066 = vmatpush1.bf16.msra.mxu0 %v1468
  %2067 = vmatprep.subr.bf16.mxu0 0
  %2068 = vmatpush1.bf16.msra.mxu0 %v1469
  %2069 = vmatprep.subr.bf16.mxu0 0
  %2070 = vmatpush1.bf16.msra.mxu0 %v1470
  %2071 = vmatprep.subr.bf16.mxu0 0
  %2072 = vmatpush1.bf16.msra.mxu0 %v1471
  %2073 = vmatprep.subr.bf16.mxu0 0
  %2074 = vmatpush1.bf16.msra.mxu0 %v1472
  %2075 = vmatprep.subr.bf16.mxu0 0
  %2076 = vmatpush1.bf16.msra.mxu0 %v1473
  %2077 = vmatprep.subr.bf16.mxu0 0
  %2078 = vmatpush1.bf16.msra.mxu0 %v1474
  %2079 = vmatprep.subr.bf16.mxu0 0
  %2080 = vmatpush1.bf16.msra.mxu0 %v1475
  %2081 = vmatprep.subr.bf16.mxu0 0
  %2082 = vmatpush1.bf16.msra.mxu0 %v1476
  %2083 = vmatprep.subr.bf16.mxu0 0
  %2084 = vmatpush1.bf16.msra.mxu0 %v1477
  %2085 = vmatprep.subr.bf16.mxu0 0
  %2086 = vmatpush1.bf16.msra.mxu0 %v1478
  %2087 = vmatprep.mubr.bf16.mxu0 %v502
  %2088 = vmatmul.mubr.bf16.gmra.mrb[0].mxu0 %v501
  %v2089 = vpop.f32.mrb[0].mxu0
  %v2090 = vadd.f32 %v2050, %v2089
  %v2091 = vpop.f32.mrb[0].mxu0
  %v2092 = vpop.f32.mrb[0].mxu0
  %v2093 = vpop.f32.mrb[0].mxu0
  %2094 = vdwg.mxu0
  %2095 = vmatprep.subr.bf16.mxu0 0
  %2096 = vmatpush1.bf16.msra.mxu0 %v1479
  %2097 = vmatprep.subr.bf16.mxu0 0
  %2098 = vmatpush1.bf16.msra.mxu0 %v1480
  %2099 = vmatprep.subr.bf16.mxu0 0
  %2100 = vmatpush1.bf16.msra.mxu0 %v1481
  %2101 = vmatprep.subr.bf16.mxu0 0
  %2102 = vmatpush1.bf16.msra.mxu0 %v1482
  %2103 = vmatprep.subr.bf16.mxu0 0
  %2104 = vmatpush1.bf16.msra.mxu0 %v1483
  %2105 = vmatprep.subr.bf16.mxu0 0
  %2106 = vmatpush1.bf16.msra.mxu0 %v1484
  %2107 = vmatprep.subr.bf16.mxu0 0
  %2108 = vmatpush1.bf16.msra.mxu0 %v1485
  %2109 = vmatprep.subr.bf16.mxu0 0
  %2110 = vmatpush1.bf16.msra.mxu0 %v1486
  %2111 = vmatprep.subr.bf16.mxu0 0
  %2112 = vmatpush1.bf16.msra.mxu0 %v1487
  %2113 = vmatprep.subr.bf16.mxu0 0
  %2114 = vmatpush1.bf16.msra.mxu0 %v1488
  %2115 = vmatprep.subr.bf16.mxu0 0
  %2116 = vmatpush1.bf16.msra.mxu0 %v1489
  %2117 = vmatprep.subr.bf16.mxu0 0
  %2118 = vmatpush1.bf16.msra.mxu0 %v1490
  %2119 = vmatprep.subr.bf16.mxu0 0
  %2120 = vmatpush1.bf16.msra.mxu0 %v1491
  %2121 = vmatprep.subr.bf16.mxu0 0
  %2122 = vmatpush1.bf16.msra.mxu0 %v1492
  %2123 = vmatprep.subr.bf16.mxu0 0
  %2124 = vmatpush1.bf16.msra.mxu0 %v1493
  %2125 = vmatprep.subr.bf16.mxu0 0
  %2126 = vmatpush1.bf16.msra.mxu0 %v1494
  %2127 = vmatprep.mubr.bf16.mxu0 %v504
  %2128 = vmatmul.mubr.bf16.gmra.mrb[0].mxu0 %v503
  %v2129 = vpop.f32.mrb[0].mxu0
  %v2130 = vadd.f32 %v2090, %v2129
  %v2131 = vpop.f32.mrb[0].mxu0
  %v2132 = vpop.f32.mrb[0].mxu0
  %v2133 = vpop.f32.mrb[0].mxu0
  %2134 = vdwg.mxu0
  %2135 = vmatprep.subr.bf16.mxu0 0
  %2136 = vmatpush1.bf16.msra.mxu0 %v1495
  %2137 = vmatprep.subr.bf16.mxu0 0
  %2138 = vmatpush1.bf16.msra.mxu0 %v1496
  %2139 = vmatprep.subr.bf16.mxu0 0
  %2140 = vmatpush1.bf16.msra.mxu0 %v1497
  %2141 = vmatprep.subr.bf16.mxu0 0
  %2142 = vmatpush1.bf16.msra.mxu0 %v1498
  %2143 = vmatprep.subr.bf16.mxu0 0
  %2144 = vmatpush1.bf16.msra.mxu0 %v1499
  %2145 = vmatprep.subr.bf16.mxu0 0
  %2146 = vmatpush1.bf16.msra.mxu0 %v1500
  %2147 = vmatprep.subr.bf16.mxu0 0
  %2148 = vmatpush1.bf16.msra.mxu0 %v1501
  %2149 = vmatprep.subr.bf16.mxu0 0
  %2150 = vmatpush1.bf16.msra.mxu0 %v1502
  %2151 = vmatprep.subr.bf16.mxu0 0
  %2152 = vmatpush1.bf16.msra.mxu0 %v1503
  %2153 = vmatprep.subr.bf16.mxu0 0
  %2154 = vmatpush1.bf16.msra.mxu0 %v1504
  %2155 = vmatprep.subr.bf16.mxu0 0
  %2156 = vmatpush1.bf16.msra.mxu0 %v1505
  %2157 = vmatprep.subr.bf16.mxu0 0
  %2158 = vmatpush1.bf16.msra.mxu0 %v1506
  %2159 = vmatprep.subr.bf16.mxu0 0
  %2160 = vmatpush1.bf16.msra.mxu0 %v1507
  %2161 = vmatprep.subr.bf16.mxu0 0
  %2162 = vmatpush1.bf16.msra.mxu0 %v1508
  %2163 = vmatprep.subr.bf16.mxu0 0
  %2164 = vmatpush1.bf16.msra.mxu0 %v1509
  %2165 = vmatprep.subr.bf16.mxu0 0
  %2166 = vmatpush1.bf16.msra.mxu0 %v1510
  %2167 = vmatprep.mubr.bf16.mxu0 %v506
  %2168 = vmatmul.mubr.bf16.gmra.mrb[0].mxu0 %v505
  %v2169 = vpop.f32.mrb[0].mxu0
  %v2170 = vadd.f32 %v2130, %v2169
  %v2171 = vpop.f32.mrb[0].mxu0
  %v2172 = vpop.f32.mrb[0].mxu0
  %v2173 = vpop.f32.mrb[0].mxu0
  %2174 = vdwg.mxu0
  %2175 = vmatprep.subr.bf16.mxu0 0
  %2176 = vmatpush1.bf16.msra.mxu0 %v1511
  %2177 = vmatprep.subr.bf16.mxu0 0
  %2178 = vmatpush1.bf16.msra.mxu0 %v1512
  %2179 = vmatprep.subr.bf16.mxu0 0
  %2180 = vmatpush1.bf16.msra.mxu0 %v1513
  %2181 = vmatprep.subr.bf16.mxu0 0
  %2182 = vmatpush1.bf16.msra.mxu0 %v1514
  %2183 = vmatprep.subr.bf16.mxu0 0
  %2184 = vmatpush1.bf16.msra.mxu0 %v1515
  %2185 = vmatprep.subr.bf16.mxu0 0
  %2186 = vmatpush1.bf16.msra.mxu0 %v1516
  %2187 = vmatprep.subr.bf16.mxu0 0
  %2188 = vmatpush1.bf16.msra.mxu0 %v1517
  %2189 = vmatprep.subr.bf16.mxu0 0
  %2190 = vmatpush1.bf16.msra.mxu0 %v1518
  %2191 = vmatprep.subr.bf16.mxu0 0
  %2192 = vmatpush1.bf16.msra.mxu0 %v1519
  %2193 = vmatprep.subr.bf16.mxu0 0
  %2194 = vmatpush1.bf16.msra.mxu0 %v1520
  %2195 = vmatprep.subr.bf16.mxu0 0
  %2196 = vmatpush1.bf16.msra.mxu0 %v1521
  %2197 = vmatprep.subr.bf16.mxu0 0
  %2198 = vmatpush1.bf16.msra.mxu0 %v1522
  %2199 = vmatprep.subr.bf16.mxu0 0
  %2200 = vmatpush1.bf16.msra.mxu0 %v1523
  %2201 = vmatprep.subr.bf16.mxu0 0
  %2202 = vmatpush1.bf16.msra.mxu0 %v1524
  %2203 = vmatprep.subr.bf16.mxu0 0
  %2204 = vmatpush1.bf16.msra.mxu0 %v1525
  %2205 = vmatprep.subr.bf16.mxu0 0
  %2206 = vmatpush1.bf16.msra.mxu0 %v1526
  %2207 = vmatprep.mubr.bf16.mxu0 %v508
  %2208 = vmatmul.mubr.bf16.gmra.mrb[0].mxu0 %v507
  %v2209 = vpop.f32.mrb[0].mxu0
  %v2210 = vadd.f32 %v2170, %v2209
  %v2211 = vpop.f32.mrb[0].mxu0
  %v2212 = vpop.f32.mrb[0].mxu0
  %v2213 = vpop.f32.mrb[0].mxu0
  %2214 = vdwg.mxu0
  %2215 = vmatprep.subr.bf16.mxu0 0
  %2216 = vmatpush1.bf16.msra.mxu0 %v1527
  %2217 = vmatprep.subr.bf16.mxu0 0
  %2218 = vmatpush1.bf16.msra.mxu0 %v1528
  %2219 = vmatprep.subr.bf16.mxu0 0
  %2220 = vmatpush1.bf16.msra.mxu0 %v1529
  %2221 = vmatprep.subr.bf16.mxu0 0
  %2222 = vmatpush1.bf16.msra.mxu0 %v1530
  %2223 = vmatprep.subr.bf16.mxu0 0
  %2224 = vmatpush1.bf16.msra.mxu0 %v1531
  %2225 = vmatprep.subr.bf16.mxu0 0
  %2226 = vmatpush1.bf16.msra.mxu0 %v1532
  %2227 = vmatprep.subr.bf16.mxu0 0
  %2228 = vmatpush1.bf16.msra.mxu0 %v1533
  %2229 = vmatprep.subr.bf16.mxu0 0
  %2230 = vmatpush1.bf16.msra.mxu0 %v1534
  %2231 = vmatprep.subr.bf16.mxu0 0
  %2232 = vmatpush1.bf16.msra.mxu0 0
  %2233 = vmatprep.subr.bf16.mxu0 0
  %2234 = vmatpush1.bf16.msra.mxu0 0
  %2235 = vmatprep.subr.bf16.mxu0 0
  %2236 = vmatpush1.bf16.msra.mxu0 0
  %2237 = vmatprep.subr.bf16.mxu0 0
  %2238 = vmatpush1.bf16.msra.mxu0 0
  %2239 = vmatprep.subr.bf16.mxu0 0
  %2240 = vmatpush1.bf16.msra.mxu0 0
  %2241 = vmatprep.subr.bf16.mxu0 0
  %2242 = vmatpush1.bf16.msra.mxu0 0
  %2243 = vmatprep.subr.bf16.mxu0 0
  %2244 = vmatpush1.bf16.msra.mxu0 0
  %2245 = vmatprep.subr.bf16.mxu0 0
  %2246 = vmatpush1.bf16.msra.mxu0 0
  %2247 = vmatprep.mubr.bf16.mxu0 0
  %2248 = vmatmul.mubr.bf16.gmra.mrb[0].mxu0 %v509
  %v2249 = vpop.f32.mrb[0].mxu0
  %v2250 = vadd.f32 %v2210, %v2249
  %v2251 = vpop.f32.mrb[0].mxu0
  %v2252 = vpop.f32.mrb[0].mxu0
  %v2253 = vpop.f32.mrb[0].mxu0
  %2254 = vdwg.mxu0
  %v2255 = vmax.f32 %v2250, 0.0
  %v2256 = vpack.c.bf16 %v2255, %v2255
  %v2257 = vld [vmem:[%s3] sm:$0xf]
  %v2258 = vld [vmem:[%s3 + $0x4] sm:$0xf]
  %v2259 = vld [vmem:[%s3 + $0x8] sm:$0xf]
  %v2260 = vld [vmem:[%s3 + $0xc] sm:$0xf]
  %v2261 = vld [vmem:[%s3 + $0x10] sm:$0xf]
  %v2262 = vld [vmem:[%s3 + $0x14] sm:$0xf]
  %v2263 = vld [vmem:[%s3 + $0x18] sm:$0xf]
  %v2264 = vld [vmem:[%s3 + $0x1c] sm:$0xf]
  %v2265 = vld [vmem:[%s3 + $0x20] sm:$0xf]
  %v2266 = vld [vmem:[%s3 + $0x24] sm:$0xf]
  %v2267 = vld [vmem:[%s3 + $0x28] sm:$0xf]
  %v2268 = vld [vmem:[%s3 + $0x2c] sm:$0xf]
  %v2269 = vld [vmem:[%s3 + $0x30] sm:$0xf]
  %v2270 = vld [vmem:[%s3 + $0x34] sm:$0xf]
  %v2271 = vld [vmem:[%s3 + $0x38] sm:$0xf]
  %v2272 = vld [vmem:[%s3 + $0x3c] sm:$0xf]
  %v2273 = vld [vmem:[%s4] sm:$0x1]
  %v2275 = vlaneseq
  %v2276 = vshrl.u32 %v2275, 7
  %v2277 = vsub.s32 0, %v2276
  %v2278 = vrot.slane %v2273, %v2277
  %v2296 = vunpack.c.l.b16 %v2257
  %v2297 = vunpack.c.l.b16 %v2258
  %v2298 = vunpack.c.l.b16 %v2259
  %v2299 = vunpack.c.l.b16 %v2260
  %v2300 = vunpack.c.l.b16 %v2261
  %v2301 = vunpack.c.l.b16 %v2262
  %v2302 = vunpack.c.l.b16 %v2263
  %v2303 = vunpack.c.l.b16 %v2264
  %v2304 = vunpack.c.l.b16 %v2265
  %v2305 = vunpack.c.l.b16 %v2266
  %v2306 = vunpack.c.l.b16 %v2267
  %v2307 = vunpack.c.l.b16 %v2268
  %v2308 = vunpack.c.l.b16 %v2269
  %v2309 = vunpack.c.l.b16 %v2270
  %v2310 = vunpack.c.l.b16 %v2271
  %v2311 = vunpack.c.l.b16 %v2272
  %v2312 = vpack.c.b16 %v2297, %v2296
  %v2313 = vpack.c.b16 %v2299, %v2298
  %v2314 = vpack.c.b16 %v2301, %v2300
  %v2315 = vpack.c.b16 %v2303, %v2302
  %v2316 = vpack.c.b16 %v2305, %v2304
  %v2317 = vpack.c.b16 %v2307, %v2306
  %v2318 = vpack.c.b16 %v2309, %v2308
  %v2319 = vpack.c.b16 %v2311, %v2310
  %2328 = vmatprep.subr.bf16.mxu0 0
  %2329 = vmatpush1.bf16.msra.mxu0 %v2312
  %2330 = vmatprep.subr.bf16.mxu0 0
  %2331 = vmatpush1.bf16.msra.mxu0 %v2313
  %2332 = vmatprep.subr.bf16.mxu0 0
  %2333 = vmatpush1.bf16.msra.mxu0 %v2314
  %2334 = vmatprep.subr.bf16.mxu0 0
  %2335 = vmatpush1.bf16.msra.mxu0 %v2315
  %2336 = vmatprep.subr.bf16.mxu0 0
  %2337 = vmatpush1.bf16.msra.mxu0 %v2316
  %2338 = vmatprep.subr.bf16.mxu0 0
  %2339 = vmatpush1.bf16.msra.mxu0 %v2317
  %2340 = vmatprep.subr.bf16.mxu0 0
  %2341 = vmatpush1.bf16.msra.mxu0 %v2318
  %2342 = vmatprep.subr.bf16.mxu0 0
  %2343 = vmatpush1.bf16.msra.mxu0 %v2319
  %2344 = vmatprep.subr.bf16.mxu0 0
  %2345 = vmatpush1.bf16.msra.mxu0 0
  %2346 = vmatprep.subr.bf16.mxu0 0
  %2347 = vmatpush1.bf16.msra.mxu0 0
  %2348 = vmatprep.subr.bf16.mxu0 0
  %2349 = vmatpush1.bf16.msra.mxu0 0
  %2350 = vmatprep.subr.bf16.mxu0 0
  %2351 = vmatpush1.bf16.msra.mxu0 0
  %2352 = vmatprep.subr.bf16.mxu0 0
  %2353 = vmatpush1.bf16.msra.mxu0 0
  %2354 = vmatprep.subr.bf16.mxu0 0
  %2355 = vmatpush1.bf16.msra.mxu0 0
  %2356 = vmatprep.subr.bf16.mxu0 0
  %2357 = vmatpush1.bf16.msra.mxu0 0
  %2358 = vmatprep.subr.bf16.mxu0 0
  %2359 = vmatpush1.bf16.msra.mxu0 0
  %2360 = vmatprep.mubr.bf16.mxu0 0
  %2361 = vmatmul.mubr.bf16.gmra.mrb[0].mxu0 %v2256
  %v2362 = vpop.f32.mrb[0].mxu0
  %v2363 = vadd.f32 %v2278, %v2362
  %v2364 = vpop.f32.mrb[0].mxu0
  %v2365 = vpop.f32.mrb[0].mxu0
  %v2366 = vpop.f32.mrb[0].mxu0
  %2367 = vdwg.mxu0
  %v2368 = vmax.f32 %v2363, 0.0
  %v2369 = vpack.c.bf16 %v2368, %v2368
  %v2370 = vld [vmem:[%s5] sm:$0xf]
  %v2371 = vld [vmem:[%s5 + $0x4] sm:$0xf]
  %v2372 = vld [vmem:[%s5 + $0x8] sm:$0xf]
  %v2373 = vld [vmem:[%s5 + $0xc] sm:$0xf]
  %v2374 = vld [vmem:[%s5 + $0x10] sm:$0xf]
  %v2375 = vld [vmem:[%s5 + $0x14] sm:$0xf]
  %v2376 = vld [vmem:[%s5 + $0x18] sm:$0xf]
  %v2377 = vld [vmem:[%s5 + $0x1c] sm:$0xf]
  %v2378 = vld [vmem:[%s5 + $0x20] sm:$0xf]
  %v2379 = vld [vmem:[%s5 + $0x24] sm:$0xf]
  %v2380 = vld [vmem:[%s5 + $0x28] sm:$0xf]
  %v2381 = vld [vmem:[%s5 + $0x2c] sm:$0xf]
  %v2382 = vld [vmem:[%s5 + $0x30] sm:$0xf]
  %v2383 = vld [vmem:[%s5 + $0x34] sm:$0xf]
  %v2384 = vld [vmem:[%s5 + $0x38] sm:$0xf]
  %v2385 = vld [vmem:[%s5 + $0x3c] sm:$0xf]
  %v2386 = vld [vmem:[%s6] sm:$0x1]
  %v2388 = vlaneseq
  %v2389 = vshrl.u32 %v2388, 7
  %v2390 = vsub.s32 0, %v2389
  %v2391 = vrot.slane %v2386, %v2390
  %v2409 = vunpack.c.l.b16 %v2370
  %v2410 = vunpack.c.l.b16 %v2371
  %v2411 = vunpack.c.l.b16 %v2372
  %v2412 = vunpack.c.l.b16 %v2373
  %v2413 = vunpack.c.l.b16 %v2374
  %v2414 = vunpack.c.l.b16 %v2375
  %v2415 = vunpack.c.l.b16 %v2376
  %v2416 = vunpack.c.l.b16 %v2377
  %v2417 = vunpack.c.l.b16 %v2378
  %v2418 = vunpack.c.l.b16 %v2379
  %v2419 = vunpack.c.l.b16 %v2380
  %v2420 = vunpack.c.l.b16 %v2381
  %v2421 = vunpack.c.l.b16 %v2382
  %v2422 = vunpack.c.l.b16 %v2383
  %v2423 = vunpack.c.l.b16 %v2384
  %v2424 = vunpack.c.l.b16 %v2385
  %v2425 = vpack.c.b16 %v2410, %v2409
  %v2426 = vpack.c.b16 %v2412, %v2411
  %v2427 = vpack.c.b16 %v2414, %v2413
  %v2428 = vpack.c.b16 %v2416, %v2415
  %v2429 = vpack.c.b16 %v2418, %v2417
  %v2430 = vpack.c.b16 %v2420, %v2419
  %v2431 = vpack.c.b16 %v2422, %v2421
  %v2432 = vpack.c.b16 %v2424, %v2423
  %2441 = vmatprep.subr.bf16.mxu0 0
  %2442 = vmatpush1.bf16.msra.mxu0 %v2425
  %2443 = vmatprep.subr.bf16.mxu0 0
  %2444 = vmatpush1.bf16.msra.mxu0 %v2426
  %2445 = vmatprep.subr.bf16.mxu0 0
  %2446 = vmatpush1.bf16.msra.mxu0 %v2427
  %2447 = vmatprep.subr.bf16.mxu0 0
  %2448 = vmatpush1.bf16.msra.mxu0 %v2428
  %2449 = vmatprep.subr.bf16.mxu0 0
  %2450 = vmatpush1.bf16.msra.mxu0 %v2429
  %2451 = vmatprep.subr.bf16.mxu0 0
  %2452 = vmatpush1.bf16.msra.mxu0 %v2430
  %2453 = vmatprep.subr.bf16.mxu0 0
  %2454 = vmatpush1.bf16.msra.mxu0 %v2431
  %2455 = vmatprep.subr.bf16.mxu0 0
  %2456 = vmatpush1.bf16.msra.mxu0 %v2432
  %2457 = vmatprep.subr.bf16.mxu0 0
  %2458 = vmatpush1.bf16.msra.mxu0 0
  %2459 = vmatprep.subr.bf16.mxu0 0
  %2460 = vmatpush1.bf16.msra.mxu0 0
  %2461 = vmatprep.subr.bf16.mxu0 0
  %2462 = vmatpush1.bf16.msra.mxu0 0
  %2463 = vmatprep.subr.bf16.mxu0 0
  %2464 = vmatpush1.bf16.msra.mxu0 0
  %2465 = vmatprep.subr.bf16.mxu0 0
  %2466 = vmatpush1.bf16.msra.mxu0 0
  %2467 = vmatprep.subr.bf16.mxu0 0
  %2468 = vmatpush1.bf16.msra.mxu0 0
  %2469 = vmatprep.subr.bf16.mxu0 0
  %2470 = vmatpush1.bf16.msra.mxu0 0
  %2471 = vmatprep.subr.bf16.mxu0 0
  %2472 = vmatpush1.bf16.msra.mxu0 0
  %2473 = vmatprep.mubr.bf16.mxu0 0
  %2474 = vmatmul.mubr.bf16.gmra.mrb[0].mxu0 %v2369
  %v2475 = vpop.f32.mrb[0].mxu0
  %v2476 = vadd.f32 %v2391, %v2475
  %v2477 = vpop.f32.mrb[0].mxu0
  %v2478 = vpop.f32.mrb[0].mxu0
  %v2479 = vpop.f32.mrb[0].mxu0
  %2480 = vdwg.mxu0
  %2481 = vst [vmem:[%s7] sm:$0xff] %v2476
  // Predicated region
  $region30: #{lenet_forward.3} parent=0 // pred_check
    _
  $region31: #{lenet_forward.3} parent=0 // pred_check_branch
    %2483 = sbr.rel (0) target = $region33
  $region32: #{lenet_forward.3} parent=0 // pred_region
    _
  $region33: #{lenet_forward.3} parent=0 // pred_fallthru
    _
  // Predicated region
  $region34: #{lenet_forward.3} parent=0 // pred_check
    _
  $region35: #{lenet_forward.3} parent=0 // pred_check_branch
    %2485 = sbr.rel (0) target = $region37
  $region36: #{lenet_forward.3} parent=0 // pred_region
    _
  $region37: #{lenet_forward.3} parent=0 // pred_fallthru
    _

// kernel: lenet_forward.2
$region0: #{lenet_forward.2}
  #allocation0 [shape = 'u32[]', space=smem, size = 0x4, offset = 0x4, fixed_abs, tag = 'smem constant byte address 0x4 - core index']
  #allocation1 [shape = 'u32[144,128]{1,0:T(1,128)}', space=vmem, size = 0x12000, scoped, tag = 'internal scratch']
  %s0 = inlined_call_operand.vmem [shape: bf16[200,784], index: 0, kind: input, shape index: {}]
  %s1 = inlined_call_operand.vmem [shape: bf16[64,200], index: 1, kind: input, shape index: {}]
  %s2 = inlined_call_operand.vmem [shape: f32[64,1], index: 2, kind: input, shape index: {}]
  %s3 = inlined_call_operand.vmem [shape: bf16[784,196], index: 3, kind: input, shape index: {}]
  %s4 = inlined_call_operand.vmem [shape: bf16[25,196,100], index: 4, kind: input, shape index: {}]
  %s5 = inlined_call_operand.vmem [shape: bf16[200,128], index: 5, kind: input, shape index: {}]
  %s6 = inlined_call_operand.vmem [shape: f32[1,128], index: 6, kind: input, shape index: {}]
  %s7 = inlined_call_operand.vmem [shape: bf16[25,100], index: 7, kind: input, shape index: {}]
  %s8 = inlined_call_operand.vmem [shape: bf16[8,25,128], index: 8, kind: output, shape index: {}]
  %s9 = sld [smem:[#allocation0]]
  $region42: #{lenet_forward.2} parent=0
    _
  %s11 = ssub.s32 1, %s9
  %s12 = scalar_select 0, %s11, %s9
  // Predicated region
  $region2: #{lenet_forward.2} parent=0 // pred_check
    _
  $region3: #{lenet_forward.2} parent=0 // pred_check_branch
    %14 = sbr.rel (0) target = $region5
  $region4: #{lenet_forward.2} parent=0 // pred_region
    _
  $region5: #{lenet_forward.2} parent=0 // pred_fallthru
    _
  // Predicated region
  $region6: #{lenet_forward.2} parent=0 // pred_check
    _
  $region7: #{lenet_forward.2} parent=0 // pred_check_branch
    %16 = sbr.rel (0) target = $region9
  $region8: #{lenet_forward.2} parent=0 // pred_region
    _
  $region9: #{lenet_forward.2} parent=0 // pred_fallthru
    _
  // Predicated region
  $region10: #{lenet_forward.2} parent=0 // pred_check
    _
  $region11: #{lenet_forward.2} parent=0 // pred_check_branch
    %18 = sbr.rel (0) target = $region13
  $region12: #{lenet_forward.2} parent=0 // pred_region
    _
  $region13: #{lenet_forward.2} parent=0 // pred_fallthru
    _
  // Predicated region
  $region14: #{lenet_forward.2} parent=0 // pred_check
    _
  $region15: #{lenet_forward.2} parent=0 // pred_check_branch
    %20 = sbr.rel (0) target = $region17
  $region16: #{lenet_forward.2} parent=0 // pred_region
    _
  $region17: #{lenet_forward.2} parent=0 // pred_fallthru
    _
  // Predicated region
  $region18: #{lenet_forward.2} parent=0 // pred_check
    _
  $region19: #{lenet_forward.2} parent=0 // pred_check_branch
    %22 = sbr.rel (0) target = $region21
  $region20: #{lenet_forward.2} parent=0 // pred_region
    _
  $region21: #{lenet_forward.2} parent=0 // pred_fallthru
    _
  // Predicated region
  $region22: #{lenet_forward.2} parent=0 // pred_check
    _
  $region23: #{lenet_forward.2} parent=0 // pred_check_branch
    %24 = sbr.rel (0) target = $region25
  $region24: #{lenet_forward.2} parent=0 // pred_region
    _
  $region25: #{lenet_forward.2} parent=0 // pred_fallthru
    _
  // Predicated region
  $region26: #{lenet_forward.2} parent=0 // pred_check
    _
  $region27: #{lenet_forward.2} parent=0 // pred_check_branch
    %26 = sbr.rel (0) target = $region29
  $region28: #{lenet_forward.2} parent=0 // pred_region
    _
  $region29: #{lenet_forward.2} parent=0 // pred_fallthru
    _
  // Predicated region
  $region30: #{lenet_forward.2} parent=0 // pred_check
    _
  $region31: #{lenet_forward.2} parent=0 // pred_check_branch
    %28 = sbr.rel (0) target = $region33
  $region32: #{lenet_forward.2} parent=0 // pred_region
    _
  $region33: #{lenet_forward.2} parent=0 // pred_fallthru
    _
  %v30 = vld [vmem:[%s1] sm:$0xff]
  %v31 = vld [vmem:[%s1 + $0x8] sm:$0xff]
  %v32 = vld [vmem:[%s1 + $0x10] sm:$0xff]
  %v33 = vld [vmem:[%s1 + $0x18] sm:$0xff]
  %v34 = vld [vmem:[%s1 + $0x20] sm:$0xff]
  %v35 = vld [vmem:[%s1 + $0x28] sm:$0xff]
  %v36 = vld [vmem:[%s1 + $0x30] sm:$0xff]
  %v37 = vld [vmem:[%s1 + $0x38] sm:$0xff]
  %v38 = vld [vmem:[%s0] sm:$0xff]
  %v39 = vld [vmem:[%s0 + $0x8] sm:$0xff]
  %v40 = vld [vmem:[%s0 + $0x10] sm:$0xff]
  %v41 = vld [vmem:[%s0 + $0x18] sm:$0xf]
  %v42 = vld [vmem:[%s0 + $0x1c] sm:$0xff]
  %v43 = vld [vmem:[%s0 + $0x24] sm:$0xff]
  %v44 = vld [vmem:[%s0 + $0x2c] sm:$0xff]
  %v45 = vld [vmem:[%s0 + $0x34] sm:$0xf]
  %v46 = vld [vmem:[%s0 + $0x38] sm:$0xff]
  %v47 = vld [vmem:[%s0 + $0x40] sm:$0xff]
  %v48 = vld [vmem:[%s0 + $0x48] sm:$0xff]
  %v49 = vld [vmem:[%s0 + $0x50] sm:$0xf]
  %v50 = vld [vmem:[%s0 + $0x54] sm:$0xff]
  %v51 = vld [vmem:[%s0 + $0x5c] sm:$0xff]
  %v52 = vld [vmem:[%s0 + $0x64] sm:$0xff]
  %v53 = vld [vmem:[%s0 + $0x6c] sm:$0xf]
  %v54 = vld [vmem:[%s0 + $0x70] sm:$0xff]
  %v55 = vld [vmem:[%s0 + $0x78] sm:$0xff]
  %v56 = vld [vmem:[%s0 + $0x80] sm:$0xff]
  %v57 = vld [vmem:[%s0 + $0x88] sm:$0xf]
  %v58 = vld [vmem:[%s0 + $0x8c] sm:$0xff]
  %v59 = vld [vmem:[%s0 + $0x94] sm:$0xff]
  %v60 = vld [vmem:[%s0 + $0x9c] sm:$0xff]
  %v61 = vld [vmem:[%s0 + $0xa4] sm:$0xf]
  %v62 = vld [vmem:[%s0 + $0xa8] sm:$0xff]
  %v63 = vld [vmem:[%s0 + $0xb0] sm:$0xff]
  %v64 = vld [vmem:[%s0 + $0xb8] sm:$0xff]
  %v65 = vld [vmem:[%s0 + $0xc0] sm:$0xf]
  %v66 = vld [vmem:[%s0 + $0xc4] sm:$0xff]
  %v67 = vld [vmem:[%s0 + $0xcc] sm:$0xff]
  %v68 = vld [vmem:[%s0 + $0xd4] sm:$0xff]
  %v69 = vld [vmem:[%s0 + $0xdc] sm:$0xf]
  %v70 = vld [vmem:[%s0 + $0xe0] sm:$0xff]
  %v71 = vld [vmem:[%s0 + $0xe8] sm:$0xff]
  %v72 = vld [vmem:[%s0 + $0xf0] sm:$0xff]
  %v73 = vld [vmem:[%s0 + $0xf8] sm:$0xf]
  %v74 = vld [vmem:[%s0 + $0xfc] sm:$0xff]
  %v75 = vld [vmem:[%s0 + $0x104] sm:$0xff]
  %v76 = vld [vmem:[%s0 + $0x10c] sm:$0xff]
  %v77 = vld [vmem:[%s0 + $0x114] sm:$0xf]
  %v78 = vld [vmem:[%s0 + $0x118] sm:$0xff]
  %v79 = vld [vmem:[%s0 + $0x120] sm:$0xff]
  %v80 = vld [vmem:[%s0 + $0x128] sm:$0xff]
  %v81 = vld [vmem:[%s0 + $0x130] sm:$0xf]
  %v82 = vld [vmem:[%s0 + $0x134] sm:$0xff]
  %v83 = vld [vmem:[%s0 + $0x13c] sm:$0xff]
  %v84 = vld [vmem:[%s0 + $0x144] sm:$0xff]
  %v85 = vld [vmem:[%s0 + $0x14c] sm:$0xf]
  %v86 = vld [vmem:[%s0 + $0x150] sm:$0xff]
  %v87 = vld [vmem:[%s0 + $0x158] sm:$0xff]
  %v88 = vld [vmem:[%s0 + $0x160] sm:$0xff]
  %v89 = vld [vmem:[%s0 + $0x168] sm:$0xf]
  %v90 = vld [vmem:[%s0 + $0x16c] sm:$0xff]
  %v91 = vld [vmem:[%s0 + $0x174] sm:$0xff]
  %v92 = vld [vmem:[%s0 + $0x17c] sm:$0xff]
  %v93 = vld [vmem:[%s0 + $0x184] sm:$0xf]
  %v94 = vld [vmem:[%s0 + $0x188] sm:$0xff]
  %v95 = vld [vmem:[%s0 + $0x190] sm:$0xff]
  %v96 = vld [vmem:[%s0 + $0x198] sm:$0xff]
  %v97 = vld [vmem:[%s0 + $0x1a0] sm:$0xf]
  %v98 = vld [vmem:[%s0 + $0x1a4] sm:$0xff]
  %v99 = vld [vmem:[%s0 + $0x1ac] sm:$0xff]
  %v100 = vld [vmem:[%s0 + $0x1b4] sm:$0xff]
  %v101 = vld [vmem:[%s0 + $0x1bc] sm:$0xf]
  %v102 = vld [vmem:[%s0 + $0x1c0] sm:$0xff]
  %v103 = vld [vmem:[%s0 + $0x1c8] sm:$0xff]
  %v104 = vld [vmem:[%s0 + $0x1d0] sm:$0xff]
  %v105 = vld [vmem:[%s0 + $0x1d8] sm:$0xf]
  %v106 = vld [vmem:[%s0 + $0x1dc] sm:$0xff]
  %v107 = vld [vmem:[%s0 + $0x1e4] sm:$0xff]
  %v108 = vld [vmem:[%s0 + $0x1ec] sm:$0xff]
  %v109 = vld [vmem:[%s0 + $0x1f4] sm:$0xf]
  %v110 = vld [vmem:[%s0 + $0x1f8] sm:$0xff]
  %v111 = vld [vmem:[%s0 + $0x200] sm:$0xff]
  %v112 = vld [vmem:[%s0 + $0x208] sm:$0xff]
  %v113 = vld [vmem:[%s0 + $0x210] sm:$0xf]
  %v114 = vld [vmem:[%s0 + $0x214] sm:$0xff]
  %v115 = vld [vmem:[%s0 + $0x21c] sm:$0xff]
  %v116 = vld [vmem:[%s0 + $0x224] sm:$0xff]
  %v117 = vld [vmem:[%s0 + $0x22c] sm:$0xf]
  %v118 = vld [vmem:[%s0 + $0x230] sm:$0xff]
  %v119 = vld [vmem:[%s0 + $0x238] sm:$0xff]
  %v120 = vld [vmem:[%s0 + $0x240] sm:$0xff]
  %v121 = vld [vmem:[%s0 + $0x248] sm:$0xf]
  %v122 = vld [vmem:[%s0 + $0x24c] sm:$0xff]
  %v123 = vld [vmem:[%s0 + $0x254] sm:$0xff]
  %v124 = vld [vmem:[%s0 + $0x25c] sm:$0xff]
  %v125 = vld [vmem:[%s0 + $0x264] sm:$0xf]
  %v126 = vld [vmem:[%s0 + $0x268] sm:$0xff]
  %v127 = vld [vmem:[%s0 + $0x270] sm:$0xff]
  %v128 = vld [vmem:[%s0 + $0x278] sm:$0xff]
  %v129 = vld [vmem:[%s0 + $0x280] sm:$0xf]
  %v130 = vld [vmem:[%s0 + $0x284] sm:$0xff]
  %v131 = vld [vmem:[%s0 + $0x28c] sm:$0xff]
  %v132 = vld [vmem:[%s0 + $0x294] sm:$0xff]
  %v133 = vld [vmem:[%s0 + $0x29c] sm:$0xf]
  %v134 = vld [vmem:[%s0 + $0x2a0] sm:$0xff]
  %v135 = vld [vmem:[%s0 + $0x2a8] sm:$0xff]
  %v136 = vld [vmem:[%s0 + $0x2b0] sm:$0xff]
  %v137 = vld [vmem:[%s0 + $0x2b8] sm:$0xf]
  %v138 = vld [vmem:[%s2] sm:$0xff]
  %v139 = vld [vmem:[%s2 + $0x8] sm:$0xff]
  %v140 = vld [vmem:[%s2 + $0x10] sm:$0xff]
  %v141 = vld [vmem:[%s2 + $0x18] sm:$0xff]
  %v142 = vld [vmem:[%s2 + $0x20] sm:$0xff]
  %v143 = vld [vmem:[%s2 + $0x28] sm:$0xff]
  %v144 = vld [vmem:[%s2 + $0x30] sm:$0xff]
  %v145 = vld [vmem:[%s2 + $0x38] sm:$0xff]
  %147 = vset.pattern.permute.xlu0 0
  %148 = vperm.xlu0 %147, %v138
  %v149 = vpop.permute.xlu0 %148
  %152 = vset.pattern.permute.xlu0 0
  %153 = vperm.xlu0 %152, %v139
  %v154 = vpop.permute.xlu0 %153
  %157 = vset.pattern.permute.xlu0 0
  %158 = vperm.xlu0 %157, %v140
  %v159 = vpop.permute.xlu0 %158
  %162 = vset.pattern.permute.xlu0 0
  %163 = vperm.xlu0 %162, %v141
  %v164 = vpop.permute.xlu0 %163
  %167 = vset.pattern.permute.xlu0 0
  %168 = vperm.xlu0 %167, %v142
  %v169 = vpop.permute.xlu0 %168
  %172 = vset.pattern.permute.xlu0 0
  %173 = vperm.xlu0 %172, %v143
  %v174 = vpop.permute.xlu0 %173
  %177 = vset.pattern.permute.xlu0 0
  %178 = vperm.xlu0 %177, %v144
  %v179 = vpop.permute.xlu0 %178
  %182 = vset.pattern.permute.xlu0 0
  %183 = vperm.xlu0 %182, %v145
  %v184 = vpop.permute.xlu0 %183
  %v194 = vunpack.c.l.b16 %v30
  %v195 = vunpack.c.h.b16 %v30
  %v196 = vunpack.c.l.b16 %v31
  %v197 = vunpack.c.h.b16 %v31
  %v198 = vunpack.c.l.b16 %v32
  %v199 = vunpack.c.h.b16 %v32
  %v200 = vunpack.c.l.b16 %v33
  %v201 = vunpack.c.h.b16 %v33
  %v202 = vunpack.c.l.b16 %v34
  %v203 = vunpack.c.h.b16 %v34
  %v204 = vunpack.c.l.b16 %v35
  %v205 = vunpack.c.h.b16 %v35
  %v206 = vunpack.c.l.b16 %v36
  %v207 = vunpack.c.h.b16 %v36
  %v208 = vunpack.c.l.b16 %v37
  %v209 = vunpack.c.h.b16 %v37
  %v210 = vpack.c.b16 %v196, %v194
  %v211 = vpack.c.b16 %v197, %v195
  %v212 = vpack.c.b16 %v200, %v198
  %v213 = vpack.c.b16 %v201, %v199
  %v214 = vpack.c.b16 %v204, %v202
  %v215 = vpack.c.b16 %v205, %v203
  %v216 = vpack.c.b16 %v208, %v206
  %v217 = vpack.c.b16 %v209, %v207
  %v322 = vunpack.c.l.b16 %v38
  %v323 = vunpack.c.h.b16 %v38
  %v324 = vunpack.c.l.b16 %v39
  %v325 = vunpack.c.h.b16 %v39
  %v326 = vunpack.c.l.b16 %v40
  %v327 = vunpack.c.h.b16 %v40
  %v328 = vunpack.c.l.b16 %v41
  %v329 = vunpack.c.l.b16 %v42
  %v330 = vunpack.c.h.b16 %v42
  %v331 = vunpack.c.l.b16 %v43
  %v332 = vunpack.c.h.b16 %v43
  %v333 = vunpack.c.l.b16 %v44
  %v334 = vunpack.c.h.b16 %v44
  %v335 = vunpack.c.l.b16 %v45
  %v336 = vunpack.c.l.b16 %v46
  %v337 = vunpack.c.h.b16 %v46
  %v338 = vunpack.c.l.b16 %v47
  %v339 = vunpack.c.h.b16 %v47
  %v340 = vunpack.c.l.b16 %v48
  %v341 = vunpack.c.h.b16 %v48
  %v342 = vunpack.c.l.b16 %v49
  %v343 = vunpack.c.l.b16 %v50
  %v344 = vunpack.c.h.b16 %v50
  %v345 = vunpack.c.l.b16 %v51
  %v346 = vunpack.c.h.b16 %v51
  %v347 = vunpack.c.l.b16 %v52
  %v348 = vunpack.c.h.b16 %v52
  %v349 = vunpack.c.l.b16 %v53
  %v350 = vunpack.c.l.b16 %v54
  %v351 = vunpack.c.h.b16 %v54
  %v352 = vunpack.c.l.b16 %v55
  %v353 = vunpack.c.h.b16 %v55
  %v354 = vunpack.c.l.b16 %v56
  %v355 = vunpack.c.h.b16 %v56
  %v356 = vunpack.c.l.b16 %v57
  %v357 = vunpack.c.l.b16 %v58
  %v358 = vunpack.c.h.b16 %v58
  %v359 = vunpack.c.l.b16 %v59
  %v360 = vunpack.c.h.b16 %v59
  %v361 = vunpack.c.l.b16 %v60
  %v362 = vunpack.c.h.b16 %v60
  %v363 = vunpack.c.l.b16 %v61
  %v364 = vunpack.c.l.b16 %v62
  %v365 = vunpack.c.h.b16 %v62
  %v366 = vunpack.c.l.b16 %v63
  %v367 = vunpack.c.h.b16 %v63
  %v368 = vunpack.c.l.b16 %v64
  %v369 = vunpack.c.h.b16 %v64
  %v370 = vunpack.c.l.b16 %v65
  %v371 = vunpack.c.l.b16 %v66
  %v372 = vunpack.c.h.b16 %v66
  %v373 = vunpack.c.l.b16 %v67
  %v374 = vunpack.c.h.b16 %v67
  %v375 = vunpack.c.l.b16 %v68
  %v376 = vunpack.c.h.b16 %v68
  %v377 = vunpack.c.l.b16 %v69
  %v378 = vunpack.c.l.b16 %v70
  %v379 = vunpack.c.h.b16 %v70
  %v380 = vunpack.c.l.b16 %v71
  %v381 = vunpack.c.h.b16 %v71
  %v382 = vunpack.c.l.b16 %v72
  %v383 = vunpack.c.h.b16 %v72
  %v384 = vunpack.c.l.b16 %v73
  %v385 = vunpack.c.l.b16 %v74
  %v386 = vunpack.c.h.b16 %v74
  %v387 = vunpack.c.l.b16 %v75
  %v388 = vunpack.c.h.b16 %v75
  %v389 = vunpack.c.l.b16 %v76
  %v390 = vunpack.c.h.b16 %v76
  %v391 = vunpack.c.l.b16 %v77
  %v392 = vunpack.c.l.b16 %v78
  %v393 = vunpack.c.h.b16 %v78
  %v394 = vunpack.c.l.b16 %v79
  %v395 = vunpack.c.h.b16 %v79
  %v396 = vunpack.c.l.b16 %v80
  %v397 = vunpack.c.h.b16 %v80
  %v398 = vunpack.c.l.b16 %v81
  %v399 = vunpack.c.l.b16 %v82
  %v400 = vunpack.c.h.b16 %v82
  %v401 = vunpack.c.l.b16 %v83
  %v402 = vunpack.c.h.b16 %v83
  %v403 = vunpack.c.l.b16 %v84
  %v404 = vunpack.c.h.b16 %v84
  %v405 = vunpack.c.l.b16 %v85
  %v406 = vunpack.c.l.b16 %v86
  %v407 = vunpack.c.h.b16 %v86
  %v408 = vunpack.c.l.b16 %v87
  %v409 = vunpack.c.h.b16 %v87
  %v410 = vunpack.c.l.b16 %v88
  %v411 = vunpack.c.h.b16 %v88
  %v412 = vunpack.c.l.b16 %v89
  %v413 = vunpack.c.l.b16 %v90
  %v414 = vunpack.c.h.b16 %v90
  %v415 = vunpack.c.l.b16 %v91
  %v416 = vunpack.c.h.b16 %v91
  %v417 = vunpack.c.l.b16 %v92
  %v418 = vunpack.c.h.b16 %v92
  %v419 = vunpack.c.l.b16 %v93
  %v420 = vunpack.c.l.b16 %v94
  %v421 = vunpack.c.h.b16 %v94
  %v422 = vunpack.c.l.b16 %v95
  %v423 = vunpack.c.h.b16 %v95
  %v424 = vunpack.c.l.b16 %v96
  %v425 = vunpack.c.h.b16 %v96
  %v426 = vunpack.c.l.b16 %v97
  %v427 = vunpack.c.l.b16 %v98
  %v428 = vunpack.c.h.b16 %v98
  %v429 = vunpack.c.l.b16 %v99
  %v430 = vunpack.c.h.b16 %v99
  %v431 = vunpack.c.l.b16 %v100
  %v432 = vunpack.c.h.b16 %v100
  %v433 = vunpack.c.l.b16 %v101
  %v434 = vunpack.c.l.b16 %v102
  %v435 = vunpack.c.h.b16 %v102
  %v436 = vunpack.c.l.b16 %v103
  %v437 = vunpack.c.h.b16 %v103
  %v438 = vunpack.c.l.b16 %v104
  %v439 = vunpack.c.h.b16 %v104
  %v440 = vunpack.c.l.b16 %v105
  %v441 = vunpack.c.l.b16 %v106
  %v442 = vunpack.c.h.b16 %v106
  %v443 = vunpack.c.l.b16 %v107
  %v444 = vunpack.c.h.b16 %v107
  %v445 = vunpack.c.l.b16 %v108
  %v446 = vunpack.c.h.b16 %v108
  %v447 = vunpack.c.l.b16 %v109
  %v448 = vunpack.c.l.b16 %v110
  %v449 = vunpack.c.h.b16 %v110
  %v450 = vunpack.c.l.b16 %v111
  %v451 = vunpack.c.h.b16 %v111
  %v452 = vunpack.c.l.b16 %v112
  %v453 = vunpack.c.h.b16 %v112
  %v454 = vunpack.c.l.b16 %v113
  %v455 = vunpack.c.l.b16 %v114
  %v456 = vunpack.c.h.b16 %v114
  %v457 = vunpack.c.l.b16 %v115
  %v458 = vunpack.c.h.b16 %v115
  %v459 = vunpack.c.l.b16 %v116
  %v460 = vunpack.c.h.b16 %v116
  %v461 = vunpack.c.l.b16 %v117
  %v462 = vunpack.c.l.b16 %v118
  %v463 = vunpack.c.h.b16 %v118
  %v464 = vunpack.c.l.b16 %v119
  %v465 = vunpack.c.h.b16 %v119
  %v466 = vunpack.c.l.b16 %v120
  %v467 = vunpack.c.h.b16 %v120
  %v468 = vunpack.c.l.b16 %v121
  %v469 = vunpack.c.l.b16 %v122
  %v470 = vunpack.c.h.b16 %v122
  %v471 = vunpack.c.l.b16 %v123
  %v472 = vunpack.c.h.b16 %v123
  %v473 = vunpack.c.l.b16 %v124
  %v474 = vunpack.c.h.b16 %v124
  %v475 = vunpack.c.l.b16 %v125
  %v476 = vunpack.c.l.b16 %v126
  %v477 = vunpack.c.h.b16 %v126
  %v478 = vunpack.c.l.b16 %v127
  %v479 = vunpack.c.h.b16 %v127
  %v480 = vunpack.c.l.b16 %v128
  %v481 = vunpack.c.h.b16 %v128
  %v482 = vunpack.c.l.b16 %v129
  %v483 = vunpack.c.l.b16 %v130
  %v484 = vunpack.c.h.b16 %v130
  %v485 = vunpack.c.l.b16 %v131
  %v486 = vunpack.c.h.b16 %v131
  %v487 = vunpack.c.l.b16 %v132
  %v488 = vunpack.c.h.b16 %v132
  %v489 = vunpack.c.l.b16 %v133
  %v490 = vunpack.c.l.b16 %v134
  %v491 = vunpack.c.h.b16 %v134
  %v492 = vunpack.c.l.b16 %v135
  %v493 = vunpack.c.h.b16 %v135
  %v494 = vunpack.c.l.b16 %v136
  %v495 = vunpack.c.h.b16 %v136
  %v496 = vunpack.c.l.b16 %v137
  %v497 = vpack.c.b16 %v329, %v322
  %v498 = vpack.c.b16 %v330, %v323
  %v499 = vpack.c.b16 %v331, %v324
  %v500 = vpack.c.b16 %v332, %v325
  %v501 = vpack.c.b16 %v333, %v326
  %v502 = vpack.c.b16 %v334, %v327
  %v503 = vpack.c.b16 %v335, %v328
  %v504 = vpack.c.b16 %v343, %v336
  %v505 = vpack.c.b16 %v344, %v337
  %v506 = vpack.c.b16 %v345, %v338
  %v507 = vpack.c.b16 %v346, %v339
  %v508 = vpack.c.b16 %v347, %v340
  %v509 = vpack.c.b16 %v348, %v341
  %v510 = vpack.c.b16 %v349, %v342
  %v511 = vpack.c.b16 %v357, %v350
  %v512 = vpack.c.b16 %v358, %v351
  %v513 = vpack.c.b16 %v359, %v352
  %v514 = vpack.c.b16 %v360, %v353
  %v515 = vpack.c.b16 %v361, %v354
  %v516 = vpack.c.b16 %v362, %v355
  %v517 = vpack.c.b16 %v363, %v356
  %v518 = vpack.c.b16 %v371, %v364
  %v519 = vpack.c.b16 %v372, %v365
  %v520 = vpack.c.b16 %v373, %v366
  %v521 = vpack.c.b16 %v374, %v367
  %v522 = vpack.c.b16 %v375, %v368
  %v523 = vpack.c.b16 %v376, %v369
  %v524 = vpack.c.b16 %v377, %v370
  %v525 = vpack.c.b16 %v385, %v378
  %v526 = vpack.c.b16 %v386, %v379
  %v527 = vpack.c.b16 %v387, %v380
  %v528 = vpack.c.b16 %v388, %v381
  %v529 = vpack.c.b16 %v389, %v382
  %v530 = vpack.c.b16 %v390, %v383
  %v531 = vpack.c.b16 %v391, %v384
  %v532 = vpack.c.b16 %v399, %v392
  %v533 = vpack.c.b16 %v400, %v393
  %v534 = vpack.c.b16 %v401, %v394
  %v535 = vpack.c.b16 %v402, %v395
  %v536 = vpack.c.b16 %v403, %v396
  %v537 = vpack.c.b16 %v404, %v397
  %v538 = vpack.c.b16 %v405, %v398
  %v539 = vpack.c.b16 %v413, %v406
  %v540 = vpack.c.b16 %v414, %v407
  %v541 = vpack.c.b16 %v415, %v408
  %v542 = vpack.c.b16 %v416, %v409
  %v543 = vpack.c.b16 %v417, %v410
  %v544 = vpack.c.b16 %v418, %v411
  %v545 = vpack.c.b16 %v419, %v412
  %v546 = vpack.c.b16 %v427, %v420
  %v547 = vpack.c.b16 %v428, %v421
  %v548 = vpack.c.b16 %v429, %v422
  %v549 = vpack.c.b16 %v430, %v423
  %v550 = vpack.c.b16 %v431, %v424
  %v551 = vpack.c.b16 %v432, %v425
  %v552 = vpack.c.b16 %v433, %v426
  %v553 = vpack.c.b16 %v441, %v434
  %v554 = vpack.c.b16 %v442, %v435
  %v555 = vpack.c.b16 %v443, %v436
  %v556 = vpack.c.b16 %v444, %v437
  %v557 = vpack.c.b16 %v445, %v438
  %v558 = vpack.c.b16 %v446, %v439
  %v559 = vpack.c.b16 %v447, %v440
  %v560 = vpack.c.b16 %v455, %v448
  %v561 = vpack.c.b16 %v456, %v449
  %v562 = vpack.c.b16 %v457, %v450
  %v563 = vpack.c.b16 %v458, %v451
  %v564 = vpack.c.b16 %v459, %v452
  %v565 = vpack.c.b16 %v460, %v453
  %v566 = vpack.c.b16 %v461, %v454
  %v567 = vpack.c.b16 %v469, %v462
  %v568 = vpack.c.b16 %v470, %v463
  %v569 = vpack.c.b16 %v471, %v464
  %v570 = vpack.c.b16 %v472, %v465
  %v571 = vpack.c.b16 %v473, %v466
  %v572 = vpack.c.b16 %v474, %v467
  %v573 = vpack.c.b16 %v475, %v468
  %v574 = vpack.c.b16 %v483, %v476
  %v575 = vpack.c.b16 %v484, %v477
  %v576 = vpack.c.b16 %v485, %v478
  %v577 = vpack.c.b16 %v486, %v479
  %v578 = vpack.c.b16 %v487, %v480
  %v579 = vpack.c.b16 %v488, %v481
  %v580 = vpack.c.b16 %v489, %v482
  %v581 = vpack.c.b16 %v490, %v490
  %v582 = vpack.c.b16 %v491, %v491
  %v583 = vpack.c.b16 %v492, %v492
  %v584 = vpack.c.b16 %v493, %v493
  %v585 = vpack.c.b16 %v494, %v494
  %v586 = vpack.c.b16 %v495, %v495
  %v587 = vpack.c.b16 %v496, %v496
  %vm672 = vcmask 588800
  %v674 = vsel %vm672, %v211, 0
  %v677 = vsel %vm672, %v213, 0
  %v680 = vsel %vm672, %v215, 0
  %v683 = vsel %vm672, %v217, 0
  %vm685 = vcmask 1043456
  %v687 = vsel %vm685, %v581, 0
  %v690 = vsel %vm685, %v582, 0
  %v693 = vsel %vm685, %v583, 0
  %v696 = vsel %vm685, %v584, 0
  %v699 = vsel %vm685, %v585, 0
  %v702 = vsel %vm685, %v586, 0
  %v705 = vsel %vm685, %v587, 0
  %707 = vmatprep.subr.bf16.mxu0 %v498
  %708 = vmatpush1.bf16.msra.mxu0 %v497
  %709 = vmatprep.subr.bf16.mxu0 %v505
  %710 = vmatpush1.bf16.msra.mxu0 %v504
  %711 = vmatprep.subr.bf16.mxu0 %v512
  %712 = vmatpush1.bf16.msra.mxu0 %v511
  %713 = vmatprep.subr.bf16.mxu0 %v519
  %714 = vmatpush1.bf16.msra.mxu0 %v518
  %715 = vmatprep.subr.bf16.mxu0 %v526
  %716 = vmatpush1.bf16.msra.mxu0 %v525
  %717 = vmatprep.subr.bf16.mxu0 %v533
  %718 = vmatpush1.bf16.msra.mxu0 %v532
  %719 = vmatprep.subr.bf16.mxu0 %v540
  %720 = vmatpush1.bf16.msra.mxu0 %v539
  %721 = vmatprep.subr.bf16.mxu0 %v547
  %722 = vmatpush1.bf16.msra.mxu0 %v546
  %723 = vmatprep.subr.bf16.mxu0 %v554
  %724 = vmatpush1.bf16.msra.mxu0 %v553
  %725 = vmatprep.subr.bf16.mxu0 %v561
  %726 = vmatpush1.bf16.msra.mxu0 %v560
  %727 = vmatprep.subr.bf16.mxu0 %v568
  %728 = vmatpush1.bf16.msra.mxu0 %v567
  %729 = vmatprep.subr.bf16.mxu0 %v575
  %730 = vmatpush1.bf16.msra.mxu0 %v574
  %731 = vmatprep.subr.bf16.mxu0 %v690
  %732 = vmatpush1.bf16.msra.mxu0 %v687
  %733 = vmatprep.subr.bf16.mxu0 0
  %734 = vmatpush1.bf16.msra.mxu0 0
  %735 = vmatprep.subr.bf16.mxu0 0
  %736 = vmatpush1.bf16.msra.mxu0 0
  %737 = vmatprep.subr.bf16.mxu0 0
  %738 = vmatpush1.bf16.msra.mxu0 0
  %739 = vmatprep.mubr.bf16.mxu0 %v674
  %740 = vmatmul.mubr.bf16.gmra.mrb[0].mxu0 %v210
  %v741 = vpop.f32.mrb[0].mxu0
  %v742 = vadd.f32 %v149, %v741
  %v743 = vpop.f32.mrb[0].mxu0
  %v744 = vadd.f32 %v149, %v743
  %v745 = vpop.f32.mrb[0].mxu0
  %v746 = vadd.f32 %v154, %v745
  %v747 = vpop.f32.mrb[0].mxu0
  %v748 = vadd.f32 %v154, %v747
  %749 = vmatprep.mubr.bf16.mxu0 %v677
  %750 = vmatmul.mubr.bf16.gmra.mrb[0].mxu0 %v212
  %v751 = vpop.f32.mrb[0].mxu0
  %v752 = vadd.f32 %v159, %v751
  %v753 = vpop.f32.mrb[0].mxu0
  %v754 = vadd.f32 %v159, %v753
  %v755 = vpop.f32.mrb[0].mxu0
  %v756 = vadd.f32 %v164, %v755
  %v757 = vpop.f32.mrb[0].mxu0
  %v758 = vadd.f32 %v164, %v757
  %759 = vmatprep.mubr.bf16.mxu0 %v680
  %760 = vmatmul.mubr.bf16.gmra.mrb[0].mxu0 %v214
  %v761 = vpop.f32.mrb[0].mxu0
  %v762 = vadd.f32 %v169, %v761
  %v763 = vpop.f32.mrb[0].mxu0
  %v764 = vadd.f32 %v169, %v763
  %v765 = vpop.f32.mrb[0].mxu0
  %v766 = vadd.f32 %v174, %v765
  %v767 = vpop.f32.mrb[0].mxu0
  %v768 = vadd.f32 %v174, %v767
  %769 = vmatprep.mubr.bf16.mxu0 %v683
  %770 = vmatmul.mubr.bf16.gmra.mrb[0].mxu0 %v216
  %v771 = vpop.f32.mrb[0].mxu0
  %v772 = vadd.f32 %v179, %v771
  %v773 = vpop.f32.mrb[0].mxu0
  %v774 = vadd.f32 %v179, %v773
  %v775 = vpop.f32.mrb[0].mxu0
  %v776 = vadd.f32 %v184, %v775
  %v777 = vpop.f32.mrb[0].mxu0
  %v778 = vadd.f32 %v184, %v777
  %779 = vdwg.mxu0
  %780 = vmatprep.subr.bf16.mxu0 %v500
  %781 = vmatpush1.bf16.msra.mxu0 %v499
  %782 = vmatprep.subr.bf16.mxu0 %v507
  %783 = vmatpush1.bf16.msra.mxu0 %v506
  %784 = vmatprep.subr.bf16.mxu0 %v514
  %785 = vmatpush1.bf16.msra.mxu0 %v513
  %786 = vmatprep.subr.bf16.mxu0 %v521
  %787 = vmatpush1.bf16.msra.mxu0 %v520
  %788 = vmatprep.subr.bf16.mxu0 %v528
  %789 = vmatpush1.bf16.msra.mxu0 %v527
  %790 = vmatprep.subr.bf16.mxu0 %v535
  %791 = vmatpush1.bf16.msra.mxu0 %v534
  %792 = vmatprep.subr.bf16.mxu0 %v542
  %793 = vmatpush1.bf16.msra.mxu0 %v541
  %794 = vmatprep.subr.bf16.mxu0 %v549
  %795 = vmatpush1.bf16.msra.mxu0 %v548
  %796 = vmatprep.subr.bf16.mxu0 %v556
  %797 = vmatpush1.bf16.msra.mxu0 %v555
  %798 = vmatprep.subr.bf16.mxu0 %v563
  %799 = vmatpush1.bf16.msra.mxu0 %v562
  %800 = vmatprep.subr.bf16.mxu0 %v570
  %801 = vmatpush1.bf16.msra.mxu0 %v569
  %802 = vmatprep.subr.bf16.mxu0 %v577
  %803 = vmatpush1.bf16.msra.mxu0 %v576
  %804 = vmatprep.subr.bf16.mxu0 %v696
  %805 = vmatpush1.bf16.msra.mxu0 %v693
  %806 = vmatprep.subr.bf16.mxu0 0
  %807 = vmatpush1.bf16.msra.mxu0 0
  %808 = vmatprep.subr.bf16.mxu0 0
  %809 = vmatpush1.bf16.msra.mxu0 0
  %810 = vmatprep.subr.bf16.mxu0 0
  %811 = vmatpush1.bf16.msra.mxu0 0
  %812 = vmatprep.mubr.bf16.mxu0 %v674
  %813 = vmatmul.mubr.bf16.gmra.mrb[0].mxu0 %v210
  %v814 = vpop.f32.mrb[0].mxu0
  %v815 = vadd.f32 %v149, %v814
  %v816 = vpop.f32.mrb[0].mxu0
  %v817 = vadd.f32 %v149, %v816
  %v818 = vpop.f32.mrb[0].mxu0
  %v819 = vadd.f32 %v154, %v818
  %v820 = vpop.f32.mrb[0].mxu0
  %v821 = vadd.f32 %v154, %v820
  %822 = vmatprep.mubr.bf16.mxu0 %v677
  %823 = vmatmul.mubr.bf16.gmra.mrb[0].mxu0 %v212
  %v824 = vpop.f32.mrb[0].mxu0
  %v825 = vadd.f32 %v159, %v824
  %v826 = vpop.f32.mrb[0].mxu0
  %v827 = vadd.f32 %v159, %v826
  %v828 = vpop.f32.mrb[0].mxu0
  %v829 = vadd.f32 %v164, %v828
  %v830 = vpop.f32.mrb[0].mxu0
  %v831 = vadd.f32 %v164, %v830
  %832 = vmatprep.mubr.bf16.mxu0 %v680
  %833 = vmatmul.mubr.bf16.gmra.mrb[0].mxu0 %v214
  %v834 = vpop.f32.mrb[0].mxu0
  %v835 = vadd.f32 %v169, %v834
  %v836 = vpop.f32.mrb[0].mxu0
  %v837 = vadd.f32 %v169, %v836
  %v838 = vpop.f32.mrb[0].mxu0
  %v839 = vadd.f32 %v174, %v838
  %v840 = vpop.f32.mrb[0].mxu0
  %v841 = vadd.f32 %v174, %v840
  %842 = vmatprep.mubr.bf16.mxu0 %v683
  %843 = vmatmul.mubr.bf16.gmra.mrb[0].mxu0 %v216
  %v844 = vpop.f32.mrb[0].mxu0
  %v845 = vadd.f32 %v179, %v844
  %v846 = vpop.f32.mrb[0].mxu0
  %v847 = vadd.f32 %v179, %v846
  %v848 = vpop.f32.mrb[0].mxu0
  %v849 = vadd.f32 %v184, %v848
  %v850 = vpop.f32.mrb[0].mxu0
  %v851 = vadd.f32 %v184, %v850
  %852 = vdwg.mxu0
  %853 = vmatprep.subr.bf16.mxu0 %v502
  %854 = vmatpush1.bf16.msra.mxu0 %v501
  %855 = vmatprep.subr.bf16.mxu0 %v509
  %856 = vmatpush1.bf16.msra.mxu0 %v508
  %857 = vmatprep.subr.bf16.mxu0 %v516
  %858 = vmatpush1.bf16.msra.mxu0 %v515
  %859 = vmatprep.subr.bf16.mxu0 %v523
  %860 = vmatpush1.bf16.msra.mxu0 %v522
  %861 = vmatprep.subr.bf16.mxu0 %v530
  %862 = vmatpush1.bf16.msra.mxu0 %v529
  %863 = vmatprep.subr.bf16.mxu0 %v537
  %864 = vmatpush1.bf16.msra.mxu0 %v536
  %865 = vmatprep.subr.bf16.mxu0 %v544
  %866 = vmatpush1.bf16.msra.mxu0 %v543
  %867 = vmatprep.subr.bf16.mxu0 %v551
  %868 = vmatpush1.bf16.msra.mxu0 %v550
  %869 = vmatprep.subr.bf16.mxu0 %v558
  %870 = vmatpush1.bf16.msra.mxu0 %v557
  %871 = vmatprep.subr.bf16.mxu0 %v565
  %872 = vmatpush1.bf16.msra.mxu0 %v564
  %873 = vmatprep.subr.bf16.mxu0 %v572
  %874 = vmatpush1.bf16.msra.mxu0 %v571
  %875 = vmatprep.subr.bf16.mxu0 %v579
  %876 = vmatpush1.bf16.msra.mxu0 %v578
  %877 = vmatprep.subr.bf16.mxu0 %v702
  %878 = vmatpush1.bf16.msra.mxu0 %v699
  %879 = vmatprep.subr.bf16.mxu0 0
  %880 = vmatpush1.bf16.msra.mxu0 0
  %881 = vmatprep.subr.bf16.mxu0 0
  %882 = vmatpush1.bf16.msra.mxu0 0
  %883 = vmatprep.subr.bf16.mxu0 0
  %884 = vmatpush1.bf16.msra.mxu0 0
  %885 = vmatprep.mubr.bf16.mxu0 %v674
  %886 = vmatmul.mubr.bf16.gmra.mrb[0].mxu0 %v210
  %v887 = vpop.f32.mrb[0].mxu0
  %v888 = vadd.f32 %v149, %v887
  %v889 = vpop.f32.mrb[0].mxu0
  %v890 = vadd.f32 %v149, %v889
  %v891 = vpop.f32.mrb[0].mxu0
  %v892 = vadd.f32 %v154, %v891
  %v893 = vpop.f32.mrb[0].mxu0
  %v894 = vadd.f32 %v154, %v893
  %895 = vmatprep.mubr.bf16.mxu0 %v677
  %896 = vmatmul.mubr.bf16.gmra.mrb[0].mxu0 %v212
  %v897 = vpop.f32.mrb[0].mxu0
  %v898 = vadd.f32 %v159, %v897
  %v899 = vpop.f32.mrb[0].mxu0
  %v900 = vadd.f32 %v159, %v899
  %v901 = vpop.f32.mrb[0].mxu0
  %v902 = vadd.f32 %v164, %v901
  %v903 = vpop.f32.mrb[0].mxu0
  %v904 = vadd.f32 %v164, %v903
  %905 = vmatprep.mubr.bf16.mxu0 %v680
  %906 = vmatmul.mubr.bf16.gmra.mrb[0].mxu0 %v214
  %v907 = vpop.f32.mrb[0].mxu0
  %v908 = vadd.f32 %v169, %v907
  %v909 = vpop.f32.mrb[0].mxu0
  %v910 = vadd.f32 %v169, %v909
  %v911 = vpop.f32.mrb[0].mxu0
  %v912 = vadd.f32 %v174, %v911
  %v913 = vpop.f32.mrb[0].mxu0
  %v914 = vadd.f32 %v174, %v913
  %915 = vmatprep.mubr.bf16.mxu0 %v683
  %916 = vmatmul.mubr.bf16.gmra.mrb[0].mxu0 %v216
  %v917 = vpop.f32.mrb[0].mxu0
  %v918 = vadd.f32 %v179, %v917
  %v919 = vpop.f32.mrb[0].mxu0
  %v920 = vadd.f32 %v179, %v919
  %v921 = vpop.f32.mrb[0].mxu0
  %v922 = vadd.f32 %v184, %v921
  %v923 = vpop.f32.mrb[0].mxu0
  %v924 = vadd.f32 %v184, %v923
  %925 = vdwg.mxu0
  %926 = vmatprep.subr.bf16.mxu0 0
  %927 = vmatpush1.bf16.msra.mxu0 %v503
  %928 = vmatprep.subr.bf16.mxu0 0
  %929 = vmatpush1.bf16.msra.mxu0 %v510
  %930 = vmatprep.subr.bf16.mxu0 0
  %931 = vmatpush1.bf16.msra.mxu0 %v517
  %932 = vmatprep.subr.bf16.mxu0 0
  %933 = vmatpush1.bf16.msra.mxu0 %v524
  %934 = vmatprep.subr.bf16.mxu0 0
  %935 = vmatpush1.bf16.msra.mxu0 %v531
  %936 = vmatprep.subr.bf16.mxu0 0
  %937 = vmatpush1.bf16.msra.mxu0 %v538
  %938 = vmatprep.subr.bf16.mxu0 0
  %939 = vmatpush1.bf16.msra.mxu0 %v545
  %940 = vmatprep.subr.bf16.mxu0 0
  %941 = vmatpush1.bf16.msra.mxu0 %v552
  %942 = vmatprep.subr.bf16.mxu0 0
  %943 = vmatpush1.bf16.msra.mxu0 %v559
  %944 = vmatprep.subr.bf16.mxu0 0
  %945 = vmatpush1.bf16.msra.mxu0 %v566
  %946 = vmatprep.subr.bf16.mxu0 0
  %947 = vmatpush1.bf16.msra.mxu0 %v573
  %948 = vmatprep.subr.bf16.mxu0 0
  %949 = vmatpush1.bf16.msra.mxu0 %v580
  %950 = vmatprep.subr.bf16.mxu0 0
  %951 = vmatpush1.bf16.msra.mxu0 %v705
  %952 = vmatprep.subr.bf16.mxu0 0
  %953 = vmatpush1.bf16.msra.mxu0 0
  %954 = vmatprep.subr.bf16.mxu0 0
  %955 = vmatpush1.bf16.msra.mxu0 0
  %956 = vmatprep.subr.bf16.mxu0 0
  %957 = vmatpush1.bf16.msra.mxu0 0
  %958 = vmatprep.mubr.bf16.mxu0 %v674
  %959 = vmatmul.mubr.bf16.gmra.mrb[0].mxu0 %v210
  %v960 = vpop.f32.mrb[0].mxu0
  %v961 = vadd.f32 %v149, %v960
  %v962 = vpop.f32.mrb[0].mxu0
  %v963 = vpop.f32.mrb[0].mxu0
  %v964 = vadd.f32 %v154, %v963
  %v965 = vpop.f32.mrb[0].mxu0
  %966 = vmatprep.mubr.bf16.mxu0 %v677
  %967 = vmatmul.mubr.bf16.gmra.mrb[0].mxu0 %v212
  %v968 = vpop.f32.mrb[0].mxu0
  %v969 = vadd.f32 %v159, %v968
  %v970 = vpop.f32.mrb[0].mxu0
  %v971 = vpop.f32.mrb[0].mxu0
  %v972 = vadd.f32 %v164, %v971
  %v973 = vpop.f32.mrb[0].mxu0
  %974 = vmatprep.mubr.bf16.mxu0 %v680
  %975 = vmatmul.mubr.bf16.gmra.mrb[0].mxu0 %v214
  %v976 = vpop.f32.mrb[0].mxu0
  %v977 = vadd.f32 %v169, %v976
  %v978 = vpop.f32.mrb[0].mxu0
  %v979 = vpop.f32.mrb[0].mxu0
  %v980 = vadd.f32 %v174, %v979
  %v981 = vpop.f32.mrb[0].mxu0
  %982 = vmatprep.mubr.bf16.mxu0 %v683
  %983 = vmatmul.mubr.bf16.gmra.mrb[0].mxu0 %v216
  %v984 = vpop.f32.mrb[0].mxu0
  %v985 = vadd.f32 %v179, %v984
  %v986 = vpop.f32.mrb[0].mxu0
  %v987 = vpop.f32.mrb[0].mxu0
  %v988 = vadd.f32 %v184, %v987
  %v989 = vpop.f32.mrb[0].mxu0
  %990 = vdwg.mxu0
  %v991 = vmax.f32 %v742, 0.0
  %v992 = vmax.f32 %v744, 0.0
  %v993 = vmax.f32 %v815, 0.0
  %v994 = vmax.f32 %v817, 0.0
  %v995 = vmax.f32 %v888, 0.0
  %v996 = vmax.f32 %v890, 0.0
  %v997 = vmax.f32 %v961, 0.0
  %v998 = vmax.f32 %v746, 0.0
  %v999 = vmax.f32 %v748, 0.0
  %v1000 = vmax.f32 %v819, 0.0
  %v1001 = vmax.f32 %v821, 0.0
  %v1002 = vmax.f32 %v892, 0.0
  %v1003 = vmax.f32 %v894, 0.0
  %v1004 = vmax.f32 %v964, 0.0
  %v1005 = vmax.f32 %v752, 0.0
  %v1006 = vmax.f32 %v754, 0.0
  %v1007 = vmax.f32 %v825, 0.0
  %v1008 = vmax.f32 %v827, 0.0
  %v1009 = vmax.f32 %v898, 0.0
  %v1010 = vmax.f32 %v900, 0.0
  %v1011 = vmax.f32 %v969, 0.0
  %v1012 = vmax.f32 %v756, 0.0
  %v1013 = vmax.f32 %v758, 0.0
  %v1014 = vmax.f32 %v829, 0.0
  %v1015 = vmax.f32 %v831, 0.0
  %v1016 = vmax.f32 %v902, 0.0
  %v1017 = vmax.f32 %v904, 0.0
  %v1018 = vmax.f32 %v972, 0.0
  %v1019 = vmax.f32 %v762, 0.0
  %v1020 = vmax.f32 %v764, 0.0
  %v1021 = vmax.f32 %v835, 0.0
  %v1022 = vmax.f32 %v837, 0.0
  %v1023 = vmax.f32 %v908, 0.0
  %v1024 = vmax.f32 %v910, 0.0
  %v1025 = vmax.f32 %v977, 0.0
  %v1026 = vmax.f32 %v766, 0.0
  %v1027 = vmax.f32 %v768, 0.0
  %v1028 = vmax.f32 %v839, 0.0
  %v1029 = vmax.f32 %v841, 0.0
  %v1030 = vmax.f32 %v912, 0.0
  %v1031 = vmax.f32 %v914, 0.0
  %v1032 = vmax.f32 %v980, 0.0
  %v1033 = vmax.f32 %v772, 0.0
  %v1034 = vmax.f32 %v774, 0.0
  %v1035 = vmax.f32 %v845, 0.0
  %v1036 = vmax.f32 %v847, 0.0
  %v1037 = vmax.f32 %v918, 0.0
  %v1038 = vmax.f32 %v920, 0.0
  %v1039 = vmax.f32 %v985, 0.0
  %v1040 = vmax.f32 %v776, 0.0
  %v1041 = vmax.f32 %v778, 0.0
  %v1042 = vmax.f32 %v849, 0.0
  %v1043 = vmax.f32 %v851, 0.0
  %v1044 = vmax.f32 %v922, 0.0
  %v1045 = vmax.f32 %v924, 0.0
  %v1046 = vmax.f32 %v988, 0.0
  %v1047 = vpack.c.bf16 %v998, %v991
  %v1048 = vpack.c.bf16 %v999, %v992
  %v1049 = vpack.c.bf16 %v1000, %v993
  %v1050 = vpack.c.bf16 %v1001, %v994
  %v1051 = vpack.c.bf16 %v1002, %v995
  %v1052 = vpack.c.bf16 %v1003, %v996
  %v1053 = vpack.c.bf16 %v1004, %v997
  %v1054 = vpack.c.bf16 %v1012, %v1005
  %v1055 = vpack.c.bf16 %v1013, %v1006
  %v1056 = vpack.c.bf16 %v1014, %v1007
  %v1057 = vpack.c.bf16 %v1015, %v1008
  %v1058 = vpack.c.bf16 %v1016, %v1009
  %v1059 = vpack.c.bf16 %v1017, %v1010
  %v1060 = vpack.c.bf16 %v1018, %v1011
  %v1061 = vpack.c.bf16 %v1026, %v1019
  %v1062 = vpack.c.bf16 %v1027, %v1020
  %v1063 = vpack.c.bf16 %v1028, %v1021
  %v1064 = vpack.c.bf16 %v1029, %v1022
  %v1065 = vpack.c.bf16 %v1030, %v1023
  %v1066 = vpack.c.bf16 %v1031, %v1024
  %v1067 = vpack.c.bf16 %v1032, %v1025
  %v1068 = vpack.c.bf16 %v1040, %v1033
  %v1069 = vpack.c.bf16 %v1041, %v1034
  %v1070 = vpack.c.bf16 %v1042, %v1035
  %v1071 = vpack.c.bf16 %v1043, %v1036
  %v1072 = vpack.c.bf16 %v1044, %v1037
  %v1073 = vpack.c.bf16 %v1045, %v1038
  %v1074 = vpack.c.bf16 %v1046, %v1039
  %v1075 = vld [vmem:[%s3] sm:$0xff]
  %v1076 = vld [vmem:[%s3 + $0x8] sm:$0xff]
  %v1077 = vld [vmem:[%s3 + $0x10] sm:$0xff]
  %v1078 = vld [vmem:[%s3 + $0x18] sm:$0xff]
  %v1079 = vld [vmem:[%s3 + $0x20] sm:$0xff]
  %v1080 = vld [vmem:[%s3 + $0x28] sm:$0xff]
  %v1081 = vld [vmem:[%s3 + $0x30] sm:$0xff]
  %v1082 = vld [vmem:[%s3 + $0x38] sm:$0xff]
  %v1083 = vld [vmem:[%s3 + $0x40] sm:$0xff]
  %v1084 = vld [vmem:[%s3 + $0x48] sm:$0xff]
  %v1085 = vld [vmem:[%s3 + $0x50] sm:$0xff]
  %v1086 = vld [vmem:[%s3 + $0x58] sm:$0xff]
  %v1087 = vld [vmem:[%s3 + $0x60] sm:$0xff]
  %v1088 = vld [vmem:[%s3 + $0x68] sm:$0xff]
  %v1089 = vld [vmem:[%s3 + $0x70] sm:$0xff]
  %v1090 = vld [vmem:[%s3 + $0x78] sm:$0xff]
  %v1091 = vld [vmem:[%s3 + $0x80] sm:$0xff]
  %v1092 = vld [vmem:[%s3 + $0x88] sm:$0xff]
  %v1093 = vld [vmem:[%s3 + $0x90] sm:$0xff]
  %v1094 = vld [vmem:[%s3 + $0x98] sm:$0xff]
  %v1095 = vld [vmem:[%s3 + $0xa0] sm:$0xff]
  %v1096 = vld [vmem:[%s3 + $0xa8] sm:$0xff]
  %v1097 = vld [vmem:[%s3 + $0xb0] sm:$0xff]
  %v1098 = vld [vmem:[%s3 + $0xb8] sm:$0xff]
  %v1099 = vld [vmem:[%s3 + $0xc0] sm:$0xff]
  %v1100 = vld [vmem:[%s3 + $0xc8] sm:$0xff]
  %v1101 = vld [vmem:[%s3 + $0xd0] sm:$0xff]
  %v1102 = vld [vmem:[%s3 + $0xd8] sm:$0xff]
  %v1103 = vld [vmem:[%s3 + $0xe0] sm:$0xff]
  %v1104 = vld [vmem:[%s3 + $0xe8] sm:$0xff]
  %v1105 = vld [vmem:[%s3 + $0xf0] sm:$0xff]
  %v1106 = vld [vmem:[%s3 + $0xf8] sm:$0xff]
  %v1107 = vld [vmem:[%s3 + $0x100] sm:$0xff]
  %v1108 = vld [vmem:[%s3 + $0x108] sm:$0xff]
  %v1109 = vld [vmem:[%s3 + $0x110] sm:$0xff]
  %v1110 = vld [vmem:[%s3 + $0x118] sm:$0xff]
  %v1111 = vld [vmem:[%s3 + $0x120] sm:$0xff]
  %v1112 = vld [vmem:[%s3 + $0x128] sm:$0xff]
  %v1113 = vld [vmem:[%s3 + $0x130] sm:$0xff]
  %v1114 = vld [vmem:[%s3 + $0x138] sm:$0xff]
  %v1115 = vld [vmem:[%s3 + $0x140] sm:$0xff]
  %v1116 = vld [vmem:[%s3 + $0x148] sm:$0xff]
  %v1117 = vld [vmem:[%s3 + $0x150] sm:$0xff]
  %v1118 = vld [vmem:[%s3 + $0x158] sm:$0xff]
  %v1119 = vld [vmem:[%s3 + $0x160] sm:$0xff]
  %v1120 = vld [vmem:[%s3 + $0x168] sm:$0xff]
  %v1121 = vld [vmem:[%s3 + $0x170] sm:$0xff]
  %v1122 = vld [vmem:[%s3 + $0x178] sm:$0xff]
  %v1123 = vld [vmem:[%s3 + $0x180] sm:$0xff]
  %v1124 = vld [vmem:[%s3 + $0x188] sm:$0xff]
  %v1125 = vld [vmem:[%s3 + $0x190] sm:$0xff]
  %v1126 = vld [vmem:[%s3 + $0x198] sm:$0xff]
  %v1127 = vld [vmem:[%s3 + $0x1a0] sm:$0xff]
  %v1128 = vld [vmem:[%s3 + $0x1a8] sm:$0xff]
  %v1129 = vld [vmem:[%s3 + $0x1b0] sm:$0xff]
  %v1130 = vld [vmem:[%s3 + $0x1b8] sm:$0xff]
  %v1131 = vld [vmem:[%s3 + $0x1c0] sm:$0xff]
  %v1132 = vld [vmem:[%s3 + $0x1c8] sm:$0xff]
  %v1133 = vld [vmem:[%s3 + $0x1d0] sm:$0xff]
  %v1134 = vld [vmem:[%s3 + $0x1d8] sm:$0xff]
  %v1135 = vld [vmem:[%s3 + $0x1e0] sm:$0xff]
  %v1136 = vld [vmem:[%s3 + $0x1e8] sm:$0xff]
  %v1137 = vld [vmem:[%s3 + $0x1f0] sm:$0xff]
  %v1138 = vld [vmem:[%s3 + $0x1f8] sm:$0xff]
  %v1139 = vld [vmem:[%s3 + $0x200] sm:$0xff]
  %v1140 = vld [vmem:[%s3 + $0x208] sm:$0xff]
  %v1141 = vld [vmem:[%s3 + $0x210] sm:$0xff]
  %v1142 = vld [vmem:[%s3 + $0x218] sm:$0xff]
  %v1143 = vld [vmem:[%s3 + $0x220] sm:$0xff]
  %v1144 = vld [vmem:[%s3 + $0x228] sm:$0xff]
  %v1145 = vld [vmem:[%s3 + $0x230] sm:$0xff]
  %v1146 = vld [vmem:[%s3 + $0x238] sm:$0xff]
  %v1147 = vld [vmem:[%s3 + $0x240] sm:$0xff]
  %v1148 = vld [vmem:[%s3 + $0x248] sm:$0xff]
  %v1149 = vld [vmem:[%s3 + $0x250] sm:$0xff]
  %v1150 = vld [vmem:[%s3 + $0x258] sm:$0xff]
  %v1151 = vld [vmem:[%s3 + $0x260] sm:$0xff]
  %v1152 = vld [vmem:[%s3 + $0x268] sm:$0xff]
  %v1153 = vld [vmem:[%s3 + $0x270] sm:$0xff]
  %v1154 = vld [vmem:[%s3 + $0x278] sm:$0xff]
  %v1155 = vld [vmem:[%s3 + $0x280] sm:$0xff]
  %v1156 = vld [vmem:[%s3 + $0x288] sm:$0xff]
  %v1157 = vld [vmem:[%s3 + $0x290] sm:$0xff]
  %v1158 = vld [vmem:[%s3 + $0x298] sm:$0xff]
  %v1159 = vld [vmem:[%s3 + $0x2a0] sm:$0xff]
  %v1160 = vld [vmem:[%s3 + $0x2a8] sm:$0xff]
  %v1161 = vld [vmem:[%s3 + $0x2b0] sm:$0xff]
  %v1162 = vld [vmem:[%s3 + $0x2b8] sm:$0xff]
  %v1163 = vld [vmem:[%s3 + $0x2c0] sm:$0xff]
  %v1164 = vld [vmem:[%s3 + $0x2c8] sm:$0xff]
  %v1165 = vld [vmem:[%s3 + $0x2d0] sm:$0xff]
  %v1166 = vld [vmem:[%s3 + $0x2d8] sm:$0xff]
  %v1167 = vld [vmem:[%s3 + $0x2e0] sm:$0xff]
  %v1168 = vld [vmem:[%s3 + $0x2e8] sm:$0xff]
  %v1169 = vld [vmem:[%s3 + $0x2f0] sm:$0xff]
  %v1170 = vld [vmem:[%s3 + $0x2f8] sm:$0xff]
  %v1171 = vld [vmem:[%s3 + $0x300] sm:$0xff]
  %v1172 = vld [vmem:[%s3 + $0x308] sm:$0xff]
  %v1271 = vunpack.c.l.b16 %v1075
  %v1272 = vunpack.c.h.b16 %v1075
  %v1273 = vunpack.c.l.b16 %v1076
  %v1274 = vunpack.c.h.b16 %v1076
  %v1275 = vunpack.c.l.b16 %v1077
  %v1276 = vunpack.c.h.b16 %v1077
  %v1277 = vunpack.c.l.b16 %v1078
  %v1278 = vunpack.c.h.b16 %v1078
  %v1279 = vunpack.c.l.b16 %v1079
  %v1280 = vunpack.c.h.b16 %v1079
  %v1281 = vunpack.c.l.b16 %v1080
  %v1282 = vunpack.c.h.b16 %v1080
  %v1283 = vunpack.c.l.b16 %v1081
  %v1284 = vunpack.c.h.b16 %v1081
  %v1285 = vunpack.c.l.b16 %v1082
  %v1286 = vunpack.c.h.b16 %v1082
  %v1287 = vunpack.c.l.b16 %v1083
  %v1288 = vunpack.c.h.b16 %v1083
  %v1289 = vunpack.c.l.b16 %v1084
  %v1290 = vunpack.c.h.b16 %v1084
  %v1291 = vunpack.c.l.b16 %v1085
  %v1292 = vunpack.c.h.b16 %v1085
  %v1293 = vunpack.c.l.b16 %v1086
  %v1294 = vunpack.c.h.b16 %v1086
  %v1295 = vunpack.c.l.b16 %v1087
  %v1296 = vunpack.c.h.b16 %v1087
  %v1297 = vunpack.c.l.b16 %v1088
  %v1298 = vunpack.c.h.b16 %v1088
  %v1299 = vunpack.c.l.b16 %v1089
  %v1300 = vunpack.c.h.b16 %v1089
  %v1301 = vunpack.c.l.b16 %v1090
  %v1302 = vunpack.c.h.b16 %v1090
  %v1303 = vunpack.c.l.b16 %v1091
  %v1304 = vunpack.c.h.b16 %v1091
  %v1305 = vunpack.c.l.b16 %v1092
  %v1306 = vunpack.c.h.b16 %v1092
  %v1307 = vunpack.c.l.b16 %v1093
  %v1308 = vunpack.c.h.b16 %v1093
  %v1309 = vunpack.c.l.b16 %v1094
  %v1310 = vunpack.c.h.b16 %v1094
  %v1311 = vunpack.c.l.b16 %v1095
  %v1312 = vunpack.c.h.b16 %v1095
  %v1313 = vunpack.c.l.b16 %v1096
  %v1314 = vunpack.c.h.b16 %v1096
  %v1315 = vunpack.c.l.b16 %v1097
  %v1316 = vunpack.c.h.b16 %v1097
  %v1317 = vunpack.c.l.b16 %v1098
  %v1318 = vunpack.c.h.b16 %v1098
  %v1319 = vunpack.c.l.b16 %v1099
  %v1320 = vunpack.c.h.b16 %v1099
  %v1321 = vunpack.c.l.b16 %v1100
  %v1322 = vunpack.c.h.b16 %v1100
  %v1323 = vunpack.c.l.b16 %v1101
  %v1324 = vunpack.c.h.b16 %v1101
  %v1325 = vunpack.c.l.b16 %v1102
  %v1326 = vunpack.c.h.b16 %v1102
  %v1327 = vunpack.c.l.b16 %v1103
  %v1328 = vunpack.c.h.b16 %v1103
  %v1329 = vunpack.c.l.b16 %v1104
  %v1330 = vunpack.c.h.b16 %v1104
  %v1331 = vunpack.c.l.b16 %v1105
  %v1332 = vunpack.c.h.b16 %v1105
  %v1333 = vunpack.c.l.b16 %v1106
  %v1334 = vunpack.c.h.b16 %v1106
  %v1335 = vunpack.c.l.b16 %v1107
  %v1336 = vunpack.c.h.b16 %v1107
  %v1337 = vunpack.c.l.b16 %v1108
  %v1338 = vunpack.c.h.b16 %v1108
  %v1339 = vunpack.c.l.b16 %v1109
  %v1340 = vunpack.c.h.b16 %v1109
  %v1341 = vunpack.c.l.b16 %v1110
  %v1342 = vunpack.c.h.b16 %v1110
  %v1343 = vunpack.c.l.b16 %v1111
  %v1344 = vunpack.c.h.b16 %v1111
  %v1345 = vunpack.c.l.b16 %v1112
  %v1346 = vunpack.c.h.b16 %v1112
  %v1347 = vunpack.c.l.b16 %v1113
  %v1348 = vunpack.c.h.b16 %v1113
  %v1349 = vunpack.c.l.b16 %v1114
  %v1350 = vunpack.c.h.b16 %v1114
  %v1351 = vunpack.c.l.b16 %v1115
  %v1352 = vunpack.c.h.b16 %v1115
  %v1353 = vunpack.c.l.b16 %v1116
  %v1354 = vunpack.c.h.b16 %v1116
  %v1355 = vunpack.c.l.b16 %v1117
  %v1356 = vunpack.c.h.b16 %v1117
  %v1357 = vunpack.c.l.b16 %v1118
  %v1358 = vunpack.c.h.b16 %v1118
  %v1359 = vunpack.c.l.b16 %v1119
  %v1360 = vunpack.c.h.b16 %v1119
  %v1361 = vunpack.c.l.b16 %v1120
  %v1362 = vunpack.c.h.b16 %v1120
  %v1363 = vunpack.c.l.b16 %v1121
  %v1364 = vunpack.c.h.b16 %v1121
  %v1365 = vunpack.c.l.b16 %v1122
  %v1366 = vunpack.c.h.b16 %v1122
  %v1367 = vunpack.c.l.b16 %v1123
  %v1368 = vunpack.c.h.b16 %v1123
  %v1369 = vunpack.c.l.b16 %v1124
  %v1370 = vunpack.c.h.b16 %v1124
  %v1371 = vunpack.c.l.b16 %v1125
  %v1372 = vunpack.c.h.b16 %v1125
  %v1373 = vunpack.c.l.b16 %v1126
  %v1374 = vunpack.c.h.b16 %v1126
  %v1375 = vunpack.c.l.b16 %v1127
  %v1376 = vunpack.c.h.b16 %v1127
  %v1377 = vunpack.c.l.b16 %v1128
  %v1378 = vunpack.c.h.b16 %v1128
  %v1379 = vunpack.c.l.b16 %v1129
  %v1380 = vunpack.c.h.b16 %v1129
  %v1381 = vunpack.c.l.b16 %v1130
  %v1382 = vunpack.c.h.b16 %v1130
  %v1383 = vunpack.c.l.b16 %v1131
  %v1384 = vunpack.c.h.b16 %v1131
  %v1385 = vunpack.c.l.b16 %v1132
  %v1386 = vunpack.c.h.b16 %v1132
  %v1387 = vunpack.c.l.b16 %v1133
  %v1388 = vunpack.c.h.b16 %v1133
  %v1389 = vunpack.c.l.b16 %v1134
  %v1390 = vunpack.c.h.b16 %v1134
  %v1391 = vunpack.c.l.b16 %v1135
  %v1392 = vunpack.c.h.b16 %v1135
  %v1393 = vunpack.c.l.b16 %v1136
  %v1394 = vunpack.c.h.b16 %v1136
  %v1395 = vunpack.c.l.b16 %v1137
  %v1396 = vunpack.c.h.b16 %v1137
  %v1397 = vunpack.c.l.b16 %v1138
  %v1398 = vunpack.c.h.b16 %v1138
  %v1399 = vunpack.c.l.b16 %v1139
  %v1400 = vunpack.c.h.b16 %v1139
  %v1401 = vunpack.c.l.b16 %v1140
  %v1402 = vunpack.c.h.b16 %v1140
  %v1403 = vunpack.c.l.b16 %v1141
  %v1404 = vunpack.c.h.b16 %v1141
  %v1405 = vunpack.c.l.b16 %v1142
  %v1406 = vunpack.c.h.b16 %v1142
  %v1407 = vunpack.c.l.b16 %v1143
  %v1408 = vunpack.c.h.b16 %v1143
  %v1409 = vunpack.c.l.b16 %v1144
  %v1410 = vunpack.c.h.b16 %v1144
  %v1411 = vunpack.c.l.b16 %v1145
  %v1412 = vunpack.c.h.b16 %v1145
  %v1413 = vunpack.c.l.b16 %v1146
  %v1414 = vunpack.c.h.b16 %v1146
  %v1415 = vunpack.c.l.b16 %v1147
  %v1416 = vunpack.c.h.b16 %v1147
  %v1417 = vunpack.c.l.b16 %v1148
  %v1418 = vunpack.c.h.b16 %v1148
  %v1419 = vunpack.c.l.b16 %v1149
  %v1420 = vunpack.c.h.b16 %v1149
  %v1421 = vunpack.c.l.b16 %v1150
  %v1422 = vunpack.c.h.b16 %v1150
  %v1423 = vunpack.c.l.b16 %v1151
  %v1424 = vunpack.c.h.b16 %v1151
  %v1425 = vunpack.c.l.b16 %v1152
  %v1426 = vunpack.c.h.b16 %v1152
  %v1427 = vunpack.c.l.b16 %v1153
  %v1428 = vunpack.c.h.b16 %v1153
  %v1429 = vunpack.c.l.b16 %v1154
  %v1430 = vunpack.c.h.b16 %v1154
  %v1431 = vunpack.c.l.b16 %v1155
  %v1432 = vunpack.c.h.b16 %v1155
  %v1433 = vunpack.c.l.b16 %v1156
  %v1434 = vunpack.c.h.b16 %v1156
  %v1435 = vunpack.c.l.b16 %v1157
  %v1436 = vunpack.c.h.b16 %v1157
  %v1437 = vunpack.c.l.b16 %v1158
  %v1438 = vunpack.c.h.b16 %v1158
  %v1439 = vunpack.c.l.b16 %v1159
  %v1440 = vunpack.c.h.b16 %v1159
  %v1441 = vunpack.c.l.b16 %v1160
  %v1442 = vunpack.c.h.b16 %v1160
  %v1443 = vunpack.c.l.b16 %v1161
  %v1444 = vunpack.c.h.b16 %v1161
  %v1445 = vunpack.c.l.b16 %v1162
  %v1446 = vunpack.c.h.b16 %v1162
  %v1447 = vunpack.c.l.b16 %v1163
  %v1448 = vunpack.c.h.b16 %v1163
  %v1449 = vunpack.c.l.b16 %v1164
  %v1450 = vunpack.c.h.b16 %v1164
  %v1451 = vunpack.c.l.b16 %v1165
  %v1452 = vunpack.c.h.b16 %v1165
  %v1453 = vunpack.c.l.b16 %v1166
  %v1454 = vunpack.c.h.b16 %v1166
  %v1455 = vunpack.c.l.b16 %v1167
  %v1456 = vunpack.c.h.b16 %v1167
  %v1457 = vunpack.c.l.b16 %v1168
  %v1458 = vunpack.c.h.b16 %v1168
  %v1459 = vunpack.c.l.b16 %v1169
  %v1460 = vunpack.c.h.b16 %v1169
  %v1461 = vunpack.c.l.b16 %v1170
  %v1462 = vunpack.c.h.b16 %v1170
  %v1463 = vunpack.c.l.b16 %v1171
  %v1464 = vunpack.c.h.b16 %v1171
  %v1465 = vunpack.c.l.b16 %v1172
  %v1466 = vunpack.c.h.b16 %v1172
  %v1467 = vpack.c.b16 %v1273, %v1271
  %v1468 = vpack.c.b16 %v1274, %v1272
  %v1469 = vpack.c.b16 %v1277, %v1275
  %v1470 = vpack.c.b16 %v1278, %v1276
  %v1471 = vpack.c.b16 %v1281, %v1279
  %v1472 = vpack.c.b16 %v1282, %v1280
  %v1473 = vpack.c.b16 %v1285, %v1283
  %v1474 = vpack.c.b16 %v1286, %v1284
  %v1475 = vpack.c.b16 %v1289, %v1287
  %v1476 = vpack.c.b16 %v1290, %v1288
  %v1477 = vpack.c.b16 %v1293, %v1291
  %v1478 = vpack.c.b16 %v1294, %v1292
  %v1479 = vpack.c.b16 %v1297, %v1295
  %v1480 = vpack.c.b16 %v1298, %v1296
  %v1481 = vpack.c.b16 %v1301, %v1299
  %v1482 = vpack.c.b16 %v1302, %v1300
  %v1483 = vpack.c.b16 %v1305, %v1303
  %v1484 = vpack.c.b16 %v1306, %v1304
  %v1485 = vpack.c.b16 %v1309, %v1307
  %v1486 = vpack.c.b16 %v1310, %v1308
  %v1487 = vpack.c.b16 %v1313, %v1311
  %v1488 = vpack.c.b16 %v1314, %v1312
  %v1489 = vpack.c.b16 %v1317, %v1315
  %v1490 = vpack.c.b16 %v1318, %v1316
  %v1491 = vpack.c.b16 %v1321, %v1319
  %v1492 = vpack.c.b16 %v1322, %v1320
  %v1493 = vpack.c.b16 %v1325, %v1323
  %v1494 = vpack.c.b16 %v1326, %v1324
  %v1495 = vpack.c.b16 %v1329, %v1327
  %v1496 = vpack.c.b16 %v1330, %v1328
  %v1497 = vpack.c.b16 %v1333, %v1331
  %v1498 = vpack.c.b16 %v1334, %v1332
  %v1499 = vpack.c.b16 %v1337, %v1335
  %v1500 = vpack.c.b16 %v1338, %v1336
  %v1501 = vpack.c.b16 %v1341, %v1339
  %v1502 = vpack.c.b16 %v1342, %v1340
  %v1503 = vpack.c.b16 %v1345, %v1343
  %v1504 = vpack.c.b16 %v1346, %v1344
  %v1505 = vpack.c.b16 %v1349, %v1347
  %v1506 = vpack.c.b16 %v1350, %v1348
  %v1507 = vpack.c.b16 %v1353, %v1351
  %v1508 = vpack.c.b16 %v1354, %v1352
  %v1509 = vpack.c.b16 %v1357, %v1355
  %v1510 = vpack.c.b16 %v1358, %v1356
  %v1511 = vpack.c.b16 %v1361, %v1359
  %v1512 = vpack.c.b16 %v1362, %v1360
  %v1513 = vpack.c.b16 %v1365, %v1363
  %v1514 = vpack.c.b16 %v1366, %v1364
  %v1515 = vpack.c.b16 %v1369, %v1367
  %v1516 = vpack.c.b16 %v1370, %v1368
  %v1517 = vpack.c.b16 %v1373, %v1371
  %v1518 = vpack.c.b16 %v1374, %v1372
  %v1519 = vpack.c.b16 %v1377, %v1375
  %v1520 = vpack.c.b16 %v1378, %v1376
  %v1521 = vpack.c.b16 %v1381, %v1379
  %v1522 = vpack.c.b16 %v1382, %v1380
  %v1523 = vpack.c.b16 %v1385, %v1383
  %v1524 = vpack.c.b16 %v1386, %v1384
  %v1525 = vpack.c.b16 %v1389, %v1387
  %v1526 = vpack.c.b16 %v1390, %v1388
  %v1527 = vpack.c.b16 %v1393, %v1391
  %v1528 = vpack.c.b16 %v1394, %v1392
  %v1529 = vpack.c.b16 %v1397, %v1395
  %v1530 = vpack.c.b16 %v1398, %v1396
  %v1531 = vpack.c.b16 %v1401, %v1399
  %v1532 = vpack.c.b16 %v1402, %v1400
  %v1533 = vpack.c.b16 %v1405, %v1403
  %v1534 = vpack.c.b16 %v1406, %v1404
  %v1535 = vpack.c.b16 %v1409, %v1407
  %v1536 = vpack.c.b16 %v1410, %v1408
  %v1537 = vpack.c.b16 %v1413, %v1411
  %v1538 = vpack.c.b16 %v1414, %v1412
  %v1539 = vpack.c.b16 %v1417, %v1415
  %v1540 = vpack.c.b16 %v1418, %v1416
  %v1541 = vpack.c.b16 %v1421, %v1419
  %v1542 = vpack.c.b16 %v1422, %v1420
  %v1543 = vpack.c.b16 %v1425, %v1423
  %v1544 = vpack.c.b16 %v1426, %v1424
  %v1545 = vpack.c.b16 %v1429, %v1427
  %v1546 = vpack.c.b16 %v1430, %v1428
  %v1547 = vpack.c.b16 %v1433, %v1431
  %v1548 = vpack.c.b16 %v1434, %v1432
  %v1549 = vpack.c.b16 %v1437, %v1435
  %v1550 = vpack.c.b16 %v1438, %v1436
  %v1551 = vpack.c.b16 %v1441, %v1439
  %v1552 = vpack.c.b16 %v1442, %v1440
  %v1553 = vpack.c.b16 %v1445, %v1443
  %v1554 = vpack.c.b16 %v1446, %v1444
  %v1555 = vpack.c.b16 %v1449, %v1447
  %v1556 = vpack.c.b16 %v1450, %v1448
  %v1557 = vpack.c.b16 %v1453, %v1451
  %v1558 = vpack.c.b16 %v1454, %v1452
  %v1559 = vpack.c.b16 %v1457, %v1455
  %v1560 = vpack.c.b16 %v1458, %v1456
  %v1561 = vpack.c.b16 %v1461, %v1459
  %v1562 = vpack.c.b16 %v1462, %v1460
  %v1563 = vpack.c.b16 %v1465, %v1463
  %v1564 = vpack.c.b16 %v1466, %v1464
  %vm1663 = vcmask 130048
  %v1665 = vsel %vm1663, %v1053, 0
  %v1668 = vsel %vm1663, %v1060, 0
  %v1671 = vsel %vm1663, %v1067, 0
  %v1674 = vsel %vm1663, %v1074, 0
  %1676 = vmatprep.subr.bf16.mxu0 %v1468
  %1677 = vmatpush1.bf16.msra.mxu0 %v1467
  %1678 = vmatprep.subr.bf16.mxu0 %v1470
  %1679 = vmatpush1.bf16.msra.mxu0 %v1469
  %1680 = vmatprep.subr.bf16.mxu0 %v1472
  %1681 = vmatpush1.bf16.msra.mxu0 %v1471
  %1682 = vmatprep.subr.bf16.mxu0 %v1474
  %1683 = vmatpush1.bf16.msra.mxu0 %v1473
  %1684 = vmatprep.subr.bf16.mxu0 %v1476
  %1685 = vmatpush1.bf16.msra.mxu0 %v1475
  %1686 = vmatprep.subr.bf16.mxu0 %v1478
  %1687 = vmatpush1.bf16.msra.mxu0 %v1477
  %1688 = vmatprep.subr.bf16.mxu0 %v1480
  %1689 = vmatpush1.bf16.msra.mxu0 %v1479
  %1690 = vmatprep.subr.bf16.mxu0 %v1482
  %1691 = vmatpush1.bf16.msra.mxu0 %v1481
  %1692 = vmatprep.subr.bf16.mxu0 %v1484
  %1693 = vmatpush1.bf16.msra.mxu0 %v1483
  %1694 = vmatprep.subr.bf16.mxu0 %v1486
  %1695 = vmatpush1.bf16.msra.mxu0 %v1485
  %1696 = vmatprep.subr.bf16.mxu0 %v1488
  %1697 = vmatpush1.bf16.msra.mxu0 %v1487
  %1698 = vmatprep.subr.bf16.mxu0 %v1490
  %1699 = vmatpush1.bf16.msra.mxu0 %v1489
  %1700 = vmatprep.subr.bf16.mxu0 %v1492
  %1701 = vmatpush1.bf16.msra.mxu0 %v1491
  %1702 = vmatprep.subr.bf16.mxu0 %v1494
  %1703 = vmatpush1.bf16.msra.mxu0 %v1493
  %1704 = vmatprep.subr.bf16.mxu0 %v1496
  %1705 = vmatpush1.bf16.msra.mxu0 %v1495
  %1706 = vmatprep.subr.bf16.mxu0 %v1498
  %1707 = vmatpush1.bf16.msra.mxu0 %v1497
  %1708 = vmatprep.mubr.bf16.mxu0 %v1048
  %1709 = vmatmul.mubr.bf16.gmra.mrb[0].mxu0 %v1047
  %v1710 = vpop.f32.mrb[0].mxu0
  %v1711 = vadd.f32 0.0, %v1710
  %v1712 = vpop.f32.mrb[0].mxu0
  %v1713 = vadd.f32 0.0, %v1712
  %v1714 = vpop.f32.mrb[0].mxu0
  %v1715 = vadd.f32 0.0, %v1714
  %v1716 = vpop.f32.mrb[0].mxu0
  %v1717 = vadd.f32 0.0, %v1716
  %1718 = vmatprep.mubr.bf16.mxu0 %v1055
  %1719 = vmatmul.mubr.bf16.gmra.mrb[0].mxu0 %v1054
  %v1720 = vpop.f32.mrb[0].mxu0
  %v1721 = vadd.f32 0.0, %v1720
  %v1722 = vpop.f32.mrb[0].mxu0
  %v1723 = vadd.f32 0.0, %v1722
  %v1724 = vpop.f32.mrb[0].mxu0
  %v1725 = vadd.f32 0.0, %v1724
  %v1726 = vpop.f32.mrb[0].mxu0
  %v1727 = vadd.f32 0.0, %v1726
  %1728 = vmatprep.mubr.bf16.mxu0 %v1062
  %1729 = vmatmul.mubr.bf16.gmra.mrb[0].mxu0 %v1061
  %v1730 = vpop.f32.mrb[0].mxu0
  %v1731 = vadd.f32 0.0, %v1730
  %v1732 = vpop.f32.mrb[0].mxu0
  %v1733 = vadd.f32 0.0, %v1732
  %v1734 = vpop.f32.mrb[0].mxu0
  %v1735 = vadd.f32 0.0, %v1734
  %v1736 = vpop.f32.mrb[0].mxu0
  %v1737 = vadd.f32 0.0, %v1736
  %1738 = vmatprep.mubr.bf16.mxu0 %v1069
  %1739 = vmatmul.mubr.bf16.gmra.mrb[0].mxu0 %v1068
  %v1740 = vpop.f32.mrb[0].mxu0
  %v1741 = vadd.f32 0.0, %v1740
  %v1742 = vpop.f32.mrb[0].mxu0
  %v1743 = vadd.f32 0.0, %v1742
  %v1744 = vpop.f32.mrb[0].mxu0
  %v1745 = vadd.f32 0.0, %v1744
  %v1746 = vpop.f32.mrb[0].mxu0
  %v1747 = vadd.f32 0.0, %v1746
  %1748 = vdwg.mxu0
  %1749 = vmatprep.subr.bf16.mxu0 %v1500
  %1750 = vmatpush1.bf16.msra.mxu0 %v1499
  %1751 = vmatprep.subr.bf16.mxu0 %v1502
  %1752 = vmatpush1.bf16.msra.mxu0 %v1501
  %1753 = vmatprep.subr.bf16.mxu0 %v1504
  %1754 = vmatpush1.bf16.msra.mxu0 %v1503
  %1755 = vmatprep.subr.bf16.mxu0 %v1506
  %1756 = vmatpush1.bf16.msra.mxu0 %v1505
  %1757 = vmatprep.subr.bf16.mxu0 %v1508
  %1758 = vmatpush1.bf16.msra.mxu0 %v1507
  %1759 = vmatprep.subr.bf16.mxu0 %v1510
  %1760 = vmatpush1.bf16.msra.mxu0 %v1509
  %1761 = vmatprep.subr.bf16.mxu0 %v1512
  %1762 = vmatpush1.bf16.msra.mxu0 %v1511
  %1763 = vmatprep.subr.bf16.mxu0 %v1514
  %1764 = vmatpush1.bf16.msra.mxu0 %v1513
  %1765 = vmatprep.subr.bf16.mxu0 %v1516
  %1766 = vmatpush1.bf16.msra.mxu0 %v1515
  %1767 = vmatprep.subr.bf16.mxu0 %v1518
  %1768 = vmatpush1.bf16.msra.mxu0 %v1517
  %1769 = vmatprep.subr.bf16.mxu0 %v1520
  %1770 = vmatpush1.bf16.msra.mxu0 %v1519
  %1771 = vmatprep.subr.bf16.mxu0 %v1522
  %1772 = vmatpush1.bf16.msra.mxu0 %v1521
  %1773 = vmatprep.subr.bf16.mxu0 %v1524
  %1774 = vmatpush1.bf16.msra.mxu0 %v1523
  %1775 = vmatprep.subr.bf16.mxu0 %v1526
  %1776 = vmatpush1.bf16.msra.mxu0 %v1525
  %1777 = vmatprep.subr.bf16.mxu0 %v1528
  %1778 = vmatpush1.bf16.msra.mxu0 %v1527
  %1779 = vmatprep.subr.bf16.mxu0 %v1530
  %1780 = vmatpush1.bf16.msra.mxu0 %v1529
  %1781 = vmatprep.mubr.bf16.mxu0 %v1050
  %1782 = vmatmul.mubr.bf16.gmra.mrb[0].mxu0 %v1049
  %v1783 = vpop.f32.mrb[0].mxu0
  %v1784 = vadd.f32 %v1711, %v1783
  %v1785 = vpop.f32.mrb[0].mxu0
  %v1786 = vadd.f32 %v1713, %v1785
  %v1787 = vpop.f32.mrb[0].mxu0
  %v1788 = vadd.f32 %v1715, %v1787
  %v1789 = vpop.f32.mrb[0].mxu0
  %v1790 = vadd.f32 %v1717, %v1789
  %1791 = vmatprep.mubr.bf16.mxu0 %v1057
  %1792 = vmatmul.mubr.bf16.gmra.mrb[0].mxu0 %v1056
  %v1793 = vpop.f32.mrb[0].mxu0
  %v1794 = vadd.f32 %v1721, %v1793
  %v1795 = vpop.f32.mrb[0].mxu0
  %v1796 = vadd.f32 %v1723, %v1795
  %v1797 = vpop.f32.mrb[0].mxu0
  %v1798 = vadd.f32 %v1725, %v1797
  %v1799 = vpop.f32.mrb[0].mxu0
  %v1800 = vadd.f32 %v1727, %v1799
  %1801 = vmatprep.mubr.bf16.mxu0 %v1064
  %1802 = vmatmul.mubr.bf16.gmra.mrb[0].mxu0 %v1063
  %v1803 = vpop.f32.mrb[0].mxu0
  %v1804 = vadd.f32 %v1731, %v1803
  %v1805 = vpop.f32.mrb[0].mxu0
  %v1806 = vadd.f32 %v1733, %v1805
  %v1807 = vpop.f32.mrb[0].mxu0
  %v1808 = vadd.f32 %v1735, %v1807
  %v1809 = vpop.f32.mrb[0].mxu0
  %v1810 = vadd.f32 %v1737, %v1809
  %1811 = vmatprep.mubr.bf16.mxu0 %v1071
  %1812 = vmatmul.mubr.bf16.gmra.mrb[0].mxu0 %v1070
  %v1813 = vpop.f32.mrb[0].mxu0
  %v1814 = vadd.f32 %v1741, %v1813
  %v1815 = vpop.f32.mrb[0].mxu0
  %v1816 = vadd.f32 %v1743, %v1815
  %v1817 = vpop.f32.mrb[0].mxu0
  %v1818 = vadd.f32 %v1745, %v1817
  %v1819 = vpop.f32.mrb[0].mxu0
  %v1820 = vadd.f32 %v1747, %v1819
  %1821 = vdwg.mxu0
  %1822 = vmatprep.subr.bf16.mxu0 %v1532
  %1823 = vmatpush1.bf16.msra.mxu0 %v1531
  %1824 = vmatprep.subr.bf16.mxu0 %v1534
  %1825 = vmatpush1.bf16.msra.mxu0 %v1533
  %1826 = vmatprep.subr.bf16.mxu0 %v1536
  %1827 = vmatpush1.bf16.msra.mxu0 %v1535
  %1828 = vmatprep.subr.bf16.mxu0 %v1538
  %1829 = vmatpush1.bf16.msra.mxu0 %v1537
  %1830 = vmatprep.subr.bf16.mxu0 %v1540
  %1831 = vmatpush1.bf16.msra.mxu0 %v1539
  %1832 = vmatprep.subr.bf16.mxu0 %v1542
  %1833 = vmatpush1.bf16.msra.mxu0 %v1541
  %1834 = vmatprep.subr.bf16.mxu0 %v1544
  %1835 = vmatpush1.bf16.msra.mxu0 %v1543
  %1836 = vmatprep.subr.bf16.mxu0 %v1546
  %1837 = vmatpush1.bf16.msra.mxu0 %v1545
  %1838 = vmatprep.subr.bf16.mxu0 %v1548
  %1839 = vmatpush1.bf16.msra.mxu0 %v1547
  %1840 = vmatprep.subr.bf16.mxu0 %v1550
  %1841 = vmatpush1.bf16.msra.mxu0 %v1549
  %1842 = vmatprep.subr.bf16.mxu0 %v1552
  %1843 = vmatpush1.bf16.msra.mxu0 %v1551
  %1844 = vmatprep.subr.bf16.mxu0 %v1554
  %1845 = vmatpush1.bf16.msra.mxu0 %v1553
  %1846 = vmatprep.subr.bf16.mxu0 %v1556
  %1847 = vmatpush1.bf16.msra.mxu0 %v1555
  %1848 = vmatprep.subr.bf16.mxu0 %v1558
  %1849 = vmatpush1.bf16.msra.mxu0 %v1557
  %1850 = vmatprep.subr.bf16.mxu0 %v1560
  %1851 = vmatpush1.bf16.msra.mxu0 %v1559
  %1852 = vmatprep.subr.bf16.mxu0 %v1562
  %1853 = vmatpush1.bf16.msra.mxu0 %v1561
  %1854 = vmatprep.mubr.bf16.mxu0 %v1052
  %1855 = vmatmul.mubr.bf16.gmra.mrb[0].mxu0 %v1051
  %v1856 = vpop.f32.mrb[0].mxu0
  %v1857 = vadd.f32 %v1784, %v1856
  %v1858 = vpop.f32.mrb[0].mxu0
  %v1859 = vadd.f32 %v1786, %v1858
  %v1860 = vpop.f32.mrb[0].mxu0
  %v1861 = vadd.f32 %v1788, %v1860
  %v1862 = vpop.f32.mrb[0].mxu0
  %v1863 = vadd.f32 %v1790, %v1862
  %1864 = vmatprep.mubr.bf16.mxu0 %v1059
  %1865 = vmatmul.mubr.bf16.gmra.mrb[0].mxu0 %v1058
  %v1866 = vpop.f32.mrb[0].mxu0
  %v1867 = vadd.f32 %v1794, %v1866
  %v1868 = vpop.f32.mrb[0].mxu0
  %v1869 = vadd.f32 %v1796, %v1868
  %v1870 = vpop.f32.mrb[0].mxu0
  %v1871 = vadd.f32 %v1798, %v1870
  %v1872 = vpop.f32.mrb[0].mxu0
  %v1873 = vadd.f32 %v1800, %v1872
  %1874 = vmatprep.mubr.bf16.mxu0 %v1066
  %1875 = vmatmul.mubr.bf16.gmra.mrb[0].mxu0 %v1065
  %v1876 = vpop.f32.mrb[0].mxu0
  %v1877 = vadd.f32 %v1804, %v1876
  %v1878 = vpop.f32.mrb[0].mxu0
  %v1879 = vadd.f32 %v1806, %v1878
  %v1880 = vpop.f32.mrb[0].mxu0
  %v1881 = vadd.f32 %v1808, %v1880
  %v1882 = vpop.f32.mrb[0].mxu0
  %v1883 = vadd.f32 %v1810, %v1882
  %1884 = vmatprep.mubr.bf16.mxu0 %v1073
  %1885 = vmatmul.mubr.bf16.gmra.mrb[0].mxu0 %v1072
  %v1886 = vpop.f32.mrb[0].mxu0
  %v1887 = vadd.f32 %v1814, %v1886
  %v1888 = vpop.f32.mrb[0].mxu0
  %v1889 = vadd.f32 %v1816, %v1888
  %v1890 = vpop.f32.mrb[0].mxu0
  %v1891 = vadd.f32 %v1818, %v1890
  %v1892 = vpop.f32.mrb[0].mxu0
  %v1893 = vadd.f32 %v1820, %v1892
  %1894 = vdwg.mxu0
  %1895 = vmatprep.subr.bf16.mxu0 %v1564
  %1896 = vmatpush1.bf16.msra.mxu0 %v1563
  %1897 = vmatprep.subr.bf16.mxu0 0
  %1898 = vmatpush1.bf16.msra.mxu0 0
  %1899 = vmatprep.subr.bf16.mxu0 0
  %1900 = vmatpush1.bf16.msra.mxu0 0
  %1901 = vmatprep.subr.bf16.mxu0 0
  %1902 = vmatpush1.bf16.msra.mxu0 0
  %1903 = vmatprep.subr.bf16.mxu0 0
  %1904 = vmatpush1.bf16.msra.mxu0 0
  %1905 = vmatprep.subr.bf16.mxu0 0
  %1906 = vmatpush1.bf16.msra.mxu0 0
  %1907 = vmatprep.subr.bf16.mxu0 0
  %1908 = vmatpush1.bf16.msra.mxu0 0
  %1909 = vmatprep.subr.bf16.mxu0 0
  %1910 = vmatpush1.bf16.msra.mxu0 0
  %1911 = vmatprep.subr.bf16.mxu0 0
  %1912 = vmatpush1.bf16.msra.mxu0 0
  %1913 = vmatprep.subr.bf16.mxu0 0
  %1914 = vmatpush1.bf16.msra.mxu0 0
  %1915 = vmatprep.subr.bf16.mxu0 0
  %1916 = vmatpush1.bf16.msra.mxu0 0
  %1917 = vmatprep.subr.bf16.mxu0 0
  %1918 = vmatpush1.bf16.msra.mxu0 0
  %1919 = vmatprep.subr.bf16.mxu0 0
  %1920 = vmatpush1.bf16.msra.mxu0 0
  %1921 = vmatprep.subr.bf16.mxu0 0
  %1922 = vmatpush1.bf16.msra.mxu0 0
  %1923 = vmatprep.subr.bf16.mxu0 0
  %1924 = vmatpush1.bf16.msra.mxu0 0
  %1925 = vmatprep.subr.bf16.mxu0 0
  %1926 = vmatpush1.bf16.msra.mxu0 0
  %1927 = vmatprep.mubr.bf16.mxu0 0
  %1928 = vmatmul.mubr.bf16.gmra.mrb[0].mxu0 %v1665
  %v1929 = vpop.f32.mrb[0].mxu0
  %v1930 = vadd.f32 %v1857, %v1929
  %v1931 = vpop.f32.mrb[0].mxu0
  %v1932 = vadd.f32 %v1859, %v1931
  %v1933 = vpop.f32.mrb[0].mxu0
  %v1934 = vadd.f32 %v1861, %v1933
  %v1935 = vpop.f32.mrb[0].mxu0
  %v1936 = vadd.f32 %v1863, %v1935
  %1937 = vmatprep.mubr.bf16.mxu0 0
  %1938 = vmatmul.mubr.bf16.gmra.mrb[0].mxu0 %v1668
  %v1939 = vpop.f32.mrb[0].mxu0
  %v1940 = vadd.f32 %v1867, %v1939
  %v1941 = vpop.f32.mrb[0].mxu0
  %v1942 = vadd.f32 %v1869, %v1941
  %v1943 = vpop.f32.mrb[0].mxu0
  %v1944 = vadd.f32 %v1871, %v1943
  %v1945 = vpop.f32.mrb[0].mxu0
  %v1946 = vadd.f32 %v1873, %v1945
  %1947 = vmatprep.mubr.bf16.mxu0 0
  %1948 = vmatmul.mubr.bf16.gmra.mrb[0].mxu0 %v1671
  %v1949 = vpop.f32.mrb[0].mxu0
  %v1950 = vadd.f32 %v1877, %v1949
  %v1951 = vpop.f32.mrb[0].mxu0
  %v1952 = vadd.f32 %v1879, %v1951
  %v1953 = vpop.f32.mrb[0].mxu0
  %v1954 = vadd.f32 %v1881, %v1953
  %v1955 = vpop.f32.mrb[0].mxu0
  %v1956 = vadd.f32 %v1883, %v1955
  %1957 = vmatprep.mubr.bf16.mxu0 0
  %1958 = vmatmul.mubr.bf16.gmra.mrb[0].mxu0 %v1674
  %v1959 = vpop.f32.mrb[0].mxu0
  %v1960 = vadd.f32 %v1887, %v1959
  %v1961 = vpop.f32.mrb[0].mxu0
  %v1962 = vadd.f32 %v1889, %v1961
  %v1963 = vpop.f32.mrb[0].mxu0
  %v1964 = vadd.f32 %v1891, %v1963
  %v1965 = vpop.f32.mrb[0].mxu0
  %v1966 = vadd.f32 %v1893, %v1965
  %1967 = vdwg.mxu0
  %v1968 = vpack.c.bf16 %v1934, %v1930
  %v1969 = vpack.c.bf16 %v1936, %v1932
  %v1970 = vpack.c.bf16 %v1944, %v1940
  %v1971 = vpack.c.bf16 %v1946, %v1942
  %v1972 = vpack.c.bf16 %v1954, %v1950
  %v1973 = vpack.c.bf16 %v1956, %v1952
  %v1974 = vpack.c.bf16 %v1964, %v1960
  %v1975 = vpack.c.bf16 %v1966, %v1962
  %v1976 = vld [vmem:[%s4] sm:$0xf]
  %v1977 = vld [vmem:[%s4 + $0x4] sm:$0xf]
  %v1978 = vld [vmem:[%s4 + $0x8] sm:$0xf]
  %v1979 = vld [vmem:[%s4 + $0xc] sm:$0xf]
  %v1980 = vld [vmem:[%s4 + $0x10] sm:$0xf]
  %v1981 = vld [vmem:[%s4 + $0x14] sm:$0xf]
  %v1982 = vld [vmem:[%s4 + $0x18] sm:$0xf]
  %v1983 = vld [vmem:[%s4 + $0x1c] sm:$0xf]
  %v1984 = vld [vmem:[%s4 + $0x20] sm:$0xf]
  %v1985 = vld [vmem:[%s4 + $0x24] sm:$0xf]
  %v1986 = vld [vmem:[%s4 + $0x28] sm:$0xf]
  %v1987 = vld [vmem:[%s4 + $0x2c] sm:$0xf]
  %v1988 = vld [vmem:[%s4 + $0x30] sm:$0xf]
  %v1989 = vld [vmem:[%s4 + $0x34] sm:$0xf]
  %v1990 = vld [vmem:[%s4 + $0x38] sm:$0xf]
  %v1991 = vld [vmem:[%s4 + $0x3c] sm:$0xf]
  %v1992 = vld [vmem:[%s4 + $0x40] sm:$0xf]
  %v1993 = vld [vmem:[%s4 + $0x44] sm:$0xf]
  %v1994 = vld [vmem:[%s4 + $0x48] sm:$0xf]
  %v1995 = vld [vmem:[%s4 + $0x4c] sm:$0xf]
  %v1996 = vld [vmem:[%s4 + $0x50] sm:$0xf]
  %v1997 = vld [vmem:[%s4 + $0x54] sm:$0xf]
  %v1998 = vld [vmem:[%s4 + $0x58] sm:$0xf]
  %v1999 = vld [vmem:[%s4 + $0x5c] sm:$0xf]
  %v2000 = vld [vmem:[%s4 + $0x60] sm:$0x3]
  %v2026 = vunpack.c.l.b16 %v1976
  %v2027 = vunpack.c.l.b16 %v1977
  %v2028 = vunpack.c.l.b16 %v1978
  %v2029 = vunpack.c.l.b16 %v1979
  %v2030 = vunpack.c.l.b16 %v1980
  %v2031 = vunpack.c.l.b16 %v1981
  %v2032 = vunpack.c.l.b16 %v1982
  %v2033 = vunpack.c.l.b16 %v1983
  %v2034 = vunpack.c.l.b16 %v1984
  %v2035 = vunpack.c.l.b16 %v1985
  %v2036 = vunpack.c.l.b16 %v1986
  %v2037 = vunpack.c.l.b16 %v1987
  %v2038 = vunpack.c.l.b16 %v1988
  %v2039 = vunpack.c.l.b16 %v1989
  %v2040 = vunpack.c.l.b16 %v1990
  %v2041 = vunpack.c.l.b16 %v1991
  %v2042 = vunpack.c.l.b16 %v1992
  %v2043 = vunpack.c.l.b16 %v1993
  %v2044 = vunpack.c.l.b16 %v1994
  %v2045 = vunpack.c.l.b16 %v1995
  %v2046 = vunpack.c.l.b16 %v1996
  %v2047 = vunpack.c.l.b16 %v1997
  %v2048 = vunpack.c.l.b16 %v1998
  %v2049 = vunpack.c.l.b16 %v1999
  %v2050 = vunpack.c.l.b16 %v2000
  %v2051 = vpack.c.b16 %v2027, %v2026
  %v2052 = vpack.c.b16 %v2029, %v2028
  %v2053 = vpack.c.b16 %v2031, %v2030
  %v2054 = vpack.c.b16 %v2033, %v2032
  %v2055 = vpack.c.b16 %v2035, %v2034
  %v2056 = vpack.c.b16 %v2037, %v2036
  %v2057 = vpack.c.b16 %v2039, %v2038
  %v2058 = vpack.c.b16 %v2041, %v2040
  %v2059 = vpack.c.b16 %v2043, %v2042
  %v2060 = vpack.c.b16 %v2045, %v2044
  %v2061 = vpack.c.b16 %v2047, %v2046
  %v2062 = vpack.c.b16 %v2049, %v2048
  %v2063 = vpack.c.b16 %v2050, %v2050
  %vm2076 = vcmask 556032
  %v2078 = vsel %vm2076, %v1969, 0
  %v2081 = vsel %vm2076, %v1971, 0
  %v2084 = vsel %vm2076, %v1973, 0
  %v2087 = vsel %vm2076, %v1975, 0
  %vm2089 = vcmask 1041408
  %v2091 = vsel %vm2089, %v2063, 0
  %2093 = vmatprep.subr.bf16.mxu0 0
  %2094 = vmatpush1.bf16.msra.mxu0 %v2051
  %2095 = vmatprep.subr.bf16.mxu0 0
  %2096 = vmatpush1.bf16.msra.mxu0 %v2052
  %2097 = vmatprep.subr.bf16.mxu0 0
  %2098 = vmatpush1.bf16.msra.mxu0 %v2053
  %2099 = vmatprep.subr.bf16.mxu0 0
  %2100 = vmatpush1.bf16.msra.mxu0 %v2054
  %2101 = vmatprep.subr.bf16.mxu0 0
  %2102 = vmatpush1.bf16.msra.mxu0 %v2055
  %2103 = vmatprep.subr.bf16.mxu0 0
  %2104 = vmatpush1.bf16.msra.mxu0 %v2056
  %2105 = vmatprep.subr.bf16.mxu0 0
  %2106 = vmatpush1.bf16.msra.mxu0 %v2057
  %2107 = vmatprep.subr.bf16.mxu0 0
  %2108 = vmatpush1.bf16.msra.mxu0 %v2058
  %2109 = vmatprep.subr.bf16.mxu0 0
  %2110 = vmatpush1.bf16.msra.mxu0 %v2059
  %2111 = vmatprep.subr.bf16.mxu0 0
  %2112 = vmatpush1.bf16.msra.mxu0 %v2060
  %2113 = vmatprep.subr.bf16.mxu0 0
  %2114 = vmatpush1.bf16.msra.mxu0 %v2061
  %2115 = vmatprep.subr.bf16.mxu0 0
  %2116 = vmatpush1.bf16.msra.mxu0 %v2062
  %2117 = vmatprep.subr.bf16.mxu0 0
  %2118 = vmatpush1.bf16.msra.mxu0 %v2091
  %2119 = vmatprep.subr.bf16.mxu0 0
  %2120 = vmatpush1.bf16.msra.mxu0 0
  %2121 = vmatprep.subr.bf16.mxu0 0
  %2122 = vmatpush1.bf16.msra.mxu0 0
  %2123 = vmatprep.subr.bf16.mxu0 0
  %2124 = vmatpush1.bf16.msra.mxu0 0
  %2125 = vmatprep.mubr.bf16.mxu0 %v2078
  %2126 = vmatmul.mubr.bf16.gmra.mrb[0].mxu0 %v1968
  %v2127 = vpop.f32.mrb[0].mxu0
  %v2128 = vadd.f32 0.0, %v2127
  %v2129 = vpop.f32.mrb[0].mxu0
  %v2130 = vpop.f32.mrb[0].mxu0
  %v2131 = vadd.f32 0.0, %v2130
  %v2132 = vpop.f32.mrb[0].mxu0
  %2133 = vmatprep.mubr.bf16.mxu0 %v2081
  %2134 = vmatmul.mubr.bf16.gmra.mrb[0].mxu0 %v1970
  %v2135 = vpop.f32.mrb[0].mxu0
  %v2136 = vadd.f32 0.0, %v2135
  %v2137 = vpop.f32.mrb[0].mxu0
  %v2138 = vpop.f32.mrb[0].mxu0
  %v2139 = vadd.f32 0.0, %v2138
  %v2140 = vpop.f32.mrb[0].mxu0
  %2141 = vmatprep.mubr.bf16.mxu0 %v2084
  %2142 = vmatmul.mubr.bf16.gmra.mrb[0].mxu0 %v1972
  %v2143 = vpop.f32.mrb[0].mxu0
  %v2144 = vadd.f32 0.0, %v2143
  %v2145 = vpop.f32.mrb[0].mxu0
  %v2146 = vpop.f32.mrb[0].mxu0
  %v2147 = vadd.f32 0.0, %v2146
  %v2148 = vpop.f32.mrb[0].mxu0
  %2149 = vmatprep.mubr.bf16.mxu0 %v2087
  %2150 = vmatmul.mubr.bf16.gmra.mrb[0].mxu0 %v1974
  %v2151 = vpop.f32.mrb[0].mxu0
  %v2152 = vadd.f32 0.0, %v2151
  %v2153 = vpop.f32.mrb[0].mxu0
  %v2154 = vpop.f32.mrb[0].mxu0
  %v2155 = vadd.f32 0.0, %v2154
  %v2156 = vpop.f32.mrb[0].mxu0
  %2157 = vdwg.mxu0
  %s2158 = scalar_lea.vmem %s4, 100
  %v2159 = vld [vmem:[%s2158] sm:$0xf]
  %v2160 = vld [vmem:[%s2158 + $0x4] sm:$0xf]
  %v2161 = vld [vmem:[%s2158 + $0x8] sm:$0xf]
  %v2162 = vld [vmem:[%s2158 + $0xc] sm:$0xf]
  %v2163 = vld [vmem:[%s2158 + $0x10] sm:$0xf]
  %v2164 = vld [vmem:[%s2158 + $0x14] sm:$0xf]
  %v2165 = vld [vmem:[%s2158 + $0x18] sm:$0xf]
  %v2166 = vld [vmem:[%s2158 + $0x1c] sm:$0xf]
  %v2167 = vld [vmem:[%s2158 + $0x20] sm:$0xf]
  %v2168 = vld [vmem:[%s2158 + $0x24] sm:$0xf]
  %v2169 = vld [vmem:[%s2158 + $0x28] sm:$0xf]
  %v2170 = vld [vmem:[%s2158 + $0x2c] sm:$0xf]
  %v2171 = vld [vmem:[%s2158 + $0x30] sm:$0xf]
  %v2172 = vld [vmem:[%s2158 + $0x34] sm:$0xf]
  %v2173 = vld [vmem:[%s2158 + $0x38] sm:$0xf]
  %v2174 = vld [vmem:[%s2158 + $0x3c] sm:$0xf]
  %v2175 = vld [vmem:[%s2158 + $0x40] sm:$0xf]
  %v2176 = vld [vmem:[%s2158 + $0x44] sm:$0xf]
  %v2177 = vld [vmem:[%s2158 + $0x48] sm:$0xf]
  %v2178 = vld [vmem:[%s2158 + $0x4c] sm:$0xf]
  %v2179 = vld [vmem:[%s2158 + $0x50] sm:$0xf]
  %v2180 = vld [vmem:[%s2158 + $0x54] sm:$0xf]
  %v2181 = vld [vmem:[%s2158 + $0x58] sm:$0xf]
  %v2182 = vld [vmem:[%s2158 + $0x5c] sm:$0xf]
  %v2183 = vld [vmem:[%s2158 + $0x60] sm:$0x3]
  %v2209 = vunpack.c.l.b16 %v2159
  %v2210 = vunpack.c.l.b16 %v2160
  %v2211 = vunpack.c.l.b16 %v2161
  %v2212 = vunpack.c.l.b16 %v2162
  %v2213 = vunpack.c.l.b16 %v2163
  %v2214 = vunpack.c.l.b16 %v2164
  %v2215 = vunpack.c.l.b16 %v2165
  %v2216 = vunpack.c.l.b16 %v2166
  %v2217 = vunpack.c.l.b16 %v2167
  %v2218 = vunpack.c.l.b16 %v2168
  %v2219 = vunpack.c.l.b16 %v2169
  %v2220 = vunpack.c.l.b16 %v2170
  %v2221 = vunpack.c.l.b16 %v2171
  %v2222 = vunpack.c.l.b16 %v2172
  %v2223 = vunpack.c.l.b16 %v2173
  %v2224 = vunpack.c.l.b16 %v2174
  %v2225 = vunpack.c.l.b16 %v2175
  %v2226 = vunpack.c.l.b16 %v2176
  %v2227 = vunpack.c.l.b16 %v2177
  %v2228 = vunpack.c.l.b16 %v2178
  %v2229 = vunpack.c.l.b16 %v2179
  %v2230 = vunpack.c.l.b16 %v2180
  %v2231 = vunpack.c.l.b16 %v2181
  %v2232 = vunpack.c.l.b16 %v2182
  %v2233 = vunpack.c.l.b16 %v2183
  %v2234 = vpack.c.b16 %v2210, %v2209
  %v2235 = vpack.c.b16 %v2212, %v2211
  %v2236 = vpack.c.b16 %v2214, %v2213
  %v2237 = vpack.c.b16 %v2216, %v2215
  %v2238 = vpack.c.b16 %v2218, %v2217
  %v2239 = vpack.c.b16 %v2220, %v2219
  %v2240 = vpack.c.b16 %v2222, %v2221
  %v2241 = vpack.c.b16 %v2224, %v2223
  %v2242 = vpack.c.b16 %v2226, %v2225
  %v2243 = vpack.c.b16 %v2228, %v2227
  %v2244 = vpack.c.b16 %v2230, %v2229
  %v2245 = vpack.c.b16 %v2232, %v2231
  %v2246 = vpack.c.b16 %v2233, %v2233
  %v2260 = vsel %vm2089, %v2246, 0
  %2262 = vmatprep.subr.bf16.mxu0 0
  %2263 = vmatpush1.bf16.msra.mxu0 %v2234
  %2264 = vmatprep.subr.bf16.mxu0 0
  %2265 = vmatpush1.bf16.msra.mxu0 %v2235
  %2266 = vmatprep.subr.bf16.mxu0 0
  %2267 = vmatpush1.bf16.msra.mxu0 %v2236
  %2268 = vmatprep.subr.bf16.mxu0 0
  %2269 = vmatpush1.bf16.msra.mxu0 %v2237
  %2270 = vmatprep.subr.bf16.mxu0 0
  %2271 = vmatpush1.bf16.msra.mxu0 %v2238
  %2272 = vmatprep.subr.bf16.mxu0 0
  %2273 = vmatpush1.bf16.msra.mxu0 %v2239
  %2274 = vmatprep.subr.bf16.mxu0 0
  %2275 = vmatpush1.bf16.msra.mxu0 %v2240
  %2276 = vmatprep.subr.bf16.mxu0 0
  %2277 = vmatpush1.bf16.msra.mxu0 %v2241
  %2278 = vmatprep.subr.bf16.mxu0 0
  %2279 = vmatpush1.bf16.msra.mxu0 %v2242
  %2280 = vmatprep.subr.bf16.mxu0 0
  %2281 = vmatpush1.bf16.msra.mxu0 %v2243
  %2282 = vmatprep.subr.bf16.mxu0 0
  %2283 = vmatpush1.bf16.msra.mxu0 %v2244
  %2284 = vmatprep.subr.bf16.mxu0 0
  %2285 = vmatpush1.bf16.msra.mxu0 %v2245
  %2286 = vmatprep.subr.bf16.mxu0 0
  %2287 = vmatpush1.bf16.msra.mxu0 %v2260
  %2288 = vmatprep.subr.bf16.mxu0 0
  %2289 = vmatpush1.bf16.msra.mxu0 0
  %2290 = vmatprep.subr.bf16.mxu0 0
  %2291 = vmatpush1.bf16.msra.mxu0 0
  %2292 = vmatprep.subr.bf16.mxu0 0
  %2293 = vmatpush1.bf16.msra.mxu0 0
  %2294 = vmatprep.mubr.bf16.mxu0 %v2078
  %2295 = vmatmul.mubr.bf16.gmra.mrb[0].mxu0 %v1968
  %v2296 = vpop.f32.mrb[0].mxu0
  %v2297 = vadd.f32 0.0, %v2296
  %v2298 = vpop.f32.mrb[0].mxu0
  %v2299 = vpop.f32.mrb[0].mxu0
  %v2300 = vadd.f32 0.0, %v2299
  %v2301 = vpop.f32.mrb[0].mxu0
  %2302 = vmatprep.mubr.bf16.mxu0 %v2081
  %2303 = vmatmul.mubr.bf16.gmra.mrb[0].mxu0 %v1970
  %v2304 = vpop.f32.mrb[0].mxu0
  %v2305 = vadd.f32 0.0, %v2304
  %v2306 = vpop.f32.mrb[0].mxu0
  %v2307 = vpop.f32.mrb[0].mxu0
  %v2308 = vadd.f32 0.0, %v2307
  %v2309 = vpop.f32.mrb[0].mxu0
  %2310 = vmatprep.mubr.bf16.mxu0 %v2084
  %2311 = vmatmul.mubr.bf16.gmra.mrb[0].mxu0 %v1972
  %v2312 = vpop.f32.mrb[0].mxu0
  %v2313 = vadd.f32 0.0, %v2312
  %v2314 = vpop.f32.mrb[0].mxu0
  %v2315 = vpop.f32.mrb[0].mxu0
  %v2316 = vadd.f32 0.0, %v2315
  %v2317 = vpop.f32.mrb[0].mxu0
  %2318 = vmatprep.mubr.bf16.mxu0 %v2087
  %2319 = vmatmul.mubr.bf16.gmra.mrb[0].mxu0 %v1974
  %v2320 = vpop.f32.mrb[0].mxu0
  %v2321 = vadd.f32 0.0, %v2320
  %v2322 = vpop.f32.mrb[0].mxu0
  %v2323 = vpop.f32.mrb[0].mxu0
  %v2324 = vadd.f32 0.0, %v2323
  %v2325 = vpop.f32.mrb[0].mxu0
  %2326 = vdwg.mxu0
  %s2327 = scalar_lea.vmem %s4, 200
  %v2328 = vld [vmem:[%s2327] sm:$0xf]
  %v2329 = vld [vmem:[%s2327 + $0x4] sm:$0xf]
  %v2330 = vld [vmem:[%s2327 + $0x8] sm:$0xf]
  %v2331 = vld [vmem:[%s2327 + $0xc] sm:$0xf]
  %v2332 = vld [vmem:[%s2327 + $0x10] sm:$0xf]
  %v2333 = vld [vmem:[%s2327 + $0x14] sm:$0xf]
  %v2334 = vld [vmem:[%s2327 + $0x18] sm:$0xf]
  %v2335 = vld [vmem:[%s2327 + $0x1c] sm:$0xf]
  %v2336 = vld [vmem:[%s2327 + $0x20] sm:$0xf]
  %v2337 = vld [vmem:[%s2327 + $0x24] sm:$0xf]
  %v2338 = vld [vmem:[%s2327 + $0x28] sm:$0xf]
  %v2339 = vld [vmem:[%s2327 + $0x2c] sm:$0xf]
  %v2340 = vld [vmem:[%s2327 + $0x30] sm:$0xf]
  %v2341 = vld [vmem:[%s2327 + $0x34] sm:$0xf]
  %v2342 = vld [vmem:[%s2327 + $0x38] sm:$0xf]
  %v2343 = vld [vmem:[%s2327 + $0x3c] sm:$0xf]
  %v2344 = vld [vmem:[%s2327 + $0x40] sm:$0xf]
  %v2345 = vld [vmem:[%s2327 + $0x44] sm:$0xf]
  %v2346 = vld [vmem:[%s2327 + $0x48] sm:$0xf]
  %v2347 = vld [vmem:[%s2327 + $0x4c] sm:$0xf]
  %v2348 = vld [vmem:[%s2327 + $0x50] sm:$0xf]
  %v2349 = vld [vmem:[%s2327 + $0x54] sm:$0xf]
  %v2350 = vld [vmem:[%s2327 + $0x58] sm:$0xf]
  %v2351 = vld [vmem:[%s2327 + $0x5c] sm:$0xf]
  %v2352 = vld [vmem:[%s2327 + $0x60] sm:$0x3]
  %v2378 = vunpack.c.l.b16 %v2328
  %v2379 = vunpack.c.l.b16 %v2329
  %v2380 = vunpack.c.l.b16 %v2330
  %v2381 = vunpack.c.l.b16 %v2331
  %v2382 = vunpack.c.l.b16 %v2332
  %v2383 = vunpack.c.l.b16 %v2333
  %v2384 = vunpack.c.l.b16 %v2334
  %v2385 = vunpack.c.l.b16 %v2335
  %v2386 = vunpack.c.l.b16 %v2336
  %v2387 = vunpack.c.l.b16 %v2337
  %v2388 = vunpack.c.l.b16 %v2338
  %v2389 = vunpack.c.l.b16 %v2339
  %v2390 = vunpack.c.l.b16 %v2340
  %v2391 = vunpack.c.l.b16 %v2341
  %v2392 = vunpack.c.l.b16 %v2342
  %v2393 = vunpack.c.l.b16 %v2343
  %v2394 = vunpack.c.l.b16 %v2344
  %v2395 = vunpack.c.l.b16 %v2345
  %v2396 = vunpack.c.l.b16 %v2346
  %v2397 = vunpack.c.l.b16 %v2347
  %v2398 = vunpack.c.l.b16 %v2348
  %v2399 = vunpack.c.l.b16 %v2349
  %v2400 = vunpack.c.l.b16 %v2350
  %v2401 = vunpack.c.l.b16 %v2351
  %v2402 = vunpack.c.l.b16 %v2352
  %v2403 = vpack.c.b16 %v2379, %v2378
  %v2404 = vpack.c.b16 %v2381, %v2380
  %v2405 = vpack.c.b16 %v2383, %v2382
  %v2406 = vpack.c.b16 %v2385, %v2384
  %v2407 = vpack.c.b16 %v2387, %v2386
  %v2408 = vpack.c.b16 %v2389, %v2388
  %v2409 = vpack.c.b16 %v2391, %v2390
  %v2410 = vpack.c.b16 %v2393, %v2392
  %v2411 = vpack.c.b16 %v2395, %v2394
  %v2412 = vpack.c.b16 %v2397, %v2396
  %v2413 = vpack.c.b16 %v2399, %v2398
  %v2414 = vpack.c.b16 %v2401, %v2400
  %v2415 = vpack.c.b16 %v2402, %v2402
  %v2429 = vsel %vm2089, %v2415, 0
  %2431 = vmatprep.subr.bf16.mxu0 0
  %2432 = vmatpush1.bf16.msra.mxu0 %v2403
  %2433 = vmatprep.subr.bf16.mxu0 0
  %2434 = vmatpush1.bf16.msra.mxu0 %v2404
  %2435 = vmatprep.subr.bf16.mxu0 0
  %2436 = vmatpush1.bf16.msra.mxu0 %v2405
  %2437 = vmatprep.subr.bf16.mxu0 0
  %2438 = vmatpush1.bf16.msra.mxu0 %v2406
  %2439 = vmatprep.subr.bf16.mxu0 0
  %2440 = vmatpush1.bf16.msra.mxu0 %v2407
  %2441 = vmatprep.subr.bf16.mxu0 0
  %2442 = vmatpush1.bf16.msra.mxu0 %v2408
  %2443 = vmatprep.subr.bf16.mxu0 0
  %2444 = vmatpush1.bf16.msra.mxu0 %v2409
  %2445 = vmatprep.subr.bf16.mxu0 0
  %2446 = vmatpush1.bf16.msra.mxu0 %v2410
  %2447 = vmatprep.subr.bf16.mxu0 0
  %2448 = vmatpush1.bf16.msra.mxu0 %v2411
  %2449 = vmatprep.subr.bf16.mxu0 0
  %2450 = vmatpush1.bf16.msra.mxu0 %v2412
  %2451 = vmatprep.subr.bf16.mxu0 0
  %2452 = vmatpush1.bf16.msra.mxu0 %v2413
  %2453 = vmatprep.subr.bf16.mxu0 0
  %2454 = vmatpush1.bf16.msra.mxu0 %v2414
  %2455 = vmatprep.subr.bf16.mxu0 0
  %2456 = vmatpush1.bf16.msra.mxu0 %v2429
  %2457 = vmatprep.subr.bf16.mxu0 0
  %2458 = vmatpush1.bf16.msra.mxu0 0
  %2459 = vmatprep.subr.bf16.mxu0 0
  %2460 = vmatpush1.bf16.msra.mxu0 0
  %2461 = vmatprep.subr.bf16.mxu0 0
  %2462 = vmatpush1.bf16.msra.mxu0 0
  %2463 = vmatprep.mubr.bf16.mxu0 %v2078
  %2464 = vmatmul.mubr.bf16.gmra.mrb[0].mxu0 %v1968
  %v2465 = vpop.f32.mrb[0].mxu0
  %v2466 = vadd.f32 0.0, %v2465
  %v2467 = vpop.f32.mrb[0].mxu0
  %v2468 = vpop.f32.mrb[0].mxu0
  %v2469 = vadd.f32 0.0, %v2468
  %v2470 = vpop.f32.mrb[0].mxu0
  %2471 = vmatprep.mubr.bf16.mxu0 %v2081
  %2472 = vmatmul.mubr.bf16.gmra.mrb[0].mxu0 %v1970
  %v2473 = vpop.f32.mrb[0].mxu0
  %v2474 = vadd.f32 0.0, %v2473
  %v2475 = vpop.f32.mrb[0].mxu0
  %v2476 = vpop.f32.mrb[0].mxu0
  %v2477 = vadd.f32 0.0, %v2476
  %v2478 = vpop.f32.mrb[0].mxu0
  %2479 = vmatprep.mubr.bf16.mxu0 %v2084
  %2480 = vmatmul.mubr.bf16.gmra.mrb[0].mxu0 %v1972
  %v2481 = vpop.f32.mrb[0].mxu0
  %v2482 = vadd.f32 0.0, %v2481
  %v2483 = vpop.f32.mrb[0].mxu0
  %v2484 = vpop.f32.mrb[0].mxu0
  %v2485 = vadd.f32 0.0, %v2484
  %v2486 = vpop.f32.mrb[0].mxu0
  %2487 = vmatprep.mubr.bf16.mxu0 %v2087
  %2488 = vmatmul.mubr.bf16.gmra.mrb[0].mxu0 %v1974
  %v2489 = vpop.f32.mrb[0].mxu0
  %v2490 = vadd.f32 0.0, %v2489
  %v2491 = vpop.f32.mrb[0].mxu0
  %v2492 = vpop.f32.mrb[0].mxu0
  %v2493 = vadd.f32 0.0, %v2492
  %v2494 = vpop.f32.mrb[0].mxu0
  %2495 = vdwg.mxu0
  %s2496 = scalar_lea.vmem %s4, 300
  %v2497 = vld [vmem:[%s2496] sm:$0xf]
  %v2498 = vld [vmem:[%s2496 + $0x4] sm:$0xf]
  %v2499 = vld [vmem:[%s2496 + $0x8] sm:$0xf]
  %v2500 = vld [vmem:[%s2496 + $0xc] sm:$0xf]
  %v2501 = vld [vmem:[%s2496 + $0x10] sm:$0xf]
  %v2502 = vld [vmem:[%s2496 + $0x14] sm:$0xf]
  %v2503 = vld [vmem:[%s2496 + $0x18] sm:$0xf]
  %v2504 = vld [vmem:[%s2496 + $0x1c] sm:$0xf]
  %v2505 = vld [vmem:[%s2496 + $0x20] sm:$0xf]
  %v2506 = vld [vmem:[%s2496 + $0x24] sm:$0xf]
  %v2507 = vld [vmem:[%s2496 + $0x28] sm:$0xf]
  %v2508 = vld [vmem:[%s2496 + $0x2c] sm:$0xf]
  %v2509 = vld [vmem:[%s2496 + $0x30] sm:$0xf]
  %v2510 = vld [vmem:[%s2496 + $0x34] sm:$0xf]
  %v2511 = vld [vmem:[%s2496 + $0x38] sm:$0xf]
  %v2512 = vld [vmem:[%s2496 + $0x3c] sm:$0xf]
  %v2513 = vld [vmem:[%s2496 + $0x40] sm:$0xf]
  %v2514 = vld [vmem:[%s2496 + $0x44] sm:$0xf]
  %v2515 = vld [vmem:[%s2496 + $0x48] sm:$0xf]
  %v2516 = vld [vmem:[%s2496 + $0x4c] sm:$0xf]
  %v2517 = vld [vmem:[%s2496 + $0x50] sm:$0xf]
  %v2518 = vld [vmem:[%s2496 + $0x54] sm:$0xf]
  %v2519 = vld [vmem:[%s2496 + $0x58] sm:$0xf]
  %v2520 = vld [vmem:[%s2496 + $0x5c] sm:$0xf]
  %v2521 = vld [vmem:[%s2496 + $0x60] sm:$0x3]
  %v2547 = vunpack.c.l.b16 %v2497
  %v2548 = vunpack.c.l.b16 %v2498
  %v2549 = vunpack.c.l.b16 %v2499
  %v2550 = vunpack.c.l.b16 %v2500
  %v2551 = vunpack.c.l.b16 %v2501
  %v2552 = vunpack.c.l.b16 %v2502
  %v2553 = vunpack.c.l.b16 %v2503
  %v2554 = vunpack.c.l.b16 %v2504
  %v2555 = vunpack.c.l.b16 %v2505
  %v2556 = vunpack.c.l.b16 %v2506
  %v2557 = vunpack.c.l.b16 %v2507
  %v2558 = vunpack.c.l.b16 %v2508
  %v2559 = vunpack.c.l.b16 %v2509
  %v2560 = vunpack.c.l.b16 %v2510
  %v2561 = vunpack.c.l.b16 %v2511
  %v2562 = vunpack.c.l.b16 %v2512
  %v2563 = vunpack.c.l.b16 %v2513
  %v2564 = vunpack.c.l.b16 %v2514
  %v2565 = vunpack.c.l.b16 %v2515
  %v2566 = vunpack.c.l.b16 %v2516
  %v2567 = vunpack.c.l.b16 %v2517
  %v2568 = vunpack.c.l.b16 %v2518
  %v2569 = vunpack.c.l.b16 %v2519
  %v2570 = vunpack.c.l.b16 %v2520
  %v2571 = vunpack.c.l.b16 %v2521
  %v2572 = vpack.c.b16 %v2548, %v2547
  %v2573 = vpack.c.b16 %v2550, %v2549
  %v2574 = vpack.c.b16 %v2552, %v2551
  %v2575 = vpack.c.b16 %v2554, %v2553
  %v2576 = vpack.c.b16 %v2556, %v2555
  %v2577 = vpack.c.b16 %v2558, %v2557
  %v2578 = vpack.c.b16 %v2560, %v2559
  %v2579 = vpack.c.b16 %v2562, %v2561
  %v2580 = vpack.c.b16 %v2564, %v2563
  %v2581 = vpack.c.b16 %v2566, %v2565
  %v2582 = vpack.c.b16 %v2568, %v2567
  %v2583 = vpack.c.b16 %v2570, %v2569
  %v2584 = vpack.c.b16 %v2571, %v2571
  %v2598 = vsel %vm2089, %v2584, 0
  %2600 = vmatprep.subr.bf16.mxu0 0
  %2601 = vmatpush1.bf16.msra.mxu0 %v2572
  %2602 = vmatprep.subr.bf16.mxu0 0
  %2603 = vmatpush1.bf16.msra.mxu0 %v2573
  %2604 = vmatprep.subr.bf16.mxu0 0
  %2605 = vmatpush1.bf16.msra.mxu0 %v2574
  %2606 = vmatprep.subr.bf16.mxu0 0
  %2607 = vmatpush1.bf16.msra.mxu0 %v2575
  %2608 = vmatprep.subr.bf16.mxu0 0
  %2609 = vmatpush1.bf16.msra.mxu0 %v2576
  %2610 = vmatprep.subr.bf16.mxu0 0
  %2611 = vmatpush1.bf16.msra.mxu0 %v2577
  %2612 = vmatprep.subr.bf16.mxu0 0
  %2613 = vmatpush1.bf16.msra.mxu0 %v2578
  %2614 = vmatprep.subr.bf16.mxu0 0
  %2615 = vmatpush1.bf16.msra.mxu0 %v2579
  %2616 = vmatprep.subr.bf16.mxu0 0
  %2617 = vmatpush1.bf16.msra.mxu0 %v2580
  %2618 = vmatprep.subr.bf16.mxu0 0
  %2619 = vmatpush1.bf16.msra.mxu0 %v2581
  %2620 = vmatprep.subr.bf16.mxu0 0
  %2621 = vmatpush1.bf16.msra.mxu0 %v2582
  %2622 = vmatprep.subr.bf16.mxu0 0
  %2623 = vmatpush1.bf16.msra.mxu0 %v2583
  %2624 = vmatprep.subr.bf16.mxu0 0
  %2625 = vmatpush1.bf16.msra.mxu0 %v2598
  %2626 = vmatprep.subr.bf16.mxu0 0
  %2627 = vmatpush1.bf16.msra.mxu0 0
  %2628 = vmatprep.subr.bf16.mxu0 0
  %2629 = vmatpush1.bf16.msra.mxu0 0
  %2630 = vmatprep.subr.bf16.mxu0 0
  %2631 = vmatpush1.bf16.msra.mxu0 0
  %2632 = vmatprep.mubr.bf16.mxu0 %v2078
  %2633 = vmatmul.mubr.bf16.gmra.mrb[0].mxu0 %v1968
  %v2634 = vpop.f32.mrb[0].mxu0
  %v2635 = vadd.f32 0.0, %v2634
  %v2636 = vpop.f32.mrb[0].mxu0
  %v2637 = vpop.f32.mrb[0].mxu0
  %v2638 = vadd.f32 0.0, %v2637
  %v2639 = vpop.f32.mrb[0].mxu0
  %2640 = vmatprep.mubr.bf16.mxu0 %v2081
  %2641 = vmatmul.mubr.bf16.gmra.mrb[0].mxu0 %v1970
  %v2642 = vpop.f32.mrb[0].mxu0
  %v2643 = vadd.f32 0.0, %v2642
  %v2644 = vpop.f32.mrb[0].mxu0
  %v2645 = vpop.f32.mrb[0].mxu0
  %v2646 = vadd.f32 0.0, %v2645
  %v2647 = vpop.f32.mrb[0].mxu0
  %2648 = vmatprep.mubr.bf16.mxu0 %v2084
  %2649 = vmatmul.mubr.bf16.gmra.mrb[0].mxu0 %v1972
  %v2650 = vpop.f32.mrb[0].mxu0
  %v2651 = vadd.f32 0.0, %v2650
  %v2652 = vpop.f32.mrb[0].mxu0
  %v2653 = vpop.f32.mrb[0].mxu0
  %v2654 = vadd.f32 0.0, %v2653
  %v2655 = vpop.f32.mrb[0].mxu0
  %2656 = vmatprep.mubr.bf16.mxu0 %v2087
  %2657 = vmatmul.mubr.bf16.gmra.mrb[0].mxu0 %v1974
  %v2658 = vpop.f32.mrb[0].mxu0
  %v2659 = vadd.f32 0.0, %v2658
  %v2660 = vpop.f32.mrb[0].mxu0
  %v2661 = vpop.f32.mrb[0].mxu0
  %v2662 = vadd.f32 0.0, %v2661
  %v2663 = vpop.f32.mrb[0].mxu0
  %2664 = vdwg.mxu0
  %s2665 = scalar_lea.vmem %s4, 400
  %v2666 = vld [vmem:[%s2665] sm:$0xf]
  %v2667 = vld [vmem:[%s2665 + $0x4] sm:$0xf]
  %v2668 = vld [vmem:[%s2665 + $0x8] sm:$0xf]
  %v2669 = vld [vmem:[%s2665 + $0xc] sm:$0xf]
  %v2670 = vld [vmem:[%s2665 + $0x10] sm:$0xf]
  %v2671 = vld [vmem:[%s2665 + $0x14] sm:$0xf]
  %v2672 = vld [vmem:[%s2665 + $0x18] sm:$0xf]
  %v2673 = vld [vmem:[%s2665 + $0x1c] sm:$0xf]
  %v2674 = vld [vmem:[%s2665 + $0x20] sm:$0xf]
  %v2675 = vld [vmem:[%s2665 + $0x24] sm:$0xf]
  %v2676 = vld [vmem:[%s2665 + $0x28] sm:$0xf]
  %v2677 = vld [vmem:[%s2665 + $0x2c] sm:$0xf]
  %v2678 = vld [vmem:[%s2665 + $0x30] sm:$0xf]
  %v2679 = vld [vmem:[%s2665 + $0x34] sm:$0xf]
  %v2680 = vld [vmem:[%s2665 + $0x38] sm:$0xf]
  %v2681 = vld [vmem:[%s2665 + $0x3c] sm:$0xf]
  %v2682 = vld [vmem:[%s2665 + $0x40] sm:$0xf]
  %v2683 = vld [vmem:[%s2665 + $0x44] sm:$0xf]
  %v2684 = vld [vmem:[%s2665 + $0x48] sm:$0xf]
  %v2685 = vld [vmem:[%s2665 + $0x4c] sm:$0xf]
  %v2686 = vld [vmem:[%s2665 + $0x50] sm:$0xf]
  %v2687 = vld [vmem:[%s2665 + $0x54] sm:$0xf]
  %v2688 = vld [vmem:[%s2665 + $0x58] sm:$0xf]
  %v2689 = vld [vmem:[%s2665 + $0x5c] sm:$0xf]
  %v2690 = vld [vmem:[%s2665 + $0x60] sm:$0x3]
  %v2716 = vunpack.c.l.b16 %v2666
  %v2717 = vunpack.c.l.b16 %v2667
  %v2718 = vunpack.c.l.b16 %v2668
  %v2719 = vunpack.c.l.b16 %v2669
  %v2720 = vunpack.c.l.b16 %v2670
  %v2721 = vunpack.c.l.b16 %v2671
  %v2722 = vunpack.c.l.b16 %v2672
  %v2723 = vunpack.c.l.b16 %v2673
  %v2724 = vunpack.c.l.b16 %v2674
  %v2725 = vunpack.c.l.b16 %v2675
  %v2726 = vunpack.c.l.b16 %v2676
  %v2727 = vunpack.c.l.b16 %v2677
  %v2728 = vunpack.c.l.b16 %v2678
  %v2729 = vunpack.c.l.b16 %v2679
  %v2730 = vunpack.c.l.b16 %v2680
  %v2731 = vunpack.c.l.b16 %v2681
  %v2732 = vunpack.c.l.b16 %v2682
  %v2733 = vunpack.c.l.b16 %v2683
  %v2734 = vunpack.c.l.b16 %v2684
  %v2735 = vunpack.c.l.b16 %v2685
  %v2736 = vunpack.c.l.b16 %v2686
  %v2737 = vunpack.c.l.b16 %v2687
  %v2738 = vunpack.c.l.b16 %v2688
  %v2739 = vunpack.c.l.b16 %v2689
  %v2740 = vunpack.c.l.b16 %v2690
  %v2741 = vpack.c.b16 %v2717, %v2716
  %v2742 = vpack.c.b16 %v2719, %v2718
  %v2743 = vpack.c.b16 %v2721, %v2720
  %v2744 = vpack.c.b16 %v2723, %v2722
  %v2745 = vpack.c.b16 %v2725, %v2724
  %v2746 = vpack.c.b16 %v2727, %v2726
  %v2747 = vpack.c.b16 %v2729, %v2728
  %v2748 = vpack.c.b16 %v2731, %v2730
  %v2749 = vpack.c.b16 %v2733, %v2732
  %v2750 = vpack.c.b16 %v2735, %v2734
  %v2751 = vpack.c.b16 %v2737, %v2736
  %v2752 = vpack.c.b16 %v2739, %v2738
  %v2753 = vpack.c.b16 %v2740, %v2740
  %v2767 = vsel %vm2089, %v2753, 0
  %2769 = vmatprep.subr.bf16.mxu0 0
  %2770 = vmatpush1.bf16.msra.mxu0 %v2741
  %2771 = vmatprep.subr.bf16.mxu0 0
  %2772 = vmatpush1.bf16.msra.mxu0 %v2742
  %2773 = vmatprep.subr.bf16.mxu0 0
  %2774 = vmatpush1.bf16.msra.mxu0 %v2743
  %2775 = vmatprep.subr.bf16.mxu0 0
  %2776 = vmatpush1.bf16.msra.mxu0 %v2744
  %2777 = vmatprep.subr.bf16.mxu0 0
  %2778 = vmatpush1.bf16.msra.mxu0 %v2745
  %2779 = vmatprep.subr.bf16.mxu0 0
  %2780 = vmatpush1.bf16.msra.mxu0 %v2746
  %2781 = vmatprep.subr.bf16.mxu0 0
  %2782 = vmatpush1.bf16.msra.mxu0 %v2747
  %2783 = vmatprep.subr.bf16.mxu0 0
  %2784 = vmatpush1.bf16.msra.mxu0 %v2748
  %2785 = vmatprep.subr.bf16.mxu0 0
  %2786 = vmatpush1.bf16.msra.mxu0 %v2749
  %2787 = vmatprep.subr.bf16.mxu0 0
  %2788 = vmatpush1.bf16.msra.mxu0 %v2750
  %2789 = vmatprep.subr.bf16.mxu0 0
  %2790 = vmatpush1.bf16.msra.mxu0 %v2751
  %2791 = vmatprep.subr.bf16.mxu0 0
  %2792 = vmatpush1.bf16.msra.mxu0 %v2752
  %2793 = vmatprep.subr.bf16.mxu0 0
  %2794 = vmatpush1.bf16.msra.mxu0 %v2767
  %2795 = vmatprep.subr.bf16.mxu0 0
  %2796 = vmatpush1.bf16.msra.mxu0 0
  %2797 = vmatprep.subr.bf16.mxu0 0
  %2798 = vmatpush1.bf16.msra.mxu0 0
  %2799 = vmatprep.subr.bf16.mxu0 0
  %2800 = vmatpush1.bf16.msra.mxu0 0
  %2801 = vmatprep.mubr.bf16.mxu0 %v2078
  %2802 = vmatmul.mubr.bf16.gmra.mrb[0].mxu0 %v1968
  %v2803 = vpop.f32.mrb[0].mxu0
  %v2804 = vadd.f32 0.0, %v2803
  %v2805 = vpop.f32.mrb[0].mxu0
  %v2806 = vpop.f32.mrb[0].mxu0
  %v2807 = vadd.f32 0.0, %v2806
  %v2808 = vpop.f32.mrb[0].mxu0
  %2809 = vmatprep.mubr.bf16.mxu0 %v2081
  %2810 = vmatmul.mubr.bf16.gmra.mrb[0].mxu0 %v1970
  %v2811 = vpop.f32.mrb[0].mxu0
  %v2812 = vadd.f32 0.0, %v2811
  %v2813 = vpop.f32.mrb[0].mxu0
  %v2814 = vpop.f32.mrb[0].mxu0
  %v2815 = vadd.f32 0.0, %v2814
  %v2816 = vpop.f32.mrb[0].mxu0
  %2817 = vmatprep.mubr.bf16.mxu0 %v2084
  %2818 = vmatmul.mubr.bf16.gmra.mrb[0].mxu0 %v1972
  %v2819 = vpop.f32.mrb[0].mxu0
  %v2820 = vadd.f32 0.0, %v2819
  %v2821 = vpop.f32.mrb[0].mxu0
  %v2822 = vpop.f32.mrb[0].mxu0
  %v2823 = vadd.f32 0.0, %v2822
  %v2824 = vpop.f32.mrb[0].mxu0
  %2825 = vmatprep.mubr.bf16.mxu0 %v2087
  %2826 = vmatmul.mubr.bf16.gmra.mrb[0].mxu0 %v1974
  %v2827 = vpop.f32.mrb[0].mxu0
  %v2828 = vadd.f32 0.0, %v2827
  %v2829 = vpop.f32.mrb[0].mxu0
  %v2830 = vpop.f32.mrb[0].mxu0
  %v2831 = vadd.f32 0.0, %v2830
  %v2832 = vpop.f32.mrb[0].mxu0
  %2833 = vdwg.mxu0
  %s2834 = scalar_lea.vmem %s4, 500
  %v2835 = vld [vmem:[%s2834] sm:$0xf]
  %v2836 = vld [vmem:[%s2834 + $0x4] sm:$0xf]
  %v2837 = vld [vmem:[%s2834 + $0x8] sm:$0xf]
  %v2838 = vld [vmem:[%s2834 + $0xc] sm:$0xf]
  %v2839 = vld [vmem:[%s2834 + $0x10] sm:$0xf]
  %v2840 = vld [vmem:[%s2834 + $0x14] sm:$0xf]
  %v2841 = vld [vmem:[%s2834 + $0x18] sm:$0xf]
  %v2842 = vld [vmem:[%s2834 + $0x1c] sm:$0xf]
  %v2843 = vld [vmem:[%s2834 + $0x20] sm:$0xf]
  %v2844 = vld [vmem:[%s2834 + $0x24] sm:$0xf]
  %v2845 = vld [vmem:[%s2834 + $0x28] sm:$0xf]
  %v2846 = vld [vmem:[%s2834 + $0x2c] sm:$0xf]
  %v2847 = vld [vmem:[%s2834 + $0x30] sm:$0xf]
  %v2848 = vld [vmem:[%s2834 + $0x34] sm:$0xf]
  %v2849 = vld [vmem:[%s2834 + $0x38] sm:$0xf]
  %v2850 = vld [vmem:[%s2834 + $0x3c] sm:$0xf]
  %v2851 = vld [vmem:[%s2834 + $0x40] sm:$0xf]
  %v2852 = vld [vmem:[%s2834 + $0x44] sm:$0xf]
  %v2853 = vld [vmem:[%s2834 + $0x48] sm:$0xf]
  %v2854 = vld [vmem:[%s2834 + $0x4c] sm:$0xf]
  %v2855 = vld [vmem:[%s2834 + $0x50] sm:$0xf]
  %v2856 = vld [vmem:[%s2834 + $0x54] sm:$0xf]
  %v2857 = vld [vmem:[%s2834 + $0x58] sm:$0xf]
  %v2858 = vld [vmem:[%s2834 + $0x5c] sm:$0xf]
  %v2859 = vld [vmem:[%s2834 + $0x60] sm:$0x3]
  %v2885 = vunpack.c.l.b16 %v2835
  %v2886 = vunpack.c.l.b16 %v2836
  %v2887 = vunpack.c.l.b16 %v2837
  %v2888 = vunpack.c.l.b16 %v2838
  %v2889 = vunpack.c.l.b16 %v2839
  %v2890 = vunpack.c.l.b16 %v2840
  %v2891 = vunpack.c.l.b16 %v2841
  %v2892 = vunpack.c.l.b16 %v2842
  %v2893 = vunpack.c.l.b16 %v2843
  %v2894 = vunpack.c.l.b16 %v2844
  %v2895 = vunpack.c.l.b16 %v2845
  %v2896 = vunpack.c.l.b16 %v2846
  %v2897 = vunpack.c.l.b16 %v2847
  %v2898 = vunpack.c.l.b16 %v2848
  %v2899 = vunpack.c.l.b16 %v2849
  %v2900 = vunpack.c.l.b16 %v2850
  %v2901 = vunpack.c.l.b16 %v2851
  %v2902 = vunpack.c.l.b16 %v2852
  %v2903 = vunpack.c.l.b16 %v2853
  %v2904 = vunpack.c.l.b16 %v2854
  %v2905 = vunpack.c.l.b16 %v2855
  %v2906 = vunpack.c.l.b16 %v2856
  %v2907 = vunpack.c.l.b16 %v2857
  %v2908 = vunpack.c.l.b16 %v2858
  %v2909 = vunpack.c.l.b16 %v2859
  %v2910 = vpack.c.b16 %v2886, %v2885
  %v2911 = vpack.c.b16 %v2888, %v2887
  %v2912 = vpack.c.b16 %v2890, %v2889
  %v2913 = vpack.c.b16 %v2892, %v2891
  %v2914 = vpack.c.b16 %v2894, %v2893
  %v2915 = vpack.c.b16 %v2896, %v2895
  %v2916 = vpack.c.b16 %v2898, %v2897
  %v2917 = vpack.c.b16 %v2900, %v2899
  %v2918 = vpack.c.b16 %v2902, %v2901
  %v2919 = vpack.c.b16 %v2904, %v2903
  %v2920 = vpack.c.b16 %v2906, %v2905
  %v2921 = vpack.c.b16 %v2908, %v2907
  %v2922 = vpack.c.b16 %v2909, %v2909
  %v2936 = vsel %vm2089, %v2922, 0
  %2938 = vmatprep.subr.bf16.mxu0 0
  %2939 = vmatpush1.bf16.msra.mxu0 %v2910
  %2940 = vmatprep.subr.bf16.mxu0 0
  %2941 = vmatpush1.bf16.msra.mxu0 %v2911
  %2942 = vmatprep.subr.bf16.mxu0 0
  %2943 = vmatpush1.bf16.msra.mxu0 %v2912
  %2944 = vmatprep.subr.bf16.mxu0 0
  %2945 = vmatpush1.bf16.msra.mxu0 %v2913
  %2946 = vmatprep.subr.bf16.mxu0 0
  %2947 = vmatpush1.bf16.msra.mxu0 %v2914
  %2948 = vmatprep.subr.bf16.mxu0 0
  %2949 = vmatpush1.bf16.msra.mxu0 %v2915
  %2950 = vmatprep.subr.bf16.mxu0 0
  %2951 = vmatpush1.bf16.msra.mxu0 %v2916
  %2952 = vmatprep.subr.bf16.mxu0 0
  %2953 = vmatpush1.bf16.msra.mxu0 %v2917
  %2954 = vmatprep.subr.bf16.mxu0 0
  %2955 = vmatpush1.bf16.msra.mxu0 %v2918
  %2956 = vmatprep.subr.bf16.mxu0 0
  %2957 = vmatpush1.bf16.msra.mxu0 %v2919
  %2958 = vmatprep.subr.bf16.mxu0 0
  %2959 = vmatpush1.bf16.msra.mxu0 %v2920
  %2960 = vmatprep.subr.bf16.mxu0 0
  %2961 = vmatpush1.bf16.msra.mxu0 %v2921
  %2962 = vmatprep.subr.bf16.mxu0 0
  %2963 = vmatpush1.bf16.msra.mxu0 %v2936
  %2964 = vmatprep.subr.bf16.mxu0 0
  %2965 = vmatpush1.bf16.msra.mxu0 0
  %2966 = vmatprep.subr.bf16.mxu0 0
  %2967 = vmatpush1.bf16.msra.mxu0 0
  %2968 = vmatprep.subr.bf16.mxu0 0
  %2969 = vmatpush1.bf16.msra.mxu0 0
  %2970 = vmatprep.mubr.bf16.mxu0 %v2078
  %2971 = vmatmul.mubr.bf16.gmra.mrb[0].mxu0 %v1968
  %v2972 = vpop.f32.mrb[0].mxu0
  %v2973 = vadd.f32 0.0, %v2972
  %v2974 = vpop.f32.mrb[0].mxu0
  %v2975 = vpop.f32.mrb[0].mxu0
  %v2976 = vadd.f32 0.0, %v2975
  %v2977 = vpop.f32.mrb[0].mxu0
  %2978 = vmatprep.mubr.bf16.mxu0 %v2081
  %2979 = vmatmul.mubr.bf16.gmra.mrb[0].mxu0 %v1970
  %v2980 = vpop.f32.mrb[0].mxu0
  %v2981 = vadd.f32 0.0, %v2980
  %v2982 = vpop.f32.mrb[0].mxu0
  %v2983 = vpop.f32.mrb[0].mxu0
  %v2984 = vadd.f32 0.0, %v2983
  %v2985 = vpop.f32.mrb[0].mxu0
  %2986 = vmatprep.mubr.bf16.mxu0 %v2084
  %2987 = vmatmul.mubr.bf16.gmra.mrb[0].mxu0 %v1972
  %v2988 = vpop.f32.mrb[0].mxu0
  %v2989 = vadd.f32 0.0, %v2988
  %v2990 = vpop.f32.mrb[0].mxu0
  %v2991 = vpop.f32.mrb[0].mxu0
  %v2992 = vadd.f32 0.0, %v2991
  %v2993 = vpop.f32.mrb[0].mxu0
  %2994 = vmatprep.mubr.bf16.mxu0 %v2087
  %2995 = vmatmul.mubr.bf16.gmra.mrb[0].mxu0 %v1974
  %v2996 = vpop.f32.mrb[0].mxu0
  %v2997 = vadd.f32 0.0, %v2996
  %v2998 = vpop.f32.mrb[0].mxu0
  %v2999 = vpop.f32.mrb[0].mxu0
  %v3000 = vadd.f32 0.0, %v2999
  %v3001 = vpop.f32.mrb[0].mxu0
  %3002 = vdwg.mxu0
  %s3003 = scalar_lea.vmem %s4, 600
  %v3004 = vld [vmem:[%s3003] sm:$0xf]
  %v3005 = vld [vmem:[%s3003 + $0x4] sm:$0xf]
  %v3006 = vld [vmem:[%s3003 + $0x8] sm:$0xf]
  %v3007 = vld [vmem:[%s3003 + $0xc] sm:$0xf]
  %v3008 = vld [vmem:[%s3003 + $0x10] sm:$0xf]
  %v3009 = vld [vmem:[%s3003 + $0x14] sm:$0xf]
  %v3010 = vld [vmem:[%s3003 + $0x18] sm:$0xf]
  %v3011 = vld [vmem:[%s3003 + $0x1c] sm:$0xf]
  %v3012 = vld [vmem:[%s3003 + $0x20] sm:$0xf]
  %v3013 = vld [vmem:[%s3003 + $0x24] sm:$0xf]
  %v3014 = vld [vmem:[%s3003 + $0x28] sm:$0xf]
  %v3015 = vld [vmem:[%s3003 + $0x2c] sm:$0xf]
  %v3016 = vld [vmem:[%s3003 + $0x30] sm:$0xf]
  %v3017 = vld [vmem:[%s3003 + $0x34] sm:$0xf]
  %v3018 = vld [vmem:[%s3003 + $0x38] sm:$0xf]
  %v3019 = vld [vmem:[%s3003 + $0x3c] sm:$0xf]
  %v3020 = vld [vmem:[%s3003 + $0x40] sm:$0xf]
  %v3021 = vld [vmem:[%s3003 + $0x44] sm:$0xf]
  %v3022 = vld [vmem:[%s3003 + $0x48] sm:$0xf]
  %v3023 = vld [vmem:[%s3003 + $0x4c] sm:$0xf]
  %v3024 = vld [vmem:[%s3003 + $0x50] sm:$0xf]
  %v3025 = vld [vmem:[%s3003 + $0x54] sm:$0xf]
  %v3026 = vld [vmem:[%s3003 + $0x58] sm:$0xf]
  %v3027 = vld [vmem:[%s3003 + $0x5c] sm:$0xf]
  %v3028 = vld [vmem:[%s3003 + $0x60] sm:$0x3]
  %v3054 = vunpack.c.l.b16 %v3004
  %v3055 = vunpack.c.l.b16 %v3005
  %v3056 = vunpack.c.l.b16 %v3006
  %v3057 = vunpack.c.l.b16 %v3007
  %v3058 = vunpack.c.l.b16 %v3008
  %v3059 = vunpack.c.l.b16 %v3009
  %v3060 = vunpack.c.l.b16 %v3010
  %v3061 = vunpack.c.l.b16 %v3011
  %v3062 = vunpack.c.l.b16 %v3012
  %v3063 = vunpack.c.l.b16 %v3013
  %v3064 = vunpack.c.l.b16 %v3014
  %v3065 = vunpack.c.l.b16 %v3015
  %v3066 = vunpack.c.l.b16 %v3016
  %v3067 = vunpack.c.l.b16 %v3017
  %v3068 = vunpack.c.l.b16 %v3018
  %v3069 = vunpack.c.l.b16 %v3019
  %v3070 = vunpack.c.l.b16 %v3020
  %v3071 = vunpack.c.l.b16 %v3021
  %v3072 = vunpack.c.l.b16 %v3022
  %v3073 = vunpack.c.l.b16 %v3023
  %v3074 = vunpack.c.l.b16 %v3024
  %v3075 = vunpack.c.l.b16 %v3025
  %v3076 = vunpack.c.l.b16 %v3026
  %v3077 = vunpack.c.l.b16 %v3027
  %v3078 = vunpack.c.l.b16 %v3028
  %v3079 = vpack.c.b16 %v3055, %v3054
  %v3080 = vpack.c.b16 %v3057, %v3056
  %v3081 = vpack.c.b16 %v3059, %v3058
  %v3082 = vpack.c.b16 %v3061, %v3060
  %v3083 = vpack.c.b16 %v3063, %v3062
  %v3084 = vpack.c.b16 %v3065, %v3064
  %v3085 = vpack.c.b16 %v3067, %v3066
  %v3086 = vpack.c.b16 %v3069, %v3068
  %v3087 = vpack.c.b16 %v3071, %v3070
  %v3088 = vpack.c.b16 %v3073, %v3072
  %v3089 = vpack.c.b16 %v3075, %v3074
  %v3090 = vpack.c.b16 %v3077, %v3076
  %v3091 = vpack.c.b16 %v3078, %v3078
  %v3105 = vsel %vm2089, %v3091, 0
  %3107 = vmatprep.subr.bf16.mxu0 0
  %3108 = vmatpush1.bf16.msra.mxu0 %v3079
  %3109 = vmatprep.subr.bf16.mxu0 0
  %3110 = vmatpush1.bf16.msra.mxu0 %v3080
  %3111 = vmatprep.subr.bf16.mxu0 0
  %3112 = vmatpush1.bf16.msra.mxu0 %v3081
  %3113 = vmatprep.subr.bf16.mxu0 0
  %3114 = vmatpush1.bf16.msra.mxu0 %v3082
  %3115 = vmatprep.subr.bf16.mxu0 0
  %3116 = vmatpush1.bf16.msra.mxu0 %v3083
  %3117 = vmatprep.subr.bf16.mxu0 0
  %3118 = vmatpush1.bf16.msra.mxu0 %v3084
  %3119 = vmatprep.subr.bf16.mxu0 0
  %3120 = vmatpush1.bf16.msra.mxu0 %v3085
  %3121 = vmatprep.subr.bf16.mxu0 0
  %3122 = vmatpush1.bf16.msra.mxu0 %v3086
  %3123 = vmatprep.subr.bf16.mxu0 0
  %3124 = vmatpush1.bf16.msra.mxu0 %v3087
  %3125 = vmatprep.subr.bf16.mxu0 0
  %3126 = vmatpush1.bf16.msra.mxu0 %v3088
  %3127 = vmatprep.subr.bf16.mxu0 0
  %3128 = vmatpush1.bf16.msra.mxu0 %v3089
  %3129 = vmatprep.subr.bf16.mxu0 0
  %3130 = vmatpush1.bf16.msra.mxu0 %v3090
  %3131 = vmatprep.subr.bf16.mxu0 0
  %3132 = vmatpush1.bf16.msra.mxu0 %v3105
  %3133 = vmatprep.subr.bf16.mxu0 0
  %3134 = vmatpush1.bf16.msra.mxu0 0
  %3135 = vmatprep.subr.bf16.mxu0 0
  %3136 = vmatpush1.bf16.msra.mxu0 0
  %3137 = vmatprep.subr.bf16.mxu0 0
  %3138 = vmatpush1.bf16.msra.mxu0 0
  %3139 = vmatprep.mubr.bf16.mxu0 %v2078
  %3140 = vmatmul.mubr.bf16.gmra.mrb[0].mxu0 %v1968
  %v3141 = vpop.f32.mrb[0].mxu0
  %v3142 = vadd.f32 0.0, %v3141
  %v3143 = vpop.f32.mrb[0].mxu0
  %v3144 = vpop.f32.mrb[0].mxu0
  %v3145 = vadd.f32 0.0, %v3144
  %v3146 = vpop.f32.mrb[0].mxu0
  %3147 = vmatprep.mubr.bf16.mxu0 %v2081
  %3148 = vmatmul.mubr.bf16.gmra.mrb[0].mxu0 %v1970
  %v3149 = vpop.f32.mrb[0].mxu0
  %v3150 = vadd.f32 0.0, %v3149
  %v3151 = vpop.f32.mrb[0].mxu0
  %v3152 = vpop.f32.mrb[0].mxu0
  %v3153 = vadd.f32 0.0, %v3152
  %v3154 = vpop.f32.mrb[0].mxu0
  %3155 = vmatprep.mubr.bf16.mxu0 %v2084
  %3156 = vmatmul.mubr.bf16.gmra.mrb[0].mxu0 %v1972
  %v3157 = vpop.f32.mrb[0].mxu0
  %v3158 = vadd.f32 0.0, %v3157
  %v3159 = vpop.f32.mrb[0].mxu0
  %v3160 = vpop.f32.mrb[0].mxu0
  %v3161 = vadd.f32 0.0, %v3160
  %v3162 = vpop.f32.mrb[0].mxu0
  %3163 = vmatprep.mubr.bf16.mxu0 %v2087
  %3164 = vmatmul.mubr.bf16.gmra.mrb[0].mxu0 %v1974
  %v3165 = vpop.f32.mrb[0].mxu0
  %v3166 = vadd.f32 0.0, %v3165
  %v3167 = vpop.f32.mrb[0].mxu0
  %v3168 = vpop.f32.mrb[0].mxu0
  %v3169 = vadd.f32 0.0, %v3168
  %v3170 = vpop.f32.mrb[0].mxu0
  %3171 = vdwg.mxu0
  %s3172 = scalar_lea.vmem %s4, 700
  %v3173 = vld [vmem:[%s3172] sm:$0xf]
  %v3174 = vld [vmem:[%s3172 + $0x4] sm:$0xf]
  %v3175 = vld [vmem:[%s3172 + $0x8] sm:$0xf]
  %v3176 = vld [vmem:[%s3172 + $0xc] sm:$0xf]
  %v3177 = vld [vmem:[%s3172 + $0x10] sm:$0xf]
  %v3178 = vld [vmem:[%s3172 + $0x14] sm:$0xf]
  %v3179 = vld [vmem:[%s3172 + $0x18] sm:$0xf]
  %v3180 = vld [vmem:[%s3172 + $0x1c] sm:$0xf]
  %v3181 = vld [vmem:[%s3172 + $0x20] sm:$0xf]
  %v3182 = vld [vmem:[%s3172 + $0x24] sm:$0xf]
  %v3183 = vld [vmem:[%s3172 + $0x28] sm:$0xf]
  %v3184 = vld [vmem:[%s3172 + $0x2c] sm:$0xf]
  %v3185 = vld [vmem:[%s3172 + $0x30] sm:$0xf]
  %v3186 = vld [vmem:[%s3172 + $0x34] sm:$0xf]
  %v3187 = vld [vmem:[%s3172 + $0x38] sm:$0xf]
  %v3188 = vld [vmem:[%s3172 + $0x3c] sm:$0xf]
  %v3189 = vld [vmem:[%s3172 + $0x40] sm:$0xf]
  %v3190 = vld [vmem:[%s3172 + $0x44] sm:$0xf]
  %v3191 = vld [vmem:[%s3172 + $0x48] sm:$0xf]
  %v3192 = vld [vmem:[%s3172 + $0x4c] sm:$0xf]
  %v3193 = vld [vmem:[%s3172 + $0x50] sm:$0xf]
  %v3194 = vld [vmem:[%s3172 + $0x54] sm:$0xf]
  %v3195 = vld [vmem:[%s3172 + $0x58] sm:$0xf]
  %v3196 = vld [vmem:[%s3172 + $0x5c] sm:$0xf]
  %v3197 = vld [vmem:[%s3172 + $0x60] sm:$0x3]
  %v3223 = vunpack.c.l.b16 %v3173
  %v3224 = vunpack.c.l.b16 %v3174
  %v3225 = vunpack.c.l.b16 %v3175
  %v3226 = vunpack.c.l.b16 %v3176
  %v3227 = vunpack.c.l.b16 %v3177
  %v3228 = vunpack.c.l.b16 %v3178
  %v3229 = vunpack.c.l.b16 %v3179
  %v3230 = vunpack.c.l.b16 %v3180
  %v3231 = vunpack.c.l.b16 %v3181
  %v3232 = vunpack.c.l.b16 %v3182
  %v3233 = vunpack.c.l.b16 %v3183
  %v3234 = vunpack.c.l.b16 %v3184
  %v3235 = vunpack.c.l.b16 %v3185
  %v3236 = vunpack.c.l.b16 %v3186
  %v3237 = vunpack.c.l.b16 %v3187
  %v3238 = vunpack.c.l.b16 %v3188
  %v3239 = vunpack.c.l.b16 %v3189
  %v3240 = vunpack.c.l.b16 %v3190
  %v3241 = vunpack.c.l.b16 %v3191
  %v3242 = vunpack.c.l.b16 %v3192
  %v3243 = vunpack.c.l.b16 %v3193
  %v3244 = vunpack.c.l.b16 %v3194
  %v3245 = vunpack.c.l.b16 %v3195
  %v3246 = vunpack.c.l.b16 %v3196
  %v3247 = vunpack.c.l.b16 %v3197
  %v3248 = vpack.c.b16 %v3224, %v3223
  %v3249 = vpack.c.b16 %v3226, %v3225
  %v3250 = vpack.c.b16 %v3228, %v3227
  %v3251 = vpack.c.b16 %v3230, %v3229
  %v3252 = vpack.c.b16 %v3232, %v3231
  %v3253 = vpack.c.b16 %v3234, %v3233
  %v3254 = vpack.c.b16 %v3236, %v3235
  %v3255 = vpack.c.b16 %v3238, %v3237
  %v3256 = vpack.c.b16 %v3240, %v3239
  %v3257 = vpack.c.b16 %v3242, %v3241
  %v3258 = vpack.c.b16 %v3244, %v3243
  %v3259 = vpack.c.b16 %v3246, %v3245
  %v3260 = vpack.c.b16 %v3247, %v3247
  %v3274 = vsel %vm2089, %v3260, 0
  %3276 = vmatprep.subr.bf16.mxu0 0
  %3277 = vmatpush1.bf16.msra.mxu0 %v3248
  %3278 = vmatprep.subr.bf16.mxu0 0
  %3279 = vmatpush1.bf16.msra.mxu0 %v3249
  %3280 = vmatprep.subr.bf16.mxu0 0
  %3281 = vmatpush1.bf16.msra.mxu0 %v3250
  %3282 = vmatprep.subr.bf16.mxu0 0
  %3283 = vmatpush1.bf16.msra.mxu0 %v3251
  %3284 = vmatprep.subr.bf16.mxu0 0
  %3285 = vmatpush1.bf16.msra.mxu0 %v3252
  %3286 = vmatprep.subr.bf16.mxu0 0
  %3287 = vmatpush1.bf16.msra.mxu0 %v3253
  %3288 = vmatprep.subr.bf16.mxu0 0
  %3289 = vmatpush1.bf16.msra.mxu0 %v3254
  %3290 = vmatprep.subr.bf16.mxu0 0
  %3291 = vmatpush1.bf16.msra.mxu0 %v3255
  %3292 = vmatprep.subr.bf16.mxu0 0
  %3293 = vmatpush1.bf16.msra.mxu0 %v3256
  %3294 = vmatprep.subr.bf16.mxu0 0
  %3295 = vmatpush1.bf16.msra.mxu0 %v3257
  %3296 = vmatprep.subr.bf16.mxu0 0
  %3297 = vmatpush1.bf16.msra.mxu0 %v3258
  %3298 = vmatprep.subr.bf16.mxu0 0
  %3299 = vmatpush1.bf16.msra.mxu0 %v3259
  %3300 = vmatprep.subr.bf16.mxu0 0
  %3301 = vmatpush1.bf16.msra.mxu0 %v3274
  %3302 = vmatprep.subr.bf16.mxu0 0
  %3303 = vmatpush1.bf16.msra.mxu0 0
  %3304 = vmatprep.subr.bf16.mxu0 0
  %3305 = vmatpush1.bf16.msra.mxu0 0
  %3306 = vmatprep.subr.bf16.mxu0 0
  %3307 = vmatpush1.bf16.msra.mxu0 0
  %3308 = vmatprep.mubr.bf16.mxu0 %v2078
  %3309 = vmatmul.mubr.bf16.gmra.mrb[0].mxu0 %v1968
  %v3310 = vpop.f32.mrb[0].mxu0
  %v3311 = vadd.f32 0.0, %v3310
  %v3312 = vpop.f32.mrb[0].mxu0
  %v3313 = vpop.f32.mrb[0].mxu0
  %v3314 = vadd.f32 0.0, %v3313
  %v3315 = vpop.f32.mrb[0].mxu0
  %3316 = vmatprep.mubr.bf16.mxu0 %v2081
  %3317 = vmatmul.mubr.bf16.gmra.mrb[0].mxu0 %v1970
  %v3318 = vpop.f32.mrb[0].mxu0
  %v3319 = vadd.f32 0.0, %v3318
  %v3320 = vpop.f32.mrb[0].mxu0
  %v3321 = vpop.f32.mrb[0].mxu0
  %v3322 = vadd.f32 0.0, %v3321
  %v3323 = vpop.f32.mrb[0].mxu0
  %3324 = vmatprep.mubr.bf16.mxu0 %v2084
  %3325 = vmatmul.mubr.bf16.gmra.mrb[0].mxu0 %v1972
  %v3326 = vpop.f32.mrb[0].mxu0
  %v3327 = vadd.f32 0.0, %v3326
  %v3328 = vpop.f32.mrb[0].mxu0
  %v3329 = vpop.f32.mrb[0].mxu0
  %v3330 = vadd.f32 0.0, %v3329
  %v3331 = vpop.f32.mrb[0].mxu0
  %3332 = vmatprep.mubr.bf16.mxu0 %v2087
  %3333 = vmatmul.mubr.bf16.gmra.mrb[0].mxu0 %v1974
  %v3334 = vpop.f32.mrb[0].mxu0
  %v3335 = vadd.f32 0.0, %v3334
  %v3336 = vpop.f32.mrb[0].mxu0
  %v3337 = vpop.f32.mrb[0].mxu0
  %v3338 = vadd.f32 0.0, %v3337
  %v3339 = vpop.f32.mrb[0].mxu0
  %3340 = vdwg.mxu0
  %s3341 = scalar_lea.vmem %s4, 800
  %v3342 = vld [vmem:[%s3341] sm:$0xf]
  %v3343 = vld [vmem:[%s3341 + $0x4] sm:$0xf]
  %v3344 = vld [vmem:[%s3341 + $0x8] sm:$0xf]
  %v3345 = vld [vmem:[%s3341 + $0xc] sm:$0xf]
  %v3346 = vld [vmem:[%s3341 + $0x10] sm:$0xf]
  %v3347 = vld [vmem:[%s3341 + $0x14] sm:$0xf]
  %v3348 = vld [vmem:[%s3341 + $0x18] sm:$0xf]
  %v3349 = vld [vmem:[%s3341 + $0x1c] sm:$0xf]
  %v3350 = vld [vmem:[%s3341 + $0x20] sm:$0xf]
  %v3351 = vld [vmem:[%s3341 + $0x24] sm:$0xf]
  %v3352 = vld [vmem:[%s3341 + $0x28] sm:$0xf]
  %v3353 = vld [vmem:[%s3341 + $0x2c] sm:$0xf]
  %v3354 = vld [vmem:[%s3341 + $0x30] sm:$0xf]
  %v3355 = vld [vmem:[%s3341 + $0x34] sm:$0xf]
  %v3356 = vld [vmem:[%s3341 + $0x38] sm:$0xf]
  %v3357 = vld [vmem:[%s3341 + $0x3c] sm:$0xf]
  %v3358 = vld [vmem:[%s3341 + $0x40] sm:$0xf]
  %v3359 = vld [vmem:[%s3341 + $0x44] sm:$0xf]
  %v3360 = vld [vmem:[%s3341 + $0x48] sm:$0xf]
  %v3361 = vld [vmem:[%s3341 + $0x4c] sm:$0xf]
  %v3362 = vld [vmem:[%s3341 + $0x50] sm:$0xf]
  %v3363 = vld [vmem:[%s3341 + $0x54] sm:$0xf]
  %v3364 = vld [vmem:[%s3341 + $0x58] sm:$0xf]
  %v3365 = vld [vmem:[%s3341 + $0x5c] sm:$0xf]
  %v3366 = vld [vmem:[%s3341 + $0x60] sm:$0x3]
  %v3392 = vunpack.c.l.b16 %v3342
  %v3393 = vunpack.c.l.b16 %v3343
  %v3394 = vunpack.c.l.b16 %v3344
  %v3395 = vunpack.c.l.b16 %v3345
  %v3396 = vunpack.c.l.b16 %v3346
  %v3397 = vunpack.c.l.b16 %v3347
  %v3398 = vunpack.c.l.b16 %v3348
  %v3399 = vunpack.c.l.b16 %v3349
  %v3400 = vunpack.c.l.b16 %v3350
  %v3401 = vunpack.c.l.b16 %v3351
  %v3402 = vunpack.c.l.b16 %v3352
  %v3403 = vunpack.c.l.b16 %v3353
  %v3404 = vunpack.c.l.b16 %v3354
  %v3405 = vunpack.c.l.b16 %v3355
  %v3406 = vunpack.c.l.b16 %v3356
  %v3407 = vunpack.c.l.b16 %v3357
  %v3408 = vunpack.c.l.b16 %v3358
  %v3409 = vunpack.c.l.b16 %v3359
  %v3410 = vunpack.c.l.b16 %v3360
  %v3411 = vunpack.c.l.b16 %v3361
  %v3412 = vunpack.c.l.b16 %v3362
  %v3413 = vunpack.c.l.b16 %v3363
  %v3414 = vunpack.c.l.b16 %v3364
  %v3415 = vunpack.c.l.b16 %v3365
  %v3416 = vunpack.c.l.b16 %v3366
  %v3417 = vpack.c.b16 %v3393, %v3392
  %v3418 = vpack.c.b16 %v3395, %v3394
  %v3419 = vpack.c.b16 %v3397, %v3396
  %v3420 = vpack.c.b16 %v3399, %v3398
  %v3421 = vpack.c.b16 %v3401, %v3400
  %v3422 = vpack.c.b16 %v3403, %v3402
  %v3423 = vpack.c.b16 %v3405, %v3404
  %v3424 = vpack.c.b16 %v3407, %v3406
  %v3425 = vpack.c.b16 %v3409, %v3408
  %v3426 = vpack.c.b16 %v3411, %v3410
  %v3427 = vpack.c.b16 %v3413, %v3412
  %v3428 = vpack.c.b16 %v3415, %v3414
  %v3429 = vpack.c.b16 %v3416, %v3416
  %v3443 = vsel %vm2089, %v3429, 0
  %3445 = vmatprep.subr.bf16.mxu0 0
  %3446 = vmatpush1.bf16.msra.mxu0 %v3417
  %3447 = vmatprep.subr.bf16.mxu0 0
  %3448 = vmatpush1.bf16.msra.mxu0 %v3418
  %3449 = vmatprep.subr.bf16.mxu0 0
  %3450 = vmatpush1.bf16.msra.mxu0 %v3419
  %3451 = vmatprep.subr.bf16.mxu0 0
  %3452 = vmatpush1.bf16.msra.mxu0 %v3420
  %3453 = vmatprep.subr.bf16.mxu0 0
  %3454 = vmatpush1.bf16.msra.mxu0 %v3421
  %3455 = vmatprep.subr.bf16.mxu0 0
  %3456 = vmatpush1.bf16.msra.mxu0 %v3422
  %3457 = vmatprep.subr.bf16.mxu0 0
  %3458 = vmatpush1.bf16.msra.mxu0 %v3423
  %3459 = vmatprep.subr.bf16.mxu0 0
  %3460 = vmatpush1.bf16.msra.mxu0 %v3424
  %3461 = vmatprep.subr.bf16.mxu0 0
  %3462 = vmatpush1.bf16.msra.mxu0 %v3425
  %3463 = vmatprep.subr.bf16.mxu0 0
  %3464 = vmatpush1.bf16.msra.mxu0 %v3426
  %3465 = vmatprep.subr.bf16.mxu0 0
  %3466 = vmatpush1.bf16.msra.mxu0 %v3427
  %3467 = vmatprep.subr.bf16.mxu0 0
  %3468 = vmatpush1.bf16.msra.mxu0 %v3428
  %3469 = vmatprep.subr.bf16.mxu0 0
  %3470 = vmatpush1.bf16.msra.mxu0 %v3443
  %3471 = vmatprep.subr.bf16.mxu0 0
  %3472 = vmatpush1.bf16.msra.mxu0 0
  %3473 = vmatprep.subr.bf16.mxu0 0
  %3474 = vmatpush1.bf16.msra.mxu0 0
  %3475 = vmatprep.subr.bf16.mxu0 0
  %3476 = vmatpush1.bf16.msra.mxu0 0
  %3477 = vmatprep.mubr.bf16.mxu0 %v2078
  %3478 = vmatmul.mubr.bf16.gmra.mrb[0].mxu0 %v1968
  %v3479 = vpop.f32.mrb[0].mxu0
  %v3480 = vadd.f32 0.0, %v3479
  %v3481 = vpop.f32.mrb[0].mxu0
  %v3482 = vpop.f32.mrb[0].mxu0
  %v3483 = vadd.f32 0.0, %v3482
  %v3484 = vpop.f32.mrb[0].mxu0
  %3485 = vmatprep.mubr.bf16.mxu0 %v2081
  %3486 = vmatmul.mubr.bf16.gmra.mrb[0].mxu0 %v1970
  %v3487 = vpop.f32.mrb[0].mxu0
  %v3488 = vadd.f32 0.0, %v3487
  %v3489 = vpop.f32.mrb[0].mxu0
  %v3490 = vpop.f32.mrb[0].mxu0
  %v3491 = vadd.f32 0.0, %v3490
  %v3492 = vpop.f32.mrb[0].mxu0
  %3493 = vmatprep.mubr.bf16.mxu0 %v2084
  %3494 = vmatmul.mubr.bf16.gmra.mrb[0].mxu0 %v1972
  %v3495 = vpop.f32.mrb[0].mxu0
  %v3496 = vadd.f32 0.0, %v3495
  %v3497 = vpop.f32.mrb[0].mxu0
  %v3498 = vpop.f32.mrb[0].mxu0
  %v3499 = vadd.f32 0.0, %v3498
  %v3500 = vpop.f32.mrb[0].mxu0
  %3501 = vmatprep.mubr.bf16.mxu0 %v2087
  %3502 = vmatmul.mubr.bf16.gmra.mrb[0].mxu0 %v1974
  %v3503 = vpop.f32.mrb[0].mxu0
  %v3504 = vadd.f32 0.0, %v3503
  %v3505 = vpop.f32.mrb[0].mxu0
  %v3506 = vpop.f32.mrb[0].mxu0
  %v3507 = vadd.f32 0.0, %v3506
  %v3508 = vpop.f32.mrb[0].mxu0
  %3509 = vdwg.mxu0
  %s3510 = scalar_lea.vmem %s4, 900
  %v3511 = vld [vmem:[%s3510] sm:$0xf]
  %v3512 = vld [vmem:[%s3510 + $0x4] sm:$0xf]
  %v3513 = vld [vmem:[%s3510 + $0x8] sm:$0xf]
  %v3514 = vld [vmem:[%s3510 + $0xc] sm:$0xf]
  %v3515 = vld [vmem:[%s3510 + $0x10] sm:$0xf]
  %v3516 = vld [vmem:[%s3510 + $0x14] sm:$0xf]
  %v3517 = vld [vmem:[%s3510 + $0x18] sm:$0xf]
  %v3518 = vld [vmem:[%s3510 + $0x1c] sm:$0xf]
  %v3519 = vld [vmem:[%s3510 + $0x20] sm:$0xf]
  %v3520 = vld [vmem:[%s3510 + $0x24] sm:$0xf]
  %v3521 = vld [vmem:[%s3510 + $0x28] sm:$0xf]
  %v3522 = vld [vmem:[%s3510 + $0x2c] sm:$0xf]
  %v3523 = vld [vmem:[%s3510 + $0x30] sm:$0xf]
  %v3524 = vld [vmem:[%s3510 + $0x34] sm:$0xf]
  %v3525 = vld [vmem:[%s3510 + $0x38] sm:$0xf]
  %v3526 = vld [vmem:[%s3510 + $0x3c] sm:$0xf]
  %v3527 = vld [vmem:[%s3510 + $0x40] sm:$0xf]
  %v3528 = vld [vmem:[%s3510 + $0x44] sm:$0xf]
  %v3529 = vld [vmem:[%s3510 + $0x48] sm:$0xf]
  %v3530 = vld [vmem:[%s3510 + $0x4c] sm:$0xf]
  %v3531 = vld [vmem:[%s3510 + $0x50] sm:$0xf]
  %v3532 = vld [vmem:[%s3510 + $0x54] sm:$0xf]
  %v3533 = vld [vmem:[%s3510 + $0x58] sm:$0xf]
  %v3534 = vld [vmem:[%s3510 + $0x5c] sm:$0xf]
  %v3535 = vld [vmem:[%s3510 + $0x60] sm:$0x3]
  %v3561 = vunpack.c.l.b16 %v3511
  %v3562 = vunpack.c.l.b16 %v3512
  %v3563 = vunpack.c.l.b16 %v3513
  %v3564 = vunpack.c.l.b16 %v3514
  %v3565 = vunpack.c.l.b16 %v3515
  %v3566 = vunpack.c.l.b16 %v3516
  %v3567 = vunpack.c.l.b16 %v3517
  %v3568 = vunpack.c.l.b16 %v3518
  %v3569 = vunpack.c.l.b16 %v3519
  %v3570 = vunpack.c.l.b16 %v3520
  %v3571 = vunpack.c.l.b16 %v3521
  %v3572 = vunpack.c.l.b16 %v3522
  %v3573 = vunpack.c.l.b16 %v3523
  %v3574 = vunpack.c.l.b16 %v3524
  %v3575 = vunpack.c.l.b16 %v3525
  %v3576 = vunpack.c.l.b16 %v3526
  %v3577 = vunpack.c.l.b16 %v3527
  %v3578 = vunpack.c.l.b16 %v3528
  %v3579 = vunpack.c.l.b16 %v3529
  %v3580 = vunpack.c.l.b16 %v3530
  %v3581 = vunpack.c.l.b16 %v3531
  %v3582 = vunpack.c.l.b16 %v3532
  %v3583 = vunpack.c.l.b16 %v3533
  %v3584 = vunpack.c.l.b16 %v3534
  %v3585 = vunpack.c.l.b16 %v3535
  %v3586 = vpack.c.b16 %v3562, %v3561
  %v3587 = vpack.c.b16 %v3564, %v3563
  %v3588 = vpack.c.b16 %v3566, %v3565
  %v3589 = vpack.c.b16 %v3568, %v3567
  %v3590 = vpack.c.b16 %v3570, %v3569
  %v3591 = vpack.c.b16 %v3572, %v3571
  %v3592 = vpack.c.b16 %v3574, %v3573
  %v3593 = vpack.c.b16 %v3576, %v3575
  %v3594 = vpack.c.b16 %v3578, %v3577
  %v3595 = vpack.c.b16 %v3580, %v3579
  %v3596 = vpack.c.b16 %v3582, %v3581
  %v3597 = vpack.c.b16 %v3584, %v3583
  %v3598 = vpack.c.b16 %v3585, %v3585
  %v3612 = vsel %vm2089, %v3598, 0
  %3614 = vmatprep.subr.bf16.mxu0 0
  %3615 = vmatpush1.bf16.msra.mxu0 %v3586
  %3616 = vmatprep.subr.bf16.mxu0 0
  %3617 = vmatpush1.bf16.msra.mxu0 %v3587
  %3618 = vmatprep.subr.bf16.mxu0 0
  %3619 = vmatpush1.bf16.msra.mxu0 %v3588
  %3620 = vmatprep.subr.bf16.mxu0 0
  %3621 = vmatpush1.bf16.msra.mxu0 %v3589
  %3622 = vmatprep.subr.bf16.mxu0 0
  %3623 = vmatpush1.bf16.msra.mxu0 %v3590
  %3624 = vmatprep.subr.bf16.mxu0 0
  %3625 = vmatpush1.bf16.msra.mxu0 %v3591
  %3626 = vmatprep.subr.bf16.mxu0 0
  %3627 = vmatpush1.bf16.msra.mxu0 %v3592
  %3628 = vmatprep.subr.bf16.mxu0 0
  %3629 = vmatpush1.bf16.msra.mxu0 %v3593
  %3630 = vmatprep.subr.bf16.mxu0 0
  %3631 = vmatpush1.bf16.msra.mxu0 %v3594
  %3632 = vmatprep.subr.bf16.mxu0 0
  %3633 = vmatpush1.bf16.msra.mxu0 %v3595
  %3634 = vmatprep.subr.bf16.mxu0 0
  %3635 = vmatpush1.bf16.msra.mxu0 %v3596
  %3636 = vmatprep.subr.bf16.mxu0 0
  %3637 = vmatpush1.bf16.msra.mxu0 %v3597
  %3638 = vmatprep.subr.bf16.mxu0 0
  %3639 = vmatpush1.bf16.msra.mxu0 %v3612
  %3640 = vmatprep.subr.bf16.mxu0 0
  %3641 = vmatpush1.bf16.msra.mxu0 0
  %3642 = vmatprep.subr.bf16.mxu0 0
  %3643 = vmatpush1.bf16.msra.mxu0 0
  %3644 = vmatprep.subr.bf16.mxu0 0
  %3645 = vmatpush1.bf16.msra.mxu0 0
  %3646 = vmatprep.mubr.bf16.mxu0 %v2078
  %3647 = vmatmul.mubr.bf16.gmra.mrb[0].mxu0 %v1968
  %v3648 = vpop.f32.mrb[0].mxu0
  %v3649 = vadd.f32 0.0, %v3648
  %v3650 = vpop.f32.mrb[0].mxu0
  %v3651 = vpop.f32.mrb[0].mxu0
  %v3652 = vadd.f32 0.0, %v3651
  %v3653 = vpop.f32.mrb[0].mxu0
  %3654 = vmatprep.mubr.bf16.mxu0 %v2081
  %3655 = vmatmul.mubr.bf16.gmra.mrb[0].mxu0 %v1970
  %v3656 = vpop.f32.mrb[0].mxu0
  %v3657 = vadd.f32 0.0, %v3656
  %v3658 = vpop.f32.mrb[0].mxu0
  %v3659 = vpop.f32.mrb[0].mxu0
  %v3660 = vadd.f32 0.0, %v3659
  %v3661 = vpop.f32.mrb[0].mxu0
  %3662 = vmatprep.mubr.bf16.mxu0 %v2084
  %3663 = vmatmul.mubr.bf16.gmra.mrb[0].mxu0 %v1972
  %v3664 = vpop.f32.mrb[0].mxu0
  %v3665 = vadd.f32 0.0, %v3664
  %v3666 = vpop.f32.mrb[0].mxu0
  %v3667 = vpop.f32.mrb[0].mxu0
  %v3668 = vadd.f32 0.0, %v3667
  %v3669 = vpop.f32.mrb[0].mxu0
  %3670 = vmatprep.mubr.bf16.mxu0 %v2087
  %3671 = vmatmul.mubr.bf16.gmra.mrb[0].mxu0 %v1974
  %v3672 = vpop.f32.mrb[0].mxu0
  %v3673 = vadd.f32 0.0, %v3672
  %v3674 = vpop.f32.mrb[0].mxu0
  %v3675 = vpop.f32.mrb[0].mxu0
  %v3676 = vadd.f32 0.0, %v3675
  %v3677 = vpop.f32.mrb[0].mxu0
  %3678 = vdwg.mxu0
  %s3679 = scalar_lea.vmem %s4, 1000
  %v3680 = vld [vmem:[%s3679] sm:$0xf]
  %v3681 = vld [vmem:[%s3679 + $0x4] sm:$0xf]
  %v3682 = vld [vmem:[%s3679 + $0x8] sm:$0xf]
  %v3683 = vld [vmem:[%s3679 + $0xc] sm:$0xf]
  %v3684 = vld [vmem:[%s3679 + $0x10] sm:$0xf]
  %v3685 = vld [vmem:[%s3679 + $0x14] sm:$0xf]
  %v3686 = vld [vmem:[%s3679 + $0x18] sm:$0xf]
  %v3687 = vld [vmem:[%s3679 + $0x1c] sm:$0xf]
  %v3688 = vld [vmem:[%s3679 + $0x20] sm:$0xf]
  %v3689 = vld [vmem:[%s3679 + $0x24] sm:$0xf]
  %v3690 = vld [vmem:[%s3679 + $0x28] sm:$0xf]
  %v3691 = vld [vmem:[%s3679 + $0x2c] sm:$0xf]
  %v3692 = vld [vmem:[%s3679 + $0x30] sm:$0xf]
  %v3693 = vld [vmem:[%s3679 + $0x34] sm:$0xf]
  %v3694 = vld [vmem:[%s3679 + $0x38] sm:$0xf]
  %v3695 = vld [vmem:[%s3679 + $0x3c] sm:$0xf]
  %v3696 = vld [vmem:[%s3679 + $0x40] sm:$0xf]
  %v3697 = vld [vmem:[%s3679 + $0x44] sm:$0xf]
  %v3698 = vld [vmem:[%s3679 + $0x48] sm:$0xf]
  %v3699 = vld [vmem:[%s3679 + $0x4c] sm:$0xf]
  %v3700 = vld [vmem:[%s3679 + $0x50] sm:$0xf]
  %v3701 = vld [vmem:[%s3679 + $0x54] sm:$0xf]
  %v3702 = vld [vmem:[%s3679 + $0x58] sm:$0xf]
  %v3703 = vld [vmem:[%s3679 + $0x5c] sm:$0xf]
  %v3704 = vld [vmem:[%s3679 + $0x60] sm:$0x3]
  %v3730 = vunpack.c.l.b16 %v3680
  %v3731 = vunpack.c.l.b16 %v3681
  %v3732 = vunpack.c.l.b16 %v3682
  %v3733 = vunpack.c.l.b16 %v3683
  %v3734 = vunpack.c.l.b16 %v3684
  %v3735 = vunpack.c.l.b16 %v3685
  %v3736 = vunpack.c.l.b16 %v3686
  %v3737 = vunpack.c.l.b16 %v3687
  %v3738 = vunpack.c.l.b16 %v3688
  %v3739 = vunpack.c.l.b16 %v3689
  %v3740 = vunpack.c.l.b16 %v3690
  %v3741 = vunpack.c.l.b16 %v3691
  %v3742 = vunpack.c.l.b16 %v3692
  %v3743 = vunpack.c.l.b16 %v3693
  %v3744 = vunpack.c.l.b16 %v3694
  %v3745 = vunpack.c.l.b16 %v3695
  %v3746 = vunpack.c.l.b16 %v3696
  %v3747 = vunpack.c.l.b16 %v3697
  %v3748 = vunpack.c.l.b16 %v3698
  %v3749 = vunpack.c.l.b16 %v3699
  %v3750 = vunpack.c.l.b16 %v3700
  %v3751 = vunpack.c.l.b16 %v3701
  %v3752 = vunpack.c.l.b16 %v3702
  %v3753 = vunpack.c.l.b16 %v3703
  %v3754 = vunpack.c.l.b16 %v3704
  %v3755 = vpack.c.b16 %v3731, %v3730
  %v3756 = vpack.c.b16 %v3733, %v3732
  %v3757 = vpack.c.b16 %v3735, %v3734
  %v3758 = vpack.c.b16 %v3737, %v3736
  %v3759 = vpack.c.b16 %v3739, %v3738
  %v3760 = vpack.c.b16 %v3741, %v3740
  %v3761 = vpack.c.b16 %v3743, %v3742
  %v3762 = vpack.c.b16 %v3745, %v3744
  %v3763 = vpack.c.b16 %v3747, %v3746
  %v3764 = vpack.c.b16 %v3749, %v3748
  %v3765 = vpack.c.b16 %v3751, %v3750
  %v3766 = vpack.c.b16 %v3753, %v3752
  %v3767 = vpack.c.b16 %v3754, %v3754
  %v3781 = vsel %vm2089, %v3767, 0
  %3783 = vmatprep.subr.bf16.mxu0 0
  %3784 = vmatpush1.bf16.msra.mxu0 %v3755
  %3785 = vmatprep.subr.bf16.mxu0 0
  %3786 = vmatpush1.bf16.msra.mxu0 %v3756
  %3787 = vmatprep.subr.bf16.mxu0 0
  %3788 = vmatpush1.bf16.msra.mxu0 %v3757
  %3789 = vmatprep.subr.bf16.mxu0 0
  %3790 = vmatpush1.bf16.msra.mxu0 %v3758
  %3791 = vmatprep.subr.bf16.mxu0 0
  %3792 = vmatpush1.bf16.msra.mxu0 %v3759
  %3793 = vmatprep.subr.bf16.mxu0 0
  %3794 = vmatpush1.bf16.msra.mxu0 %v3760
  %3795 = vmatprep.subr.bf16.mxu0 0
  %3796 = vmatpush1.bf16.msra.mxu0 %v3761
  %3797 = vmatprep.subr.bf16.mxu0 0
  %3798 = vmatpush1.bf16.msra.mxu0 %v3762
  %3799 = vmatprep.subr.bf16.mxu0 0
  %3800 = vmatpush1.bf16.msra.mxu0 %v3763
  %3801 = vmatprep.subr.bf16.mxu0 0
  %3802 = vmatpush1.bf16.msra.mxu0 %v3764
  %3803 = vmatprep.subr.bf16.mxu0 0
  %3804 = vmatpush1.bf16.msra.mxu0 %v3765
  %3805 = vmatprep.subr.bf16.mxu0 0
  %3806 = vmatpush1.bf16.msra.mxu0 %v3766
  %3807 = vmatprep.subr.bf16.mxu0 0
  %3808 = vmatpush1.bf16.msra.mxu0 %v3781
  %3809 = vmatprep.subr.bf16.mxu0 0
  %3810 = vmatpush1.bf16.msra.mxu0 0
  %3811 = vmatprep.subr.bf16.mxu0 0
  %3812 = vmatpush1.bf16.msra.mxu0 0
  %3813 = vmatprep.subr.bf16.mxu0 0
  %3814 = vmatpush1.bf16.msra.mxu0 0
  %3815 = vmatprep.mubr.bf16.mxu0 %v2078
  %3816 = vmatmul.mubr.bf16.gmra.mrb[0].mxu0 %v1968
  %v3817 = vpop.f32.mrb[0].mxu0
  %v3818 = vadd.f32 0.0, %v3817
  %v3819 = vpop.f32.mrb[0].mxu0
  %v3820 = vpop.f32.mrb[0].mxu0
  %v3821 = vadd.f32 0.0, %v3820
  %v3822 = vpop.f32.mrb[0].mxu0
  %3823 = vmatprep.mubr.bf16.mxu0 %v2081
  %3824 = vmatmul.mubr.bf16.gmra.mrb[0].mxu0 %v1970
  %v3825 = vpop.f32.mrb[0].mxu0
  %v3826 = vadd.f32 0.0, %v3825
  %v3827 = vpop.f32.mrb[0].mxu0
  %v3828 = vpop.f32.mrb[0].mxu0
  %v3829 = vadd.f32 0.0, %v3828
  %v3830 = vpop.f32.mrb[0].mxu0
  %3831 = vmatprep.mubr.bf16.mxu0 %v2084
  %3832 = vmatmul.mubr.bf16.gmra.mrb[0].mxu0 %v1972
  %v3833 = vpop.f32.mrb[0].mxu0
  %v3834 = vadd.f32 0.0, %v3833
  %v3835 = vpop.f32.mrb[0].mxu0
  %v3836 = vpop.f32.mrb[0].mxu0
  %v3837 = vadd.f32 0.0, %v3836
  %v3838 = vpop.f32.mrb[0].mxu0
  %3839 = vmatprep.mubr.bf16.mxu0 %v2087
  %3840 = vmatmul.mubr.bf16.gmra.mrb[0].mxu0 %v1974
  %v3841 = vpop.f32.mrb[0].mxu0
  %v3842 = vadd.f32 0.0, %v3841
  %v3843 = vpop.f32.mrb[0].mxu0
  %v3844 = vpop.f32.mrb[0].mxu0
  %v3845 = vadd.f32 0.0, %v3844
  %v3846 = vpop.f32.mrb[0].mxu0
  %3847 = vdwg.mxu0
  %s3848 = scalar_lea.vmem %s4, 1100
  %v3849 = vld [vmem:[%s3848] sm:$0xf]
  %v3850 = vld [vmem:[%s3848 + $0x4] sm:$0xf]
  %v3851 = vld [vmem:[%s3848 + $0x8] sm:$0xf]
  %v3852 = vld [vmem:[%s3848 + $0xc] sm:$0xf]
  %v3853 = vld [vmem:[%s3848 + $0x10] sm:$0xf]
  %v3854 = vld [vmem:[%s3848 + $0x14] sm:$0xf]
  %v3855 = vld [vmem:[%s3848 + $0x18] sm:$0xf]
  %v3856 = vld [vmem:[%s3848 + $0x1c] sm:$0xf]
  %v3857 = vld [vmem:[%s3848 + $0x20] sm:$0xf]
  %v3858 = vld [vmem:[%s3848 + $0x24] sm:$0xf]
  %v3859 = vld [vmem:[%s3848 + $0x28] sm:$0xf]
  %v3860 = vld [vmem:[%s3848 + $0x2c] sm:$0xf]
  %v3861 = vld [vmem:[%s3848 + $0x30] sm:$0xf]
  %v3862 = vld [vmem:[%s3848 + $0x34] sm:$0xf]
  %v3863 = vld [vmem:[%s3848 + $0x38] sm:$0xf]
  %v3864 = vld [vmem:[%s3848 + $0x3c] sm:$0xf]
  %v3865 = vld [vmem:[%s3848 + $0x40] sm:$0xf]
  %v3866 = vld [vmem:[%s3848 + $0x44] sm:$0xf]
  %v3867 = vld [vmem:[%s3848 + $0x48] sm:$0xf]
  %v3868 = vld [vmem:[%s3848 + $0x4c] sm:$0xf]
  %v3869 = vld [vmem:[%s3848 + $0x50] sm:$0xf]
  %v3870 = vld [vmem:[%s3848 + $0x54] sm:$0xf]
  %v3871 = vld [vmem:[%s3848 + $0x58] sm:$0xf]
  %v3872 = vld [vmem:[%s3848 + $0x5c] sm:$0xf]
  %v3873 = vld [vmem:[%s3848 + $0x60] sm:$0x3]
  %v3899 = vunpack.c.l.b16 %v3849
  %v3900 = vunpack.c.l.b16 %v3850
  %v3901 = vunpack.c.l.b16 %v3851
  %v3902 = vunpack.c.l.b16 %v3852
  %v3903 = vunpack.c.l.b16 %v3853
  %v3904 = vunpack.c.l.b16 %v3854
  %v3905 = vunpack.c.l.b16 %v3855
  %v3906 = vunpack.c.l.b16 %v3856
  %v3907 = vunpack.c.l.b16 %v3857
  %v3908 = vunpack.c.l.b16 %v3858
  %v3909 = vunpack.c.l.b16 %v3859
  %v3910 = vunpack.c.l.b16 %v3860
  %v3911 = vunpack.c.l.b16 %v3861
  %v3912 = vunpack.c.l.b16 %v3862
  %v3913 = vunpack.c.l.b16 %v3863
  %v3914 = vunpack.c.l.b16 %v3864
  %v3915 = vunpack.c.l.b16 %v3865
  %v3916 = vunpack.c.l.b16 %v3866
  %v3917 = vunpack.c.l.b16 %v3867
  %v3918 = vunpack.c.l.b16 %v3868
  %v3919 = vunpack.c.l.b16 %v3869
  %v3920 = vunpack.c.l.b16 %v3870
  %v3921 = vunpack.c.l.b16 %v3871
  %v3922 = vunpack.c.l.b16 %v3872
  %v3923 = vunpack.c.l.b16 %v3873
  %v3924 = vpack.c.b16 %v3900, %v3899
  %v3925 = vpack.c.b16 %v3902, %v3901
  %v3926 = vpack.c.b16 %v3904, %v3903
  %v3927 = vpack.c.b16 %v3906, %v3905
  %v3928 = vpack.c.b16 %v3908, %v3907
  %v3929 = vpack.c.b16 %v3910, %v3909
  %v3930 = vpack.c.b16 %v3912, %v3911
  %v3931 = vpack.c.b16 %v3914, %v3913
  %v3932 = vpack.c.b16 %v3916, %v3915
  %v3933 = vpack.c.b16 %v3918, %v3917
  %v3934 = vpack.c.b16 %v3920, %v3919
  %v3935 = vpack.c.b16 %v3922, %v3921
  %v3936 = vpack.c.b16 %v3923, %v3923
  %v3950 = vsel %vm2089, %v3936, 0
  %3952 = vmatprep.subr.bf16.mxu0 0
  %3953 = vmatpush1.bf16.msra.mxu0 %v3924
  %3954 = vmatprep.subr.bf16.mxu0 0
  %3955 = vmatpush1.bf16.msra.mxu0 %v3925
  %3956 = vmatprep.subr.bf16.mxu0 0
  %3957 = vmatpush1.bf16.msra.mxu0 %v3926
  %3958 = vmatprep.subr.bf16.mxu0 0
  %3959 = vmatpush1.bf16.msra.mxu0 %v3927
  %3960 = vmatprep.subr.bf16.mxu0 0
  %3961 = vmatpush1.bf16.msra.mxu0 %v3928
  %3962 = vmatprep.subr.bf16.mxu0 0
  %3963 = vmatpush1.bf16.msra.mxu0 %v3929
  %3964 = vmatprep.subr.bf16.mxu0 0
  %3965 = vmatpush1.bf16.msra.mxu0 %v3930
  %3966 = vmatprep.subr.bf16.mxu0 0
  %3967 = vmatpush1.bf16.msra.mxu0 %v3931
  %3968 = vmatprep.subr.bf16.mxu0 0
  %3969 = vmatpush1.bf16.msra.mxu0 %v3932
  %3970 = vmatprep.subr.bf16.mxu0 0
  %3971 = vmatpush1.bf16.msra.mxu0 %v3933
  %3972 = vmatprep.subr.bf16.mxu0 0
  %3973 = vmatpush1.bf16.msra.mxu0 %v3934
  %3974 = vmatprep.subr.bf16.mxu0 0
  %3975 = vmatpush1.bf16.msra.mxu0 %v3935
  %3976 = vmatprep.subr.bf16.mxu0 0
  %3977 = vmatpush1.bf16.msra.mxu0 %v3950
  %3978 = vmatprep.subr.bf16.mxu0 0
  %3979 = vmatpush1.bf16.msra.mxu0 0
  %3980 = vmatprep.subr.bf16.mxu0 0
  %3981 = vmatpush1.bf16.msra.mxu0 0
  %3982 = vmatprep.subr.bf16.mxu0 0
  %3983 = vmatpush1.bf16.msra.mxu0 0
  %3984 = vmatprep.mubr.bf16.mxu0 %v2078
  %3985 = vmatmul.mubr.bf16.gmra.mrb[0].mxu0 %v1968
  %v3986 = vpop.f32.mrb[0].mxu0
  %v3987 = vadd.f32 0.0, %v3986
  %v3988 = vpop.f32.mrb[0].mxu0
  %v3989 = vpop.f32.mrb[0].mxu0
  %v3990 = vadd.f32 0.0, %v3989
  %v3991 = vpop.f32.mrb[0].mxu0
  %3992 = vmatprep.mubr.bf16.mxu0 %v2081
  %3993 = vmatmul.mubr.bf16.gmra.mrb[0].mxu0 %v1970
  %v3994 = vpop.f32.mrb[0].mxu0
  %v3995 = vadd.f32 0.0, %v3994
  %v3996 = vpop.f32.mrb[0].mxu0
  %v3997 = vpop.f32.mrb[0].mxu0
  %v3998 = vadd.f32 0.0, %v3997
  %v3999 = vpop.f32.mrb[0].mxu0
  %4000 = vmatprep.mubr.bf16.mxu0 %v2084
  %4001 = vmatmul.mubr.bf16.gmra.mrb[0].mxu0 %v1972
  %v4002 = vpop.f32.mrb[0].mxu0
  %v4003 = vadd.f32 0.0, %v4002
  %v4004 = vpop.f32.mrb[0].mxu0
  %v4005 = vpop.f32.mrb[0].mxu0
  %v4006 = vadd.f32 0.0, %v4005
  %v4007 = vpop.f32.mrb[0].mxu0
  %4008 = vmatprep.mubr.bf16.mxu0 %v2087
  %4009 = vmatmul.mubr.bf16.gmra.mrb[0].mxu0 %v1974
  %v4010 = vpop.f32.mrb[0].mxu0
  %v4011 = vadd.f32 0.0, %v4010
  %v4012 = vpop.f32.mrb[0].mxu0
  %v4013 = vpop.f32.mrb[0].mxu0
  %v4014 = vadd.f32 0.0, %v4013
  %v4015 = vpop.f32.mrb[0].mxu0
  %4016 = vdwg.mxu0
  %s4017 = scalar_lea.vmem %s4, 1200
  %v4018 = vld [vmem:[%s4017] sm:$0xf]
  %v4019 = vld [vmem:[%s4017 + $0x4] sm:$0xf]
  %v4020 = vld [vmem:[%s4017 + $0x8] sm:$0xf]
  %v4021 = vld [vmem:[%s4017 + $0xc] sm:$0xf]
  %v4022 = vld [vmem:[%s4017 + $0x10] sm:$0xf]
  %v4023 = vld [vmem:[%s4017 + $0x14] sm:$0xf]
  %v4024 = vld [vmem:[%s4017 + $0x18] sm:$0xf]
  %v4025 = vld [vmem:[%s4017 + $0x1c] sm:$0xf]
  %v4026 = vld [vmem:[%s4017 + $0x20] sm:$0xf]
  %v4027 = vld [vmem:[%s4017 + $0x24] sm:$0xf]
  %v4028 = vld [vmem:[%s4017 + $0x28] sm:$0xf]
  %v4029 = vld [vmem:[%s4017 + $0x2c] sm:$0xf]
  %v4030 = vld [vmem:[%s4017 + $0x30] sm:$0xf]
  %v4031 = vld [vmem:[%s4017 + $0x34] sm:$0xf]
  %v4032 = vld [vmem:[%s4017 + $0x38] sm:$0xf]
  %v4033 = vld [vmem:[%s4017 + $0x3c] sm:$0xf]
  %v4034 = vld [vmem:[%s4017 + $0x40] sm:$0xf]
  %v4035 = vld [vmem:[%s4017 + $0x44] sm:$0xf]
  %v4036 = vld [vmem:[%s4017 + $0x48] sm:$0xf]
  %v4037 = vld [vmem:[%s4017 + $0x4c] sm:$0xf]
  %v4038 = vld [vmem:[%s4017 + $0x50] sm:$0xf]
  %v4039 = vld [vmem:[%s4017 + $0x54] sm:$0xf]
  %v4040 = vld [vmem:[%s4017 + $0x58] sm:$0xf]
  %v4041 = vld [vmem:[%s4017 + $0x5c] sm:$0xf]
  %v4042 = vld [vmem:[%s4017 + $0x60] sm:$0x3]
  %v4068 = vunpack.c.l.b16 %v4018
  %v4069 = vunpack.c.l.b16 %v4019
  %v4070 = vunpack.c.l.b16 %v4020
  %v4071 = vunpack.c.l.b16 %v4021
  %v4072 = vunpack.c.l.b16 %v4022
  %v4073 = vunpack.c.l.b16 %v4023
  %v4074 = vunpack.c.l.b16 %v4024
  %v4075 = vunpack.c.l.b16 %v4025
  %v4076 = vunpack.c.l.b16 %v4026
  %v4077 = vunpack.c.l.b16 %v4027
  %v4078 = vunpack.c.l.b16 %v4028
  %v4079 = vunpack.c.l.b16 %v4029
  %v4080 = vunpack.c.l.b16 %v4030
  %v4081 = vunpack.c.l.b16 %v4031
  %v4082 = vunpack.c.l.b16 %v4032
  %v4083 = vunpack.c.l.b16 %v4033
  %v4084 = vunpack.c.l.b16 %v4034
  %v4085 = vunpack.c.l.b16 %v4035
  %v4086 = vunpack.c.l.b16 %v4036
  %v4087 = vunpack.c.l.b16 %v4037
  %v4088 = vunpack.c.l.b16 %v4038
  %v4089 = vunpack.c.l.b16 %v4039
  %v4090 = vunpack.c.l.b16 %v4040
  %v4091 = vunpack.c.l.b16 %v4041
  %v4092 = vunpack.c.l.b16 %v4042
  %v4093 = vpack.c.b16 %v4069, %v4068
  %v4094 = vpack.c.b16 %v4071, %v4070
  %v4095 = vpack.c.b16 %v4073, %v4072
  %v4096 = vpack.c.b16 %v4075, %v4074
  %v4097 = vpack.c.b16 %v4077, %v4076
  %v4098 = vpack.c.b16 %v4079, %v4078
  %v4099 = vpack.c.b16 %v4081, %v4080
  %v4100 = vpack.c.b16 %v4083, %v4082
  %v4101 = vpack.c.b16 %v4085, %v4084
  %v4102 = vpack.c.b16 %v4087, %v4086
  %v4103 = vpack.c.b16 %v4089, %v4088
  %v4104 = vpack.c.b16 %v4091, %v4090
  %v4105 = vpack.c.b16 %v4092, %v4092
  %v4119 = vsel %vm2089, %v4105, 0
  %4121 = vmatprep.subr.bf16.mxu0 0
  %4122 = vmatpush1.bf16.msra.mxu0 %v4093
  %4123 = vmatprep.subr.bf16.mxu0 0
  %4124 = vmatpush1.bf16.msra.mxu0 %v4094
  %4125 = vmatprep.subr.bf16.mxu0 0
  %4126 = vmatpush1.bf16.msra.mxu0 %v4095
  %4127 = vmatprep.subr.bf16.mxu0 0
  %4128 = vmatpush1.bf16.msra.mxu0 %v4096
  %4129 = vmatprep.subr.bf16.mxu0 0
  %4130 = vmatpush1.bf16.msra.mxu0 %v4097
  %4131 = vmatprep.subr.bf16.mxu0 0
  %4132 = vmatpush1.bf16.msra.mxu0 %v4098
  %4133 = vmatprep.subr.bf16.mxu0 0
  %4134 = vmatpush1.bf16.msra.mxu0 %v4099
  %4135 = vmatprep.subr.bf16.mxu0 0
  %4136 = vmatpush1.bf16.msra.mxu0 %v4100
  %4137 = vmatprep.subr.bf16.mxu0 0
  %4138 = vmatpush1.bf16.msra.mxu0 %v4101
  %4139 = vmatprep.subr.bf16.mxu0 0
  %4140 = vmatpush1.bf16.msra.mxu0 %v4102
  %4141 = vmatprep.subr.bf16.mxu0 0
  %4142 = vmatpush1.bf16.msra.mxu0 %v4103
  %4143 = vmatprep.subr.bf16.mxu0 0
  %4144 = vmatpush1.bf16.msra.mxu0 %v4104
  %4145 = vmatprep.subr.bf16.mxu0 0
  %4146 = vmatpush1.bf16.msra.mxu0 %v4119
  %4147 = vmatprep.subr.bf16.mxu0 0
  %4148 = vmatpush1.bf16.msra.mxu0 0
  %4149 = vmatprep.subr.bf16.mxu0 0
  %4150 = vmatpush1.bf16.msra.mxu0 0
  %4151 = vmatprep.subr.bf16.mxu0 0
  %4152 = vmatpush1.bf16.msra.mxu0 0
  %4153 = vmatprep.mubr.bf16.mxu0 %v2078
  %4154 = vmatmul.mubr.bf16.gmra.mrb[0].mxu0 %v1968
  %v4155 = vpop.f32.mrb[0].mxu0
  %v4156 = vadd.f32 0.0, %v4155
  %v4157 = vpop.f32.mrb[0].mxu0
  %v4158 = vpop.f32.mrb[0].mxu0
  %v4159 = vadd.f32 0.0, %v4158
  %v4160 = vpop.f32.mrb[0].mxu0
  %4161 = vmatprep.mubr.bf16.mxu0 %v2081
  %4162 = vmatmul.mubr.bf16.gmra.mrb[0].mxu0 %v1970
  %v4163 = vpop.f32.mrb[0].mxu0
  %v4164 = vadd.f32 0.0, %v4163
  %v4165 = vpop.f32.mrb[0].mxu0
  %v4166 = vpop.f32.mrb[0].mxu0
  %v4167 = vadd.f32 0.0, %v4166
  %v4168 = vpop.f32.mrb[0].mxu0
  %4169 = vmatprep.mubr.bf16.mxu0 %v2084
  %4170 = vmatmul.mubr.bf16.gmra.mrb[0].mxu0 %v1972
  %v4171 = vpop.f32.mrb[0].mxu0
  %v4172 = vadd.f32 0.0, %v4171
  %v4173 = vpop.f32.mrb[0].mxu0
  %v4174 = vpop.f32.mrb[0].mxu0
  %v4175 = vadd.f32 0.0, %v4174
  %v4176 = vpop.f32.mrb[0].mxu0
  %4177 = vmatprep.mubr.bf16.mxu0 %v2087
  %4178 = vmatmul.mubr.bf16.gmra.mrb[0].mxu0 %v1974
  %v4179 = vpop.f32.mrb[0].mxu0
  %v4180 = vadd.f32 0.0, %v4179
  %v4181 = vpop.f32.mrb[0].mxu0
  %v4182 = vpop.f32.mrb[0].mxu0
  %v4183 = vadd.f32 0.0, %v4182
  %v4184 = vpop.f32.mrb[0].mxu0
  %4185 = vdwg.mxu0
  %s4186 = scalar_lea.vmem %s4, 1300
  %v4187 = vld [vmem:[%s4186] sm:$0xf]
  %v4188 = vld [vmem:[%s4186 + $0x4] sm:$0xf]
  %v4189 = vld [vmem:[%s4186 + $0x8] sm:$0xf]
  %v4190 = vld [vmem:[%s4186 + $0xc] sm:$0xf]
  %v4191 = vld [vmem:[%s4186 + $0x10] sm:$0xf]
  %v4192 = vld [vmem:[%s4186 + $0x14] sm:$0xf]
  %v4193 = vld [vmem:[%s4186 + $0x18] sm:$0xf]
  %v4194 = vld [vmem:[%s4186 + $0x1c] sm:$0xf]
  %v4195 = vld [vmem:[%s4186 + $0x20] sm:$0xf]
  %v4196 = vld [vmem:[%s4186 + $0x24] sm:$0xf]
  %v4197 = vld [vmem:[%s4186 + $0x28] sm:$0xf]
  %v4198 = vld [vmem:[%s4186 + $0x2c] sm:$0xf]
  %v4199 = vld [vmem:[%s4186 + $0x30] sm:$0xf]
  %v4200 = vld [vmem:[%s4186 + $0x34] sm:$0xf]
  %v4201 = vld [vmem:[%s4186 + $0x38] sm:$0xf]
  %v4202 = vld [vmem:[%s4186 + $0x3c] sm:$0xf]
  %v4203 = vld [vmem:[%s4186 + $0x40] sm:$0xf]
  %v4204 = vld [vmem:[%s4186 + $0x44] sm:$0xf]
  %v4205 = vld [vmem:[%s4186 + $0x48] sm:$0xf]
  %v4206 = vld [vmem:[%s4186 + $0x4c] sm:$0xf]
  %v4207 = vld [vmem:[%s4186 + $0x50] sm:$0xf]
  %v4208 = vld [vmem:[%s4186 + $0x54] sm:$0xf]
  %v4209 = vld [vmem:[%s4186 + $0x58] sm:$0xf]
  %v4210 = vld [vmem:[%s4186 + $0x5c] sm:$0xf]
  %v4211 = vld [vmem:[%s4186 + $0x60] sm:$0x3]
  %v4237 = vunpack.c.l.b16 %v4187
  %v4238 = vunpack.c.l.b16 %v4188
  %v4239 = vunpack.c.l.b16 %v4189
  %v4240 = vunpack.c.l.b16 %v4190
  %v4241 = vunpack.c.l.b16 %v4191
  %v4242 = vunpack.c.l.b16 %v4192
  %v4243 = vunpack.c.l.b16 %v4193
  %v4244 = vunpack.c.l.b16 %v4194
  %v4245 = vunpack.c.l.b16 %v4195
  %v4246 = vunpack.c.l.b16 %v4196
  %v4247 = vunpack.c.l.b16 %v4197
  %v4248 = vunpack.c.l.b16 %v4198
  %v4249 = vunpack.c.l.b16 %v4199
  %v4250 = vunpack.c.l.b16 %v4200
  %v4251 = vunpack.c.l.b16 %v4201
  %v4252 = vunpack.c.l.b16 %v4202
  %v4253 = vunpack.c.l.b16 %v4203
  %v4254 = vunpack.c.l.b16 %v4204
  %v4255 = vunpack.c.l.b16 %v4205
  %v4256 = vunpack.c.l.b16 %v4206
  %v4257 = vunpack.c.l.b16 %v4207
  %v4258 = vunpack.c.l.b16 %v4208
  %v4259 = vunpack.c.l.b16 %v4209
  %v4260 = vunpack.c.l.b16 %v4210
  %v4261 = vunpack.c.l.b16 %v4211
  %v4262 = vpack.c.b16 %v4238, %v4237
  %v4263 = vpack.c.b16 %v4240, %v4239
  %v4264 = vpack.c.b16 %v4242, %v4241
  %v4265 = vpack.c.b16 %v4244, %v4243
  %v4266 = vpack.c.b16 %v4246, %v4245
  %v4267 = vpack.c.b16 %v4248, %v4247
  %v4268 = vpack.c.b16 %v4250, %v4249
  %v4269 = vpack.c.b16 %v4252, %v4251
  %v4270 = vpack.c.b16 %v4254, %v4253
  %v4271 = vpack.c.b16 %v4256, %v4255
  %v4272 = vpack.c.b16 %v4258, %v4257
  %v4273 = vpack.c.b16 %v4260, %v4259
  %v4274 = vpack.c.b16 %v4261, %v4261
  %v4288 = vsel %vm2089, %v4274, 0
  %4290 = vmatprep.subr.bf16.mxu0 0
  %4291 = vmatpush1.bf16.msra.mxu0 %v4262
  %4292 = vmatprep.subr.bf16.mxu0 0
  %4293 = vmatpush1.bf16.msra.mxu0 %v4263
  %4294 = vmatprep.subr.bf16.mxu0 0
  %4295 = vmatpush1.bf16.msra.mxu0 %v4264
  %4296 = vmatprep.subr.bf16.mxu0 0
  %4297 = vmatpush1.bf16.msra.mxu0 %v4265
  %4298 = vmatprep.subr.bf16.mxu0 0
  %4299 = vmatpush1.bf16.msra.mxu0 %v4266
  %4300 = vmatprep.subr.bf16.mxu0 0
  %4301 = vmatpush1.bf16.msra.mxu0 %v4267
  %4302 = vmatprep.subr.bf16.mxu0 0
  %4303 = vmatpush1.bf16.msra.mxu0 %v4268
  %4304 = vmatprep.subr.bf16.mxu0 0
  %4305 = vmatpush1.bf16.msra.mxu0 %v4269
  %4306 = vmatprep.subr.bf16.mxu0 0
  %4307 = vmatpush1.bf16.msra.mxu0 %v4270
  %4308 = vmatprep.subr.bf16.mxu0 0
  %4309 = vmatpush1.bf16.msra.mxu0 %v4271
  %4310 = vmatprep.subr.bf16.mxu0 0
  %4311 = vmatpush1.bf16.msra.mxu0 %v4272
  %4312 = vmatprep.subr.bf16.mxu0 0
  %4313 = vmatpush1.bf16.msra.mxu0 %v4273
  %4314 = vmatprep.subr.bf16.mxu0 0
  %4315 = vmatpush1.bf16.msra.mxu0 %v4288
  %4316 = vmatprep.subr.bf16.mxu0 0
  %4317 = vmatpush1.bf16.msra.mxu0 0
  %4318 = vmatprep.subr.bf16.mxu0 0
  %4319 = vmatpush1.bf16.msra.mxu0 0
  %4320 = vmatprep.subr.bf16.mxu0 0
  %4321 = vmatpush1.bf16.msra.mxu0 0
  %4322 = vmatprep.mubr.bf16.mxu0 %v2078
  %4323 = vmatmul.mubr.bf16.gmra.mrb[0].mxu0 %v1968
  %v4324 = vpop.f32.mrb[0].mxu0
  %v4325 = vadd.f32 0.0, %v4324
  %v4326 = vpop.f32.mrb[0].mxu0
  %v4327 = vpop.f32.mrb[0].mxu0
  %v4328 = vadd.f32 0.0, %v4327
  %v4329 = vpop.f32.mrb[0].mxu0
  %4330 = vmatprep.mubr.bf16.mxu0 %v2081
  %4331 = vmatmul.mubr.bf16.gmra.mrb[0].mxu0 %v1970
  %v4332 = vpop.f32.mrb[0].mxu0
  %v4333 = vadd.f32 0.0, %v4332
  %v4334 = vpop.f32.mrb[0].mxu0
  %v4335 = vpop.f32.mrb[0].mxu0
  %v4336 = vadd.f32 0.0, %v4335
  %v4337 = vpop.f32.mrb[0].mxu0
  %4338 = vmatprep.mubr.bf16.mxu0 %v2084
  %4339 = vmatmul.mubr.bf16.gmra.mrb[0].mxu0 %v1972
  %v4340 = vpop.f32.mrb[0].mxu0
  %v4341 = vadd.f32 0.0, %v4340
  %v4342 = vpop.f32.mrb[0].mxu0
  %v4343 = vpop.f32.mrb[0].mxu0
  %v4344 = vadd.f32 0.0, %v4343
  %v4345 = vpop.f32.mrb[0].mxu0
  %4346 = vmatprep.mubr.bf16.mxu0 %v2087
  %4347 = vmatmul.mubr.bf16.gmra.mrb[0].mxu0 %v1974
  %v4348 = vpop.f32.mrb[0].mxu0
  %v4349 = vadd.f32 0.0, %v4348
  %v4350 = vpop.f32.mrb[0].mxu0
  %v4351 = vpop.f32.mrb[0].mxu0
  %v4352 = vadd.f32 0.0, %v4351
  %v4353 = vpop.f32.mrb[0].mxu0
  %4354 = vdwg.mxu0
  %s4355 = scalar_lea.vmem %s4, 1400
  %v4356 = vld [vmem:[%s4355] sm:$0xf]
  %v4357 = vld [vmem:[%s4355 + $0x4] sm:$0xf]
  %v4358 = vld [vmem:[%s4355 + $0x8] sm:$0xf]
  %v4359 = vld [vmem:[%s4355 + $0xc] sm:$0xf]
  %v4360 = vld [vmem:[%s4355 + $0x10] sm:$0xf]
  %v4361 = vld [vmem:[%s4355 + $0x14] sm:$0xf]
  %v4362 = vld [vmem:[%s4355 + $0x18] sm:$0xf]
  %v4363 = vld [vmem:[%s4355 + $0x1c] sm:$0xf]
  %v4364 = vld [vmem:[%s4355 + $0x20] sm:$0xf]
  %v4365 = vld [vmem:[%s4355 + $0x24] sm:$0xf]
  %v4366 = vld [vmem:[%s4355 + $0x28] sm:$0xf]
  %v4367 = vld [vmem:[%s4355 + $0x2c] sm:$0xf]
  %v4368 = vld [vmem:[%s4355 + $0x30] sm:$0xf]
  %v4369 = vld [vmem:[%s4355 + $0x34] sm:$0xf]
  %v4370 = vld [vmem:[%s4355 + $0x38] sm:$0xf]
  %v4371 = vld [vmem:[%s4355 + $0x3c] sm:$0xf]
  %v4372 = vld [vmem:[%s4355 + $0x40] sm:$0xf]
  %v4373 = vld [vmem:[%s4355 + $0x44] sm:$0xf]
  %v4374 = vld [vmem:[%s4355 + $0x48] sm:$0xf]
  %v4375 = vld [vmem:[%s4355 + $0x4c] sm:$0xf]
  %v4376 = vld [vmem:[%s4355 + $0x50] sm:$0xf]
  %v4377 = vld [vmem:[%s4355 + $0x54] sm:$0xf]
  %v4378 = vld [vmem:[%s4355 + $0x58] sm:$0xf]
  %v4379 = vld [vmem:[%s4355 + $0x5c] sm:$0xf]
  %v4380 = vld [vmem:[%s4355 + $0x60] sm:$0x3]
  %v4406 = vunpack.c.l.b16 %v4356
  %v4407 = vunpack.c.l.b16 %v4357
  %v4408 = vunpack.c.l.b16 %v4358
  %v4409 = vunpack.c.l.b16 %v4359
  %v4410 = vunpack.c.l.b16 %v4360
  %v4411 = vunpack.c.l.b16 %v4361
  %v4412 = vunpack.c.l.b16 %v4362
  %v4413 = vunpack.c.l.b16 %v4363
  %v4414 = vunpack.c.l.b16 %v4364
  %v4415 = vunpack.c.l.b16 %v4365
  %v4416 = vunpack.c.l.b16 %v4366
  %v4417 = vunpack.c.l.b16 %v4367
  %v4418 = vunpack.c.l.b16 %v4368
  %v4419 = vunpack.c.l.b16 %v4369
  %v4420 = vunpack.c.l.b16 %v4370
  %v4421 = vunpack.c.l.b16 %v4371
  %v4422 = vunpack.c.l.b16 %v4372
  %v4423 = vunpack.c.l.b16 %v4373
  %v4424 = vunpack.c.l.b16 %v4374
  %v4425 = vunpack.c.l.b16 %v4375
  %v4426 = vunpack.c.l.b16 %v4376
  %v4427 = vunpack.c.l.b16 %v4377
  %v4428 = vunpack.c.l.b16 %v4378
  %v4429 = vunpack.c.l.b16 %v4379
  %v4430 = vunpack.c.l.b16 %v4380
  %v4431 = vpack.c.b16 %v4407, %v4406
  %v4432 = vpack.c.b16 %v4409, %v4408
  %v4433 = vpack.c.b16 %v4411, %v4410
  %v4434 = vpack.c.b16 %v4413, %v4412
  %v4435 = vpack.c.b16 %v4415, %v4414
  %v4436 = vpack.c.b16 %v4417, %v4416
  %v4437 = vpack.c.b16 %v4419, %v4418
  %v4438 = vpack.c.b16 %v4421, %v4420
  %v4439 = vpack.c.b16 %v4423, %v4422
  %v4440 = vpack.c.b16 %v4425, %v4424
  %v4441 = vpack.c.b16 %v4427, %v4426
  %v4442 = vpack.c.b16 %v4429, %v4428
  %v4443 = vpack.c.b16 %v4430, %v4430
  %v4457 = vsel %vm2089, %v4443, 0
  %4459 = vmatprep.subr.bf16.mxu0 0
  %4460 = vmatpush1.bf16.msra.mxu0 %v4431
  %4461 = vmatprep.subr.bf16.mxu0 0
  %4462 = vmatpush1.bf16.msra.mxu0 %v4432
  %4463 = vmatprep.subr.bf16.mxu0 0
  %4464 = vmatpush1.bf16.msra.mxu0 %v4433
  %4465 = vmatprep.subr.bf16.mxu0 0
  %4466 = vmatpush1.bf16.msra.mxu0 %v4434
  %4467 = vmatprep.subr.bf16.mxu0 0
  %4468 = vmatpush1.bf16.msra.mxu0 %v4435
  %4469 = vmatprep.subr.bf16.mxu0 0
  %4470 = vmatpush1.bf16.msra.mxu0 %v4436
  %4471 = vmatprep.subr.bf16.mxu0 0
  %4472 = vmatpush1.bf16.msra.mxu0 %v4437
  %4473 = vmatprep.subr.bf16.mxu0 0
  %4474 = vmatpush1.bf16.msra.mxu0 %v4438
  %4475 = vmatprep.subr.bf16.mxu0 0
  %4476 = vmatpush1.bf16.msra.mxu0 %v4439
  %4477 = vmatprep.subr.bf16.mxu0 0
  %4478 = vmatpush1.bf16.msra.mxu0 %v4440
  %4479 = vmatprep.subr.bf16.mxu0 0
  %4480 = vmatpush1.bf16.msra.mxu0 %v4441
  %4481 = vmatprep.subr.bf16.mxu0 0
  %4482 = vmatpush1.bf16.msra.mxu0 %v4442
  %4483 = vmatprep.subr.bf16.mxu0 0
  %4484 = vmatpush1.bf16.msra.mxu0 %v4457
  %4485 = vmatprep.subr.bf16.mxu0 0
  %4486 = vmatpush1.bf16.msra.mxu0 0
  %4487 = vmatprep.subr.bf16.mxu0 0
  %4488 = vmatpush1.bf16.msra.mxu0 0
  %4489 = vmatprep.subr.bf16.mxu0 0
  %4490 = vmatpush1.bf16.msra.mxu0 0
  %4491 = vmatprep.mubr.bf16.mxu0 %v2078
  %4492 = vmatmul.mubr.bf16.gmra.mrb[0].mxu0 %v1968
  %v4493 = vpop.f32.mrb[0].mxu0
  %v4494 = vadd.f32 0.0, %v4493
  %v4495 = vpop.f32.mrb[0].mxu0
  %v4496 = vpop.f32.mrb[0].mxu0
  %v4497 = vadd.f32 0.0, %v4496
  %v4498 = vpop.f32.mrb[0].mxu0
  %4499 = vmatprep.mubr.bf16.mxu0 %v2081
  %4500 = vmatmul.mubr.bf16.gmra.mrb[0].mxu0 %v1970
  %v4501 = vpop.f32.mrb[0].mxu0
  %v4502 = vadd.f32 0.0, %v4501
  %v4503 = vpop.f32.mrb[0].mxu0
  %v4504 = vpop.f32.mrb[0].mxu0
  %v4505 = vadd.f32 0.0, %v4504
  %v4506 = vpop.f32.mrb[0].mxu0
  %4507 = vmatprep.mubr.bf16.mxu0 %v2084
  %4508 = vmatmul.mubr.bf16.gmra.mrb[0].mxu0 %v1972
  %v4509 = vpop.f32.mrb[0].mxu0
  %v4510 = vadd.f32 0.0, %v4509
  %v4511 = vpop.f32.mrb[0].mxu0
  %v4512 = vpop.f32.mrb[0].mxu0
  %v4513 = vadd.f32 0.0, %v4512
  %v4514 = vpop.f32.mrb[0].mxu0
  %4515 = vmatprep.mubr.bf16.mxu0 %v2087
  %4516 = vmatmul.mubr.bf16.gmra.mrb[0].mxu0 %v1974
  %v4517 = vpop.f32.mrb[0].mxu0
  %v4518 = vadd.f32 0.0, %v4517
  %v4519 = vpop.f32.mrb[0].mxu0
  %v4520 = vpop.f32.mrb[0].mxu0
  %v4521 = vadd.f32 0.0, %v4520
  %v4522 = vpop.f32.mrb[0].mxu0
  %4523 = vdwg.mxu0
  %s4524 = scalar_lea.vmem %s4, 1500
  %v4525 = vld [vmem:[%s4524] sm:$0xf]
  %v4526 = vld [vmem:[%s4524 + $0x4] sm:$0xf]
  %v4527 = vld [vmem:[%s4524 + $0x8] sm:$0xf]
  %v4528 = vld [vmem:[%s4524 + $0xc] sm:$0xf]
  %v4529 = vld [vmem:[%s4524 + $0x10] sm:$0xf]
  %v4530 = vld [vmem:[%s4524 + $0x14] sm:$0xf]
  %v4531 = vld [vmem:[%s4524 + $0x18] sm:$0xf]
  %v4532 = vld [vmem:[%s4524 + $0x1c] sm:$0xf]
  %v4533 = vld [vmem:[%s4524 + $0x20] sm:$0xf]
  %v4534 = vld [vmem:[%s4524 + $0x24] sm:$0xf]
  %v4535 = vld [vmem:[%s4524 + $0x28] sm:$0xf]
  %v4536 = vld [vmem:[%s4524 + $0x2c] sm:$0xf]
  %v4537 = vld [vmem:[%s4524 + $0x30] sm:$0xf]
  %v4538 = vld [vmem:[%s4524 + $0x34] sm:$0xf]
  %v4539 = vld [vmem:[%s4524 + $0x38] sm:$0xf]
  %v4540 = vld [vmem:[%s4524 + $0x3c] sm:$0xf]
  %v4541 = vld [vmem:[%s4524 + $0x40] sm:$0xf]
  %v4542 = vld [vmem:[%s4524 + $0x44] sm:$0xf]
  %v4543 = vld [vmem:[%s4524 + $0x48] sm:$0xf]
  %v4544 = vld [vmem:[%s4524 + $0x4c] sm:$0xf]
  %v4545 = vld [vmem:[%s4524 + $0x50] sm:$0xf]
  %v4546 = vld [vmem:[%s4524 + $0x54] sm:$0xf]
  %v4547 = vld [vmem:[%s4524 + $0x58] sm:$0xf]
  %v4548 = vld [vmem:[%s4524 + $0x5c] sm:$0xf]
  %v4549 = vld [vmem:[%s4524 + $0x60] sm:$0x3]
  %v4575 = vunpack.c.l.b16 %v4525
  %v4576 = vunpack.c.l.b16 %v4526
  %v4577 = vunpack.c.l.b16 %v4527
  %v4578 = vunpack.c.l.b16 %v4528
  %v4579 = vunpack.c.l.b16 %v4529
  %v4580 = vunpack.c.l.b16 %v4530
  %v4581 = vunpack.c.l.b16 %v4531
  %v4582 = vunpack.c.l.b16 %v4532
  %v4583 = vunpack.c.l.b16 %v4533
  %v4584 = vunpack.c.l.b16 %v4534
  %v4585 = vunpack.c.l.b16 %v4535
  %v4586 = vunpack.c.l.b16 %v4536
  %v4587 = vunpack.c.l.b16 %v4537
  %v4588 = vunpack.c.l.b16 %v4538
  %v4589 = vunpack.c.l.b16 %v4539
  %v4590 = vunpack.c.l.b16 %v4540
  %v4591 = vunpack.c.l.b16 %v4541
  %v4592 = vunpack.c.l.b16 %v4542
  %v4593 = vunpack.c.l.b16 %v4543
  %v4594 = vunpack.c.l.b16 %v4544
  %v4595 = vunpack.c.l.b16 %v4545
  %v4596 = vunpack.c.l.b16 %v4546
  %v4597 = vunpack.c.l.b16 %v4547
  %v4598 = vunpack.c.l.b16 %v4548
  %v4599 = vunpack.c.l.b16 %v4549
  %v4600 = vpack.c.b16 %v4576, %v4575
  %v4601 = vpack.c.b16 %v4578, %v4577
  %v4602 = vpack.c.b16 %v4580, %v4579
  %v4603 = vpack.c.b16 %v4582, %v4581
  %v4604 = vpack.c.b16 %v4584, %v4583
  %v4605 = vpack.c.b16 %v4586, %v4585
  %v4606 = vpack.c.b16 %v4588, %v4587
  %v4607 = vpack.c.b16 %v4590, %v4589
  %v4608 = vpack.c.b16 %v4592, %v4591
  %v4609 = vpack.c.b16 %v4594, %v4593
  %v4610 = vpack.c.b16 %v4596, %v4595
  %v4611 = vpack.c.b16 %v4598, %v4597
  %v4612 = vpack.c.b16 %v4599, %v4599
  %v4626 = vsel %vm2089, %v4612, 0
  %4628 = vmatprep.subr.bf16.mxu0 0
  %4629 = vmatpush1.bf16.msra.mxu0 %v4600
  %4630 = vmatprep.subr.bf16.mxu0 0
  %4631 = vmatpush1.bf16.msra.mxu0 %v4601
  %4632 = vmatprep.subr.bf16.mxu0 0
  %4633 = vmatpush1.bf16.msra.mxu0 %v4602
  %4634 = vmatprep.subr.bf16.mxu0 0
  %4635 = vmatpush1.bf16.msra.mxu0 %v4603
  %4636 = vmatprep.subr.bf16.mxu0 0
  %4637 = vmatpush1.bf16.msra.mxu0 %v4604
  %4638 = vmatprep.subr.bf16.mxu0 0
  %4639 = vmatpush1.bf16.msra.mxu0 %v4605
  %4640 = vmatprep.subr.bf16.mxu0 0
  %4641 = vmatpush1.bf16.msra.mxu0 %v4606
  %4642 = vmatprep.subr.bf16.mxu0 0
  %4643 = vmatpush1.bf16.msra.mxu0 %v4607
  %4644 = vmatprep.subr.bf16.mxu0 0
  %4645 = vmatpush1.bf16.msra.mxu0 %v4608
  %4646 = vmatprep.subr.bf16.mxu0 0
  %4647 = vmatpush1.bf16.msra.mxu0 %v4609
  %4648 = vmatprep.subr.bf16.mxu0 0
  %4649 = vmatpush1.bf16.msra.mxu0 %v4610
  %4650 = vmatprep.subr.bf16.mxu0 0
  %4651 = vmatpush1.bf16.msra.mxu0 %v4611
  %4652 = vmatprep.subr.bf16.mxu0 0
  %4653 = vmatpush1.bf16.msra.mxu0 %v4626
  %4654 = vmatprep.subr.bf16.mxu0 0
  %4655 = vmatpush1.bf16.msra.mxu0 0
  %4656 = vmatprep.subr.bf16.mxu0 0
  %4657 = vmatpush1.bf16.msra.mxu0 0
  %4658 = vmatprep.subr.bf16.mxu0 0
  %4659 = vmatpush1.bf16.msra.mxu0 0
  %4660 = vmatprep.mubr.bf16.mxu0 %v2078
  %4661 = vmatmul.mubr.bf16.gmra.mrb[0].mxu0 %v1968
  %v4662 = vpop.f32.mrb[0].mxu0
  %v4663 = vadd.f32 0.0, %v4662
  %v4664 = vpop.f32.mrb[0].mxu0
  %v4665 = vpop.f32.mrb[0].mxu0
  %v4666 = vadd.f32 0.0, %v4665
  %v4667 = vpop.f32.mrb[0].mxu0
  %4668 = vmatprep.mubr.bf16.mxu0 %v2081
  %4669 = vmatmul.mubr.bf16.gmra.mrb[0].mxu0 %v1970
  %v4670 = vpop.f32.mrb[0].mxu0
  %v4671 = vadd.f32 0.0, %v4670
  %v4672 = vpop.f32.mrb[0].mxu0
  %v4673 = vpop.f32.mrb[0].mxu0
  %v4674 = vadd.f32 0.0, %v4673
  %v4675 = vpop.f32.mrb[0].mxu0
  %4676 = vmatprep.mubr.bf16.mxu0 %v2084
  %4677 = vmatmul.mubr.bf16.gmra.mrb[0].mxu0 %v1972
  %v4678 = vpop.f32.mrb[0].mxu0
  %v4679 = vadd.f32 0.0, %v4678
  %v4680 = vpop.f32.mrb[0].mxu0
  %v4681 = vpop.f32.mrb[0].mxu0
  %v4682 = vadd.f32 0.0, %v4681
  %v4683 = vpop.f32.mrb[0].mxu0
  %4684 = vmatprep.mubr.bf16.mxu0 %v2087
  %4685 = vmatmul.mubr.bf16.gmra.mrb[0].mxu0 %v1974
  %v4686 = vpop.f32.mrb[0].mxu0
  %v4687 = vadd.f32 0.0, %v4686
  %v4688 = vpop.f32.mrb[0].mxu0
  %v4689 = vpop.f32.mrb[0].mxu0
  %v4690 = vadd.f32 0.0, %v4689
  %v4691 = vpop.f32.mrb[0].mxu0
  %4692 = vdwg.mxu0
  %s4693 = scalar_lea.vmem %s4, 1600
  %v4694 = vld [vmem:[%s4693] sm:$0xf]
  %v4695 = vld [vmem:[%s4693 + $0x4] sm:$0xf]
  %v4696 = vld [vmem:[%s4693 + $0x8] sm:$0xf]
  %v4697 = vld [vmem:[%s4693 + $0xc] sm:$0xf]
  %v4698 = vld [vmem:[%s4693 + $0x10] sm:$0xf]
  %v4699 = vld [vmem:[%s4693 + $0x14] sm:$0xf]
  %v4700 = vld [vmem:[%s4693 + $0x18] sm:$0xf]
  %v4701 = vld [vmem:[%s4693 + $0x1c] sm:$0xf]
  %v4702 = vld [vmem:[%s4693 + $0x20] sm:$0xf]
  %v4703 = vld [vmem:[%s4693 + $0x24] sm:$0xf]
  %v4704 = vld [vmem:[%s4693 + $0x28] sm:$0xf]
  %v4705 = vld [vmem:[%s4693 + $0x2c] sm:$0xf]
  %v4706 = vld [vmem:[%s4693 + $0x30] sm:$0xf]
  %v4707 = vld [vmem:[%s4693 + $0x34] sm:$0xf]
  %v4708 = vld [vmem:[%s4693 + $0x38] sm:$0xf]
  %v4709 = vld [vmem:[%s4693 + $0x3c] sm:$0xf]
  %v4710 = vld [vmem:[%s4693 + $0x40] sm:$0xf]
  %v4711 = vld [vmem:[%s4693 + $0x44] sm:$0xf]
  %v4712 = vld [vmem:[%s4693 + $0x48] sm:$0xf]
  %v4713 = vld [vmem:[%s4693 + $0x4c] sm:$0xf]
  %v4714 = vld [vmem:[%s4693 + $0x50] sm:$0xf]
  %v4715 = vld [vmem:[%s4693 + $0x54] sm:$0xf]
  %v4716 = vld [vmem:[%s4693 + $0x58] sm:$0xf]
  %v4717 = vld [vmem:[%s4693 + $0x5c] sm:$0xf]
  %v4718 = vld [vmem:[%s4693 + $0x60] sm:$0x3]
  %v4744 = vunpack.c.l.b16 %v4694
  %v4745 = vunpack.c.l.b16 %v4695
  %v4746 = vunpack.c.l.b16 %v4696
  %v4747 = vunpack.c.l.b16 %v4697
  %v4748 = vunpack.c.l.b16 %v4698
  %v4749 = vunpack.c.l.b16 %v4699
  %v4750 = vunpack.c.l.b16 %v4700
  %v4751 = vunpack.c.l.b16 %v4701
  %v4752 = vunpack.c.l.b16 %v4702
  %v4753 = vunpack.c.l.b16 %v4703
  %v4754 = vunpack.c.l.b16 %v4704
  %v4755 = vunpack.c.l.b16 %v4705
  %v4756 = vunpack.c.l.b16 %v4706
  %v4757 = vunpack.c.l.b16 %v4707
  %v4758 = vunpack.c.l.b16 %v4708
  %v4759 = vunpack.c.l.b16 %v4709
  %v4760 = vunpack.c.l.b16 %v4710
  %v4761 = vunpack.c.l.b16 %v4711
  %v4762 = vunpack.c.l.b16 %v4712
  %v4763 = vunpack.c.l.b16 %v4713
  %v4764 = vunpack.c.l.b16 %v4714
  %v4765 = vunpack.c.l.b16 %v4715
  %v4766 = vunpack.c.l.b16 %v4716
  %v4767 = vunpack.c.l.b16 %v4717
  %v4768 = vunpack.c.l.b16 %v4718
  %v4769 = vpack.c.b16 %v4745, %v4744
  %v4770 = vpack.c.b16 %v4747, %v4746
  %v4771 = vpack.c.b16 %v4749, %v4748
  %v4772 = vpack.c.b16 %v4751, %v4750
  %v4773 = vpack.c.b16 %v4753, %v4752
  %v4774 = vpack.c.b16 %v4755, %v4754
  %v4775 = vpack.c.b16 %v4757, %v4756
  %v4776 = vpack.c.b16 %v4759, %v4758
  %v4777 = vpack.c.b16 %v4761, %v4760
  %v4778 = vpack.c.b16 %v4763, %v4762
  %v4779 = vpack.c.b16 %v4765, %v4764
  %v4780 = vpack.c.b16 %v4767, %v4766
  %v4781 = vpack.c.b16 %v4768, %v4768
  %v4795 = vsel %vm2089, %v4781, 0
  %4797 = vmatprep.subr.bf16.mxu0 0
  %4798 = vmatpush1.bf16.msra.mxu0 %v4769
  %4799 = vmatprep.subr.bf16.mxu0 0
  %4800 = vmatpush1.bf16.msra.mxu0 %v4770
  %4801 = vmatprep.subr.bf16.mxu0 0
  %4802 = vmatpush1.bf16.msra.mxu0 %v4771
  %4803 = vmatprep.subr.bf16.mxu0 0
  %4804 = vmatpush1.bf16.msra.mxu0 %v4772
  %4805 = vmatprep.subr.bf16.mxu0 0
  %4806 = vmatpush1.bf16.msra.mxu0 %v4773
  %4807 = vmatprep.subr.bf16.mxu0 0
  %4808 = vmatpush1.bf16.msra.mxu0 %v4774
  %4809 = vmatprep.subr.bf16.mxu0 0
  %4810 = vmatpush1.bf16.msra.mxu0 %v4775
  %4811 = vmatprep.subr.bf16.mxu0 0
  %4812 = vmatpush1.bf16.msra.mxu0 %v4776
  %4813 = vmatprep.subr.bf16.mxu0 0
  %4814 = vmatpush1.bf16.msra.mxu0 %v4777
  %4815 = vmatprep.subr.bf16.mxu0 0
  %4816 = vmatpush1.bf16.msra.mxu0 %v4778
  %4817 = vmatprep.subr.bf16.mxu0 0
  %4818 = vmatpush1.bf16.msra.mxu0 %v4779
  %4819 = vmatprep.subr.bf16.mxu0 0
  %4820 = vmatpush1.bf16.msra.mxu0 %v4780
  %4821 = vmatprep.subr.bf16.mxu0 0
  %4822 = vmatpush1.bf16.msra.mxu0 %v4795
  %4823 = vmatprep.subr.bf16.mxu0 0
  %4824 = vmatpush1.bf16.msra.mxu0 0
  %4825 = vmatprep.subr.bf16.mxu0 0
  %4826 = vmatpush1.bf16.msra.mxu0 0
  %4827 = vmatprep.subr.bf16.mxu0 0
  %4828 = vmatpush1.bf16.msra.mxu0 0
  %4829 = vmatprep.mubr.bf16.mxu0 %v2078
  %4830 = vmatmul.mubr.bf16.gmra.mrb[0].mxu0 %v1968
  %v4831 = vpop.f32.mrb[0].mxu0
  %v4832 = vadd.f32 0.0, %v4831
  %v4833 = vpop.f32.mrb[0].mxu0
  %v4834 = vpop.f32.mrb[0].mxu0
  %v4835 = vadd.f32 0.0, %v4834
  %v4836 = vpop.f32.mrb[0].mxu0
  %4837 = vmatprep.mubr.bf16.mxu0 %v2081
  %4838 = vmatmul.mubr.bf16.gmra.mrb[0].mxu0 %v1970
  %v4839 = vpop.f32.mrb[0].mxu0
  %v4840 = vadd.f32 0.0, %v4839
  %v4841 = vpop.f32.mrb[0].mxu0
  %v4842 = vpop.f32.mrb[0].mxu0
  %v4843 = vadd.f32 0.0, %v4842
  %v4844 = vpop.f32.mrb[0].mxu0
  %4845 = vmatprep.mubr.bf16.mxu0 %v2084
  %4846 = vmatmul.mubr.bf16.gmra.mrb[0].mxu0 %v1972
  %v4847 = vpop.f32.mrb[0].mxu0
  %v4848 = vadd.f32 0.0, %v4847
  %v4849 = vpop.f32.mrb[0].mxu0
  %v4850 = vpop.f32.mrb[0].mxu0
  %v4851 = vadd.f32 0.0, %v4850
  %v4852 = vpop.f32.mrb[0].mxu0
  %4853 = vmatprep.mubr.bf16.mxu0 %v2087
  %4854 = vmatmul.mubr.bf16.gmra.mrb[0].mxu0 %v1974
  %v4855 = vpop.f32.mrb[0].mxu0
  %v4856 = vadd.f32 0.0, %v4855
  %v4857 = vpop.f32.mrb[0].mxu0
  %v4858 = vpop.f32.mrb[0].mxu0
  %v4859 = vadd.f32 0.0, %v4858
  %v4860 = vpop.f32.mrb[0].mxu0
  %4861 = vdwg.mxu0
  %s4862 = scalar_lea.vmem %s4, 1700
  %v4863 = vld [vmem:[%s4862] sm:$0xf]
  %v4864 = vld [vmem:[%s4862 + $0x4] sm:$0xf]
  %v4865 = vld [vmem:[%s4862 + $0x8] sm:$0xf]
  %v4866 = vld [vmem:[%s4862 + $0xc] sm:$0xf]
  %v4867 = vld [vmem:[%s4862 + $0x10] sm:$0xf]
  %v4868 = vld [vmem:[%s4862 + $0x14] sm:$0xf]
  %v4869 = vld [vmem:[%s4862 + $0x18] sm:$0xf]
  %v4870 = vld [vmem:[%s4862 + $0x1c] sm:$0xf]
  %v4871 = vld [vmem:[%s4862 + $0x20] sm:$0xf]
  %v4872 = vld [vmem:[%s4862 + $0x24] sm:$0xf]
  %v4873 = vld [vmem:[%s4862 + $0x28] sm:$0xf]
  %v4874 = vld [vmem:[%s4862 + $0x2c] sm:$0xf]
  %v4875 = vld [vmem:[%s4862 + $0x30] sm:$0xf]
  %v4876 = vld [vmem:[%s4862 + $0x34] sm:$0xf]
  %v4877 = vld [vmem:[%s4862 + $0x38] sm:$0xf]
  %v4878 = vld [vmem:[%s4862 + $0x3c] sm:$0xf]
  %v4879 = vld [vmem:[%s4862 + $0x40] sm:$0xf]
  %v4880 = vld [vmem:[%s4862 + $0x44] sm:$0xf]
  %v4881 = vld [vmem:[%s4862 + $0x48] sm:$0xf]
  %v4882 = vld [vmem:[%s4862 + $0x4c] sm:$0xf]
  %v4883 = vld [vmem:[%s4862 + $0x50] sm:$0xf]
  %v4884 = vld [vmem:[%s4862 + $0x54] sm:$0xf]
  %v4885 = vld [vmem:[%s4862 + $0x58] sm:$0xf]
  %v4886 = vld [vmem:[%s4862 + $0x5c] sm:$0xf]
  %v4887 = vld [vmem:[%s4862 + $0x60] sm:$0x3]
  %v4913 = vunpack.c.l.b16 %v4863
  %v4914 = vunpack.c.l.b16 %v4864
  %v4915 = vunpack.c.l.b16 %v4865
  %v4916 = vunpack.c.l.b16 %v4866
  %v4917 = vunpack.c.l.b16 %v4867
  %v4918 = vunpack.c.l.b16 %v4868
  %v4919 = vunpack.c.l.b16 %v4869
  %v4920 = vunpack.c.l.b16 %v4870
  %v4921 = vunpack.c.l.b16 %v4871
  %v4922 = vunpack.c.l.b16 %v4872
  %v4923 = vunpack.c.l.b16 %v4873
  %v4924 = vunpack.c.l.b16 %v4874
  %v4925 = vunpack.c.l.b16 %v4875
  %v4926 = vunpack.c.l.b16 %v4876
  %v4927 = vunpack.c.l.b16 %v4877
  %v4928 = vunpack.c.l.b16 %v4878
  %v4929 = vunpack.c.l.b16 %v4879
  %v4930 = vunpack.c.l.b16 %v4880
  %v4931 = vunpack.c.l.b16 %v4881
  %v4932 = vunpack.c.l.b16 %v4882
  %v4933 = vunpack.c.l.b16 %v4883
  %v4934 = vunpack.c.l.b16 %v4884
  %v4935 = vunpack.c.l.b16 %v4885
  %v4936 = vunpack.c.l.b16 %v4886
  %v4937 = vunpack.c.l.b16 %v4887
  %v4938 = vpack.c.b16 %v4914, %v4913
  %v4939 = vpack.c.b16 %v4916, %v4915
  %v4940 = vpack.c.b16 %v4918, %v4917
  %v4941 = vpack.c.b16 %v4920, %v4919
  %v4942 = vpack.c.b16 %v4922, %v4921
  %v4943 = vpack.c.b16 %v4924, %v4923
  %v4944 = vpack.c.b16 %v4926, %v4925
  %v4945 = vpack.c.b16 %v4928, %v4927
  %v4946 = vpack.c.b16 %v4930, %v4929
  %v4947 = vpack.c.b16 %v4932, %v4931
  %v4948 = vpack.c.b16 %v4934, %v4933
  %v4949 = vpack.c.b16 %v4936, %v4935
  %v4950 = vpack.c.b16 %v4937, %v4937
  %v4964 = vsel %vm2089, %v4950, 0
  %4966 = vmatprep.subr.bf16.mxu0 0
  %4967 = vmatpush1.bf16.msra.mxu0 %v4938
  %4968 = vmatprep.subr.bf16.mxu0 0
  %4969 = vmatpush1.bf16.msra.mxu0 %v4939
  %4970 = vmatprep.subr.bf16.mxu0 0
  %4971 = vmatpush1.bf16.msra.mxu0 %v4940
  %4972 = vmatprep.subr.bf16.mxu0 0
  %4973 = vmatpush1.bf16.msra.mxu0 %v4941
  %4974 = vmatprep.subr.bf16.mxu0 0
  %4975 = vmatpush1.bf16.msra.mxu0 %v4942
  %4976 = vmatprep.subr.bf16.mxu0 0
  %4977 = vmatpush1.bf16.msra.mxu0 %v4943
  %4978 = vmatprep.subr.bf16.mxu0 0
  %4979 = vmatpush1.bf16.msra.mxu0 %v4944
  %4980 = vmatprep.subr.bf16.mxu0 0
  %4981 = vmatpush1.bf16.msra.mxu0 %v4945
  %4982 = vmatprep.subr.bf16.mxu0 0
  %4983 = vmatpush1.bf16.msra.mxu0 %v4946
  %4984 = vmatprep.subr.bf16.mxu0 0
  %4985 = vmatpush1.bf16.msra.mxu0 %v4947
  %4986 = vmatprep.subr.bf16.mxu0 0
  %4987 = vmatpush1.bf16.msra.mxu0 %v4948
  %4988 = vmatprep.subr.bf16.mxu0 0
  %4989 = vmatpush1.bf16.msra.mxu0 %v4949
  %4990 = vmatprep.subr.bf16.mxu0 0
  %4991 = vmatpush1.bf16.msra.mxu0 %v4964
  %4992 = vmatprep.subr.bf16.mxu0 0
  %4993 = vmatpush1.bf16.msra.mxu0 0
  %4994 = vmatprep.subr.bf16.mxu0 0
  %4995 = vmatpush1.bf16.msra.mxu0 0
  %4996 = vmatprep.subr.bf16.mxu0 0
  %4997 = vmatpush1.bf16.msra.mxu0 0
  %4998 = vmatprep.mubr.bf16.mxu0 %v2078
  %4999 = vmatmul.mubr.bf16.gmra.mrb[0].mxu0 %v1968
  %v5000 = vpop.f32.mrb[0].mxu0
  %v5001 = vadd.f32 0.0, %v5000
  %v5002 = vpop.f32.mrb[0].mxu0
  %v5003 = vpop.f32.mrb[0].mxu0
  %v5004 = vadd.f32 0.0, %v5003
  %v5005 = vpop.f32.mrb[0].mxu0
  %5006 = vmatprep.mubr.bf16.mxu0 %v2081
  %5007 = vmatmul.mubr.bf16.gmra.mrb[0].mxu0 %v1970
  %v5008 = vpop.f32.mrb[0].mxu0
  %v5009 = vadd.f32 0.0, %v5008
  %v5010 = vpop.f32.mrb[0].mxu0
  %v5011 = vpop.f32.mrb[0].mxu0
  %v5012 = vadd.f32 0.0, %v5011
  %v5013 = vpop.f32.mrb[0].mxu0
  %5014 = vmatprep.mubr.bf16.mxu0 %v2084
  %5015 = vmatmul.mubr.bf16.gmra.mrb[0].mxu0 %v1972
  %v5016 = vpop.f32.mrb[0].mxu0
  %v5017 = vadd.f32 0.0, %v5016
  %v5018 = vpop.f32.mrb[0].mxu0
  %v5019 = vpop.f32.mrb[0].mxu0
  %v5020 = vadd.f32 0.0, %v5019
  %v5021 = vpop.f32.mrb[0].mxu0
  %5022 = vmatprep.mubr.bf16.mxu0 %v2087
  %5023 = vmatmul.mubr.bf16.gmra.mrb[0].mxu0 %v1974
  %v5024 = vpop.f32.mrb[0].mxu0
  %v5025 = vadd.f32 0.0, %v5024
  %v5026 = vpop.f32.mrb[0].mxu0
  %v5027 = vpop.f32.mrb[0].mxu0
  %v5028 = vadd.f32 0.0, %v5027
  %v5029 = vpop.f32.mrb[0].mxu0
  %5030 = vdwg.mxu0
  %s5031 = scalar_lea.vmem %s4, 1800
  %v5032 = vld [vmem:[%s5031] sm:$0xf]
  %v5033 = vld [vmem:[%s5031 + $0x4] sm:$0xf]
  %v5034 = vld [vmem:[%s5031 + $0x8] sm:$0xf]
  %v5035 = vld [vmem:[%s5031 + $0xc] sm:$0xf]
  %v5036 = vld [vmem:[%s5031 + $0x10] sm:$0xf]
  %v5037 = vld [vmem:[%s5031 + $0x14] sm:$0xf]
  %v5038 = vld [vmem:[%s5031 + $0x18] sm:$0xf]
  %v5039 = vld [vmem:[%s5031 + $0x1c] sm:$0xf]
  %v5040 = vld [vmem:[%s5031 + $0x20] sm:$0xf]
  %v5041 = vld [vmem:[%s5031 + $0x24] sm:$0xf]
  %v5042 = vld [vmem:[%s5031 + $0x28] sm:$0xf]
  %v5043 = vld [vmem:[%s5031 + $0x2c] sm:$0xf]
  %v5044 = vld [vmem:[%s5031 + $0x30] sm:$0xf]
  %v5045 = vld [vmem:[%s5031 + $0x34] sm:$0xf]
  %v5046 = vld [vmem:[%s5031 + $0x38] sm:$0xf]
  %v5047 = vld [vmem:[%s5031 + $0x3c] sm:$0xf]
  %v5048 = vld [vmem:[%s5031 + $0x40] sm:$0xf]
  %v5049 = vld [vmem:[%s5031 + $0x44] sm:$0xf]
  %v5050 = vld [vmem:[%s5031 + $0x48] sm:$0xf]
  %v5051 = vld [vmem:[%s5031 + $0x4c] sm:$0xf]
  %v5052 = vld [vmem:[%s5031 + $0x50] sm:$0xf]
  %v5053 = vld [vmem:[%s5031 + $0x54] sm:$0xf]
  %v5054 = vld [vmem:[%s5031 + $0x58] sm:$0xf]
  %v5055 = vld [vmem:[%s5031 + $0x5c] sm:$0xf]
  %v5056 = vld [vmem:[%s5031 + $0x60] sm:$0x3]
  %v5082 = vunpack.c.l.b16 %v5032
  %v5083 = vunpack.c.l.b16 %v5033
  %v5084 = vunpack.c.l.b16 %v5034
  %v5085 = vunpack.c.l.b16 %v5035
  %v5086 = vunpack.c.l.b16 %v5036
  %v5087 = vunpack.c.l.b16 %v5037
  %v5088 = vunpack.c.l.b16 %v5038
  %v5089 = vunpack.c.l.b16 %v5039
  %v5090 = vunpack.c.l.b16 %v5040
  %v5091 = vunpack.c.l.b16 %v5041
  %v5092 = vunpack.c.l.b16 %v5042
  %v5093 = vunpack.c.l.b16 %v5043
  %v5094 = vunpack.c.l.b16 %v5044
  %v5095 = vunpack.c.l.b16 %v5045
  %v5096 = vunpack.c.l.b16 %v5046
  %v5097 = vunpack.c.l.b16 %v5047
  %v5098 = vunpack.c.l.b16 %v5048
  %v5099 = vunpack.c.l.b16 %v5049
  %v5100 = vunpack.c.l.b16 %v5050
  %v5101 = vunpack.c.l.b16 %v5051
  %v5102 = vunpack.c.l.b16 %v5052
  %v5103 = vunpack.c.l.b16 %v5053
  %v5104 = vunpack.c.l.b16 %v5054
  %v5105 = vunpack.c.l.b16 %v5055
  %v5106 = vunpack.c.l.b16 %v5056
  %v5107 = vpack.c.b16 %v5083, %v5082
  %v5108 = vpack.c.b16 %v5085, %v5084
  %v5109 = vpack.c.b16 %v5087, %v5086
  %v5110 = vpack.c.b16 %v5089, %v5088
  %v5111 = vpack.c.b16 %v5091, %v5090
  %v5112 = vpack.c.b16 %v5093, %v5092
  %v5113 = vpack.c.b16 %v5095, %v5094
  %v5114 = vpack.c.b16 %v5097, %v5096
  %v5115 = vpack.c.b16 %v5099, %v5098
  %v5116 = vpack.c.b16 %v5101, %v5100
  %v5117 = vpack.c.b16 %v5103, %v5102
  %v5118 = vpack.c.b16 %v5105, %v5104
  %v5119 = vpack.c.b16 %v5106, %v5106
  %v5133 = vsel %vm2089, %v5119, 0
  %5135 = vmatprep.subr.bf16.mxu0 0
  %5136 = vmatpush1.bf16.msra.mxu0 %v5107
  %5137 = vmatprep.subr.bf16.mxu0 0
  %5138 = vmatpush1.bf16.msra.mxu0 %v5108
  %5139 = vmatprep.subr.bf16.mxu0 0
  %5140 = vmatpush1.bf16.msra.mxu0 %v5109
  %5141 = vmatprep.subr.bf16.mxu0 0
  %5142 = vmatpush1.bf16.msra.mxu0 %v5110
  %5143 = vmatprep.subr.bf16.mxu0 0
  %5144 = vmatpush1.bf16.msra.mxu0 %v5111
  %5145 = vmatprep.subr.bf16.mxu0 0
  %5146 = vmatpush1.bf16.msra.mxu0 %v5112
  %5147 = vmatprep.subr.bf16.mxu0 0
  %5148 = vmatpush1.bf16.msra.mxu0 %v5113
  %5149 = vmatprep.subr.bf16.mxu0 0
  %5150 = vmatpush1.bf16.msra.mxu0 %v5114
  %5151 = vmatprep.subr.bf16.mxu0 0
  %5152 = vmatpush1.bf16.msra.mxu0 %v5115
  %5153 = vmatprep.subr.bf16.mxu0 0
  %5154 = vmatpush1.bf16.msra.mxu0 %v5116
  %5155 = vmatprep.subr.bf16.mxu0 0
  %5156 = vmatpush1.bf16.msra.mxu0 %v5117
  %5157 = vmatprep.subr.bf16.mxu0 0
  %5158 = vmatpush1.bf16.msra.mxu0 %v5118
  %5159 = vmatprep.subr.bf16.mxu0 0
  %5160 = vmatpush1.bf16.msra.mxu0 %v5133
  %5161 = vmatprep.subr.bf16.mxu0 0
  %5162 = vmatpush1.bf16.msra.mxu0 0
  %5163 = vmatprep.subr.bf16.mxu0 0
  %5164 = vmatpush1.bf16.msra.mxu0 0
  %5165 = vmatprep.subr.bf16.mxu0 0
  %5166 = vmatpush1.bf16.msra.mxu0 0
  %5167 = vmatprep.mubr.bf16.mxu0 %v2078
  %5168 = vmatmul.mubr.bf16.gmra.mrb[0].mxu0 %v1968
  %v5169 = vpop.f32.mrb[0].mxu0
  %v5170 = vadd.f32 0.0, %v5169
  %v5171 = vpop.f32.mrb[0].mxu0
  %v5172 = vpop.f32.mrb[0].mxu0
  %v5173 = vadd.f32 0.0, %v5172
  %v5174 = vpop.f32.mrb[0].mxu0
  %5175 = vmatprep.mubr.bf16.mxu0 %v2081
  %5176 = vmatmul.mubr.bf16.gmra.mrb[0].mxu0 %v1970
  %v5177 = vpop.f32.mrb[0].mxu0
  %v5178 = vadd.f32 0.0, %v5177
  %v5179 = vpop.f32.mrb[0].mxu0
  %v5180 = vpop.f32.mrb[0].mxu0
  %v5181 = vadd.f32 0.0, %v5180
  %v5182 = vpop.f32.mrb[0].mxu0
  %5183 = vmatprep.mubr.bf16.mxu0 %v2084
  %5184 = vmatmul.mubr.bf16.gmra.mrb[0].mxu0 %v1972
  %v5185 = vpop.f32.mrb[0].mxu0
  %v5186 = vadd.f32 0.0, %v5185
  %v5187 = vpop.f32.mrb[0].mxu0
  %v5188 = vpop.f32.mrb[0].mxu0
  %v5189 = vadd.f32 0.0, %v5188
  %v5190 = vpop.f32.mrb[0].mxu0
  %5191 = vmatprep.mubr.bf16.mxu0 %v2087
  %5192 = vmatmul.mubr.bf16.gmra.mrb[0].mxu0 %v1974
  %v5193 = vpop.f32.mrb[0].mxu0
  %v5194 = vadd.f32 0.0, %v5193
  %v5195 = vpop.f32.mrb[0].mxu0
  %v5196 = vpop.f32.mrb[0].mxu0
  %v5197 = vadd.f32 0.0, %v5196
  %v5198 = vpop.f32.mrb[0].mxu0
  %5199 = vdwg.mxu0
  %s5200 = scalar_lea.vmem %s4, 1900
  %v5201 = vld [vmem:[%s5200] sm:$0xf]
  %v5202 = vld [vmem:[%s5200 + $0x4] sm:$0xf]
  %v5203 = vld [vmem:[%s5200 + $0x8] sm:$0xf]
  %v5204 = vld [vmem:[%s5200 + $0xc] sm:$0xf]
  %v5205 = vld [vmem:[%s5200 + $0x10] sm:$0xf]
  %v5206 = vld [vmem:[%s5200 + $0x14] sm:$0xf]
  %v5207 = vld [vmem:[%s5200 + $0x18] sm:$0xf]
  %v5208 = vld [vmem:[%s5200 + $0x1c] sm:$0xf]
  %v5209 = vld [vmem:[%s5200 + $0x20] sm:$0xf]
  %v5210 = vld [vmem:[%s5200 + $0x24] sm:$0xf]
  %v5211 = vld [vmem:[%s5200 + $0x28] sm:$0xf]
  %v5212 = vld [vmem:[%s5200 + $0x2c] sm:$0xf]
  %v5213 = vld [vmem:[%s5200 + $0x30] sm:$0xf]
  %v5214 = vld [vmem:[%s5200 + $0x34] sm:$0xf]
  %v5215 = vld [vmem:[%s5200 + $0x38] sm:$0xf]
  %v5216 = vld [vmem:[%s5200 + $0x3c] sm:$0xf]
  %v5217 = vld [vmem:[%s5200 + $0x40] sm:$0xf]
  %v5218 = vld [vmem:[%s5200 + $0x44] sm:$0xf]
  %v5219 = vld [vmem:[%s5200 + $0x48] sm:$0xf]
  %v5220 = vld [vmem:[%s5200 + $0x4c] sm:$0xf]
  %v5221 = vld [vmem:[%s5200 + $0x50] sm:$0xf]
  %v5222 = vld [vmem:[%s5200 + $0x54] sm:$0xf]
  %v5223 = vld [vmem:[%s5200 + $0x58] sm:$0xf]
  %v5224 = vld [vmem:[%s5200 + $0x5c] sm:$0xf]
  %v5225 = vld [vmem:[%s5200 + $0x60] sm:$0x3]
  %v5251 = vunpack.c.l.b16 %v5201
  %v5252 = vunpack.c.l.b16 %v5202
  %v5253 = vunpack.c.l.b16 %v5203
  %v5254 = vunpack.c.l.b16 %v5204
  %v5255 = vunpack.c.l.b16 %v5205
  %v5256 = vunpack.c.l.b16 %v5206
  %v5257 = vunpack.c.l.b16 %v5207
  %v5258 = vunpack.c.l.b16 %v5208
  %v5259 = vunpack.c.l.b16 %v5209
  %v5260 = vunpack.c.l.b16 %v5210
  %v5261 = vunpack.c.l.b16 %v5211
  %v5262 = vunpack.c.l.b16 %v5212
  %v5263 = vunpack.c.l.b16 %v5213
  %v5264 = vunpack.c.l.b16 %v5214
  %v5265 = vunpack.c.l.b16 %v5215
  %v5266 = vunpack.c.l.b16 %v5216
  %v5267 = vunpack.c.l.b16 %v5217
  %v5268 = vunpack.c.l.b16 %v5218
  %v5269 = vunpack.c.l.b16 %v5219
  %v5270 = vunpack.c.l.b16 %v5220
  %v5271 = vunpack.c.l.b16 %v5221
  %v5272 = vunpack.c.l.b16 %v5222
  %v5273 = vunpack.c.l.b16 %v5223
  %v5274 = vunpack.c.l.b16 %v5224
  %v5275 = vunpack.c.l.b16 %v5225
  %v5276 = vpack.c.b16 %v5252, %v5251
  %v5277 = vpack.c.b16 %v5254, %v5253
  %v5278 = vpack.c.b16 %v5256, %v5255
  %v5279 = vpack.c.b16 %v5258, %v5257
  %v5280 = vpack.c.b16 %v5260, %v5259
  %v5281 = vpack.c.b16 %v5262, %v5261
  %v5282 = vpack.c.b16 %v5264, %v5263
  %v5283 = vpack.c.b16 %v5266, %v5265
  %v5284 = vpack.c.b16 %v5268, %v5267
  %v5285 = vpack.c.b16 %v5270, %v5269
  %v5286 = vpack.c.b16 %v5272, %v5271
  %v5287 = vpack.c.b16 %v5274, %v5273
  %v5288 = vpack.c.b16 %v5275, %v5275
  %v5302 = vsel %vm2089, %v5288, 0
  %5304 = vmatprep.subr.bf16.mxu0 0
  %5305 = vmatpush1.bf16.msra.mxu0 %v5276
  %5306 = vmatprep.subr.bf16.mxu0 0
  %5307 = vmatpush1.bf16.msra.mxu0 %v5277
  %5308 = vmatprep.subr.bf16.mxu0 0
  %5309 = vmatpush1.bf16.msra.mxu0 %v5278
  %5310 = vmatprep.subr.bf16.mxu0 0
  %5311 = vmatpush1.bf16.msra.mxu0 %v5279
  %5312 = vmatprep.subr.bf16.mxu0 0
  %5313 = vmatpush1.bf16.msra.mxu0 %v5280
  %5314 = vmatprep.subr.bf16.mxu0 0
  %5315 = vmatpush1.bf16.msra.mxu0 %v5281
  %5316 = vmatprep.subr.bf16.mxu0 0
  %5317 = vmatpush1.bf16.msra.mxu0 %v5282
  %5318 = vmatprep.subr.bf16.mxu0 0
  %5319 = vmatpush1.bf16.msra.mxu0 %v5283
  %5320 = vmatprep.subr.bf16.mxu0 0
  %5321 = vmatpush1.bf16.msra.mxu0 %v5284
  %5322 = vmatprep.subr.bf16.mxu0 0
  %5323 = vmatpush1.bf16.msra.mxu0 %v5285
  %5324 = vmatprep.subr.bf16.mxu0 0
  %5325 = vmatpush1.bf16.msra.mxu0 %v5286
  %5326 = vmatprep.subr.bf16.mxu0 0
  %5327 = vmatpush1.bf16.msra.mxu0 %v5287
  %5328 = vmatprep.subr.bf16.mxu0 0
  %5329 = vmatpush1.bf16.msra.mxu0 %v5302
  %5330 = vmatprep.subr.bf16.mxu0 0
  %5331 = vmatpush1.bf16.msra.mxu0 0
  %5332 = vmatprep.subr.bf16.mxu0 0
  %5333 = vmatpush1.bf16.msra.mxu0 0
  %5334 = vmatprep.subr.bf16.mxu0 0
  %5335 = vmatpush1.bf16.msra.mxu0 0
  %5336 = vmatprep.mubr.bf16.mxu0 %v2078
  %5337 = vmatmul.mubr.bf16.gmra.mrb[0].mxu0 %v1968
  %v5338 = vpop.f32.mrb[0].mxu0
  %v5339 = vadd.f32 0.0, %v5338
  %v5340 = vpop.f32.mrb[0].mxu0
  %v5341 = vpop.f32.mrb[0].mxu0
  %v5342 = vadd.f32 0.0, %v5341
  %v5343 = vpop.f32.mrb[0].mxu0
  %5344 = vmatprep.mubr.bf16.mxu0 %v2081
  %5345 = vmatmul.mubr.bf16.gmra.mrb[0].mxu0 %v1970
  %v5346 = vpop.f32.mrb[0].mxu0
  %v5347 = vadd.f32 0.0, %v5346
  %v5348 = vpop.f32.mrb[0].mxu0
  %v5349 = vpop.f32.mrb[0].mxu0
  %v5350 = vadd.f32 0.0, %v5349
  %v5351 = vpop.f32.mrb[0].mxu0
  %5352 = vmatprep.mubr.bf16.mxu0 %v2084
  %5353 = vmatmul.mubr.bf16.gmra.mrb[0].mxu0 %v1972
  %v5354 = vpop.f32.mrb[0].mxu0
  %v5355 = vadd.f32 0.0, %v5354
  %v5356 = vpop.f32.mrb[0].mxu0
  %v5357 = vpop.f32.mrb[0].mxu0
  %v5358 = vadd.f32 0.0, %v5357
  %v5359 = vpop.f32.mrb[0].mxu0
  %5360 = vmatprep.mubr.bf16.mxu0 %v2087
  %5361 = vmatmul.mubr.bf16.gmra.mrb[0].mxu0 %v1974
  %v5362 = vpop.f32.mrb[0].mxu0
  %v5363 = vadd.f32 0.0, %v5362
  %v5364 = vpop.f32.mrb[0].mxu0
  %v5365 = vpop.f32.mrb[0].mxu0
  %v5366 = vadd.f32 0.0, %v5365
  %v5367 = vpop.f32.mrb[0].mxu0
  %5368 = vdwg.mxu0
  %s5369 = scalar_lea.vmem %s4, 2000
  %v5370 = vld [vmem:[%s5369] sm:$0xf]
  %v5371 = vld [vmem:[%s5369 + $0x4] sm:$0xf]
  %v5372 = vld [vmem:[%s5369 + $0x8] sm:$0xf]
  %v5373 = vld [vmem:[%s5369 + $0xc] sm:$0xf]
  %v5374 = vld [vmem:[%s5369 + $0x10] sm:$0xf]
  %v5375 = vld [vmem:[%s5369 + $0x14] sm:$0xf]
  %v5376 = vld [vmem:[%s5369 + $0x18] sm:$0xf]
  %v5377 = vld [vmem:[%s5369 + $0x1c] sm:$0xf]
  %v5378 = vld [vmem:[%s5369 + $0x20] sm:$0xf]
  %v5379 = vld [vmem:[%s5369 + $0x24] sm:$0xf]
  %v5380 = vld [vmem:[%s5369 + $0x28] sm:$0xf]
  %v5381 = vld [vmem:[%s5369 + $0x2c] sm:$0xf]
  %v5382 = vld [vmem:[%s5369 + $0x30] sm:$0xf]
  %v5383 = vld [vmem:[%s5369 + $0x34] sm:$0xf]
  %v5384 = vld [vmem:[%s5369 + $0x38] sm:$0xf]
  %v5385 = vld [vmem:[%s5369 + $0x3c] sm:$0xf]
  %v5386 = vld [vmem:[%s5369 + $0x40] sm:$0xf]
  %v5387 = vld [vmem:[%s5369 + $0x44] sm:$0xf]
  %v5388 = vld [vmem:[%s5369 + $0x48] sm:$0xf]
  %v5389 = vld [vmem:[%s5369 + $0x4c] sm:$0xf]
  %v5390 = vld [vmem:[%s5369 + $0x50] sm:$0xf]
  %v5391 = vld [vmem:[%s5369 + $0x54] sm:$0xf]
  %v5392 = vld [vmem:[%s5369 + $0x58] sm:$0xf]
  %v5393 = vld [vmem:[%s5369 + $0x5c] sm:$0xf]
  %v5394 = vld [vmem:[%s5369 + $0x60] sm:$0x3]
  %v5420 = vunpack.c.l.b16 %v5370
  %v5421 = vunpack.c.l.b16 %v5371
  %v5422 = vunpack.c.l.b16 %v5372
  %v5423 = vunpack.c.l.b16 %v5373
  %v5424 = vunpack.c.l.b16 %v5374
  %v5425 = vunpack.c.l.b16 %v5375
  %v5426 = vunpack.c.l.b16 %v5376
  %v5427 = vunpack.c.l.b16 %v5377
  %v5428 = vunpack.c.l.b16 %v5378
  %v5429 = vunpack.c.l.b16 %v5379
  %v5430 = vunpack.c.l.b16 %v5380
  %v5431 = vunpack.c.l.b16 %v5381
  %v5432 = vunpack.c.l.b16 %v5382
  %v5433 = vunpack.c.l.b16 %v5383
  %v5434 = vunpack.c.l.b16 %v5384
  %v5435 = vunpack.c.l.b16 %v5385
  %v5436 = vunpack.c.l.b16 %v5386
  %v5437 = vunpack.c.l.b16 %v5387
  %v5438 = vunpack.c.l.b16 %v5388
  %v5439 = vunpack.c.l.b16 %v5389
  %v5440 = vunpack.c.l.b16 %v5390
  %v5441 = vunpack.c.l.b16 %v5391
  %v5442 = vunpack.c.l.b16 %v5392
  %v5443 = vunpack.c.l.b16 %v5393
  %v5444 = vunpack.c.l.b16 %v5394
  %v5445 = vpack.c.b16 %v5421, %v5420
  %v5446 = vpack.c.b16 %v5423, %v5422
  %v5447 = vpack.c.b16 %v5425, %v5424
  %v5448 = vpack.c.b16 %v5427, %v5426
  %v5449 = vpack.c.b16 %v5429, %v5428
  %v5450 = vpack.c.b16 %v5431, %v5430
  %v5451 = vpack.c.b16 %v5433, %v5432
  %v5452 = vpack.c.b16 %v5435, %v5434
  %v5453 = vpack.c.b16 %v5437, %v5436
  %v5454 = vpack.c.b16 %v5439, %v5438
  %v5455 = vpack.c.b16 %v5441, %v5440
  %v5456 = vpack.c.b16 %v5443, %v5442
  %v5457 = vpack.c.b16 %v5444, %v5444
  %v5471 = vsel %vm2089, %v5457, 0
  %5473 = vmatprep.subr.bf16.mxu0 0
  %5474 = vmatpush1.bf16.msra.mxu0 %v5445
  %5475 = vmatprep.subr.bf16.mxu0 0
  %5476 = vmatpush1.bf16.msra.mxu0 %v5446
  %5477 = vmatprep.subr.bf16.mxu0 0
  %5478 = vmatpush1.bf16.msra.mxu0 %v5447
  %5479 = vmatprep.subr.bf16.mxu0 0
  %5480 = vmatpush1.bf16.msra.mxu0 %v5448
  %5481 = vmatprep.subr.bf16.mxu0 0
  %5482 = vmatpush1.bf16.msra.mxu0 %v5449
  %5483 = vmatprep.subr.bf16.mxu0 0
  %5484 = vmatpush1.bf16.msra.mxu0 %v5450
  %5485 = vmatprep.subr.bf16.mxu0 0
  %5486 = vmatpush1.bf16.msra.mxu0 %v5451
  %5487 = vmatprep.subr.bf16.mxu0 0
  %5488 = vmatpush1.bf16.msra.mxu0 %v5452
  %5489 = vmatprep.subr.bf16.mxu0 0
  %5490 = vmatpush1.bf16.msra.mxu0 %v5453
  %5491 = vmatprep.subr.bf16.mxu0 0
  %5492 = vmatpush1.bf16.msra.mxu0 %v5454
  %5493 = vmatprep.subr.bf16.mxu0 0
  %5494 = vmatpush1.bf16.msra.mxu0 %v5455
  %5495 = vmatprep.subr.bf16.mxu0 0
  %5496 = vmatpush1.bf16.msra.mxu0 %v5456
  %5497 = vmatprep.subr.bf16.mxu0 0
  %5498 = vmatpush1.bf16.msra.mxu0 %v5471
  %5499 = vmatprep.subr.bf16.mxu0 0
  %5500 = vmatpush1.bf16.msra.mxu0 0
  %5501 = vmatprep.subr.bf16.mxu0 0
  %5502 = vmatpush1.bf16.msra.mxu0 0
  %5503 = vmatprep.subr.bf16.mxu0 0
  %5504 = vmatpush1.bf16.msra.mxu0 0
  %5505 = vmatprep.mubr.bf16.mxu0 %v2078
  %5506 = vmatmul.mubr.bf16.gmra.mrb[0].mxu0 %v1968
  %v5507 = vpop.f32.mrb[0].mxu0
  %v5508 = vadd.f32 0.0, %v5507
  %v5509 = vpop.f32.mrb[0].mxu0
  %v5510 = vpop.f32.mrb[0].mxu0
  %v5511 = vadd.f32 0.0, %v5510
  %v5512 = vpop.f32.mrb[0].mxu0
  %5513 = vmatprep.mubr.bf16.mxu0 %v2081
  %5514 = vmatmul.mubr.bf16.gmra.mrb[0].mxu0 %v1970
  %v5515 = vpop.f32.mrb[0].mxu0
  %v5516 = vadd.f32 0.0, %v5515
  %v5517 = vpop.f32.mrb[0].mxu0
  %v5518 = vpop.f32.mrb[0].mxu0
  %v5519 = vadd.f32 0.0, %v5518
  %v5520 = vpop.f32.mrb[0].mxu0
  %5521 = vmatprep.mubr.bf16.mxu0 %v2084
  %5522 = vmatmul.mubr.bf16.gmra.mrb[0].mxu0 %v1972
  %v5523 = vpop.f32.mrb[0].mxu0
  %v5524 = vadd.f32 0.0, %v5523
  %v5525 = vpop.f32.mrb[0].mxu0
  %v5526 = vpop.f32.mrb[0].mxu0
  %v5527 = vadd.f32 0.0, %v5526
  %v5528 = vpop.f32.mrb[0].mxu0
  %5529 = vmatprep.mubr.bf16.mxu0 %v2087
  %5530 = vmatmul.mubr.bf16.gmra.mrb[0].mxu0 %v1974
  %v5531 = vpop.f32.mrb[0].mxu0
  %v5532 = vadd.f32 0.0, %v5531
  %v5533 = vpop.f32.mrb[0].mxu0
  %v5534 = vpop.f32.mrb[0].mxu0
  %v5535 = vadd.f32 0.0, %v5534
  %v5536 = vpop.f32.mrb[0].mxu0
  %5537 = vdwg.mxu0
  %s5538 = scalar_lea.vmem %s4, 2100
  %v5539 = vld [vmem:[%s5538] sm:$0xf]
  %v5540 = vld [vmem:[%s5538 + $0x4] sm:$0xf]
  %v5541 = vld [vmem:[%s5538 + $0x8] sm:$0xf]
  %v5542 = vld [vmem:[%s5538 + $0xc] sm:$0xf]
  %v5543 = vld [vmem:[%s5538 + $0x10] sm:$0xf]
  %v5544 = vld [vmem:[%s5538 + $0x14] sm:$0xf]
  %v5545 = vld [vmem:[%s5538 + $0x18] sm:$0xf]
  %v5546 = vld [vmem:[%s5538 + $0x1c] sm:$0xf]
  %v5547 = vld [vmem:[%s5538 + $0x20] sm:$0xf]
  %v5548 = vld [vmem:[%s5538 + $0x24] sm:$0xf]
  %v5549 = vld [vmem:[%s5538 + $0x28] sm:$0xf]
  %v5550 = vld [vmem:[%s5538 + $0x2c] sm:$0xf]
  %v5551 = vld [vmem:[%s5538 + $0x30] sm:$0xf]
  %v5552 = vld [vmem:[%s5538 + $0x34] sm:$0xf]
  %v5553 = vld [vmem:[%s5538 + $0x38] sm:$0xf]
  %v5554 = vld [vmem:[%s5538 + $0x3c] sm:$0xf]
  %v5555 = vld [vmem:[%s5538 + $0x40] sm:$0xf]
  %v5556 = vld [vmem:[%s5538 + $0x44] sm:$0xf]
  %v5557 = vld [vmem:[%s5538 + $0x48] sm:$0xf]
  %v5558 = vld [vmem:[%s5538 + $0x4c] sm:$0xf]
  %v5559 = vld [vmem:[%s5538 + $0x50] sm:$0xf]
  %v5560 = vld [vmem:[%s5538 + $0x54] sm:$0xf]
  %v5561 = vld [vmem:[%s5538 + $0x58] sm:$0xf]
  %v5562 = vld [vmem:[%s5538 + $0x5c] sm:$0xf]
  %v5563 = vld [vmem:[%s5538 + $0x60] sm:$0x3]
  %v5589 = vunpack.c.l.b16 %v5539
  %v5590 = vunpack.c.l.b16 %v5540
  %v5591 = vunpack.c.l.b16 %v5541
  %v5592 = vunpack.c.l.b16 %v5542
  %v5593 = vunpack.c.l.b16 %v5543
  %v5594 = vunpack.c.l.b16 %v5544
  %v5595 = vunpack.c.l.b16 %v5545
  %v5596 = vunpack.c.l.b16 %v5546
  %v5597 = vunpack.c.l.b16 %v5547
  %v5598 = vunpack.c.l.b16 %v5548
  %v5599 = vunpack.c.l.b16 %v5549
  %v5600 = vunpack.c.l.b16 %v5550
  %v5601 = vunpack.c.l.b16 %v5551
  %v5602 = vunpack.c.l.b16 %v5552
  %v5603 = vunpack.c.l.b16 %v5553
  %v5604 = vunpack.c.l.b16 %v5554
  %v5605 = vunpack.c.l.b16 %v5555
  %v5606 = vunpack.c.l.b16 %v5556
  %v5607 = vunpack.c.l.b16 %v5557
  %v5608 = vunpack.c.l.b16 %v5558
  %v5609 = vunpack.c.l.b16 %v5559
  %v5610 = vunpack.c.l.b16 %v5560
  %v5611 = vunpack.c.l.b16 %v5561
  %v5612 = vunpack.c.l.b16 %v5562
  %v5613 = vunpack.c.l.b16 %v5563
  %v5614 = vpack.c.b16 %v5590, %v5589
  %v5615 = vpack.c.b16 %v5592, %v5591
  %v5616 = vpack.c.b16 %v5594, %v5593
  %v5617 = vpack.c.b16 %v5596, %v5595
  %v5618 = vpack.c.b16 %v5598, %v5597
  %v5619 = vpack.c.b16 %v5600, %v5599
  %v5620 = vpack.c.b16 %v5602, %v5601
  %v5621 = vpack.c.b16 %v5604, %v5603
  %v5622 = vpack.c.b16 %v5606, %v5605
  %v5623 = vpack.c.b16 %v5608, %v5607
  %v5624 = vpack.c.b16 %v5610, %v5609
  %v5625 = vpack.c.b16 %v5612, %v5611
  %v5626 = vpack.c.b16 %v5613, %v5613
  %v5640 = vsel %vm2089, %v5626, 0
  %5642 = vmatprep.subr.bf16.mxu0 0
  %5643 = vmatpush1.bf16.msra.mxu0 %v5614
  %5644 = vmatprep.subr.bf16.mxu0 0
  %5645 = vmatpush1.bf16.msra.mxu0 %v5615
  %5646 = vmatprep.subr.bf16.mxu0 0
  %5647 = vmatpush1.bf16.msra.mxu0 %v5616
  %5648 = vmatprep.subr.bf16.mxu0 0
  %5649 = vmatpush1.bf16.msra.mxu0 %v5617
  %5650 = vmatprep.subr.bf16.mxu0 0
  %5651 = vmatpush1.bf16.msra.mxu0 %v5618
  %5652 = vmatprep.subr.bf16.mxu0 0
  %5653 = vmatpush1.bf16.msra.mxu0 %v5619
  %5654 = vmatprep.subr.bf16.mxu0 0
  %5655 = vmatpush1.bf16.msra.mxu0 %v5620
  %5656 = vmatprep.subr.bf16.mxu0 0
  %5657 = vmatpush1.bf16.msra.mxu0 %v5621
  %5658 = vmatprep.subr.bf16.mxu0 0
  %5659 = vmatpush1.bf16.msra.mxu0 %v5622
  %5660 = vmatprep.subr.bf16.mxu0 0
  %5661 = vmatpush1.bf16.msra.mxu0 %v5623
  %5662 = vmatprep.subr.bf16.mxu0 0
  %5663 = vmatpush1.bf16.msra.mxu0 %v5624
  %5664 = vmatprep.subr.bf16.mxu0 0
  %5665 = vmatpush1.bf16.msra.mxu0 %v5625
  %5666 = vmatprep.subr.bf16.mxu0 0
  %5667 = vmatpush1.bf16.msra.mxu0 %v5640
  %5668 = vmatprep.subr.bf16.mxu0 0
  %5669 = vmatpush1.bf16.msra.mxu0 0
  %5670 = vmatprep.subr.bf16.mxu0 0
  %5671 = vmatpush1.bf16.msra.mxu0 0
  %5672 = vmatprep.subr.bf16.mxu0 0
  %5673 = vmatpush1.bf16.msra.mxu0 0
  %5674 = vmatprep.mubr.bf16.mxu0 %v2078
  %5675 = vmatmul.mubr.bf16.gmra.mrb[0].mxu0 %v1968
  %v5676 = vpop.f32.mrb[0].mxu0
  %v5677 = vadd.f32 0.0, %v5676
  %v5678 = vpop.f32.mrb[0].mxu0
  %v5679 = vpop.f32.mrb[0].mxu0
  %v5680 = vadd.f32 0.0, %v5679
  %v5681 = vpop.f32.mrb[0].mxu0
  %5682 = vmatprep.mubr.bf16.mxu0 %v2081
  %5683 = vmatmul.mubr.bf16.gmra.mrb[0].mxu0 %v1970
  %v5684 = vpop.f32.mrb[0].mxu0
  %v5685 = vadd.f32 0.0, %v5684
  %v5686 = vpop.f32.mrb[0].mxu0
  %v5687 = vpop.f32.mrb[0].mxu0
  %v5688 = vadd.f32 0.0, %v5687
  %v5689 = vpop.f32.mrb[0].mxu0
  %5690 = vmatprep.mubr.bf16.mxu0 %v2084
  %5691 = vmatmul.mubr.bf16.gmra.mrb[0].mxu0 %v1972
  %v5692 = vpop.f32.mrb[0].mxu0
  %v5693 = vadd.f32 0.0, %v5692
  %v5694 = vpop.f32.mrb[0].mxu0
  %v5695 = vpop.f32.mrb[0].mxu0
  %v5696 = vadd.f32 0.0, %v5695
  %v5697 = vpop.f32.mrb[0].mxu0
  %5698 = vmatprep.mubr.bf16.mxu0 %v2087
  %5699 = vmatmul.mubr.bf16.gmra.mrb[0].mxu0 %v1974
  %v5700 = vpop.f32.mrb[0].mxu0
  %v5701 = vadd.f32 0.0, %v5700
  %v5702 = vpop.f32.mrb[0].mxu0
  %v5703 = vpop.f32.mrb[0].mxu0
  %v5704 = vadd.f32 0.0, %v5703
  %v5705 = vpop.f32.mrb[0].mxu0
  %5706 = vdwg.mxu0
  %s5707 = scalar_lea.vmem %s4, 2200
  %v5708 = vld [vmem:[%s5707] sm:$0xf]
  %v5709 = vld [vmem:[%s5707 + $0x4] sm:$0xf]
  %v5710 = vld [vmem:[%s5707 + $0x8] sm:$0xf]
  %v5711 = vld [vmem:[%s5707 + $0xc] sm:$0xf]
  %v5712 = vld [vmem:[%s5707 + $0x10] sm:$0xf]
  %v5713 = vld [vmem:[%s5707 + $0x14] sm:$0xf]
  %v5714 = vld [vmem:[%s5707 + $0x18] sm:$0xf]
  %v5715 = vld [vmem:[%s5707 + $0x1c] sm:$0xf]
  %v5716 = vld [vmem:[%s5707 + $0x20] sm:$0xf]
  %v5717 = vld [vmem:[%s5707 + $0x24] sm:$0xf]
  %v5718 = vld [vmem:[%s5707 + $0x28] sm:$0xf]
  %v5719 = vld [vmem:[%s5707 + $0x2c] sm:$0xf]
  %v5720 = vld [vmem:[%s5707 + $0x30] sm:$0xf]
  %v5721 = vld [vmem:[%s5707 + $0x34] sm:$0xf]
  %v5722 = vld [vmem:[%s5707 + $0x38] sm:$0xf]
  %v5723 = vld [vmem:[%s5707 + $0x3c] sm:$0xf]
  %v5724 = vld [vmem:[%s5707 + $0x40] sm:$0xf]
  %v5725 = vld [vmem:[%s5707 + $0x44] sm:$0xf]
  %v5726 = vld [vmem:[%s5707 + $0x48] sm:$0xf]
  %v5727 = vld [vmem:[%s5707 + $0x4c] sm:$0xf]
  %v5728 = vld [vmem:[%s5707 + $0x50] sm:$0xf]
  %v5729 = vld [vmem:[%s5707 + $0x54] sm:$0xf]
  %v5730 = vld [vmem:[%s5707 + $0x58] sm:$0xf]
  %v5731 = vld [vmem:[%s5707 + $0x5c] sm:$0xf]
  %v5732 = vld [vmem:[%s5707 + $0x60] sm:$0x3]
  %v5758 = vunpack.c.l.b16 %v5708
  %v5759 = vunpack.c.l.b16 %v5709
  %v5760 = vunpack.c.l.b16 %v5710
  %v5761 = vunpack.c.l.b16 %v5711
  %v5762 = vunpack.c.l.b16 %v5712
  %v5763 = vunpack.c.l.b16 %v5713
  %v5764 = vunpack.c.l.b16 %v5714
  %v5765 = vunpack.c.l.b16 %v5715
  %v5766 = vunpack.c.l.b16 %v5716
  %v5767 = vunpack.c.l.b16 %v5717
  %v5768 = vunpack.c.l.b16 %v5718
  %v5769 = vunpack.c.l.b16 %v5719
  %v5770 = vunpack.c.l.b16 %v5720
  %v5771 = vunpack.c.l.b16 %v5721
  %v5772 = vunpack.c.l.b16 %v5722
  %v5773 = vunpack.c.l.b16 %v5723
  %v5774 = vunpack.c.l.b16 %v5724
  %v5775 = vunpack.c.l.b16 %v5725
  %v5776 = vunpack.c.l.b16 %v5726
  %v5777 = vunpack.c.l.b16 %v5727
  %v5778 = vunpack.c.l.b16 %v5728
  %v5779 = vunpack.c.l.b16 %v5729
  %v5780 = vunpack.c.l.b16 %v5730
  %v5781 = vunpack.c.l.b16 %v5731
  %v5782 = vunpack.c.l.b16 %v5732
  %v5783 = vpack.c.b16 %v5759, %v5758
  %v5784 = vpack.c.b16 %v5761, %v5760
  %v5785 = vpack.c.b16 %v5763, %v5762
  %v5786 = vpack.c.b16 %v5765, %v5764
  %v5787 = vpack.c.b16 %v5767, %v5766
  %v5788 = vpack.c.b16 %v5769, %v5768
  %v5789 = vpack.c.b16 %v5771, %v5770
  %v5790 = vpack.c.b16 %v5773, %v5772
  %v5791 = vpack.c.b16 %v5775, %v5774
  %v5792 = vpack.c.b16 %v5777, %v5776
  %v5793 = vpack.c.b16 %v5779, %v5778
  %v5794 = vpack.c.b16 %v5781, %v5780
  %v5795 = vpack.c.b16 %v5782, %v5782
  %v5809 = vsel %vm2089, %v5795, 0
  %5811 = vmatprep.subr.bf16.mxu0 0
  %5812 = vmatpush1.bf16.msra.mxu0 %v5783
  %5813 = vmatprep.subr.bf16.mxu0 0
  %5814 = vmatpush1.bf16.msra.mxu0 %v5784
  %5815 = vmatprep.subr.bf16.mxu0 0
  %5816 = vmatpush1.bf16.msra.mxu0 %v5785
  %5817 = vmatprep.subr.bf16.mxu0 0
  %5818 = vmatpush1.bf16.msra.mxu0 %v5786
  %5819 = vmatprep.subr.bf16.mxu0 0
  %5820 = vmatpush1.bf16.msra.mxu0 %v5787
  %5821 = vmatprep.subr.bf16.mxu0 0
  %5822 = vmatpush1.bf16.msra.mxu0 %v5788
  %5823 = vmatprep.subr.bf16.mxu0 0
  %5824 = vmatpush1.bf16.msra.mxu0 %v5789
  %5825 = vmatprep.subr.bf16.mxu0 0
  %5826 = vmatpush1.bf16.msra.mxu0 %v5790
  %5827 = vmatprep.subr.bf16.mxu0 0
  %5828 = vmatpush1.bf16.msra.mxu0 %v5791
  %5829 = vmatprep.subr.bf16.mxu0 0
  %5830 = vmatpush1.bf16.msra.mxu0 %v5792
  %5831 = vmatprep.subr.bf16.mxu0 0
  %5832 = vmatpush1.bf16.msra.mxu0 %v5793
  %5833 = vmatprep.subr.bf16.mxu0 0
  %5834 = vmatpush1.bf16.msra.mxu0 %v5794
  %5835 = vmatprep.subr.bf16.mxu0 0
  %5836 = vmatpush1.bf16.msra.mxu0 %v5809
  %5837 = vmatprep.subr.bf16.mxu0 0
  %5838 = vmatpush1.bf16.msra.mxu0 0
  %5839 = vmatprep.subr.bf16.mxu0 0
  %5840 = vmatpush1.bf16.msra.mxu0 0
  %5841 = vmatprep.subr.bf16.mxu0 0
  %5842 = vmatpush1.bf16.msra.mxu0 0
  %5843 = vmatprep.mubr.bf16.mxu0 %v2078
  %5844 = vmatmul.mubr.bf16.gmra.mrb[0].mxu0 %v1968
  %v5845 = vpop.f32.mrb[0].mxu0
  %v5846 = vadd.f32 0.0, %v5845
  %v5847 = vpop.f32.mrb[0].mxu0
  %v5848 = vpop.f32.mrb[0].mxu0
  %v5849 = vadd.f32 0.0, %v5848
  %v5850 = vpop.f32.mrb[0].mxu0
  %5851 = vmatprep.mubr.bf16.mxu0 %v2081
  %5852 = vmatmul.mubr.bf16.gmra.mrb[0].mxu0 %v1970
  %v5853 = vpop.f32.mrb[0].mxu0
  %v5854 = vadd.f32 0.0, %v5853
  %v5855 = vpop.f32.mrb[0].mxu0
  %v5856 = vpop.f32.mrb[0].mxu0
  %v5857 = vadd.f32 0.0, %v5856
  %v5858 = vpop.f32.mrb[0].mxu0
  %5859 = vmatprep.mubr.bf16.mxu0 %v2084
  %5860 = vmatmul.mubr.bf16.gmra.mrb[0].mxu0 %v1972
  %v5861 = vpop.f32.mrb[0].mxu0
  %v5862 = vadd.f32 0.0, %v5861
  %v5863 = vpop.f32.mrb[0].mxu0
  %v5864 = vpop.f32.mrb[0].mxu0
  %v5865 = vadd.f32 0.0, %v5864
  %v5866 = vpop.f32.mrb[0].mxu0
  %5867 = vmatprep.mubr.bf16.mxu0 %v2087
  %5868 = vmatmul.mubr.bf16.gmra.mrb[0].mxu0 %v1974
  %v5869 = vpop.f32.mrb[0].mxu0
  %v5870 = vadd.f32 0.0, %v5869
  %v5871 = vpop.f32.mrb[0].mxu0
  %v5872 = vpop.f32.mrb[0].mxu0
  %v5873 = vadd.f32 0.0, %v5872
  %v5874 = vpop.f32.mrb[0].mxu0
  %5875 = vdwg.mxu0
  %s5876 = scalar_lea.vmem %s4, 2300
  %v5877 = vld [vmem:[%s5876] sm:$0xf]
  %v5878 = vld [vmem:[%s5876 + $0x4] sm:$0xf]
  %v5879 = vld [vmem:[%s5876 + $0x8] sm:$0xf]
  %v5880 = vld [vmem:[%s5876 + $0xc] sm:$0xf]
  %v5881 = vld [vmem:[%s5876 + $0x10] sm:$0xf]
  %v5882 = vld [vmem:[%s5876 + $0x14] sm:$0xf]
  %v5883 = vld [vmem:[%s5876 + $0x18] sm:$0xf]
  %v5884 = vld [vmem:[%s5876 + $0x1c] sm:$0xf]
  %v5885 = vld [vmem:[%s5876 + $0x20] sm:$0xf]
  %v5886 = vld [vmem:[%s5876 + $0x24] sm:$0xf]
  %v5887 = vld [vmem:[%s5876 + $0x28] sm:$0xf]
  %v5888 = vld [vmem:[%s5876 + $0x2c] sm:$0xf]
  %v5889 = vld [vmem:[%s5876 + $0x30] sm:$0xf]
  %v5890 = vld [vmem:[%s5876 + $0x34] sm:$0xf]
  %v5891 = vld [vmem:[%s5876 + $0x38] sm:$0xf]
  %v5892 = vld [vmem:[%s5876 + $0x3c] sm:$0xf]
  %v5893 = vld [vmem:[%s5876 + $0x40] sm:$0xf]
  %v5894 = vld [vmem:[%s5876 + $0x44] sm:$0xf]
  %v5895 = vld [vmem:[%s5876 + $0x48] sm:$0xf]
  %v5896 = vld [vmem:[%s5876 + $0x4c] sm:$0xf]
  %v5897 = vld [vmem:[%s5876 + $0x50] sm:$0xf]
  %v5898 = vld [vmem:[%s5876 + $0x54] sm:$0xf]
  %v5899 = vld [vmem:[%s5876 + $0x58] sm:$0xf]
  %v5900 = vld [vmem:[%s5876 + $0x5c] sm:$0xf]
  %v5901 = vld [vmem:[%s5876 + $0x60] sm:$0x3]
  %v5927 = vunpack.c.l.b16 %v5877
  %v5928 = vunpack.c.l.b16 %v5878
  %v5929 = vunpack.c.l.b16 %v5879
  %v5930 = vunpack.c.l.b16 %v5880
  %v5931 = vunpack.c.l.b16 %v5881
  %v5932 = vunpack.c.l.b16 %v5882
  %v5933 = vunpack.c.l.b16 %v5883
  %v5934 = vunpack.c.l.b16 %v5884
  %v5935 = vunpack.c.l.b16 %v5885
  %v5936 = vunpack.c.l.b16 %v5886
  %v5937 = vunpack.c.l.b16 %v5887
  %v5938 = vunpack.c.l.b16 %v5888
  %v5939 = vunpack.c.l.b16 %v5889
  %v5940 = vunpack.c.l.b16 %v5890
  %v5941 = vunpack.c.l.b16 %v5891
  %v5942 = vunpack.c.l.b16 %v5892
  %v5943 = vunpack.c.l.b16 %v5893
  %v5944 = vunpack.c.l.b16 %v5894
  %v5945 = vunpack.c.l.b16 %v5895
  %v5946 = vunpack.c.l.b16 %v5896
  %v5947 = vunpack.c.l.b16 %v5897
  %v5948 = vunpack.c.l.b16 %v5898
  %v5949 = vunpack.c.l.b16 %v5899
  %v5950 = vunpack.c.l.b16 %v5900
  %v5951 = vunpack.c.l.b16 %v5901
  %v5952 = vpack.c.b16 %v5928, %v5927
  %v5953 = vpack.c.b16 %v5930, %v5929
  %v5954 = vpack.c.b16 %v5932, %v5931
  %v5955 = vpack.c.b16 %v5934, %v5933
  %v5956 = vpack.c.b16 %v5936, %v5935
  %v5957 = vpack.c.b16 %v5938, %v5937
  %v5958 = vpack.c.b16 %v5940, %v5939
  %v5959 = vpack.c.b16 %v5942, %v5941
  %v5960 = vpack.c.b16 %v5944, %v5943
  %v5961 = vpack.c.b16 %v5946, %v5945
  %v5962 = vpack.c.b16 %v5948, %v5947
  %v5963 = vpack.c.b16 %v5950, %v5949
  %v5964 = vpack.c.b16 %v5951, %v5951
  %v5978 = vsel %vm2089, %v5964, 0
  %5980 = vmatprep.subr.bf16.mxu0 0
  %5981 = vmatpush1.bf16.msra.mxu0 %v5952
  %5982 = vmatprep.subr.bf16.mxu0 0
  %5983 = vmatpush1.bf16.msra.mxu0 %v5953
  %5984 = vmatprep.subr.bf16.mxu0 0
  %5985 = vmatpush1.bf16.msra.mxu0 %v5954
  %5986 = vmatprep.subr.bf16.mxu0 0
  %5987 = vmatpush1.bf16.msra.mxu0 %v5955
  %5988 = vmatprep.subr.bf16.mxu0 0
  %5989 = vmatpush1.bf16.msra.mxu0 %v5956
  %5990 = vmatprep.subr.bf16.mxu0 0
  %5991 = vmatpush1.bf16.msra.mxu0 %v5957
  %5992 = vmatprep.subr.bf16.mxu0 0
  %5993 = vmatpush1.bf16.msra.mxu0 %v5958
  %5994 = vmatprep.subr.bf16.mxu0 0
  %5995 = vmatpush1.bf16.msra.mxu0 %v5959
  %5996 = vmatprep.subr.bf16.mxu0 0
  %5997 = vmatpush1.bf16.msra.mxu0 %v5960
  %5998 = vmatprep.subr.bf16.mxu0 0
  %5999 = vmatpush1.bf16.msra.mxu0 %v5961
  %6000 = vmatprep.subr.bf16.mxu0 0
  %6001 = vmatpush1.bf16.msra.mxu0 %v5962
  %6002 = vmatprep.subr.bf16.mxu0 0
  %6003 = vmatpush1.bf16.msra.mxu0 %v5963
  %6004 = vmatprep.subr.bf16.mxu0 0
  %6005 = vmatpush1.bf16.msra.mxu0 %v5978
  %6006 = vmatprep.subr.bf16.mxu0 0
  %6007 = vmatpush1.bf16.msra.mxu0 0
  %6008 = vmatprep.subr.bf16.mxu0 0
  %6009 = vmatpush1.bf16.msra.mxu0 0
  %6010 = vmatprep.subr.bf16.mxu0 0
  %6011 = vmatpush1.bf16.msra.mxu0 0
  %6012 = vmatprep.mubr.bf16.mxu0 %v2078
  %6013 = vmatmul.mubr.bf16.gmra.mrb[0].mxu0 %v1968
  %v6014 = vpop.f32.mrb[0].mxu0
  %v6015 = vadd.f32 0.0, %v6014
  %v6016 = vpop.f32.mrb[0].mxu0
  %v6017 = vpop.f32.mrb[0].mxu0
  %v6018 = vadd.f32 0.0, %v6017
  %v6019 = vpop.f32.mrb[0].mxu0
  %6020 = vmatprep.mubr.bf16.mxu0 %v2081
  %6021 = vmatmul.mubr.bf16.gmra.mrb[0].mxu0 %v1970
  %v6022 = vpop.f32.mrb[0].mxu0
  %v6023 = vadd.f32 0.0, %v6022
  %v6024 = vpop.f32.mrb[0].mxu0
  %v6025 = vpop.f32.mrb[0].mxu0
  %v6026 = vadd.f32 0.0, %v6025
  %v6027 = vpop.f32.mrb[0].mxu0
  %6028 = vmatprep.mubr.bf16.mxu0 %v2084
  %6029 = vmatmul.mubr.bf16.gmra.mrb[0].mxu0 %v1972
  %v6030 = vpop.f32.mrb[0].mxu0
  %v6031 = vadd.f32 0.0, %v6030
  %v6032 = vpop.f32.mrb[0].mxu0
  %v6033 = vpop.f32.mrb[0].mxu0
  %v6034 = vadd.f32 0.0, %v6033
  %v6035 = vpop.f32.mrb[0].mxu0
  %6036 = vmatprep.mubr.bf16.mxu0 %v2087
  %6037 = vmatmul.mubr.bf16.gmra.mrb[0].mxu0 %v1974
  %v6038 = vpop.f32.mrb[0].mxu0
  %v6039 = vadd.f32 0.0, %v6038
  %v6040 = vpop.f32.mrb[0].mxu0
  %v6041 = vpop.f32.mrb[0].mxu0
  %v6042 = vadd.f32 0.0, %v6041
  %v6043 = vpop.f32.mrb[0].mxu0
  %6044 = vdwg.mxu0
  %s6045 = scalar_lea.vmem %s4, 2400
  %v6046 = vld [vmem:[%s6045] sm:$0xf]
  %v6047 = vld [vmem:[%s6045 + $0x4] sm:$0xf]
  %v6048 = vld [vmem:[%s6045 + $0x8] sm:$0xf]
  %v6049 = vld [vmem:[%s6045 + $0xc] sm:$0xf]
  %v6050 = vld [vmem:[%s6045 + $0x10] sm:$0xf]
  %v6051 = vld [vmem:[%s6045 + $0x14] sm:$0xf]
  %v6052 = vld [vmem:[%s6045 + $0x18] sm:$0xf]
  %v6053 = vld [vmem:[%s6045 + $0x1c] sm:$0xf]
  %v6054 = vld [vmem:[%s6045 + $0x20] sm:$0xf]
  %v6055 = vld [vmem:[%s6045 + $0x24] sm:$0xf]
  %v6056 = vld [vmem:[%s6045 + $0x28] sm:$0xf]
  %v6057 = vld [vmem:[%s6045 + $0x2c] sm:$0xf]
  %v6058 = vld [vmem:[%s6045 + $0x30] sm:$0xf]
  %v6059 = vld [vmem:[%s6045 + $0x34] sm:$0xf]
  %v6060 = vld [vmem:[%s6045 + $0x38] sm:$0xf]
  %v6061 = vld [vmem:[%s6045 + $0x3c] sm:$0xf]
  %v6062 = vld [vmem:[%s6045 + $0x40] sm:$0xf]
  %v6063 = vld [vmem:[%s6045 + $0x44] sm:$0xf]
  %v6064 = vld [vmem:[%s6045 + $0x48] sm:$0xf]
  %v6065 = vld [vmem:[%s6045 + $0x4c] sm:$0xf]
  %v6066 = vld [vmem:[%s6045 + $0x50] sm:$0xf]
  %v6067 = vld [vmem:[%s6045 + $0x54] sm:$0xf]
  %v6068 = vld [vmem:[%s6045 + $0x58] sm:$0xf]
  %v6069 = vld [vmem:[%s6045 + $0x5c] sm:$0xf]
  %v6070 = vld [vmem:[%s6045 + $0x60] sm:$0x3]
  %v6096 = vunpack.c.l.b16 %v6046
  %v6097 = vunpack.c.l.b16 %v6047
  %v6098 = vunpack.c.l.b16 %v6048
  %v6099 = vunpack.c.l.b16 %v6049
  %v6100 = vunpack.c.l.b16 %v6050
  %v6101 = vunpack.c.l.b16 %v6051
  %v6102 = vunpack.c.l.b16 %v6052
  %v6103 = vunpack.c.l.b16 %v6053
  %v6104 = vunpack.c.l.b16 %v6054
  %v6105 = vunpack.c.l.b16 %v6055
  %v6106 = vunpack.c.l.b16 %v6056
  %v6107 = vunpack.c.l.b16 %v6057
  %v6108 = vunpack.c.l.b16 %v6058
  %v6109 = vunpack.c.l.b16 %v6059
  %v6110 = vunpack.c.l.b16 %v6060
  %v6111 = vunpack.c.l.b16 %v6061
  %v6112 = vunpack.c.l.b16 %v6062
  %v6113 = vunpack.c.l.b16 %v6063
  %v6114 = vunpack.c.l.b16 %v6064
  %v6115 = vunpack.c.l.b16 %v6065
  %v6116 = vunpack.c.l.b16 %v6066
  %v6117 = vunpack.c.l.b16 %v6067
  %v6118 = vunpack.c.l.b16 %v6068
  %v6119 = vunpack.c.l.b16 %v6069
  %v6120 = vunpack.c.l.b16 %v6070
  %v6121 = vpack.c.b16 %v6097, %v6096
  %v6122 = vpack.c.b16 %v6099, %v6098
  %v6123 = vpack.c.b16 %v6101, %v6100
  %v6124 = vpack.c.b16 %v6103, %v6102
  %v6125 = vpack.c.b16 %v6105, %v6104
  %v6126 = vpack.c.b16 %v6107, %v6106
  %v6127 = vpack.c.b16 %v6109, %v6108
  %v6128 = vpack.c.b16 %v6111, %v6110
  %v6129 = vpack.c.b16 %v6113, %v6112
  %v6130 = vpack.c.b16 %v6115, %v6114
  %v6131 = vpack.c.b16 %v6117, %v6116
  %v6132 = vpack.c.b16 %v6119, %v6118
  %v6133 = vpack.c.b16 %v6120, %v6120
  %v6147 = vsel %vm2089, %v6133, 0
  %6149 = vmatprep.subr.bf16.mxu0 0
  %6150 = vmatpush1.bf16.msra.mxu0 %v6121
  %6151 = vmatprep.subr.bf16.mxu0 0
  %6152 = vmatpush1.bf16.msra.mxu0 %v6122
  %6153 = vmatprep.subr.bf16.mxu0 0
  %6154 = vmatpush1.bf16.msra.mxu0 %v6123
  %6155 = vmatprep.subr.bf16.mxu0 0
  %6156 = vmatpush1.bf16.msra.mxu0 %v6124
  %6157 = vmatprep.subr.bf16.mxu0 0
  %6158 = vmatpush1.bf16.msra.mxu0 %v6125
  %6159 = vmatprep.subr.bf16.mxu0 0
  %6160 = vmatpush1.bf16.msra.mxu0 %v6126
  %6161 = vmatprep.subr.bf16.mxu0 0
  %6162 = vmatpush1.bf16.msra.mxu0 %v6127
  %6163 = vmatprep.subr.bf16.mxu0 0
  %6164 = vmatpush1.bf16.msra.mxu0 %v6128
  %6165 = vmatprep.subr.bf16.mxu0 0
  %6166 = vmatpush1.bf16.msra.mxu0 %v6129
  %6167 = vmatprep.subr.bf16.mxu0 0
  %6168 = vmatpush1.bf16.msra.mxu0 %v6130
  %6169 = vmatprep.subr.bf16.mxu0 0
  %6170 = vmatpush1.bf16.msra.mxu0 %v6131
  %6171 = vmatprep.subr.bf16.mxu0 0
  %6172 = vmatpush1.bf16.msra.mxu0 %v6132
  %6173 = vmatprep.subr.bf16.mxu0 0
  %6174 = vmatpush1.bf16.msra.mxu0 %v6147
  %6175 = vmatprep.subr.bf16.mxu0 0
  %6176 = vmatpush1.bf16.msra.mxu0 0
  %6177 = vmatprep.subr.bf16.mxu0 0
  %6178 = vmatpush1.bf16.msra.mxu0 0
  %6179 = vmatprep.subr.bf16.mxu0 0
  %6180 = vmatpush1.bf16.msra.mxu0 0
  %6181 = vmatprep.mubr.bf16.mxu0 %v2078
  %6182 = vmatmul.mubr.bf16.gmra.mrb[0].mxu0 %v1968
  %v6183 = vpop.f32.mrb[0].mxu0
  %v6184 = vadd.f32 0.0, %v6183
  %v6185 = vpop.f32.mrb[0].mxu0
  %v6186 = vpop.f32.mrb[0].mxu0
  %v6187 = vadd.f32 0.0, %v6186
  %v6188 = vpop.f32.mrb[0].mxu0
  %6189 = vmatprep.mubr.bf16.mxu0 %v2081
  %6190 = vmatmul.mubr.bf16.gmra.mrb[0].mxu0 %v1970
  %v6191 = vpop.f32.mrb[0].mxu0
  %v6192 = vadd.f32 0.0, %v6191
  %v6193 = vpop.f32.mrb[0].mxu0
  %v6194 = vpop.f32.mrb[0].mxu0
  %v6195 = vadd.f32 0.0, %v6194
  %v6196 = vpop.f32.mrb[0].mxu0
  %6197 = vmatprep.mubr.bf16.mxu0 %v2084
  %6198 = vmatmul.mubr.bf16.gmra.mrb[0].mxu0 %v1972
  %v6199 = vpop.f32.mrb[0].mxu0
  %v6200 = vadd.f32 0.0, %v6199
  %v6201 = vpop.f32.mrb[0].mxu0
  %v6202 = vpop.f32.mrb[0].mxu0
  %v6203 = vadd.f32 0.0, %v6202
  %v6204 = vpop.f32.mrb[0].mxu0
  %6205 = vmatprep.mubr.bf16.mxu0 %v2087
  %6206 = vmatmul.mubr.bf16.gmra.mrb[0].mxu0 %v1974
  %v6207 = vpop.f32.mrb[0].mxu0
  %v6208 = vadd.f32 0.0, %v6207
  %v6209 = vpop.f32.mrb[0].mxu0
  %v6210 = vpop.f32.mrb[0].mxu0
  %v6211 = vadd.f32 0.0, %v6210
  %v6212 = vpop.f32.mrb[0].mxu0
  %6213 = vdwg.mxu0
  %v6214 = vpack.c.bf16 %v2297, %v2128
  %v6215 = vpack.c.bf16 %v2635, %v2466
  %v6216 = vpack.c.bf16 %v2973, %v2804
  %v6217 = vpack.c.bf16 %v3311, %v3142
  %v6218 = vpack.c.bf16 %v3649, %v3480
  %v6219 = vpack.c.bf16 %v3987, %v3818
  %v6220 = vpack.c.bf16 %v4325, %v4156
  %v6221 = vpack.c.bf16 %v4663, %v4494
  %v6222 = vpack.c.bf16 %v5001, %v4832
  %v6223 = vpack.c.bf16 %v5339, %v5170
  %v6224 = vpack.c.bf16 %v5677, %v5508
  %v6225 = vpack.c.bf16 %v6015, %v5846
  %v6226 = vpack.c.bf16 %v6184, %v6184
  %v6227 = vld [vmem:[%s5] sm:$0xf]
  %v6228 = vld [vmem:[%s5 + $0x4] sm:$0xf]
  %v6229 = vld [vmem:[%s5 + $0x8] sm:$0xf]
  %v6230 = vld [vmem:[%s5 + $0xc] sm:$0xf]
  %v6231 = vld [vmem:[%s5 + $0x10] sm:$0xf]
  %v6232 = vld [vmem:[%s5 + $0x14] sm:$0xf]
  %v6233 = vld [vmem:[%s5 + $0x18] sm:$0xf]
  %v6234 = vld [vmem:[%s5 + $0x1c] sm:$0xf]
  %v6235 = vld [vmem:[%s5 + $0x20] sm:$0xf]
  %v6236 = vld [vmem:[%s5 + $0x24] sm:$0xf]
  %v6237 = vld [vmem:[%s5 + $0x28] sm:$0xf]
  %v6238 = vld [vmem:[%s5 + $0x2c] sm:$0xf]
  %v6239 = vld [vmem:[%s5 + $0x30] sm:$0xf]
  %v6240 = vld [vmem:[%s5 + $0x34] sm:$0xf]
  %v6241 = vld [vmem:[%s5 + $0x38] sm:$0xf]
  %v6242 = vld [vmem:[%s5 + $0x3c] sm:$0xf]
  %v6243 = vld [vmem:[%s5 + $0x40] sm:$0xf]
  %v6244 = vld [vmem:[%s5 + $0x44] sm:$0xf]
  %v6245 = vld [vmem:[%s5 + $0x48] sm:$0xf]
  %v6246 = vld [vmem:[%s5 + $0x4c] sm:$0xf]
  %v6247 = vld [vmem:[%s5 + $0x50] sm:$0xf]
  %v6248 = vld [vmem:[%s5 + $0x54] sm:$0xf]
  %v6249 = vld [vmem:[%s5 + $0x58] sm:$0xf]
  %v6250 = vld [vmem:[%s5 + $0x5c] sm:$0xf]
  %v6251 = vld [vmem:[%s5 + $0x60] sm:$0xf]
  %v6252 = vld [vmem:[%s6] sm:$0x1]
  %v6254 = vlaneseq
  %v6255 = vshrl.u32 %v6254, 7
  %v6256 = vsub.s32 0, %v6255
  %v6257 = vrot.slane %v6252, %v6256
  %6259 = vxpose.xlu0.c.b16.start [1/8] %v6214, 128
  %6260 = vxpose.xlu0.c.b16.cont [2/8] %v6215, 128
  %6261 = vxpose.xlu0.c.b16.cont [3/8] %v6216, 128
  %6262 = vxpose.xlu0.c.b16.cont [4/8] %v6217, 128
  %6263 = vxpose.xlu0.c.b16.cont [5/8] %v6218, 128
  %6264 = vxpose.xlu0.c.b16.cont [6/8] %v6219, 128
  %6265 = vxpose.xlu0.c.b16.cont [7/8] %v6220, 128
  %6266 = vxpose.xlu0.c.b16.end [8/8] %v6221, 128
  %v6267 = vpop.trf.xlu0
  %v6268 = vpop.trf.xlu0
  %v6269 = vpop.trf.xlu0
  %v6270 = vpop.trf.xlu0
  %v6271 = vpop.trf.xlu0
  %v6272 = vpop.trf.xlu0
  %v6273 = vpop.trf.xlu0
  %v6274 = vpop.trf.xlu0
  %6275 = vxpose.xlu0.c.b16.start [1/8] %v6222, 128
  %6276 = vxpose.xlu0.c.b16.cont [2/8] %v6223, 128
  %6277 = vxpose.xlu0.c.b16.cont [3/8] %v6224, 128
  %6278 = vxpose.xlu0.c.b16.cont [4/8] %v6225, 128
  %6279 = vxpose.xlu0.c.b16.cont [5/8] %v6226, 128
  %6280 = vxpose.xlu0.c.b16.cont [6/8] 0, 128
  %6281 = vxpose.xlu0.c.b16.cont [7/8] 0, 128
  %6282 = vxpose.xlu0.c.b16.end [8/8] 0, 128
  %v6283 = vpop.trf.xlu0
  %v6284 = vpop.trf.xlu0
  %v6285 = vpop.trf.xlu0
  %v6286 = vpop.trf.xlu0
  %v6287 = vpop.trf.xlu0
  %v6288 = vpop.trf.xlu0
  %v6289 = vpop.trf.xlu0
  %v6290 = vpop.trf.xlu0
  %v6316 = vunpack.c.l.b16 %v6227
  %v6317 = vunpack.c.l.b16 %v6228
  %v6318 = vunpack.c.l.b16 %v6229
  %v6319 = vunpack.c.l.b16 %v6230
  %v6320 = vunpack.c.l.b16 %v6231
  %v6321 = vunpack.c.l.b16 %v6232
  %v6322 = vunpack.c.l.b16 %v6233
  %v6323 = vunpack.c.l.b16 %v6234
  %v6324 = vunpack.c.l.b16 %v6235
  %v6325 = vunpack.c.l.b16 %v6236
  %v6326 = vunpack.c.l.b16 %v6237
  %v6327 = vunpack.c.l.b16 %v6238
  %v6328 = vunpack.c.l.b16 %v6239
  %v6329 = vunpack.c.l.b16 %v6240
  %v6330 = vunpack.c.l.b16 %v6241
  %v6331 = vunpack.c.l.b16 %v6242
  %v6332 = vunpack.c.l.b16 %v6243
  %v6333 = vunpack.c.l.b16 %v6244
  %v6334 = vunpack.c.l.b16 %v6245
  %v6335 = vunpack.c.l.b16 %v6246
  %v6336 = vunpack.c.l.b16 %v6247
  %v6337 = vunpack.c.l.b16 %v6248
  %v6338 = vunpack.c.l.b16 %v6249
  %v6339 = vunpack.c.l.b16 %v6250
  %v6340 = vunpack.c.l.b16 %v6251
  %v6341 = vpack.c.b16 %v6317, %v6316
  %v6342 = vpack.c.b16 %v6319, %v6318
  %v6343 = vpack.c.b16 %v6321, %v6320
  %v6344 = vpack.c.b16 %v6323, %v6322
  %v6345 = vpack.c.b16 %v6325, %v6324
  %v6346 = vpack.c.b16 %v6327, %v6326
  %v6347 = vpack.c.b16 %v6329, %v6328
  %v6348 = vpack.c.b16 %v6331, %v6330
  %v6349 = vpack.c.b16 %v6333, %v6332
  %v6350 = vpack.c.b16 %v6335, %v6334
  %v6351 = vpack.c.b16 %v6337, %v6336
  %v6352 = vpack.c.b16 %v6339, %v6338
  %v6353 = vpack.c.b16 %v6340, %v6340
  %v6367 = vsel %vm672, %v6283, 0
  %v6370 = vsel %vm672, %v6284, 0
  %v6373 = vsel %vm672, %v6285, 0
  %v6376 = vsel %vm672, %v6286, 0
  %v6379 = vsel %vm672, %v6287, 0
  %v6382 = vsel %vm672, %v6288, 0
  %v6385 = vsel %vm672, %v6289, 0
  %v6388 = vsel %vm685, %v6353, 0
  %6390 = vmatprep.subr.bf16.mxu0 0
  %6391 = vmatpush1.bf16.msra.mxu0 %v6341
  %6392 = vmatprep.subr.bf16.mxu0 0
  %6393 = vmatpush1.bf16.msra.mxu0 %v6342
  %6394 = vmatprep.subr.bf16.mxu0 0
  %6395 = vmatpush1.bf16.msra.mxu0 %v6343
  %6396 = vmatprep.subr.bf16.mxu0 0
  %6397 = vmatpush1.bf16.msra.mxu0 %v6344
  %6398 = vmatprep.subr.bf16.mxu0 0
  %6399 = vmatpush1.bf16.msra.mxu0 %v6345
  %6400 = vmatprep.subr.bf16.mxu0 0
  %6401 = vmatpush1.bf16.msra.mxu0 %v6346
  %6402 = vmatprep.subr.bf16.mxu0 0
  %6403 = vmatpush1.bf16.msra.mxu0 %v6347
  %6404 = vmatprep.subr.bf16.mxu0 0
  %6405 = vmatpush1.bf16.msra.mxu0 %v6348
  %6406 = vmatprep.subr.bf16.mxu0 0
  %6407 = vmatpush1.bf16.msra.mxu0 %v6349
  %6408 = vmatprep.subr.bf16.mxu0 0
  %6409 = vmatpush1.bf16.msra.mxu0 %v6350
  %6410 = vmatprep.subr.bf16.mxu0 0
  %6411 = vmatpush1.bf16.msra.mxu0 %v6351
  %6412 = vmatprep.subr.bf16.mxu0 0
  %6413 = vmatpush1.bf16.msra.mxu0 %v6352
  %6414 = vmatprep.subr.bf16.mxu0 0
  %6415 = vmatpush1.bf16.msra.mxu0 %v6388
  %6416 = vmatprep.subr.bf16.mxu0 0
  %6417 = vmatpush1.bf16.msra.mxu0 0
  %6418 = vmatprep.subr.bf16.mxu0 0
  %6419 = vmatpush1.bf16.msra.mxu0 0
  %6420 = vmatprep.subr.bf16.mxu0 0
  %6421 = vmatpush1.bf16.msra.mxu0 0
  %6422 = vmatprep.mubr.bf16.mxu0 %v6367
  %6423 = vmatmul.mubr.bf16.gmra.mrb[0].mxu0 %v6267
  %v6424 = vpop.f32.mrb[0].mxu0
  %v6425 = vadd.f32 %v6257, %v6424
  %v6426 = vpop.f32.mrb[0].mxu0
  %v6427 = vpop.f32.mrb[0].mxu0
  %v6428 = vadd.f32 %v6257, %v6427
  %v6429 = vpop.f32.mrb[0].mxu0
  %6430 = vmatprep.mubr.bf16.mxu0 %v6370
  %6431 = vmatmul.mubr.bf16.gmra.mrb[0].mxu0 %v6268
  %v6432 = vpop.f32.mrb[0].mxu0
  %v6433 = vadd.f32 %v6257, %v6432
  %v6434 = vpop.f32.mrb[0].mxu0
  %v6435 = vpop.f32.mrb[0].mxu0
  %v6436 = vadd.f32 %v6257, %v6435
  %v6437 = vpop.f32.mrb[0].mxu0
  %6438 = vmatprep.mubr.bf16.mxu0 %v6373
  %6439 = vmatmul.mubr.bf16.gmra.mrb[0].mxu0 %v6269
  %v6440 = vpop.f32.mrb[0].mxu0
  %v6441 = vadd.f32 %v6257, %v6440
  %v6442 = vpop.f32.mrb[0].mxu0
  %v6443 = vpop.f32.mrb[0].mxu0
  %v6444 = vadd.f32 %v6257, %v6443
  %v6445 = vpop.f32.mrb[0].mxu0
  %6446 = vmatprep.mubr.bf16.mxu0 %v6376
  %6447 = vmatmul.mubr.bf16.gmra.mrb[0].mxu0 %v6270
  %v6448 = vpop.f32.mrb[0].mxu0
  %v6449 = vadd.f32 %v6257, %v6448
  %v6450 = vpop.f32.mrb[0].mxu0
  %v6451 = vpop.f32.mrb[0].mxu0
  %v6452 = vadd.f32 %v6257, %v6451
  %v6453 = vpop.f32.mrb[0].mxu0
  %6454 = vmatprep.mubr.bf16.mxu0 %v6379
  %6455 = vmatmul.mubr.bf16.gmra.mrb[0].mxu0 %v6271
  %v6456 = vpop.f32.mrb[0].mxu0
  %v6457 = vadd.f32 %v6257, %v6456
  %v6458 = vpop.f32.mrb[0].mxu0
  %v6459 = vpop.f32.mrb[0].mxu0
  %v6460 = vadd.f32 %v6257, %v6459
  %v6461 = vpop.f32.mrb[0].mxu0
  %6462 = vmatprep.mubr.bf16.mxu0 %v6382
  %6463 = vmatmul.mubr.bf16.gmra.mrb[0].mxu0 %v6272
  %v6464 = vpop.f32.mrb[0].mxu0
  %v6465 = vadd.f32 %v6257, %v6464
  %v6466 = vpop.f32.mrb[0].mxu0
  %v6467 = vpop.f32.mrb[0].mxu0
  %v6468 = vadd.f32 %v6257, %v6467
  %v6469 = vpop.f32.mrb[0].mxu0
  %6470 = vmatprep.mubr.bf16.mxu0 %v6385
  %6471 = vmatmul.mubr.bf16.gmra.mrb[0].mxu0 %v6273
  %v6472 = vpop.f32.mrb[0].mxu0
  %v6473 = vadd.f32 %v6257, %v6472
  %v6474 = vpop.f32.mrb[0].mxu0
  %v6475 = vpop.f32.mrb[0].mxu0
  %v6476 = vpop.f32.mrb[0].mxu0
  %6477 = vdwg.mxu0
  %v6478 = vmax.f32 %v6425, 0.0
  %v6479 = vmax.f32 %v6428, 0.0
  %v6480 = vmax.f32 %v6433, 0.0
  %v6481 = vmax.f32 %v6436, 0.0
  %v6482 = vmax.f32 %v6441, 0.0
  %v6483 = vmax.f32 %v6444, 0.0
  %v6484 = vmax.f32 %v6449, 0.0
  %v6485 = vmax.f32 %v6452, 0.0
  %v6486 = vmax.f32 %v6457, 0.0
  %v6487 = vmax.f32 %v6460, 0.0
  %v6488 = vmax.f32 %v6465, 0.0
  %v6489 = vmax.f32 %v6468, 0.0
  %v6490 = vmax.f32 %v6473, 0.0
  %v6491 = vpack.c.bf16 %v6479, %v6478
  %v6492 = vpack.c.bf16 %v6481, %v6480
  %v6493 = vpack.c.bf16 %v6483, %v6482
  %v6494 = vpack.c.bf16 %v6485, %v6484
  %v6495 = vpack.c.bf16 %v6487, %v6486
  %v6496 = vpack.c.bf16 %v6489, %v6488
  %v6497 = vpack.c.bf16 %v6490, %v6490
  %v6498 = vld [vmem:[%s7] sm:$0xf]
  %v6499 = vld [vmem:[%s7 + $0x4] sm:$0xf]
  %v6500 = vld [vmem:[%s7 + $0x8] sm:$0xf]
  %v6501 = vld [vmem:[%s7 + $0xc] sm:$0x1]
  %v6506 = vunpack.c.l.b16 %v6498
  %v6507 = vunpack.c.l.b16 %v6499
  %v6508 = vunpack.c.l.b16 %v6500
  %v6509 = vunpack.c.l.b16 %v6501
  %v6510 = vpack.c.b16 %v6507, %v6506
  %v6511 = vpack.c.b16 %v6509, %v6508
  %vm6512 = vcmask 818176
  %v6514 = vsel %vm6512, %v6510, 0
  %v6517 = vsel %vm6512, %v6511, 0
  %v6520 = vsel %vm2089, %v6497, 0
  %6522 = vmatprep.subr.bf16.mxu0 0
  %6523 = vmatpush1.bf16.msra.mxu0 %v6491
  %6524 = vmatprep.subr.bf16.mxu0 0
  %6525 = vmatpush1.bf16.msra.mxu0 %v6492
  %6526 = vmatprep.subr.bf16.mxu0 0
  %6527 = vmatpush1.bf16.msra.mxu0 %v6493
  %6528 = vmatprep.subr.bf16.mxu0 0
  %6529 = vmatpush1.bf16.msra.mxu0 %v6494
  %6530 = vmatprep.subr.bf16.mxu0 0
  %6531 = vmatpush1.bf16.msra.mxu0 %v6495
  %6532 = vmatprep.subr.bf16.mxu0 0
  %6533 = vmatpush1.bf16.msra.mxu0 %v6496
  %6534 = vmatprep.subr.bf16.mxu0 0
  %6535 = vmatpush1.bf16.msra.mxu0 %v6520
  %6536 = vmatprep.subr.bf16.mxu0 0
  %6537 = vmatpush1.bf16.msra.mxu0 0
  %6538 = vmatprep.subr.bf16.mxu0 0
  %6539 = vmatpush1.bf16.msra.mxu0 0
  %6540 = vmatprep.subr.bf16.mxu0 0
  %6541 = vmatpush1.bf16.msra.mxu0 0
  %6542 = vmatprep.subr.bf16.mxu0 0
  %6543 = vmatpush1.bf16.msra.mxu0 0
  %6544 = vmatprep.subr.bf16.mxu0 0
  %6545 = vmatpush1.bf16.msra.mxu0 0
  %6546 = vmatprep.subr.bf16.mxu0 0
  %6547 = vmatpush1.bf16.msra.mxu0 0
  %6548 = vmatprep.subr.bf16.mxu0 0
  %6549 = vmatpush1.bf16.msra.mxu0 0
  %6550 = vmatprep.subr.bf16.mxu0 0
  %6551 = vmatpush1.bf16.msra.mxu0 0
  %6552 = vmatprep.subr.bf16.mxu0 0
  %6553 = vmatpush1.bf16.msra.mxu0 0
  %6554 = vmatprep.mubr.bf16.mxu0 0
  %6555 = vmatmul.mubr.bf16.gmra.mrb[0].mxu0 %v6514
  %v6556 = vpop.f32.mrb[0].mxu0
  %v6557 = vadd.f32 0.0, %v6556
  %v6558 = vpop.f32.mrb[0].mxu0
  %v6559 = vpop.f32.mrb[0].mxu0
  %v6560 = vadd.f32 0.0, %v6559
  %v6561 = vpop.f32.mrb[0].mxu0
  %6562 = vmatprep.mubr.bf16.mxu0 0
  %6563 = vmatmul.mubr.bf16.gmra.mrb[0].mxu0 %v6517
  %v6564 = vpop.f32.mrb[0].mxu0
  %v6565 = vadd.f32 0.0, %v6564
  %v6566 = vpop.f32.mrb[0].mxu0
  %v6567 = vpop.f32.mrb[0].mxu0
  %v6568 = vadd.f32 0.0, %v6567
  %v6569 = vpop.f32.mrb[0].mxu0
  %6570 = vdwg.mxu0
  %v6571 = vpack.c.bf16 %v6560, %v6557
  %v6572 = vpack.c.bf16 %v6568, %v6565
  %v6575 = vunpack.c.l.b16 %v6571
  %v6576 = vunpack.c.h.b16 %v6571
  %v6577 = vunpack.c.l.b16 %v6572
  %v6578 = vunpack.c.h.b16 %v6572
  %v6579 = vpack.c.b16 %v6575, %v6575
  %v6580 = vpack.c.b16 %v6576, %v6576
  %v6581 = vpack.c.b16 %v6577, %v6577
  %v6582 = vpack.c.b16 %v6578, %v6578
  %6587 = vst [vmem:[%s8] sm:$0xf] %v6579
  %6588 = vst [vmem:[%s8 + $0x4] sm:$0xf] %v6580
  %6589 = vst [vmem:[%s8 + $0x8] sm:$0xf] %v6581
  %vm6590 = vcmask 1040384
  %vm6591 = vsmask.f32 256
  %vm6592 = vmand %vm6590, %vm6591
  %v6593 = vld [vmem:[%s8 + $0xc] sm:$0x1]
  %v6594 = vsel %vm6592, %v6582, %v6593
  %6595 = vst [vmem:[%s8 + $0xc] sm:$0x1] %v6594
  %v6596 = vpack.c.bf16 %v2300, %v2131
  %v6597 = vpack.c.bf16 %v2638, %v2469
  %v6598 = vpack.c.bf16 %v2976, %v2807
  %v6599 = vpack.c.bf16 %v3314, %v3145
  %v6600 = vpack.c.bf16 %v3652, %v3483
  %v6601 = vpack.c.bf16 %v3990, %v3821
  %v6602 = vpack.c.bf16 %v4328, %v4159
  %v6603 = vpack.c.bf16 %v4666, %v4497
  %v6604 = vpack.c.bf16 %v5004, %v4835
  %v6605 = vpack.c.bf16 %v5342, %v5173
  %v6606 = vpack.c.bf16 %v5680, %v5511
  %v6607 = vpack.c.bf16 %v6018, %v5849
  %v6608 = vpack.c.bf16 %v6187, %v6187
  %v6609 = vld [vmem:[%s5] sm:$0xf]
  %v6610 = vld [vmem:[%s5 + $0x4] sm:$0xf]
  %v6611 = vld [vmem:[%s5 + $0x8] sm:$0xf]
  %v6612 = vld [vmem:[%s5 + $0xc] sm:$0xf]
  %v6613 = vld [vmem:[%s5 + $0x10] sm:$0xf]
  %v6614 = vld [vmem:[%s5 + $0x14] sm:$0xf]
  %v6615 = vld [vmem:[%s5 + $0x18] sm:$0xf]
  %v6616 = vld [vmem:[%s5 + $0x1c] sm:$0xf]
  %v6617 = vld [vmem:[%s5 + $0x20] sm:$0xf]
  %v6618 = vld [vmem:[%s5 + $0x24] sm:$0xf]
  %v6619 = vld [vmem:[%s5 + $0x28] sm:$0xf]
  %v6620 = vld [vmem:[%s5 + $0x2c] sm:$0xf]
  %v6621 = vld [vmem:[%s5 + $0x30] sm:$0xf]
  %v6622 = vld [vmem:[%s5 + $0x34] sm:$0xf]
  %v6623 = vld [vmem:[%s5 + $0x38] sm:$0xf]
  %v6624 = vld [vmem:[%s5 + $0x3c] sm:$0xf]
  %v6625 = vld [vmem:[%s5 + $0x40] sm:$0xf]
  %v6626 = vld [vmem:[%s5 + $0x44] sm:$0xf]
  %v6627 = vld [vmem:[%s5 + $0x48] sm:$0xf]
  %v6628 = vld [vmem:[%s5 + $0x4c] sm:$0xf]
  %v6629 = vld [vmem:[%s5 + $0x50] sm:$0xf]
  %v6630 = vld [vmem:[%s5 + $0x54] sm:$0xf]
  %v6631 = vld [vmem:[%s5 + $0x58] sm:$0xf]
  %v6632 = vld [vmem:[%s5 + $0x5c] sm:$0xf]
  %v6633 = vld [vmem:[%s5 + $0x60] sm:$0xf]
  %v6634 = vld [vmem:[%s6] sm:$0x1]
  %v6636 = vlaneseq
  %v6637 = vshrl.u32 %v6636, 7
  %v6638 = vsub.s32 0, %v6637
  %v6639 = vrot.slane %v6634, %v6638
  %6641 = vxpose.xlu0.c.b16.start [1/8] %v6596, 128
  %6642 = vxpose.xlu0.c.b16.cont [2/8] %v6597, 128
  %6643 = vxpose.xlu0.c.b16.cont [3/8] %v6598, 128
  %6644 = vxpose.xlu0.c.b16.cont [4/8] %v6599, 128
  %6645 = vxpose.xlu0.c.b16.cont [5/8] %v6600, 128
  %6646 = vxpose.xlu0.c.b16.cont [6/8] %v6601, 128
  %6647 = vxpose.xlu0.c.b16.cont [7/8] %v6602, 128
  %6648 = vxpose.xlu0.c.b16.end [8/8] %v6603, 128
  %v6649 = vpop.trf.xlu0
  %v6650 = vpop.trf.xlu0
  %v6651 = vpop.trf.xlu0
  %v6652 = vpop.trf.xlu0
  %v6653 = vpop.trf.xlu0
  %v6654 = vpop.trf.xlu0
  %v6655 = vpop.trf.xlu0
  %v6656 = vpop.trf.xlu0
  %6657 = vxpose.xlu0.c.b16.start [1/8] %v6604, 128
  %6658 = vxpose.xlu0.c.b16.cont [2/8] %v6605, 128
  %6659 = vxpose.xlu0.c.b16.cont [3/8] %v6606, 128
  %6660 = vxpose.xlu0.c.b16.cont [4/8] %v6607, 128
  %6661 = vxpose.xlu0.c.b16.cont [5/8] %v6608, 128
  %6662 = vxpose.xlu0.c.b16.cont [6/8] 0, 128
  %6663 = vxpose.xlu0.c.b16.cont [7/8] 0, 128
  %6664 = vxpose.xlu0.c.b16.end [8/8] 0, 128
  %v6665 = vpop.trf.xlu0
  %v6666 = vpop.trf.xlu0
  %v6667 = vpop.trf.xlu0
  %v6668 = vpop.trf.xlu0
  %v6669 = vpop.trf.xlu0
  %v6670 = vpop.trf.xlu0
  %v6671 = vpop.trf.xlu0
  %v6672 = vpop.trf.xlu0
  %v6698 = vunpack.c.l.b16 %v6609
  %v6699 = vunpack.c.l.b16 %v6610
  %v6700 = vunpack.c.l.b16 %v6611
  %v6701 = vunpack.c.l.b16 %v6612
  %v6702 = vunpack.c.l.b16 %v6613
  %v6703 = vunpack.c.l.b16 %v6614
  %v6704 = vunpack.c.l.b16 %v6615
  %v6705 = vunpack.c.l.b16 %v6616
  %v6706 = vunpack.c.l.b16 %v6617
  %v6707 = vunpack.c.l.b16 %v6618
  %v6708 = vunpack.c.l.b16 %v6619
  %v6709 = vunpack.c.l.b16 %v6620
  %v6710 = vunpack.c.l.b16 %v6621
  %v6711 = vunpack.c.l.b16 %v6622
  %v6712 = vunpack.c.l.b16 %v6623
  %v6713 = vunpack.c.l.b16 %v6624
  %v6714 = vunpack.c.l.b16 %v6625
  %v6715 = vunpack.c.l.b16 %v6626
  %v6716 = vunpack.c.l.b16 %v6627
  %v6717 = vunpack.c.l.b16 %v6628
  %v6718 = vunpack.c.l.b16 %v6629
  %v6719 = vunpack.c.l.b16 %v6630
  %v6720 = vunpack.c.l.b16 %v6631
  %v6721 = vunpack.c.l.b16 %v6632
  %v6722 = vunpack.c.l.b16 %v6633
  %v6723 = vpack.c.b16 %v6699, %v6698
  %v6724 = vpack.c.b16 %v6701, %v6700
  %v6725 = vpack.c.b16 %v6703, %v6702
  %v6726 = vpack.c.b16 %v6705, %v6704
  %v6727 = vpack.c.b16 %v6707, %v6706
  %v6728 = vpack.c.b16 %v6709, %v6708
  %v6729 = vpack.c.b16 %v6711, %v6710
  %v6730 = vpack.c.b16 %v6713, %v6712
  %v6731 = vpack.c.b16 %v6715, %v6714
  %v6732 = vpack.c.b16 %v6717, %v6716
  %v6733 = vpack.c.b16 %v6719, %v6718
  %v6734 = vpack.c.b16 %v6721, %v6720
  %v6735 = vpack.c.b16 %v6722, %v6722
  %v6749 = vsel %vm672, %v6665, 0
  %v6752 = vsel %vm672, %v6666, 0
  %v6755 = vsel %vm672, %v6667, 0
  %v6758 = vsel %vm672, %v6668, 0
  %v6761 = vsel %vm672, %v6669, 0
  %v6764 = vsel %vm672, %v6670, 0
  %v6767 = vsel %vm672, %v6671, 0
  %v6770 = vsel %vm685, %v6735, 0
  %6772 = vmatprep.subr.bf16.mxu0 0
  %6773 = vmatpush1.bf16.msra.mxu0 %v6723
  %6774 = vmatprep.subr.bf16.mxu0 0
  %6775 = vmatpush1.bf16.msra.mxu0 %v6724
  %6776 = vmatprep.subr.bf16.mxu0 0
  %6777 = vmatpush1.bf16.msra.mxu0 %v6725
  %6778 = vmatprep.subr.bf16.mxu0 0
  %6779 = vmatpush1.bf16.msra.mxu0 %v6726
  %6780 = vmatprep.subr.bf16.mxu0 0
  %6781 = vmatpush1.bf16.msra.mxu0 %v6727
  %6782 = vmatprep.subr.bf16.mxu0 0
  %6783 = vmatpush1.bf16.msra.mxu0 %v6728
  %6784 = vmatprep.subr.bf16.mxu0 0
  %6785 = vmatpush1.bf16.msra.mxu0 %v6729
  %6786 = vmatprep.subr.bf16.mxu0 0
  %6787 = vmatpush1.bf16.msra.mxu0 %v6730
  %6788 = vmatprep.subr.bf16.mxu0 0
  %6789 = vmatpush1.bf16.msra.mxu0 %v6731
  %6790 = vmatprep.subr.bf16.mxu0 0
  %6791 = vmatpush1.bf16.msra.mxu0 %v6732
  %6792 = vmatprep.subr.bf16.mxu0 0
  %6793 = vmatpush1.bf16.msra.mxu0 %v6733
  %6794 = vmatprep.subr.bf16.mxu0 0
  %6795 = vmatpush1.bf16.msra.mxu0 %v6734
  %6796 = vmatprep.subr.bf16.mxu0 0
  %6797 = vmatpush1.bf16.msra.mxu0 %v6770
  %6798 = vmatprep.subr.bf16.mxu0 0
  %6799 = vmatpush1.bf16.msra.mxu0 0
  %6800 = vmatprep.subr.bf16.mxu0 0
  %6801 = vmatpush1.bf16.msra.mxu0 0
  %6802 = vmatprep.subr.bf16.mxu0 0
  %6803 = vmatpush1.bf16.msra.mxu0 0
  %6804 = vmatprep.mubr.bf16.mxu0 %v6749
  %6805 = vmatmul.mubr.bf16.gmra.mrb[0].mxu0 %v6649
  %v6806 = vpop.f32.mrb[0].mxu0
  %v6807 = vadd.f32 %v6639, %v6806
  %v6808 = vpop.f32.mrb[0].mxu0
  %v6809 = vpop.f32.mrb[0].mxu0
  %v6810 = vadd.f32 %v6639, %v6809
  %v6811 = vpop.f32.mrb[0].mxu0
  %6812 = vmatprep.mubr.bf16.mxu0 %v6752
  %6813 = vmatmul.mubr.bf16.gmra.mrb[0].mxu0 %v6650
  %v6814 = vpop.f32.mrb[0].mxu0
  %v6815 = vadd.f32 %v6639, %v6814
  %v6816 = vpop.f32.mrb[0].mxu0
  %v6817 = vpop.f32.mrb[0].mxu0
  %v6818 = vadd.f32 %v6639, %v6817
  %v6819 = vpop.f32.mrb[0].mxu0
  %6820 = vmatprep.mubr.bf16.mxu0 %v6755
  %6821 = vmatmul.mubr.bf16.gmra.mrb[0].mxu0 %v6651
  %v6822 = vpop.f32.mrb[0].mxu0
  %v6823 = vadd.f32 %v6639, %v6822
  %v6824 = vpop.f32.mrb[0].mxu0
  %v6825 = vpop.f32.mrb[0].mxu0
  %v6826 = vadd.f32 %v6639, %v6825
  %v6827 = vpop.f32.mrb[0].mxu0
  %6828 = vmatprep.mubr.bf16.mxu0 %v6758
  %6829 = vmatmul.mubr.bf16.gmra.mrb[0].mxu0 %v6652
  %v6830 = vpop.f32.mrb[0].mxu0
  %v6831 = vadd.f32 %v6639, %v6830
  %v6832 = vpop.f32.mrb[0].mxu0
  %v6833 = vpop.f32.mrb[0].mxu0
  %v6834 = vadd.f32 %v6639, %v6833
  %v6835 = vpop.f32.mrb[0].mxu0
  %6836 = vmatprep.mubr.bf16.mxu0 %v6761
  %6837 = vmatmul.mubr.bf16.gmra.mrb[0].mxu0 %v6653
  %v6838 = vpop.f32.mrb[0].mxu0
  %v6839 = vadd.f32 %v6639, %v6838
  %v6840 = vpop.f32.mrb[0].mxu0
  %v6841 = vpop.f32.mrb[0].mxu0
  %v6842 = vadd.f32 %v6639, %v6841
  %v6843 = vpop.f32.mrb[0].mxu0
  %6844 = vmatprep.mubr.bf16.mxu0 %v6764
  %6845 = vmatmul.mubr.bf16.gmra.mrb[0].mxu0 %v6654
  %v6846 = vpop.f32.mrb[0].mxu0
  %v6847 = vadd.f32 %v6639, %v6846
  %v6848 = vpop.f32.mrb[0].mxu0
  %v6849 = vpop.f32.mrb[0].mxu0
  %v6850 = vadd.f32 %v6639, %v6849
  %v6851 = vpop.f32.mrb[0].mxu0
  %6852 = vmatprep.mubr.bf16.mxu0 %v6767
  %6853 = vmatmul.mubr.bf16.gmra.mrb[0].mxu0 %v6655
  %v6854 = vpop.f32.mrb[0].mxu0
  %v6855 = vadd.f32 %v6639, %v6854
  %v6856 = vpop.f32.mrb[0].mxu0
  %v6857 = vpop.f32.mrb[0].mxu0
  %v6858 = vpop.f32.mrb[0].mxu0
  %6859 = vdwg.mxu0
  %v6860 = vmax.f32 %v6807, 0.0
  %v6861 = vmax.f32 %v6810, 0.0
  %v6862 = vmax.f32 %v6815, 0.0
  %v6863 = vmax.f32 %v6818, 0.0
  %v6864 = vmax.f32 %v6823, 0.0
  %v6865 = vmax.f32 %v6826, 0.0
  %v6866 = vmax.f32 %v6831, 0.0
  %v6867 = vmax.f32 %v6834, 0.0
  %v6868 = vmax.f32 %v6839, 0.0
  %v6869 = vmax.f32 %v6842, 0.0
  %v6870 = vmax.f32 %v6847, 0.0
  %v6871 = vmax.f32 %v6850, 0.0
  %v6872 = vmax.f32 %v6855, 0.0
  %v6873 = vpack.c.bf16 %v6861, %v6860
  %v6874 = vpack.c.bf16 %v6863, %v6862
  %v6875 = vpack.c.bf16 %v6865, %v6864
  %v6876 = vpack.c.bf16 %v6867, %v6866
  %v6877 = vpack.c.bf16 %v6869, %v6868
  %v6878 = vpack.c.bf16 %v6871, %v6870
  %v6879 = vpack.c.bf16 %v6872, %v6872
  %v6880 = vld [vmem:[%s7] sm:$0xf]
  %v6881 = vld [vmem:[%s7 + $0x4] sm:$0xf]
  %v6882 = vld [vmem:[%s7 + $0x8] sm:$0xf]
  %v6883 = vld [vmem:[%s7 + $0xc] sm:$0x1]
  %v6888 = vunpack.c.l.b16 %v6880
  %v6889 = vunpack.c.l.b16 %v6881
  %v6890 = vunpack.c.l.b16 %v6882
  %v6891 = vunpack.c.l.b16 %v6883
  %v6892 = vpack.c.b16 %v6889, %v6888
  %v6893 = vpack.c.b16 %v6891, %v6890
  %v6895 = vsel %vm6512, %v6892, 0
  %v6898 = vsel %vm6512, %v6893, 0
  %v6901 = vsel %vm2089, %v6879, 0
  %6903 = vmatprep.subr.bf16.mxu0 0
  %6904 = vmatpush1.bf16.msra.mxu0 %v6873
  %6905 = vmatprep.subr.bf16.mxu0 0
  %6906 = vmatpush1.bf16.msra.mxu0 %v6874
  %6907 = vmatprep.subr.bf16.mxu0 0
  %6908 = vmatpush1.bf16.msra.mxu0 %v6875
  %6909 = vmatprep.subr.bf16.mxu0 0
  %6910 = vmatpush1.bf16.msra.mxu0 %v6876
  %6911 = vmatprep.subr.bf16.mxu0 0
  %6912 = vmatpush1.bf16.msra.mxu0 %v6877
  %6913 = vmatprep.subr.bf16.mxu0 0
  %6914 = vmatpush1.bf16.msra.mxu0 %v6878
  %6915 = vmatprep.subr.bf16.mxu0 0
  %6916 = vmatpush1.bf16.msra.mxu0 %v6901
  %6917 = vmatprep.subr.bf16.mxu0 0
  %6918 = vmatpush1.bf16.msra.mxu0 0
  %6919 = vmatprep.subr.bf16.mxu0 0
  %6920 = vmatpush1.bf16.msra.mxu0 0
  %6921 = vmatprep.subr.bf16.mxu0 0
  %6922 = vmatpush1.bf16.msra.mxu0 0
  %6923 = vmatprep.subr.bf16.mxu0 0
  %6924 = vmatpush1.bf16.msra.mxu0 0
  %6925 = vmatprep.subr.bf16.mxu0 0
  %6926 = vmatpush1.bf16.msra.mxu0 0
  %6927 = vmatprep.subr.bf16.mxu0 0
  %6928 = vmatpush1.bf16.msra.mxu0 0
  %6929 = vmatprep.subr.bf16.mxu0 0
  %6930 = vmatpush1.bf16.msra.mxu0 0
  %6931 = vmatprep.subr.bf16.mxu0 0
  %6932 = vmatpush1.bf16.msra.mxu0 0
  %6933 = vmatprep.subr.bf16.mxu0 0
  %6934 = vmatpush1.bf16.msra.mxu0 0
  %6935 = vmatprep.mubr.bf16.mxu0 0
  %6936 = vmatmul.mubr.bf16.gmra.mrb[0].mxu0 %v6895
  %v6937 = vpop.f32.mrb[0].mxu0
  %v6938 = vadd.f32 0.0, %v6937
  %v6939 = vpop.f32.mrb[0].mxu0
  %v6940 = vpop.f32.mrb[0].mxu0
  %v6941 = vadd.f32 0.0, %v6940
  %v6942 = vpop.f32.mrb[0].mxu0
  %6943 = vmatprep.mubr.bf16.mxu0 0
  %6944 = vmatmul.mubr.bf16.gmra.mrb[0].mxu0 %v6898
  %v6945 = vpop.f32.mrb[0].mxu0
  %v6946 = vadd.f32 0.0, %v6945
  %v6947 = vpop.f32.mrb[0].mxu0
  %v6948 = vpop.f32.mrb[0].mxu0
  %v6949 = vadd.f32 0.0, %v6948
  %v6950 = vpop.f32.mrb[0].mxu0
  %6951 = vdwg.mxu0
  %v6952 = vpack.c.bf16 %v6941, %v6938
  %v6953 = vpack.c.bf16 %v6949, %v6946
  %v6956 = vunpack.c.l.b16 %v6952
  %v6957 = vunpack.c.h.b16 %v6952
  %v6958 = vunpack.c.l.b16 %v6953
  %v6959 = vunpack.c.h.b16 %v6953
  %v6960 = vpack.c.b16 %v6956, %v6956
  %v6961 = vpack.c.b16 %v6957, %v6957
  %v6962 = vpack.c.b16 %v6958, %v6958
  %v6963 = vpack.c.b16 %v6959, %v6959
  %s6968 = scalar_lea.vmem %s8, 16
  %6969 = vst [vmem:[%s6968] sm:$0xf] %v6960
  %6970 = vst [vmem:[%s6968 + $0x4] sm:$0xf] %v6961
  %6971 = vst [vmem:[%s6968 + $0x8] sm:$0xf] %v6962
  %v6972 = vld [vmem:[%s6968 + $0xc] sm:$0x1]
  %v6973 = vsel %vm6592, %v6963, %v6972
  %6974 = vst [vmem:[%s6968 + $0xc] sm:$0x1] %v6973
  %v6975 = vpack.c.bf16 %v2305, %v2136
  %v6976 = vpack.c.bf16 %v2643, %v2474
  %v6977 = vpack.c.bf16 %v2981, %v2812
  %v6978 = vpack.c.bf16 %v3319, %v3150
  %v6979 = vpack.c.bf16 %v3657, %v3488
  %v6980 = vpack.c.bf16 %v3995, %v3826
  %v6981 = vpack.c.bf16 %v4333, %v4164
  %v6982 = vpack.c.bf16 %v4671, %v4502
  %v6983 = vpack.c.bf16 %v5009, %v4840
  %v6984 = vpack.c.bf16 %v5347, %v5178
  %v6985 = vpack.c.bf16 %v5685, %v5516
  %v6986 = vpack.c.bf16 %v6023, %v5854
  %v6987 = vpack.c.bf16 %v6192, %v6192
  %v6988 = vld [vmem:[%s5] sm:$0xf]
  %v6989 = vld [vmem:[%s5 + $0x4] sm:$0xf]
  %v6990 = vld [vmem:[%s5 + $0x8] sm:$0xf]
  %v6991 = vld [vmem:[%s5 + $0xc] sm:$0xf]
  %v6992 = vld [vmem:[%s5 + $0x10] sm:$0xf]
  %v6993 = vld [vmem:[%s5 + $0x14] sm:$0xf]
  %v6994 = vld [vmem:[%s5 + $0x18] sm:$0xf]
  %v6995 = vld [vmem:[%s5 + $0x1c] sm:$0xf]
  %v6996 = vld [vmem:[%s5 + $0x20] sm:$0xf]
  %v6997 = vld [vmem:[%s5 + $0x24] sm:$0xf]
  %v6998 = vld [vmem:[%s5 + $0x28] sm:$0xf]
  %v6999 = vld [vmem:[%s5 + $0x2c] sm:$0xf]
  %v7000 = vld [vmem:[%s5 + $0x30] sm:$0xf]
  %v7001 = vld [vmem:[%s5 + $0x34] sm:$0xf]
  %v7002 = vld [vmem:[%s5 + $0x38] sm:$0xf]
  %v7003 = vld [vmem:[%s5 + $0x3c] sm:$0xf]
  %v7004 = vld [vmem:[%s5 + $0x40] sm:$0xf]
  %v7005 = vld [vmem:[%s5 + $0x44] sm:$0xf]
  %v7006 = vld [vmem:[%s5 + $0x48] sm:$0xf]
  %v7007 = vld [vmem:[%s5 + $0x4c] sm:$0xf]
  %v7008 = vld [vmem:[%s5 + $0x50] sm:$0xf]
  %v7009 = vld [vmem:[%s5 + $0x54] sm:$0xf]
  %v7010 = vld [vmem:[%s5 + $0x58] sm:$0xf]
  %v7011 = vld [vmem:[%s5 + $0x5c] sm:$0xf]
  %v7012 = vld [vmem:[%s5 + $0x60] sm:$0xf]
  %v7013 = vld [vmem:[%s6] sm:$0x1]
  %v7015 = vlaneseq
  %v7016 = vshrl.u32 %v7015, 7
  %v7017 = vsub.s32 0, %v7016
  %v7018 = vrot.slane %v7013, %v7017
  %7020 = vxpose.xlu0.c.b16.start [1/8] %v6975, 128
  %7021 = vxpose.xlu0.c.b16.cont [2/8] %v6976, 128
  %7022 = vxpose.xlu0.c.b16.cont [3/8] %v6977, 128
  %7023 = vxpose.xlu0.c.b16.cont [4/8] %v6978, 128
  %7024 = vxpose.xlu0.c.b16.cont [5/8] %v6979, 128
  %7025 = vxpose.xlu0.c.b16.cont [6/8] %v6980, 128
  %7026 = vxpose.xlu0.c.b16.cont [7/8] %v6981, 128
  %7027 = vxpose.xlu0.c.b16.end [8/8] %v6982, 128
  %v7028 = vpop.trf.xlu0
  %v7029 = vpop.trf.xlu0
  %v7030 = vpop.trf.xlu0
  %v7031 = vpop.trf.xlu0
  %v7032 = vpop.trf.xlu0
  %v7033 = vpop.trf.xlu0
  %v7034 = vpop.trf.xlu0
  %v7035 = vpop.trf.xlu0
  %7036 = vxpose.xlu0.c.b16.start [1/8] %v6983, 128
  %7037 = vxpose.xlu0.c.b16.cont [2/8] %v6984, 128
  %7038 = vxpose.xlu0.c.b16.cont [3/8] %v6985, 128
  %7039 = vxpose.xlu0.c.b16.cont [4/8] %v6986, 128
  %7040 = vxpose.xlu0.c.b16.cont [5/8] %v6987, 128
  %7041 = vxpose.xlu0.c.b16.cont [6/8] 0, 128
  %7042 = vxpose.xlu0.c.b16.cont [7/8] 0, 128
  %7043 = vxpose.xlu0.c.b16.end [8/8] 0, 128
  %v7044 = vpop.trf.xlu0
  %v7045 = vpop.trf.xlu0
  %v7046 = vpop.trf.xlu0
  %v7047 = vpop.trf.xlu0
  %v7048 = vpop.trf.xlu0
  %v7049 = vpop.trf.xlu0
  %v7050 = vpop.trf.xlu0
  %v7051 = vpop.trf.xlu0
  %v7077 = vunpack.c.l.b16 %v6988
  %v7078 = vunpack.c.l.b16 %v6989
  %v7079 = vunpack.c.l.b16 %v6990
  %v7080 = vunpack.c.l.b16 %v6991
  %v7081 = vunpack.c.l.b16 %v6992
  %v7082 = vunpack.c.l.b16 %v6993
  %v7083 = vunpack.c.l.b16 %v6994
  %v7084 = vunpack.c.l.b16 %v6995
  %v7085 = vunpack.c.l.b16 %v6996
  %v7086 = vunpack.c.l.b16 %v6997
  %v7087 = vunpack.c.l.b16 %v6998
  %v7088 = vunpack.c.l.b16 %v6999
  %v7089 = vunpack.c.l.b16 %v7000
  %v7090 = vunpack.c.l.b16 %v7001
  %v7091 = vunpack.c.l.b16 %v7002
  %v7092 = vunpack.c.l.b16 %v7003
  %v7093 = vunpack.c.l.b16 %v7004
  %v7094 = vunpack.c.l.b16 %v7005
  %v7095 = vunpack.c.l.b16 %v7006
  %v7096 = vunpack.c.l.b16 %v7007
  %v7097 = vunpack.c.l.b16 %v7008
  %v7098 = vunpack.c.l.b16 %v7009
  %v7099 = vunpack.c.l.b16 %v7010
  %v7100 = vunpack.c.l.b16 %v7011
  %v7101 = vunpack.c.l.b16 %v7012
  %v7102 = vpack.c.b16 %v7078, %v7077
  %v7103 = vpack.c.b16 %v7080, %v7079
  %v7104 = vpack.c.b16 %v7082, %v7081
  %v7105 = vpack.c.b16 %v7084, %v7083
  %v7106 = vpack.c.b16 %v7086, %v7085
  %v7107 = vpack.c.b16 %v7088, %v7087
  %v7108 = vpack.c.b16 %v7090, %v7089
  %v7109 = vpack.c.b16 %v7092, %v7091
  %v7110 = vpack.c.b16 %v7094, %v7093
  %v7111 = vpack.c.b16 %v7096, %v7095
  %v7112 = vpack.c.b16 %v7098, %v7097
  %v7113 = vpack.c.b16 %v7100, %v7099
  %v7114 = vpack.c.b16 %v7101, %v7101
  %v7128 = vsel %vm672, %v7044, 0
  %v7131 = vsel %vm672, %v7045, 0
  %v7134 = vsel %vm672, %v7046, 0
  %v7137 = vsel %vm672, %v7047, 0
  %v7140 = vsel %vm672, %v7048, 0
  %v7143 = vsel %vm672, %v7049, 0
  %v7146 = vsel %vm672, %v7050, 0
  %v7149 = vsel %vm685, %v7114, 0
  %7151 = vmatprep.subr.bf16.mxu0 0
  %7152 = vmatpush1.bf16.msra.mxu0 %v7102
  %7153 = vmatprep.subr.bf16.mxu0 0
  %7154 = vmatpush1.bf16.msra.mxu0 %v7103
  %7155 = vmatprep.subr.bf16.mxu0 0
  %7156 = vmatpush1.bf16.msra.mxu0 %v7104
  %7157 = vmatprep.subr.bf16.mxu0 0
  %7158 = vmatpush1.bf16.msra.mxu0 %v7105
  %7159 = vmatprep.subr.bf16.mxu0 0
  %7160 = vmatpush1.bf16.msra.mxu0 %v7106
  %7161 = vmatprep.subr.bf16.mxu0 0
  %7162 = vmatpush1.bf16.msra.mxu0 %v7107
  %7163 = vmatprep.subr.bf16.mxu0 0
  %7164 = vmatpush1.bf16.msra.mxu0 %v7108
  %7165 = vmatprep.subr.bf16.mxu0 0
  %7166 = vmatpush1.bf16.msra.mxu0 %v7109
  %7167 = vmatprep.subr.bf16.mxu0 0
  %7168 = vmatpush1.bf16.msra.mxu0 %v7110
  %7169 = vmatprep.subr.bf16.mxu0 0
  %7170 = vmatpush1.bf16.msra.mxu0 %v7111
  %7171 = vmatprep.subr.bf16.mxu0 0
  %7172 = vmatpush1.bf16.msra.mxu0 %v7112
  %7173 = vmatprep.subr.bf16.mxu0 0
  %7174 = vmatpush1.bf16.msra.mxu0 %v7113
  %7175 = vmatprep.subr.bf16.mxu0 0
  %7176 = vmatpush1.bf16.msra.mxu0 %v7149
  %7177 = vmatprep.subr.bf16.mxu0 0
  %7178 = vmatpush1.bf16.msra.mxu0 0
  %7179 = vmatprep.subr.bf16.mxu0 0
  %7180 = vmatpush1.bf16.msra.mxu0 0
  %7181 = vmatprep.subr.bf16.mxu0 0
  %7182 = vmatpush1.bf16.msra.mxu0 0
  %7183 = vmatprep.mubr.bf16.mxu0 %v7128
  %7184 = vmatmul.mubr.bf16.gmra.mrb[0].mxu0 %v7028
  %v7185 = vpop.f32.mrb[0].mxu0
  %v7186 = vadd.f32 %v7018, %v7185
  %v7187 = vpop.f32.mrb[0].mxu0
  %v7188 = vpop.f32.mrb[0].mxu0
  %v7189 = vadd.f32 %v7018, %v7188
  %v7190 = vpop.f32.mrb[0].mxu0
  %7191 = vmatprep.mubr.bf16.mxu0 %v7131
  %7192 = vmatmul.mubr.bf16.gmra.mrb[0].mxu0 %v7029
  %v7193 = vpop.f32.mrb[0].mxu0
  %v7194 = vadd.f32 %v7018, %v7193
  %v7195 = vpop.f32.mrb[0].mxu0
  %v7196 = vpop.f32.mrb[0].mxu0
  %v7197 = vadd.f32 %v7018, %v7196
  %v7198 = vpop.f32.mrb[0].mxu0
  %7199 = vmatprep.mubr.bf16.mxu0 %v7134
  %7200 = vmatmul.mubr.bf16.gmra.mrb[0].mxu0 %v7030
  %v7201 = vpop.f32.mrb[0].mxu0
  %v7202 = vadd.f32 %v7018, %v7201
  %v7203 = vpop.f32.mrb[0].mxu0
  %v7204 = vpop.f32.mrb[0].mxu0
  %v7205 = vadd.f32 %v7018, %v7204
  %v7206 = vpop.f32.mrb[0].mxu0
  %7207 = vmatprep.mubr.bf16.mxu0 %v7137
  %7208 = vmatmul.mubr.bf16.gmra.mrb[0].mxu0 %v7031
  %v7209 = vpop.f32.mrb[0].mxu0
  %v7210 = vadd.f32 %v7018, %v7209
  %v7211 = vpop.f32.mrb[0].mxu0
  %v7212 = vpop.f32.mrb[0].mxu0
  %v7213 = vadd.f32 %v7018, %v7212
  %v7214 = vpop.f32.mrb[0].mxu0
  %7215 = vmatprep.mubr.bf16.mxu0 %v7140
  %7216 = vmatmul.mubr.bf16.gmra.mrb[0].mxu0 %v7032
  %v7217 = vpop.f32.mrb[0].mxu0
  %v7218 = vadd.f32 %v7018, %v7217
  %v7219 = vpop.f32.mrb[0].mxu0
  %v7220 = vpop.f32.mrb[0].mxu0
  %v7221 = vadd.f32 %v7018, %v7220
  %v7222 = vpop.f32.mrb[0].mxu0
  %7223 = vmatprep.mubr.bf16.mxu0 %v7143
  %7224 = vmatmul.mubr.bf16.gmra.mrb[0].mxu0 %v7033
  %v7225 = vpop.f32.mrb[0].mxu0
  %v7226 = vadd.f32 %v7018, %v7225
  %v7227 = vpop.f32.mrb[0].mxu0
  %v7228 = vpop.f32.mrb[0].mxu0
  %v7229 = vadd.f32 %v7018, %v7228
  %v7230 = vpop.f32.mrb[0].mxu0
  %7231 = vmatprep.mubr.bf16.mxu0 %v7146
  %7232 = vmatmul.mubr.bf16.gmra.mrb[0].mxu0 %v7034
  %v7233 = vpop.f32.mrb[0].mxu0
  %v7234 = vadd.f32 %v7018, %v7233
  %v7235 = vpop.f32.mrb[0].mxu0
  %v7236 = vpop.f32.mrb[0].mxu0
  %v7237 = vpop.f32.mrb[0].mxu0
  %7238 = vdwg.mxu0
  %v7239 = vmax.f32 %v7186, 0.0
  %v7240 = vmax.f32 %v7189, 0.0
  %v7241 = vmax.f32 %v7194, 0.0
  %v7242 = vmax.f32 %v7197, 0.0
  %v7243 = vmax.f32 %v7202, 0.0
  %v7244 = vmax.f32 %v7205, 0.0
  %v7245 = vmax.f32 %v7210, 0.0
  %v7246 = vmax.f32 %v7213, 0.0
  %v7247 = vmax.f32 %v7218, 0.0
  %v7248 = vmax.f32 %v7221, 0.0
  %v7249 = vmax.f32 %v7226, 0.0
  %v7250 = vmax.f32 %v7229, 0.0
  %v7251 = vmax.f32 %v7234, 0.0
  %v7252 = vpack.c.bf16 %v7240, %v7239
  %v7253 = vpack.c.bf16 %v7242, %v7241
  %v7254 = vpack.c.bf16 %v7244, %v7243
  %v7255 = vpack.c.bf16 %v7246, %v7245
  %v7256 = vpack.c.bf16 %v7248, %v7247
  %v7257 = vpack.c.bf16 %v7250, %v7249
  %v7258 = vpack.c.bf16 %v7251, %v7251
  %v7259 = vld [vmem:[%s7] sm:$0xf]
  %v7260 = vld [vmem:[%s7 + $0x4] sm:$0xf]
  %v7261 = vld [vmem:[%s7 + $0x8] sm:$0xf]
  %v7262 = vld [vmem:[%s7 + $0xc] sm:$0x1]
  %v7267 = vunpack.c.l.b16 %v7259
  %v7268 = vunpack.c.l.b16 %v7260
  %v7269 = vunpack.c.l.b16 %v7261
  %v7270 = vunpack.c.l.b16 %v7262
  %v7271 = vpack.c.b16 %v7268, %v7267
  %v7272 = vpack.c.b16 %v7270, %v7269
  %v7274 = vsel %vm6512, %v7271, 0
  %v7277 = vsel %vm6512, %v7272, 0
  %v7280 = vsel %vm2089, %v7258, 0
  %7282 = vmatprep.subr.bf16.mxu0 0
  %7283 = vmatpush1.bf16.msra.mxu0 %v7252
  %7284 = vmatprep.subr.bf16.mxu0 0
  %7285 = vmatpush1.bf16.msra.mxu0 %v7253
  %7286 = vmatprep.subr.bf16.mxu0 0
  %7287 = vmatpush1.bf16.msra.mxu0 %v7254
  %7288 = vmatprep.subr.bf16.mxu0 0
  %7289 = vmatpush1.bf16.msra.mxu0 %v7255
  %7290 = vmatprep.subr.bf16.mxu0 0
  %7291 = vmatpush1.bf16.msra.mxu0 %v7256
  %7292 = vmatprep.subr.bf16.mxu0 0
  %7293 = vmatpush1.bf16.msra.mxu0 %v7257
  %7294 = vmatprep.subr.bf16.mxu0 0
  %7295 = vmatpush1.bf16.msra.mxu0 %v7280
  %7296 = vmatprep.subr.bf16.mxu0 0
  %7297 = vmatpush1.bf16.msra.mxu0 0
  %7298 = vmatprep.subr.bf16.mxu0 0
  %7299 = vmatpush1.bf16.msra.mxu0 0
  %7300 = vmatprep.subr.bf16.mxu0 0
  %7301 = vmatpush1.bf16.msra.mxu0 0
  %7302 = vmatprep.subr.bf16.mxu0 0
  %7303 = vmatpush1.bf16.msra.mxu0 0
  %7304 = vmatprep.subr.bf16.mxu0 0
  %7305 = vmatpush1.bf16.msra.mxu0 0
  %7306 = vmatprep.subr.bf16.mxu0 0
  %7307 = vmatpush1.bf16.msra.mxu0 0
  %7308 = vmatprep.subr.bf16.mxu0 0
  %7309 = vmatpush1.bf16.msra.mxu0 0
  %7310 = vmatprep.subr.bf16.mxu0 0
  %7311 = vmatpush1.bf16.msra.mxu0 0
  %7312 = vmatprep.subr.bf16.mxu0 0
  %7313 = vmatpush1.bf16.msra.mxu0 0
  %7314 = vmatprep.mubr.bf16.mxu0 0
  %7315 = vmatmul.mubr.bf16.gmra.mrb[0].mxu0 %v7274
  %v7316 = vpop.f32.mrb[0].mxu0
  %v7317 = vadd.f32 0.0, %v7316
  %v7318 = vpop.f32.mrb[0].mxu0
  %v7319 = vpop.f32.mrb[0].mxu0
  %v7320 = vadd.f32 0.0, %v7319
  %v7321 = vpop.f32.mrb[0].mxu0
  %7322 = vmatprep.mubr.bf16.mxu0 0
  %7323 = vmatmul.mubr.bf16.gmra.mrb[0].mxu0 %v7277
  %v7324 = vpop.f32.mrb[0].mxu0
  %v7325 = vadd.f32 0.0, %v7324
  %v7326 = vpop.f32.mrb[0].mxu0
  %v7327 = vpop.f32.mrb[0].mxu0
  %v7328 = vadd.f32 0.0, %v7327
  %v7329 = vpop.f32.mrb[0].mxu0
  %7330 = vdwg.mxu0
  %v7331 = vpack.c.bf16 %v7320, %v7317
  %v7332 = vpack.c.bf16 %v7328, %v7325
  %v7335 = vunpack.c.l.b16 %v7331
  %v7336 = vunpack.c.h.b16 %v7331
  %v7337 = vunpack.c.l.b16 %v7332
  %v7338 = vunpack.c.h.b16 %v7332
  %v7339 = vpack.c.b16 %v7335, %v7335
  %v7340 = vpack.c.b16 %v7336, %v7336
  %v7341 = vpack.c.b16 %v7337, %v7337
  %v7342 = vpack.c.b16 %v7338, %v7338
  %s7347 = scalar_lea.vmem %s8, 32
  %7348 = vst [vmem:[%s7347] sm:$0xf] %v7339
  %7349 = vst [vmem:[%s7347 + $0x4] sm:$0xf] %v7340
  %7350 = vst [vmem:[%s7347 + $0x8] sm:$0xf] %v7341
  %v7351 = vld [vmem:[%s7347 + $0xc] sm:$0x1]
  %v7352 = vsel %vm6592, %v7342, %v7351
  %7353 = vst [vmem:[%s7347 + $0xc] sm:$0x1] %v7352
  %v7354 = vpack.c.bf16 %v2308, %v2139
  %v7355 = vpack.c.bf16 %v2646, %v2477
  %v7356 = vpack.c.bf16 %v2984, %v2815
  %v7357 = vpack.c.bf16 %v3322, %v3153
  %v7358 = vpack.c.bf16 %v3660, %v3491
  %v7359 = vpack.c.bf16 %v3998, %v3829
  %v7360 = vpack.c.bf16 %v4336, %v4167
  %v7361 = vpack.c.bf16 %v4674, %v4505
  %v7362 = vpack.c.bf16 %v5012, %v4843
  %v7363 = vpack.c.bf16 %v5350, %v5181
  %v7364 = vpack.c.bf16 %v5688, %v5519
  %v7365 = vpack.c.bf16 %v6026, %v5857
  %v7366 = vpack.c.bf16 %v6195, %v6195
  %v7367 = vld [vmem:[%s5] sm:$0xf]
  %v7368 = vld [vmem:[%s5 + $0x4] sm:$0xf]
  %v7369 = vld [vmem:[%s5 + $0x8] sm:$0xf]
  %v7370 = vld [vmem:[%s5 + $0xc] sm:$0xf]
  %v7371 = vld [vmem:[%s5 + $0x10] sm:$0xf]
  %v7372 = vld [vmem:[%s5 + $0x14] sm:$0xf]
  %v7373 = vld [vmem:[%s5 + $0x18] sm:$0xf]
  %v7374 = vld [vmem:[%s5 + $0x1c] sm:$0xf]
  %v7375 = vld [vmem:[%s5 + $0x20] sm:$0xf]
  %v7376 = vld [vmem:[%s5 + $0x24] sm:$0xf]
  %v7377 = vld [vmem:[%s5 + $0x28] sm:$0xf]
  %v7378 = vld [vmem:[%s5 + $0x2c] sm:$0xf]
  %v7379 = vld [vmem:[%s5 + $0x30] sm:$0xf]
  %v7380 = vld [vmem:[%s5 + $0x34] sm:$0xf]
  %v7381 = vld [vmem:[%s5 + $0x38] sm:$0xf]
  %v7382 = vld [vmem:[%s5 + $0x3c] sm:$0xf]
  %v7383 = vld [vmem:[%s5 + $0x40] sm:$0xf]
  %v7384 = vld [vmem:[%s5 + $0x44] sm:$0xf]
  %v7385 = vld [vmem:[%s5 + $0x48] sm:$0xf]
  %v7386 = vld [vmem:[%s5 + $0x4c] sm:$0xf]
  %v7387 = vld [vmem:[%s5 + $0x50] sm:$0xf]
  %v7388 = vld [vmem:[%s5 + $0x54] sm:$0xf]
  %v7389 = vld [vmem:[%s5 + $0x58] sm:$0xf]
  %v7390 = vld [vmem:[%s5 + $0x5c] sm:$0xf]
  %v7391 = vld [vmem:[%s5 + $0x60] sm:$0xf]
  %v7392 = vld [vmem:[%s6] sm:$0x1]
  %v7394 = vlaneseq
  %v7395 = vshrl.u32 %v7394, 7
  %v7396 = vsub.s32 0, %v7395
  %v7397 = vrot.slane %v7392, %v7396
  %7399 = vxpose.xlu0.c.b16.start [1/8] %v7354, 128
  %7400 = vxpose.xlu0.c.b16.cont [2/8] %v7355, 128
  %7401 = vxpose.xlu0.c.b16.cont [3/8] %v7356, 128
  %7402 = vxpose.xlu0.c.b16.cont [4/8] %v7357, 128
  %7403 = vxpose.xlu0.c.b16.cont [5/8] %v7358, 128
  %7404 = vxpose.xlu0.c.b16.cont [6/8] %v7359, 128
  %7405 = vxpose.xlu0.c.b16.cont [7/8] %v7360, 128
  %7406 = vxpose.xlu0.c.b16.end [8/8] %v7361, 128
  %v7407 = vpop.trf.xlu0
  %v7408 = vpop.trf.xlu0
  %v7409 = vpop.trf.xlu0
  %v7410 = vpop.trf.xlu0
  %v7411 = vpop.trf.xlu0
  %v7412 = vpop.trf.xlu0
  %v7413 = vpop.trf.xlu0
  %v7414 = vpop.trf.xlu0
  %7415 = vxpose.xlu0.c.b16.start [1/8] %v7362, 128
  %7416 = vxpose.xlu0.c.b16.cont [2/8] %v7363, 128
  %7417 = vxpose.xlu0.c.b16.cont [3/8] %v7364, 128
  %7418 = vxpose.xlu0.c.b16.cont [4/8] %v7365, 128
  %7419 = vxpose.xlu0.c.b16.cont [5/8] %v7366, 128
  %7420 = vxpose.xlu0.c.b16.cont [6/8] 0, 128
  %7421 = vxpose.xlu0.c.b16.cont [7/8] 0, 128
  %7422 = vxpose.xlu0.c.b16.end [8/8] 0, 128
  %v7423 = vpop.trf.xlu0
  %v7424 = vpop.trf.xlu0
  %v7425 = vpop.trf.xlu0
  %v7426 = vpop.trf.xlu0
  %v7427 = vpop.trf.xlu0
  %v7428 = vpop.trf.xlu0
  %v7429 = vpop.trf.xlu0
  %v7430 = vpop.trf.xlu0
  %v7456 = vunpack.c.l.b16 %v7367
  %v7457 = vunpack.c.l.b16 %v7368
  %v7458 = vunpack.c.l.b16 %v7369
  %v7459 = vunpack.c.l.b16 %v7370
  %v7460 = vunpack.c.l.b16 %v7371
  %v7461 = vunpack.c.l.b16 %v7372
  %v7462 = vunpack.c.l.b16 %v7373
  %v7463 = vunpack.c.l.b16 %v7374
  %v7464 = vunpack.c.l.b16 %v7375
  %v7465 = vunpack.c.l.b16 %v7376
  %v7466 = vunpack.c.l.b16 %v7377
  %v7467 = vunpack.c.l.b16 %v7378
  %v7468 = vunpack.c.l.b16 %v7379
  %v7469 = vunpack.c.l.b16 %v7380
  %v7470 = vunpack.c.l.b16 %v7381
  %v7471 = vunpack.c.l.b16 %v7382
  %v7472 = vunpack.c.l.b16 %v7383
  %v7473 = vunpack.c.l.b16 %v7384
  %v7474 = vunpack.c.l.b16 %v7385
  %v7475 = vunpack.c.l.b16 %v7386
  %v7476 = vunpack.c.l.b16 %v7387
  %v7477 = vunpack.c.l.b16 %v7388
  %v7478 = vunpack.c.l.b16 %v7389
  %v7479 = vunpack.c.l.b16 %v7390
  %v7480 = vunpack.c.l.b16 %v7391
  %v7481 = vpack.c.b16 %v7457, %v7456
  %v7482 = vpack.c.b16 %v7459, %v7458
  %v7483 = vpack.c.b16 %v7461, %v7460
  %v7484 = vpack.c.b16 %v7463, %v7462
  %v7485 = vpack.c.b16 %v7465, %v7464
  %v7486 = vpack.c.b16 %v7467, %v7466
  %v7487 = vpack.c.b16 %v7469, %v7468
  %v7488 = vpack.c.b16 %v7471, %v7470
  %v7489 = vpack.c.b16 %v7473, %v7472
  %v7490 = vpack.c.b16 %v7475, %v7474
  %v7491 = vpack.c.b16 %v7477, %v7476
  %v7492 = vpack.c.b16 %v7479, %v7478
  %v7493 = vpack.c.b16 %v7480, %v7480
  %v7507 = vsel %vm672, %v7423, 0
  %v7510 = vsel %vm672, %v7424, 0
  %v7513 = vsel %vm672, %v7425, 0
  %v7516 = vsel %vm672, %v7426, 0
  %v7519 = vsel %vm672, %v7427, 0
  %v7522 = vsel %vm672, %v7428, 0
  %v7525 = vsel %vm672, %v7429, 0
  %v7528 = vsel %vm685, %v7493, 0
  %7530 = vmatprep.subr.bf16.mxu0 0
  %7531 = vmatpush1.bf16.msra.mxu0 %v7481
  %7532 = vmatprep.subr.bf16.mxu0 0
  %7533 = vmatpush1.bf16.msra.mxu0 %v7482
  %7534 = vmatprep.subr.bf16.mxu0 0
  %7535 = vmatpush1.bf16.msra.mxu0 %v7483
  %7536 = vmatprep.subr.bf16.mxu0 0
  %7537 = vmatpush1.bf16.msra.mxu0 %v7484
  %7538 = vmatprep.subr.bf16.mxu0 0
  %7539 = vmatpush1.bf16.msra.mxu0 %v7485
  %7540 = vmatprep.subr.bf16.mxu0 0
  %7541 = vmatpush1.bf16.msra.mxu0 %v7486
  %7542 = vmatprep.subr.bf16.mxu0 0
  %7543 = vmatpush1.bf16.msra.mxu0 %v7487
  %7544 = vmatprep.subr.bf16.mxu0 0
  %7545 = vmatpush1.bf16.msra.mxu0 %v7488
  %7546 = vmatprep.subr.bf16.mxu0 0
  %7547 = vmatpush1.bf16.msra.mxu0 %v7489
  %7548 = vmatprep.subr.bf16.mxu0 0
  %7549 = vmatpush1.bf16.msra.mxu0 %v7490
  %7550 = vmatprep.subr.bf16.mxu0 0
  %7551 = vmatpush1.bf16.msra.mxu0 %v7491
  %7552 = vmatprep.subr.bf16.mxu0 0
  %7553 = vmatpush1.bf16.msra.mxu0 %v7492
  %7554 = vmatprep.subr.bf16.mxu0 0
  %7555 = vmatpush1.bf16.msra.mxu0 %v7528
  %7556 = vmatprep.subr.bf16.mxu0 0
  %7557 = vmatpush1.bf16.msra.mxu0 0
  %7558 = vmatprep.subr.bf16.mxu0 0
  %7559 = vmatpush1.bf16.msra.mxu0 0
  %7560 = vmatprep.subr.bf16.mxu0 0
  %7561 = vmatpush1.bf16.msra.mxu0 0
  %7562 = vmatprep.mubr.bf16.mxu0 %v7507
  %7563 = vmatmul.mubr.bf16.gmra.mrb[0].mxu0 %v7407
  %v7564 = vpop.f32.mrb[0].mxu0
  %v7565 = vadd.f32 %v7397, %v7564
  %v7566 = vpop.f32.mrb[0].mxu0
  %v7567 = vpop.f32.mrb[0].mxu0
  %v7568 = vadd.f32 %v7397, %v7567
  %v7569 = vpop.f32.mrb[0].mxu0
  %7570 = vmatprep.mubr.bf16.mxu0 %v7510
  %7571 = vmatmul.mubr.bf16.gmra.mrb[0].mxu0 %v7408
  %v7572 = vpop.f32.mrb[0].mxu0
  %v7573 = vadd.f32 %v7397, %v7572
  %v7574 = vpop.f32.mrb[0].mxu0
  %v7575 = vpop.f32.mrb[0].mxu0
  %v7576 = vadd.f32 %v7397, %v7575
  %v7577 = vpop.f32.mrb[0].mxu0
  %7578 = vmatprep.mubr.bf16.mxu0 %v7513
  %7579 = vmatmul.mubr.bf16.gmra.mrb[0].mxu0 %v7409
  %v7580 = vpop.f32.mrb[0].mxu0
  %v7581 = vadd.f32 %v7397, %v7580
  %v7582 = vpop.f32.mrb[0].mxu0
  %v7583 = vpop.f32.mrb[0].mxu0
  %v7584 = vadd.f32 %v7397, %v7583
  %v7585 = vpop.f32.mrb[0].mxu0
  %7586 = vmatprep.mubr.bf16.mxu0 %v7516
  %7587 = vmatmul.mubr.bf16.gmra.mrb[0].mxu0 %v7410
  %v7588 = vpop.f32.mrb[0].mxu0
  %v7589 = vadd.f32 %v7397, %v7588
  %v7590 = vpop.f32.mrb[0].mxu0
  %v7591 = vpop.f32.mrb[0].mxu0
  %v7592 = vadd.f32 %v7397, %v7591
  %v7593 = vpop.f32.mrb[0].mxu0
  %7594 = vmatprep.mubr.bf16.mxu0 %v7519
  %7595 = vmatmul.mubr.bf16.gmra.mrb[0].mxu0 %v7411
  %v7596 = vpop.f32.mrb[0].mxu0
  %v7597 = vadd.f32 %v7397, %v7596
  %v7598 = vpop.f32.mrb[0].mxu0
  %v7599 = vpop.f32.mrb[0].mxu0
  %v7600 = vadd.f32 %v7397, %v7599
  %v7601 = vpop.f32.mrb[0].mxu0
  %7602 = vmatprep.mubr.bf16.mxu0 %v7522
  %7603 = vmatmul.mubr.bf16.gmra.mrb[0].mxu0 %v7412
  %v7604 = vpop.f32.mrb[0].mxu0
  %v7605 = vadd.f32 %v7397, %v7604
  %v7606 = vpop.f32.mrb[0].mxu0
  %v7607 = vpop.f32.mrb[0].mxu0
  %v7608 = vadd.f32 %v7397, %v7607
  %v7609 = vpop.f32.mrb[0].mxu0
  %7610 = vmatprep.mubr.bf16.mxu0 %v7525
  %7611 = vmatmul.mubr.bf16.gmra.mrb[0].mxu0 %v7413
  %v7612 = vpop.f32.mrb[0].mxu0
  %v7613 = vadd.f32 %v7397, %v7612
  %v7614 = vpop.f32.mrb[0].mxu0
  %v7615 = vpop.f32.mrb[0].mxu0
  %v7616 = vpop.f32.mrb[0].mxu0
  %7617 = vdwg.mxu0
  %v7618 = vmax.f32 %v7565, 0.0
  %v7619 = vmax.f32 %v7568, 0.0
  %v7620 = vmax.f32 %v7573, 0.0
  %v7621 = vmax.f32 %v7576, 0.0
  %v7622 = vmax.f32 %v7581, 0.0
  %v7623 = vmax.f32 %v7584, 0.0
  %v7624 = vmax.f32 %v7589, 0.0
  %v7625 = vmax.f32 %v7592, 0.0
  %v7626 = vmax.f32 %v7597, 0.0
  %v7627 = vmax.f32 %v7600, 0.0
  %v7628 = vmax.f32 %v7605, 0.0
  %v7629 = vmax.f32 %v7608, 0.0
  %v7630 = vmax.f32 %v7613, 0.0
  %v7631 = vpack.c.bf16 %v7619, %v7618
  %v7632 = vpack.c.bf16 %v7621, %v7620
  %v7633 = vpack.c.bf16 %v7623, %v7622
  %v7634 = vpack.c.bf16 %v7625, %v7624
  %v7635 = vpack.c.bf16 %v7627, %v7626
  %v7636 = vpack.c.bf16 %v7629, %v7628
  %v7637 = vpack.c.bf16 %v7630, %v7630
  %v7638 = vld [vmem:[%s7] sm:$0xf]
  %v7639 = vld [vmem:[%s7 + $0x4] sm:$0xf]
  %v7640 = vld [vmem:[%s7 + $0x8] sm:$0xf]
  %v7641 = vld [vmem:[%s7 + $0xc] sm:$0x1]
  %v7646 = vunpack.c.l.b16 %v7638
  %v7647 = vunpack.c.l.b16 %v7639
  %v7648 = vunpack.c.l.b16 %v7640
  %v7649 = vunpack.c.l.b16 %v7641
  %v7650 = vpack.c.b16 %v7647, %v7646
  %v7651 = vpack.c.b16 %v7649, %v7648
  %v7653 = vsel %vm6512, %v7650, 0
  %v7656 = vsel %vm6512, %v7651, 0
  %v7659 = vsel %vm2089, %v7637, 0
  %7661 = vmatprep.subr.bf16.mxu0 0
  %7662 = vmatpush1.bf16.msra.mxu0 %v7631
  %7663 = vmatprep.subr.bf16.mxu0 0
  %7664 = vmatpush1.bf16.msra.mxu0 %v7632
  %7665 = vmatprep.subr.bf16.mxu0 0
  %7666 = vmatpush1.bf16.msra.mxu0 %v7633
  %7667 = vmatprep.subr.bf16.mxu0 0
  %7668 = vmatpush1.bf16.msra.mxu0 %v7634
  %7669 = vmatprep.subr.bf16.mxu0 0
  %7670 = vmatpush1.bf16.msra.mxu0 %v7635
  %7671 = vmatprep.subr.bf16.mxu0 0
  %7672 = vmatpush1.bf16.msra.mxu0 %v7636
  %7673 = vmatprep.subr.bf16.mxu0 0
  %7674 = vmatpush1.bf16.msra.mxu0 %v7659
  %7675 = vmatprep.subr.bf16.mxu0 0
  %7676 = vmatpush1.bf16.msra.mxu0 0
  %7677 = vmatprep.subr.bf16.mxu0 0
  %7678 = vmatpush1.bf16.msra.mxu0 0
  %7679 = vmatprep.subr.bf16.mxu0 0
  %7680 = vmatpush1.bf16.msra.mxu0 0
  %7681 = vmatprep.subr.bf16.mxu0 0
  %7682 = vmatpush1.bf16.msra.mxu0 0
  %7683 = vmatprep.subr.bf16.mxu0 0
  %7684 = vmatpush1.bf16.msra.mxu0 0
  %7685 = vmatprep.subr.bf16.mxu0 0
  %7686 = vmatpush1.bf16.msra.mxu0 0
  %7687 = vmatprep.subr.bf16.mxu0 0
  %7688 = vmatpush1.bf16.msra.mxu0 0
  %7689 = vmatprep.subr.bf16.mxu0 0
  %7690 = vmatpush1.bf16.msra.mxu0 0
  %7691 = vmatprep.subr.bf16.mxu0 0
  %7692 = vmatpush1.bf16.msra.mxu0 0
  %7693 = vmatprep.mubr.bf16.mxu0 0
  %7694 = vmatmul.mubr.bf16.gmra.mrb[0].mxu0 %v7653
  %v7695 = vpop.f32.mrb[0].mxu0
  %v7696 = vadd.f32 0.0, %v7695
  %v7697 = vpop.f32.mrb[0].mxu0
  %v7698 = vpop.f32.mrb[0].mxu0
  %v7699 = vadd.f32 0.0, %v7698
  %v7700 = vpop.f32.mrb[0].mxu0
  %7701 = vmatprep.mubr.bf16.mxu0 0
  %7702 = vmatmul.mubr.bf16.gmra.mrb[0].mxu0 %v7656
  %v7703 = vpop.f32.mrb[0].mxu0
  %v7704 = vadd.f32 0.0, %v7703
  %v7705 = vpop.f32.mrb[0].mxu0
  %v7706 = vpop.f32.mrb[0].mxu0
  %v7707 = vadd.f32 0.0, %v7706
  %v7708 = vpop.f32.mrb[0].mxu0
  %7709 = vdwg.mxu0
  %v7710 = vpack.c.bf16 %v7699, %v7696
  %v7711 = vpack.c.bf16 %v7707, %v7704
  %v7714 = vunpack.c.l.b16 %v7710
  %v7715 = vunpack.c.h.b16 %v7710
  %v7716 = vunpack.c.l.b16 %v7711
  %v7717 = vunpack.c.h.b16 %v7711
  %v7718 = vpack.c.b16 %v7714, %v7714
  %v7719 = vpack.c.b16 %v7715, %v7715
  %v7720 = vpack.c.b16 %v7716, %v7716
  %v7721 = vpack.c.b16 %v7717, %v7717
  %s7726 = scalar_lea.vmem %s8, 48
  %7727 = vst [vmem:[%s7726] sm:$0xf] %v7718
  %7728 = vst [vmem:[%s7726 + $0x4] sm:$0xf] %v7719
  %7729 = vst [vmem:[%s7726 + $0x8] sm:$0xf] %v7720
  %v7730 = vld [vmem:[%s7726 + $0xc] sm:$0x1]
  %v7731 = vsel %vm6592, %v7721, %v7730
  %7732 = vst [vmem:[%s7726 + $0xc] sm:$0x1] %v7731
  %v7733 = vpack.c.bf16 %v2313, %v2144
  %v7734 = vpack.c.bf16 %v2651, %v2482
  %v7735 = vpack.c.bf16 %v2989, %v2820
  %v7736 = vpack.c.bf16 %v3327, %v3158
  %v7737 = vpack.c.bf16 %v3665, %v3496
  %v7738 = vpack.c.bf16 %v4003, %v3834
  %v7739 = vpack.c.bf16 %v4341, %v4172
  %v7740 = vpack.c.bf16 %v4679, %v4510
  %v7741 = vpack.c.bf16 %v5017, %v4848
  %v7742 = vpack.c.bf16 %v5355, %v5186
  %v7743 = vpack.c.bf16 %v5693, %v5524
  %v7744 = vpack.c.bf16 %v6031, %v5862
  %v7745 = vpack.c.bf16 %v6200, %v6200
  %v7746 = vld [vmem:[%s5] sm:$0xf]
  %v7747 = vld [vmem:[%s5 + $0x4] sm:$0xf]
  %v7748 = vld [vmem:[%s5 + $0x8] sm:$0xf]
  %v7749 = vld [vmem:[%s5 + $0xc] sm:$0xf]
  %v7750 = vld [vmem:[%s5 + $0x10] sm:$0xf]
  %v7751 = vld [vmem:[%s5 + $0x14] sm:$0xf]
  %v7752 = vld [vmem:[%s5 + $0x18] sm:$0xf]
  %v7753 = vld [vmem:[%s5 + $0x1c] sm:$0xf]
  %v7754 = vld [vmem:[%s5 + $0x20] sm:$0xf]
  %v7755 = vld [vmem:[%s5 + $0x24] sm:$0xf]
  %v7756 = vld [vmem:[%s5 + $0x28] sm:$0xf]
  %v7757 = vld [vmem:[%s5 + $0x2c] sm:$0xf]
  %v7758 = vld [vmem:[%s5 + $0x30] sm:$0xf]
  %v7759 = vld [vmem:[%s5 + $0x34] sm:$0xf]
  %v7760 = vld [vmem:[%s5 + $0x38] sm:$0xf]
  %v7761 = vld [vmem:[%s5 + $0x3c] sm:$0xf]
  %v7762 = vld [vmem:[%s5 + $0x40] sm:$0xf]
  %v7763 = vld [vmem:[%s5 + $0x44] sm:$0xf]
  %v7764 = vld [vmem:[%s5 + $0x48] sm:$0xf]
  %v7765 = vld [vmem:[%s5 + $0x4c] sm:$0xf]
  %v7766 = vld [vmem:[%s5 + $0x50] sm:$0xf]
  %v7767 = vld [vmem:[%s5 + $0x54] sm:$0xf]
  %v7768 = vld [vmem:[%s5 + $0x58] sm:$0xf]
  %v7769 = vld [vmem:[%s5 + $0x5c] sm:$0xf]
  %v7770 = vld [vmem:[%s5 + $0x60] sm:$0xf]
  %v7771 = vld [vmem:[%s6] sm:$0x1]
  %v7773 = vlaneseq
  %v7774 = vshrl.u32 %v7773, 7
  %v7775 = vsub.s32 0, %v7774
  %v7776 = vrot.slane %v7771, %v7775
  %7778 = vxpose.xlu0.c.b16.start [1/8] %v7733, 128
  %7779 = vxpose.xlu0.c.b16.cont [2/8] %v7734, 128
  %7780 = vxpose.xlu0.c.b16.cont [3/8] %v7735, 128
  %7781 = vxpose.xlu0.c.b16.cont [4/8] %v7736, 128
  %7782 = vxpose.xlu0.c.b16.cont [5/8] %v7737, 128
  %7783 = vxpose.xlu0.c.b16.cont [6/8] %v7738, 128
  %7784 = vxpose.xlu0.c.b16.cont [7/8] %v7739, 128
  %7785 = vxpose.xlu0.c.b16.end [8/8] %v7740, 128
  %v7786 = vpop.trf.xlu0
  %v7787 = vpop.trf.xlu0
  %v7788 = vpop.trf.xlu0
  %v7789 = vpop.trf.xlu0
  %v7790 = vpop.trf.xlu0
  %v7791 = vpop.trf.xlu0
  %v7792 = vpop.trf.xlu0
  %v7793 = vpop.trf.xlu0
  %7794 = vxpose.xlu0.c.b16.start [1/8] %v7741, 128
  %7795 = vxpose.xlu0.c.b16.cont [2/8] %v7742, 128
  %7796 = vxpose.xlu0.c.b16.cont [3/8] %v7743, 128
  %7797 = vxpose.xlu0.c.b16.cont [4/8] %v7744, 128
  %7798 = vxpose.xlu0.c.b16.cont [5/8] %v7745, 128
  %7799 = vxpose.xlu0.c.b16.cont [6/8] 0, 128
  %7800 = vxpose.xlu0.c.b16.cont [7/8] 0, 128
  %7801 = vxpose.xlu0.c.b16.end [8/8] 0, 128
  %v7802 = vpop.trf.xlu0
  %v7803 = vpop.trf.xlu0
  %v7804 = vpop.trf.xlu0
  %v7805 = vpop.trf.xlu0
  %v7806 = vpop.trf.xlu0
  %v7807 = vpop.trf.xlu0
  %v7808 = vpop.trf.xlu0
  %v7809 = vpop.trf.xlu0
  %v7835 = vunpack.c.l.b16 %v7746
  %v7836 = vunpack.c.l.b16 %v7747
  %v7837 = vunpack.c.l.b16 %v7748
  %v7838 = vunpack.c.l.b16 %v7749
  %v7839 = vunpack.c.l.b16 %v7750
  %v7840 = vunpack.c.l.b16 %v7751
  %v7841 = vunpack.c.l.b16 %v7752
  %v7842 = vunpack.c.l.b16 %v7753
  %v7843 = vunpack.c.l.b16 %v7754
  %v7844 = vunpack.c.l.b16 %v7755
  %v7845 = vunpack.c.l.b16 %v7756
  %v7846 = vunpack.c.l.b16 %v7757
  %v7847 = vunpack.c.l.b16 %v7758
  %v7848 = vunpack.c.l.b16 %v7759
  %v7849 = vunpack.c.l.b16 %v7760
  %v7850 = vunpack.c.l.b16 %v7761
  %v7851 = vunpack.c.l.b16 %v7762
  %v7852 = vunpack.c.l.b16 %v7763
  %v7853 = vunpack.c.l.b16 %v7764
  %v7854 = vunpack.c.l.b16 %v7765
  %v7855 = vunpack.c.l.b16 %v7766
  %v7856 = vunpack.c.l.b16 %v7767
  %v7857 = vunpack.c.l.b16 %v7768
  %v7858 = vunpack.c.l.b16 %v7769
  %v7859 = vunpack.c.l.b16 %v7770
  %v7860 = vpack.c.b16 %v7836, %v7835
  %v7861 = vpack.c.b16 %v7838, %v7837
  %v7862 = vpack.c.b16 %v7840, %v7839
  %v7863 = vpack.c.b16 %v7842, %v7841
  %v7864 = vpack.c.b16 %v7844, %v7843
  %v7865 = vpack.c.b16 %v7846, %v7845
  %v7866 = vpack.c.b16 %v7848, %v7847
  %v7867 = vpack.c.b16 %v7850, %v7849
  %v7868 = vpack.c.b16 %v7852, %v7851
  %v7869 = vpack.c.b16 %v7854, %v7853
  %v7870 = vpack.c.b16 %v7856, %v7855
  %v7871 = vpack.c.b16 %v7858, %v7857
  %v7872 = vpack.c.b16 %v7859, %v7859
  %v7886 = vsel %vm672, %v7802, 0
  %v7889 = vsel %vm672, %v7803, 0
  %v7892 = vsel %vm672, %v7804, 0
  %v7895 = vsel %vm672, %v7805, 0
  %v7898 = vsel %vm672, %v7806, 0
  %v7901 = vsel %vm672, %v7807, 0
  %v7904 = vsel %vm672, %v7808, 0
  %v7907 = vsel %vm685, %v7872, 0
  %7909 = vmatprep.subr.bf16.mxu0 0
  %7910 = vmatpush1.bf16.msra.mxu0 %v7860
  %7911 = vmatprep.subr.bf16.mxu0 0
  %7912 = vmatpush1.bf16.msra.mxu0 %v7861
  %7913 = vmatprep.subr.bf16.mxu0 0
  %7914 = vmatpush1.bf16.msra.mxu0 %v7862
  %7915 = vmatprep.subr.bf16.mxu0 0
  %7916 = vmatpush1.bf16.msra.mxu0 %v7863
  %7917 = vmatprep.subr.bf16.mxu0 0
  %7918 = vmatpush1.bf16.msra.mxu0 %v7864
  %7919 = vmatprep.subr.bf16.mxu0 0
  %7920 = vmatpush1.bf16.msra.mxu0 %v7865
  %7921 = vmatprep.subr.bf16.mxu0 0
  %7922 = vmatpush1.bf16.msra.mxu0 %v7866
  %7923 = vmatprep.subr.bf16.mxu0 0
  %7924 = vmatpush1.bf16.msra.mxu0 %v7867
  %7925 = vmatprep.subr.bf16.mxu0 0
  %7926 = vmatpush1.bf16.msra.mxu0 %v7868
  %7927 = vmatprep.subr.bf16.mxu0 0
  %7928 = vmatpush1.bf16.msra.mxu0 %v7869
  %7929 = vmatprep.subr.bf16.mxu0 0
  %7930 = vmatpush1.bf16.msra.mxu0 %v7870
  %7931 = vmatprep.subr.bf16.mxu0 0
  %7932 = vmatpush1.bf16.msra.mxu0 %v7871
  %7933 = vmatprep.subr.bf16.mxu0 0
  %7934 = vmatpush1.bf16.msra.mxu0 %v7907
  %7935 = vmatprep.subr.bf16.mxu0 0
  %7936 = vmatpush1.bf16.msra.mxu0 0
  %7937 = vmatprep.subr.bf16.mxu0 0
  %7938 = vmatpush1.bf16.msra.mxu0 0
  %7939 = vmatprep.subr.bf16.mxu0 0
  %7940 = vmatpush1.bf16.msra.mxu0 0
  %7941 = vmatprep.mubr.bf16.mxu0 %v7886
  %7942 = vmatmul.mubr.bf16.gmra.mrb[0].mxu0 %v7786
  %v7943 = vpop.f32.mrb[0].mxu0
  %v7944 = vadd.f32 %v7776, %v7943
  %v7945 = vpop.f32.mrb[0].mxu0
  %v7946 = vpop.f32.mrb[0].mxu0
  %v7947 = vadd.f32 %v7776, %v7946
  %v7948 = vpop.f32.mrb[0].mxu0
  %7949 = vmatprep.mubr.bf16.mxu0 %v7889
  %7950 = vmatmul.mubr.bf16.gmra.mrb[0].mxu0 %v7787
  %v7951 = vpop.f32.mrb[0].mxu0
  %v7952 = vadd.f32 %v7776, %v7951
  %v7953 = vpop.f32.mrb[0].mxu0
  %v7954 = vpop.f32.mrb[0].mxu0
  %v7955 = vadd.f32 %v7776, %v7954
  %v7956 = vpop.f32.mrb[0].mxu0
  %7957 = vmatprep.mubr.bf16.mxu0 %v7892
  %7958 = vmatmul.mubr.bf16.gmra.mrb[0].mxu0 %v7788
  %v7959 = vpop.f32.mrb[0].mxu0
  %v7960 = vadd.f32 %v7776, %v7959
  %v7961 = vpop.f32.mrb[0].mxu0
  %v7962 = vpop.f32.mrb[0].mxu0
  %v7963 = vadd.f32 %v7776, %v7962
  %v7964 = vpop.f32.mrb[0].mxu0
  %7965 = vmatprep.mubr.bf16.mxu0 %v7895
  %7966 = vmatmul.mubr.bf16.gmra.mrb[0].mxu0 %v7789
  %v7967 = vpop.f32.mrb[0].mxu0
  %v7968 = vadd.f32 %v7776, %v7967
  %v7969 = vpop.f32.mrb[0].mxu0
  %v7970 = vpop.f32.mrb[0].mxu0
  %v7971 = vadd.f32 %v7776, %v7970
  %v7972 = vpop.f32.mrb[0].mxu0
  %7973 = vmatprep.mubr.bf16.mxu0 %v7898
  %7974 = vmatmul.mubr.bf16.gmra.mrb[0].mxu0 %v7790
  %v7975 = vpop.f32.mrb[0].mxu0
  %v7976 = vadd.f32 %v7776, %v7975
  %v7977 = vpop.f32.mrb[0].mxu0
  %v7978 = vpop.f32.mrb[0].mxu0
  %v7979 = vadd.f32 %v7776, %v7978
  %v7980 = vpop.f32.mrb[0].mxu0
  %7981 = vmatprep.mubr.bf16.mxu0 %v7901
  %7982 = vmatmul.mubr.bf16.gmra.mrb[0].mxu0 %v7791
  %v7983 = vpop.f32.mrb[0].mxu0
  %v7984 = vadd.f32 %v7776, %v7983
  %v7985 = vpop.f32.mrb[0].mxu0
  %v7986 = vpop.f32.mrb[0].mxu0
  %v7987 = vadd.f32 %v7776, %v7986
  %v7988 = vpop.f32.mrb[0].mxu0
  %7989 = vmatprep.mubr.bf16.mxu0 %v7904
  %7990 = vmatmul.mubr.bf16.gmra.mrb[0].mxu0 %v7792
  %v7991 = vpop.f32.mrb[0].mxu0
  %v7992 = vadd.f32 %v7776, %v7991
  %v7993 = vpop.f32.mrb[0].mxu0
  %v7994 = vpop.f32.mrb[0].mxu0
  %v7995 = vpop.f32.mrb[0].mxu0
  %7996 = vdwg.mxu0
  %v7997 = vmax.f32 %v7944, 0.0
  %v7998 = vmax.f32 %v7947, 0.0
  %v7999 = vmax.f32 %v7952, 0.0
  %v8000 = vmax.f32 %v7955, 0.0
  %v8001 = vmax.f32 %v7960, 0.0
  %v8002 = vmax.f32 %v7963, 0.0
  %v8003 = vmax.f32 %v7968, 0.0
  %v8004 = vmax.f32 %v7971, 0.0
  %v8005 = vmax.f32 %v7976, 0.0
  %v8006 = vmax.f32 %v7979, 0.0
  %v8007 = vmax.f32 %v7984, 0.0
  %v8008 = vmax.f32 %v7987, 0.0
  %v8009 = vmax.f32 %v7992, 0.0
  %v8010 = vpack.c.bf16 %v7998, %v7997
  %v8011 = vpack.c.bf16 %v8000, %v7999
  %v8012 = vpack.c.bf16 %v8002, %v8001
  %v8013 = vpack.c.bf16 %v8004, %v8003
  %v8014 = vpack.c.bf16 %v8006, %v8005
  %v8015 = vpack.c.bf16 %v8008, %v8007
  %v8016 = vpack.c.bf16 %v8009, %v8009
  %v8017 = vld [vmem:[%s7] sm:$0xf]
  %v8018 = vld [vmem:[%s7 + $0x4] sm:$0xf]
  %v8019 = vld [vmem:[%s7 + $0x8] sm:$0xf]
  %v8020 = vld [vmem:[%s7 + $0xc] sm:$0x1]
  %v8025 = vunpack.c.l.b16 %v8017
  %v8026 = vunpack.c.l.b16 %v8018
  %v8027 = vunpack.c.l.b16 %v8019
  %v8028 = vunpack.c.l.b16 %v8020
  %v8029 = vpack.c.b16 %v8026, %v8025
  %v8030 = vpack.c.b16 %v8028, %v8027
  %v8032 = vsel %vm6512, %v8029, 0
  %v8035 = vsel %vm6512, %v8030, 0
  %v8038 = vsel %vm2089, %v8016, 0
  %8040 = vmatprep.subr.bf16.mxu0 0
  %8041 = vmatpush1.bf16.msra.mxu0 %v8010
  %8042 = vmatprep.subr.bf16.mxu0 0
  %8043 = vmatpush1.bf16.msra.mxu0 %v8011
  %8044 = vmatprep.subr.bf16.mxu0 0
  %8045 = vmatpush1.bf16.msra.mxu0 %v8012
  %8046 = vmatprep.subr.bf16.mxu0 0
  %8047 = vmatpush1.bf16.msra.mxu0 %v8013
  %8048 = vmatprep.subr.bf16.mxu0 0
  %8049 = vmatpush1.bf16.msra.mxu0 %v8014
  %8050 = vmatprep.subr.bf16.mxu0 0
  %8051 = vmatpush1.bf16.msra.mxu0 %v8015
  %8052 = vmatprep.subr.bf16.mxu0 0
  %8053 = vmatpush1.bf16.msra.mxu0 %v8038
  %8054 = vmatprep.subr.bf16.mxu0 0
  %8055 = vmatpush1.bf16.msra.mxu0 0
  %8056 = vmatprep.subr.bf16.mxu0 0
  %8057 = vmatpush1.bf16.msra.mxu0 0
  %8058 = vmatprep.subr.bf16.mxu0 0
  %8059 = vmatpush1.bf16.msra.mxu0 0
  %8060 = vmatprep.subr.bf16.mxu0 0
  %8061 = vmatpush1.bf16.msra.mxu0 0
  %8062 = vmatprep.subr.bf16.mxu0 0
  %8063 = vmatpush1.bf16.msra.mxu0 0
  %8064 = vmatprep.subr.bf16.mxu0 0
  %8065 = vmatpush1.bf16.msra.mxu0 0
  %8066 = vmatprep.subr.bf16.mxu0 0
  %8067 = vmatpush1.bf16.msra.mxu0 0
  %8068 = vmatprep.subr.bf16.mxu0 0
  %8069 = vmatpush1.bf16.msra.mxu0 0
  %8070 = vmatprep.subr.bf16.mxu0 0
  %8071 = vmatpush1.bf16.msra.mxu0 0
  %8072 = vmatprep.mubr.bf16.mxu0 0
  %8073 = vmatmul.mubr.bf16.gmra.mrb[0].mxu0 %v8032
  %v8074 = vpop.f32.mrb[0].mxu0
  %v8075 = vadd.f32 0.0, %v8074
  %v8076 = vpop.f32.mrb[0].mxu0
  %v8077 = vpop.f32.mrb[0].mxu0
  %v8078 = vadd.f32 0.0, %v8077
  %v8079 = vpop.f32.mrb[0].mxu0
  %8080 = vmatprep.mubr.bf16.mxu0 0
  %8081 = vmatmul.mubr.bf16.gmra.mrb[0].mxu0 %v8035
  %v8082 = vpop.f32.mrb[0].mxu0
  %v8083 = vadd.f32 0.0, %v8082
  %v8084 = vpop.f32.mrb[0].mxu0
  %v8085 = vpop.f32.mrb[0].mxu0
  %v8086 = vadd.f32 0.0, %v8085
  %v8087 = vpop.f32.mrb[0].mxu0
  %8088 = vdwg.mxu0
  %v8089 = vpack.c.bf16 %v8078, %v8075
  %v8090 = vpack.c.bf16 %v8086, %v8083
  %v8093 = vunpack.c.l.b16 %v8089
  %v8094 = vunpack.c.h.b16 %v8089
  %v8095 = vunpack.c.l.b16 %v8090
  %v8096 = vunpack.c.h.b16 %v8090
  %v8097 = vpack.c.b16 %v8093, %v8093
  %v8098 = vpack.c.b16 %v8094, %v8094
  %v8099 = vpack.c.b16 %v8095, %v8095
  %v8100 = vpack.c.b16 %v8096, %v8096
  %s8105 = scalar_lea.vmem %s8, 64
  %8106 = vst [vmem:[%s8105] sm:$0xf] %v8097
  %8107 = vst [vmem:[%s8105 + $0x4] sm:$0xf] %v8098
  %8108 = vst [vmem:[%s8105 + $0x8] sm:$0xf] %v8099
  %v8109 = vld [vmem:[%s8105 + $0xc] sm:$0x1]
  %v8110 = vsel %vm6592, %v8100, %v8109
  %8111 = vst [vmem:[%s8105 + $0xc] sm:$0x1] %v8110
  %v8112 = vpack.c.bf16 %v2316, %v2147
  %v8113 = vpack.c.bf16 %v2654, %v2485
  %v8114 = vpack.c.bf16 %v2992, %v2823
  %v8115 = vpack.c.bf16 %v3330, %v3161
  %v8116 = vpack.c.bf16 %v3668, %v3499
  %v8117 = vpack.c.bf16 %v4006, %v3837
  %v8118 = vpack.c.bf16 %v4344, %v4175
  %v8119 = vpack.c.bf16 %v4682, %v4513
  %v8120 = vpack.c.bf16 %v5020, %v4851
  %v8121 = vpack.c.bf16 %v5358, %v5189
  %v8122 = vpack.c.bf16 %v5696, %v5527
  %v8123 = vpack.c.bf16 %v6034, %v5865
  %v8124 = vpack.c.bf16 %v6203, %v6203
  %v8125 = vld [vmem:[%s5] sm:$0xf]
  %v8126 = vld [vmem:[%s5 + $0x4] sm:$0xf]
  %v8127 = vld [vmem:[%s5 + $0x8] sm:$0xf]
  %v8128 = vld [vmem:[%s5 + $0xc] sm:$0xf]
  %v8129 = vld [vmem:[%s5 + $0x10] sm:$0xf]
  %v8130 = vld [vmem:[%s5 + $0x14] sm:$0xf]
  %v8131 = vld [vmem:[%s5 + $0x18] sm:$0xf]
  %v8132 = vld [vmem:[%s5 + $0x1c] sm:$0xf]
  %v8133 = vld [vmem:[%s5 + $0x20] sm:$0xf]
  %v8134 = vld [vmem:[%s5 + $0x24] sm:$0xf]
  %v8135 = vld [vmem:[%s5 + $0x28] sm:$0xf]
  %v8136 = vld [vmem:[%s5 + $0x2c] sm:$0xf]
  %v8137 = vld [vmem:[%s5 + $0x30] sm:$0xf]
  %v8138 = vld [vmem:[%s5 + $0x34] sm:$0xf]
  %v8139 = vld [vmem:[%s5 + $0x38] sm:$0xf]
  %v8140 = vld [vmem:[%s5 + $0x3c] sm:$0xf]
  %v8141 = vld [vmem:[%s5 + $0x40] sm:$0xf]
  %v8142 = vld [vmem:[%s5 + $0x44] sm:$0xf]
  %v8143 = vld [vmem:[%s5 + $0x48] sm:$0xf]
  %v8144 = vld [vmem:[%s5 + $0x4c] sm:$0xf]
  %v8145 = vld [vmem:[%s5 + $0x50] sm:$0xf]
  %v8146 = vld [vmem:[%s5 + $0x54] sm:$0xf]
  %v8147 = vld [vmem:[%s5 + $0x58] sm:$0xf]
  %v8148 = vld [vmem:[%s5 + $0x5c] sm:$0xf]
  %v8149 = vld [vmem:[%s5 + $0x60] sm:$0xf]
  %v8150 = vld [vmem:[%s6] sm:$0x1]
  %v8152 = vlaneseq
  %v8153 = vshrl.u32 %v8152, 7
  %v8154 = vsub.s32 0, %v8153
  %v8155 = vrot.slane %v8150, %v8154
  %8157 = vxpose.xlu0.c.b16.start [1/8] %v8112, 128
  %8158 = vxpose.xlu0.c.b16.cont [2/8] %v8113, 128
  %8159 = vxpose.xlu0.c.b16.cont [3/8] %v8114, 128
  %8160 = vxpose.xlu0.c.b16.cont [4/8] %v8115, 128
  %8161 = vxpose.xlu0.c.b16.cont [5/8] %v8116, 128
  %8162 = vxpose.xlu0.c.b16.cont [6/8] %v8117, 128
  %8163 = vxpose.xlu0.c.b16.cont [7/8] %v8118, 128
  %8164 = vxpose.xlu0.c.b16.end [8/8] %v8119, 128
  %v8165 = vpop.trf.xlu0
  %v8166 = vpop.trf.xlu0
  %v8167 = vpop.trf.xlu0
  %v8168 = vpop.trf.xlu0
  %v8169 = vpop.trf.xlu0
  %v8170 = vpop.trf.xlu0
  %v8171 = vpop.trf.xlu0
  %v8172 = vpop.trf.xlu0
  %8173 = vxpose.xlu0.c.b16.start [1/8] %v8120, 128
  %8174 = vxpose.xlu0.c.b16.cont [2/8] %v8121, 128
  %8175 = vxpose.xlu0.c.b16.cont [3/8] %v8122, 128
  %8176 = vxpose.xlu0.c.b16.cont [4/8] %v8123, 128
  %8177 = vxpose.xlu0.c.b16.cont [5/8] %v8124, 128
  %8178 = vxpose.xlu0.c.b16.cont [6/8] 0, 128
  %8179 = vxpose.xlu0.c.b16.cont [7/8] 0, 128
  %8180 = vxpose.xlu0.c.b16.end [8/8] 0, 128
  %v8181 = vpop.trf.xlu0
  %v8182 = vpop.trf.xlu0
  %v8183 = vpop.trf.xlu0
  %v8184 = vpop.trf.xlu0
  %v8185 = vpop.trf.xlu0
  %v8186 = vpop.trf.xlu0
  %v8187 = vpop.trf.xlu0
  %v8188 = vpop.trf.xlu0
  %v8214 = vunpack.c.l.b16 %v8125
  %v8215 = vunpack.c.l.b16 %v8126
  %v8216 = vunpack.c.l.b16 %v8127
  %v8217 = vunpack.c.l.b16 %v8128
  %v8218 = vunpack.c.l.b16 %v8129
  %v8219 = vunpack.c.l.b16 %v8130
  %v8220 = vunpack.c.l.b16 %v8131
  %v8221 = vunpack.c.l.b16 %v8132
  %v8222 = vunpack.c.l.b16 %v8133
  %v8223 = vunpack.c.l.b16 %v8134
  %v8224 = vunpack.c.l.b16 %v8135
  %v8225 = vunpack.c.l.b16 %v8136
  %v8226 = vunpack.c.l.b16 %v8137
  %v8227 = vunpack.c.l.b16 %v8138
  %v8228 = vunpack.c.l.b16 %v8139
  %v8229 = vunpack.c.l.b16 %v8140
  %v8230 = vunpack.c.l.b16 %v8141
  %v8231 = vunpack.c.l.b16 %v8142
  %v8232 = vunpack.c.l.b16 %v8143
  %v8233 = vunpack.c.l.b16 %v8144
  %v8234 = vunpack.c.l.b16 %v8145
  %v8235 = vunpack.c.l.b16 %v8146
  %v8236 = vunpack.c.l.b16 %v8147
  %v8237 = vunpack.c.l.b16 %v8148
  %v8238 = vunpack.c.l.b16 %v8149
  %v8239 = vpack.c.b16 %v8215, %v8214
  %v8240 = vpack.c.b16 %v8217, %v8216
  %v8241 = vpack.c.b16 %v8219, %v8218
  %v8242 = vpack.c.b16 %v8221, %v8220
  %v8243 = vpack.c.b16 %v8223, %v8222
  %v8244 = vpack.c.b16 %v8225, %v8224
  %v8245 = vpack.c.b16 %v8227, %v8226
  %v8246 = vpack.c.b16 %v8229, %v8228
  %v8247 = vpack.c.b16 %v8231, %v8230
  %v8248 = vpack.c.b16 %v8233, %v8232
  %v8249 = vpack.c.b16 %v8235, %v8234
  %v8250 = vpack.c.b16 %v8237, %v8236
  %v8251 = vpack.c.b16 %v8238, %v8238
  %v8265 = vsel %vm672, %v8181, 0
  %v8268 = vsel %vm672, %v8182, 0
  %v8271 = vsel %vm672, %v8183, 0
  %v8274 = vsel %vm672, %v8184, 0
  %v8277 = vsel %vm672, %v8185, 0
  %v8280 = vsel %vm672, %v8186, 0
  %v8283 = vsel %vm672, %v8187, 0
  %v8286 = vsel %vm685, %v8251, 0
  %8288 = vmatprep.subr.bf16.mxu0 0
  %8289 = vmatpush1.bf16.msra.mxu0 %v8239
  %8290 = vmatprep.subr.bf16.mxu0 0
  %8291 = vmatpush1.bf16.msra.mxu0 %v8240
  %8292 = vmatprep.subr.bf16.mxu0 0
  %8293 = vmatpush1.bf16.msra.mxu0 %v8241
  %8294 = vmatprep.subr.bf16.mxu0 0
  %8295 = vmatpush1.bf16.msra.mxu0 %v8242
  %8296 = vmatprep.subr.bf16.mxu0 0
  %8297 = vmatpush1.bf16.msra.mxu0 %v8243
  %8298 = vmatprep.subr.bf16.mxu0 0
  %8299 = vmatpush1.bf16.msra.mxu0 %v8244
  %8300 = vmatprep.subr.bf16.mxu0 0
  %8301 = vmatpush1.bf16.msra.mxu0 %v8245
  %8302 = vmatprep.subr.bf16.mxu0 0
  %8303 = vmatpush1.bf16.msra.mxu0 %v8246
  %8304 = vmatprep.subr.bf16.mxu0 0
  %8305 = vmatpush1.bf16.msra.mxu0 %v8247
  %8306 = vmatprep.subr.bf16.mxu0 0
  %8307 = vmatpush1.bf16.msra.mxu0 %v8248
  %8308 = vmatprep.subr.bf16.mxu0 0
  %8309 = vmatpush1.bf16.msra.mxu0 %v8249
  %8310 = vmatprep.subr.bf16.mxu0 0
  %8311 = vmatpush1.bf16.msra.mxu0 %v8250
  %8312 = vmatprep.subr.bf16.mxu0 0
  %8313 = vmatpush1.bf16.msra.mxu0 %v8286
  %8314 = vmatprep.subr.bf16.mxu0 0
  %8315 = vmatpush1.bf16.msra.mxu0 0
  %8316 = vmatprep.subr.bf16.mxu0 0
  %8317 = vmatpush1.bf16.msra.mxu0 0
  %8318 = vmatprep.subr.bf16.mxu0 0
  %8319 = vmatpush1.bf16.msra.mxu0 0
  %8320 = vmatprep.mubr.bf16.mxu0 %v8265
  %8321 = vmatmul.mubr.bf16.gmra.mrb[0].mxu0 %v8165
  %v8322 = vpop.f32.mrb[0].mxu0
  %v8323 = vadd.f32 %v8155, %v8322
  %v8324 = vpop.f32.mrb[0].mxu0
  %v8325 = vpop.f32.mrb[0].mxu0
  %v8326 = vadd.f32 %v8155, %v8325
  %v8327 = vpop.f32.mrb[0].mxu0
  %8328 = vmatprep.mubr.bf16.mxu0 %v8268
  %8329 = vmatmul.mubr.bf16.gmra.mrb[0].mxu0 %v8166
  %v8330 = vpop.f32.mrb[0].mxu0
  %v8331 = vadd.f32 %v8155, %v8330
  %v8332 = vpop.f32.mrb[0].mxu0
  %v8333 = vpop.f32.mrb[0].mxu0
  %v8334 = vadd.f32 %v8155, %v8333
  %v8335 = vpop.f32.mrb[0].mxu0
  %8336 = vmatprep.mubr.bf16.mxu0 %v8271
  %8337 = vmatmul.mubr.bf16.gmra.mrb[0].mxu0 %v8167
  %v8338 = vpop.f32.mrb[0].mxu0
  %v8339 = vadd.f32 %v8155, %v8338
  %v8340 = vpop.f32.mrb[0].mxu0
  %v8341 = vpop.f32.mrb[0].mxu0
  %v8342 = vadd.f32 %v8155, %v8341
  %v8343 = vpop.f32.mrb[0].mxu0
  %8344 = vmatprep.mubr.bf16.mxu0 %v8274
  %8345 = vmatmul.mubr.bf16.gmra.mrb[0].mxu0 %v8168
  %v8346 = vpop.f32.mrb[0].mxu0
  %v8347 = vadd.f32 %v8155, %v8346
  %v8348 = vpop.f32.mrb[0].mxu0
  %v8349 = vpop.f32.mrb[0].mxu0
  %v8350 = vadd.f32 %v8155, %v8349
  %v8351 = vpop.f32.mrb[0].mxu0
  %8352 = vmatprep.mubr.bf16.mxu0 %v8277
  %8353 = vmatmul.mubr.bf16.gmra.mrb[0].mxu0 %v8169
  %v8354 = vpop.f32.mrb[0].mxu0
  %v8355 = vadd.f32 %v8155, %v8354
  %v8356 = vpop.f32.mrb[0].mxu0
  %v8357 = vpop.f32.mrb[0].mxu0
  %v8358 = vadd.f32 %v8155, %v8357
  %v8359 = vpop.f32.mrb[0].mxu0
  %8360 = vmatprep.mubr.bf16.mxu0 %v8280
  %8361 = vmatmul.mubr.bf16.gmra.mrb[0].mxu0 %v8170
  %v8362 = vpop.f32.mrb[0].mxu0
  %v8363 = vadd.f32 %v8155, %v8362
  %v8364 = vpop.f32.mrb[0].mxu0
  %v8365 = vpop.f32.mrb[0].mxu0
  %v8366 = vadd.f32 %v8155, %v8365
  %v8367 = vpop.f32.mrb[0].mxu0
  %8368 = vmatprep.mubr.bf16.mxu0 %v8283
  %8369 = vmatmul.mubr.bf16.gmra.mrb[0].mxu0 %v8171
  %v8370 = vpop.f32.mrb[0].mxu0
  %v8371 = vadd.f32 %v8155, %v8370
  %v8372 = vpop.f32.mrb[0].mxu0
  %v8373 = vpop.f32.mrb[0].mxu0
  %v8374 = vpop.f32.mrb[0].mxu0
  %8375 = vdwg.mxu0
  %v8376 = vmax.f32 %v8323, 0.0
  %v8377 = vmax.f32 %v8326, 0.0
  %v8378 = vmax.f32 %v8331, 0.0
  %v8379 = vmax.f32 %v8334, 0.0
  %v8380 = vmax.f32 %v8339, 0.0
  %v8381 = vmax.f32 %v8342, 0.0
  %v8382 = vmax.f32 %v8347, 0.0
  %v8383 = vmax.f32 %v8350, 0.0
  %v8384 = vmax.f32 %v8355, 0.0
  %v8385 = vmax.f32 %v8358, 0.0
  %v8386 = vmax.f32 %v8363, 0.0
  %v8387 = vmax.f32 %v8366, 0.0
  %v8388 = vmax.f32 %v8371, 0.0
  %v8389 = vpack.c.bf16 %v8377, %v8376
  %v8390 = vpack.c.bf16 %v8379, %v8378
  %v8391 = vpack.c.bf16 %v8381, %v8380
  %v8392 = vpack.c.bf16 %v8383, %v8382
  %v8393 = vpack.c.bf16 %v8385, %v8384
  %v8394 = vpack.c.bf16 %v8387, %v8386
  %v8395 = vpack.c.bf16 %v8388, %v8388
  %v8396 = vld [vmem:[%s7] sm:$0xf]
  %v8397 = vld [vmem:[%s7 + $0x4] sm:$0xf]
  %v8398 = vld [vmem:[%s7 + $0x8] sm:$0xf]
  %v8399 = vld [vmem:[%s7 + $0xc] sm:$0x1]
  %v8404 = vunpack.c.l.b16 %v8396
  %v8405 = vunpack.c.l.b16 %v8397
  %v8406 = vunpack.c.l.b16 %v8398
  %v8407 = vunpack.c.l.b16 %v8399
  %v8408 = vpack.c.b16 %v8405, %v8404
  %v8409 = vpack.c.b16 %v8407, %v8406
  %v8411 = vsel %vm6512, %v8408, 0
  %v8414 = vsel %vm6512, %v8409, 0
  %v8417 = vsel %vm2089, %v8395, 0
  %8419 = vmatprep.subr.bf16.mxu0 0
  %8420 = vmatpush1.bf16.msra.mxu0 %v8389
  %8421 = vmatprep.subr.bf16.mxu0 0
  %8422 = vmatpush1.bf16.msra.mxu0 %v8390
  %8423 = vmatprep.subr.bf16.mxu0 0
  %8424 = vmatpush1.bf16.msra.mxu0 %v8391
  %8425 = vmatprep.subr.bf16.mxu0 0
  %8426 = vmatpush1.bf16.msra.mxu0 %v8392
  %8427 = vmatprep.subr.bf16.mxu0 0
  %8428 = vmatpush1.bf16.msra.mxu0 %v8393
  %8429 = vmatprep.subr.bf16.mxu0 0
  %8430 = vmatpush1.bf16.msra.mxu0 %v8394
  %8431 = vmatprep.subr.bf16.mxu0 0
  %8432 = vmatpush1.bf16.msra.mxu0 %v8417
  %8433 = vmatprep.subr.bf16.mxu0 0
  %8434 = vmatpush1.bf16.msra.mxu0 0
  %8435 = vmatprep.subr.bf16.mxu0 0
  %8436 = vmatpush1.bf16.msra.mxu0 0
  %8437 = vmatprep.subr.bf16.mxu0 0
  %8438 = vmatpush1.bf16.msra.mxu0 0
  %8439 = vmatprep.subr.bf16.mxu0 0
  %8440 = vmatpush1.bf16.msra.mxu0 0
  %8441 = vmatprep.subr.bf16.mxu0 0
  %8442 = vmatpush1.bf16.msra.mxu0 0
  %8443 = vmatprep.subr.bf16.mxu0 0
  %8444 = vmatpush1.bf16.msra.mxu0 0
  %8445 = vmatprep.subr.bf16.mxu0 0
  %8446 = vmatpush1.bf16.msra.mxu0 0
  %8447 = vmatprep.subr.bf16.mxu0 0
  %8448 = vmatpush1.bf16.msra.mxu0 0
  %8449 = vmatprep.subr.bf16.mxu0 0
  %8450 = vmatpush1.bf16.msra.mxu0 0
  %8451 = vmatprep.mubr.bf16.mxu0 0
  %8452 = vmatmul.mubr.bf16.gmra.mrb[0].mxu0 %v8411
  %v8453 = vpop.f32.mrb[0].mxu0
  %v8454 = vadd.f32 0.0, %v8453
  %v8455 = vpop.f32.mrb[0].mxu0
  %v8456 = vpop.f32.mrb[0].mxu0
  %v8457 = vadd.f32 0.0, %v8456
  %v8458 = vpop.f32.mrb[0].mxu0
  %8459 = vmatprep.mubr.bf16.mxu0 0
  %8460 = vmatmul.mubr.bf16.gmra.mrb[0].mxu0 %v8414
  %v8461 = vpop.f32.mrb[0].mxu0
  %v8462 = vadd.f32 0.0, %v8461
  %v8463 = vpop.f32.mrb[0].mxu0
  %v8464 = vpop.f32.mrb[0].mxu0
  %v8465 = vadd.f32 0.0, %v8464
  %v8466 = vpop.f32.mrb[0].mxu0
  %8467 = vdwg.mxu0
  %v8468 = vpack.c.bf16 %v8457, %v8454
  %v8469 = vpack.c.bf16 %v8465, %v8462
  %v8472 = vunpack.c.l.b16 %v8468
  %v8473 = vunpack.c.h.b16 %v8468
  %v8474 = vunpack.c.l.b16 %v8469
  %v8475 = vunpack.c.h.b16 %v8469
  %v8476 = vpack.c.b16 %v8472, %v8472
  %v8477 = vpack.c.b16 %v8473, %v8473
  %v8478 = vpack.c.b16 %v8474, %v8474
  %v8479 = vpack.c.b16 %v8475, %v8475
  %s8484 = scalar_lea.vmem %s8, 80
  %8485 = vst [vmem:[%s8484] sm:$0xf] %v8476
  %8486 = vst [vmem:[%s8484 + $0x4] sm:$0xf] %v8477
  %8487 = vst [vmem:[%s8484 + $0x8] sm:$0xf] %v8478
  %v8488 = vld [vmem:[%s8484 + $0xc] sm:$0x1]
  %v8489 = vsel %vm6592, %v8479, %v8488
  %8490 = vst [vmem:[%s8484 + $0xc] sm:$0x1] %v8489
  %v8491 = vpack.c.bf16 %v2321, %v2152
  %v8492 = vpack.c.bf16 %v2659, %v2490
  %v8493 = vpack.c.bf16 %v2997, %v2828
  %v8494 = vpack.c.bf16 %v3335, %v3166
  %v8495 = vpack.c.bf16 %v3673, %v3504
  %v8496 = vpack.c.bf16 %v4011, %v3842
  %v8497 = vpack.c.bf16 %v4349, %v4180
  %v8498 = vpack.c.bf16 %v4687, %v4518
  %v8499 = vpack.c.bf16 %v5025, %v4856
  %v8500 = vpack.c.bf16 %v5363, %v5194
  %v8501 = vpack.c.bf16 %v5701, %v5532
  %v8502 = vpack.c.bf16 %v6039, %v5870
  %v8503 = vpack.c.bf16 %v6208, %v6208
  %v8504 = vld [vmem:[%s5] sm:$0xf]
  %v8505 = vld [vmem:[%s5 + $0x4] sm:$0xf]
  %v8506 = vld [vmem:[%s5 + $0x8] sm:$0xf]
  %v8507 = vld [vmem:[%s5 + $0xc] sm:$0xf]
  %v8508 = vld [vmem:[%s5 + $0x10] sm:$0xf]
  %v8509 = vld [vmem:[%s5 + $0x14] sm:$0xf]
  %v8510 = vld [vmem:[%s5 + $0x18] sm:$0xf]
  %v8511 = vld [vmem:[%s5 + $0x1c] sm:$0xf]
  %v8512 = vld [vmem:[%s5 + $0x20] sm:$0xf]
  %v8513 = vld [vmem:[%s5 + $0x24] sm:$0xf]
  %v8514 = vld [vmem:[%s5 + $0x28] sm:$0xf]
  %v8515 = vld [vmem:[%s5 + $0x2c] sm:$0xf]
  %v8516 = vld [vmem:[%s5 + $0x30] sm:$0xf]
  %v8517 = vld [vmem:[%s5 + $0x34] sm:$0xf]
  %v8518 = vld [vmem:[%s5 + $0x38] sm:$0xf]
  %v8519 = vld [vmem:[%s5 + $0x3c] sm:$0xf]
  %v8520 = vld [vmem:[%s5 + $0x40] sm:$0xf]
  %v8521 = vld [vmem:[%s5 + $0x44] sm:$0xf]
  %v8522 = vld [vmem:[%s5 + $0x48] sm:$0xf]
  %v8523 = vld [vmem:[%s5 + $0x4c] sm:$0xf]
  %v8524 = vld [vmem:[%s5 + $0x50] sm:$0xf]
  %v8525 = vld [vmem:[%s5 + $0x54] sm:$0xf]
  %v8526 = vld [vmem:[%s5 + $0x58] sm:$0xf]
  %v8527 = vld [vmem:[%s5 + $0x5c] sm:$0xf]
  %v8528 = vld [vmem:[%s5 + $0x60] sm:$0xf]
  %v8529 = vld [vmem:[%s6] sm:$0x1]
  %v8531 = vlaneseq
  %v8532 = vshrl.u32 %v8531, 7
  %v8533 = vsub.s32 0, %v8532
  %v8534 = vrot.slane %v8529, %v8533
  %8536 = vxpose.xlu0.c.b16.start [1/8] %v8491, 128
  %8537 = vxpose.xlu0.c.b16.cont [2/8] %v8492, 128
  %8538 = vxpose.xlu0.c.b16.cont [3/8] %v8493, 128
  %8539 = vxpose.xlu0.c.b16.cont [4/8] %v8494, 128
  %8540 = vxpose.xlu0.c.b16.cont [5/8] %v8495, 128
  %8541 = vxpose.xlu0.c.b16.cont [6/8] %v8496, 128
  %8542 = vxpose.xlu0.c.b16.cont [7/8] %v8497, 128
  %8543 = vxpose.xlu0.c.b16.end [8/8] %v8498, 128
  %v8544 = vpop.trf.xlu0
  %v8545 = vpop.trf.xlu0
  %v8546 = vpop.trf.xlu0
  %v8547 = vpop.trf.xlu0
  %v8548 = vpop.trf.xlu0
  %v8549 = vpop.trf.xlu0
  %v8550 = vpop.trf.xlu0
  %v8551 = vpop.trf.xlu0
  %8552 = vxpose.xlu0.c.b16.start [1/8] %v8499, 128
  %8553 = vxpose.xlu0.c.b16.cont [2/8] %v8500, 128
  %8554 = vxpose.xlu0.c.b16.cont [3/8] %v8501, 128
  %8555 = vxpose.xlu0.c.b16.cont [4/8] %v8502, 128
  %8556 = vxpose.xlu0.c.b16.cont [5/8] %v8503, 128
  %8557 = vxpose.xlu0.c.b16.cont [6/8] 0, 128
  %8558 = vxpose.xlu0.c.b16.cont [7/8] 0, 128
  %8559 = vxpose.xlu0.c.b16.end [8/8] 0, 128
  %v8560 = vpop.trf.xlu0
  %v8561 = vpop.trf.xlu0
  %v8562 = vpop.trf.xlu0
  %v8563 = vpop.trf.xlu0
  %v8564 = vpop.trf.xlu0
  %v8565 = vpop.trf.xlu0
  %v8566 = vpop.trf.xlu0
  %v8567 = vpop.trf.xlu0
  %v8593 = vunpack.c.l.b16 %v8504
  %v8594 = vunpack.c.l.b16 %v8505
  %v8595 = vunpack.c.l.b16 %v8506
  %v8596 = vunpack.c.l.b16 %v8507
  %v8597 = vunpack.c.l.b16 %v8508
  %v8598 = vunpack.c.l.b16 %v8509
  %v8599 = vunpack.c.l.b16 %v8510
  %v8600 = vunpack.c.l.b16 %v8511
  %v8601 = vunpack.c.l.b16 %v8512
  %v8602 = vunpack.c.l.b16 %v8513
  %v8603 = vunpack.c.l.b16 %v8514
  %v8604 = vunpack.c.l.b16 %v8515
  %v8605 = vunpack.c.l.b16 %v8516
  %v8606 = vunpack.c.l.b16 %v8517
  %v8607 = vunpack.c.l.b16 %v8518
  %v8608 = vunpack.c.l.b16 %v8519
  %v8609 = vunpack.c.l.b16 %v8520
  %v8610 = vunpack.c.l.b16 %v8521
  %v8611 = vunpack.c.l.b16 %v8522
  %v8612 = vunpack.c.l.b16 %v8523
  %v8613 = vunpack.c.l.b16 %v8524
  %v8614 = vunpack.c.l.b16 %v8525
  %v8615 = vunpack.c.l.b16 %v8526
  %v8616 = vunpack.c.l.b16 %v8527
  %v8617 = vunpack.c.l.b16 %v8528
  %v8618 = vpack.c.b16 %v8594, %v8593
  %v8619 = vpack.c.b16 %v8596, %v8595
  %v8620 = vpack.c.b16 %v8598, %v8597
  %v8621 = vpack.c.b16 %v8600, %v8599
  %v8622 = vpack.c.b16 %v8602, %v8601
  %v8623 = vpack.c.b16 %v8604, %v8603
  %v8624 = vpack.c.b16 %v8606, %v8605
  %v8625 = vpack.c.b16 %v8608, %v8607
  %v8626 = vpack.c.b16 %v8610, %v8609
  %v8627 = vpack.c.b16 %v8612, %v8611
  %v8628 = vpack.c.b16 %v8614, %v8613
  %v8629 = vpack.c.b16 %v8616, %v8615
  %v8630 = vpack.c.b16 %v8617, %v8617
  %v8644 = vsel %vm672, %v8560, 0
  %v8647 = vsel %vm672, %v8561, 0
  %v8650 = vsel %vm672, %v8562, 0
  %v8653 = vsel %vm672, %v8563, 0
  %v8656 = vsel %vm672, %v8564, 0
  %v8659 = vsel %vm672, %v8565, 0
  %v8662 = vsel %vm672, %v8566, 0
  %v8665 = vsel %vm685, %v8630, 0
  %8667 = vmatprep.subr.bf16.mxu0 0
  %8668 = vmatpush1.bf16.msra.mxu0 %v8618
  %8669 = vmatprep.subr.bf16.mxu0 0
  %8670 = vmatpush1.bf16.msra.mxu0 %v8619
  %8671 = vmatprep.subr.bf16.mxu0 0
  %8672 = vmatpush1.bf16.msra.mxu0 %v8620
  %8673 = vmatprep.subr.bf16.mxu0 0
  %8674 = vmatpush1.bf16.msra.mxu0 %v8621
  %8675 = vmatprep.subr.bf16.mxu0 0
  %8676 = vmatpush1.bf16.msra.mxu0 %v8622
  %8677 = vmatprep.subr.bf16.mxu0 0
  %8678 = vmatpush1.bf16.msra.mxu0 %v8623
  %8679 = vmatprep.subr.bf16.mxu0 0
  %8680 = vmatpush1.bf16.msra.mxu0 %v8624
  %8681 = vmatprep.subr.bf16.mxu0 0
  %8682 = vmatpush1.bf16.msra.mxu0 %v8625
  %8683 = vmatprep.subr.bf16.mxu0 0
  %8684 = vmatpush1.bf16.msra.mxu0 %v8626
  %8685 = vmatprep.subr.bf16.mxu0 0
  %8686 = vmatpush1.bf16.msra.mxu0 %v8627
  %8687 = vmatprep.subr.bf16.mxu0 0
  %8688 = vmatpush1.bf16.msra.mxu0 %v8628
  %8689 = vmatprep.subr.bf16.mxu0 0
  %8690 = vmatpush1.bf16.msra.mxu0 %v8629
  %8691 = vmatprep.subr.bf16.mxu0 0
  %8692 = vmatpush1.bf16.msra.mxu0 %v8665
  %8693 = vmatprep.subr.bf16.mxu0 0
  %8694 = vmatpush1.bf16.msra.mxu0 0
  %8695 = vmatprep.subr.bf16.mxu0 0
  %8696 = vmatpush1.bf16.msra.mxu0 0
  %8697 = vmatprep.subr.bf16.mxu0 0
  %8698 = vmatpush1.bf16.msra.mxu0 0
  %8699 = vmatprep.mubr.bf16.mxu0 %v8644
  %8700 = vmatmul.mubr.bf16.gmra.mrb[0].mxu0 %v8544
  %v8701 = vpop.f32.mrb[0].mxu0
  %v8702 = vadd.f32 %v8534, %v8701
  %v8703 = vpop.f32.mrb[0].mxu0
  %v8704 = vpop.f32.mrb[0].mxu0
  %v8705 = vadd.f32 %v8534, %v8704
  %v8706 = vpop.f32.mrb[0].mxu0
  %8707 = vmatprep.mubr.bf16.mxu0 %v8647
  %8708 = vmatmul.mubr.bf16.gmra.mrb[0].mxu0 %v8545
  %v8709 = vpop.f32.mrb[0].mxu0
  %v8710 = vadd.f32 %v8534, %v8709
  %v8711 = vpop.f32.mrb[0].mxu0
  %v8712 = vpop.f32.mrb[0].mxu0
  %v8713 = vadd.f32 %v8534, %v8712
  %v8714 = vpop.f32.mrb[0].mxu0
  %8715 = vmatprep.mubr.bf16.mxu0 %v8650
  %8716 = vmatmul.mubr.bf16.gmra.mrb[0].mxu0 %v8546
  %v8717 = vpop.f32.mrb[0].mxu0
  %v8718 = vadd.f32 %v8534, %v8717
  %v8719 = vpop.f32.mrb[0].mxu0
  %v8720 = vpop.f32.mrb[0].mxu0
  %v8721 = vadd.f32 %v8534, %v8720
  %v8722 = vpop.f32.mrb[0].mxu0
  %8723 = vmatprep.mubr.bf16.mxu0 %v8653
  %8724 = vmatmul.mubr.bf16.gmra.mrb[0].mxu0 %v8547
  %v8725 = vpop.f32.mrb[0].mxu0
  %v8726 = vadd.f32 %v8534, %v8725
  %v8727 = vpop.f32.mrb[0].mxu0
  %v8728 = vpop.f32.mrb[0].mxu0
  %v8729 = vadd.f32 %v8534, %v8728
  %v8730 = vpop.f32.mrb[0].mxu0
  %8731 = vmatprep.mubr.bf16.mxu0 %v8656
  %8732 = vmatmul.mubr.bf16.gmra.mrb[0].mxu0 %v8548
  %v8733 = vpop.f32.mrb[0].mxu0
  %v8734 = vadd.f32 %v8534, %v8733
  %v8735 = vpop.f32.mrb[0].mxu0
  %v8736 = vpop.f32.mrb[0].mxu0
  %v8737 = vadd.f32 %v8534, %v8736
  %v8738 = vpop.f32.mrb[0].mxu0
  %8739 = vmatprep.mubr.bf16.mxu0 %v8659
  %8740 = vmatmul.mubr.bf16.gmra.mrb[0].mxu0 %v8549
  %v8741 = vpop.f32.mrb[0].mxu0
  %v8742 = vadd.f32 %v8534, %v8741
  %v8743 = vpop.f32.mrb[0].mxu0
  %v8744 = vpop.f32.mrb[0].mxu0
  %v8745 = vadd.f32 %v8534, %v8744
  %v8746 = vpop.f32.mrb[0].mxu0
  %8747 = vmatprep.mubr.bf16.mxu0 %v8662
  %8748 = vmatmul.mubr.bf16.gmra.mrb[0].mxu0 %v8550
  %v8749 = vpop.f32.mrb[0].mxu0
  %v8750 = vadd.f32 %v8534, %v8749
  %v8751 = vpop.f32.mrb[0].mxu0
  %v8752 = vpop.f32.mrb[0].mxu0
  %v8753 = vpop.f32.mrb[0].mxu0
  %8754 = vdwg.mxu0
  %v8755 = vmax.f32 %v8702, 0.0
  %v8756 = vmax.f32 %v8705, 0.0
  %v8757 = vmax.f32 %v8710, 0.0
  %v8758 = vmax.f32 %v8713, 0.0
  %v8759 = vmax.f32 %v8718, 0.0
  %v8760 = vmax.f32 %v8721, 0.0
  %v8761 = vmax.f32 %v8726, 0.0
  %v8762 = vmax.f32 %v8729, 0.0
  %v8763 = vmax.f32 %v8734, 0.0
  %v8764 = vmax.f32 %v8737, 0.0
  %v8765 = vmax.f32 %v8742, 0.0
  %v8766 = vmax.f32 %v8745, 0.0
  %v8767 = vmax.f32 %v8750, 0.0
  %v8768 = vpack.c.bf16 %v8756, %v8755
  %v8769 = vpack.c.bf16 %v8758, %v8757
  %v8770 = vpack.c.bf16 %v8760, %v8759
  %v8771 = vpack.c.bf16 %v8762, %v8761
  %v8772 = vpack.c.bf16 %v8764, %v8763
  %v8773 = vpack.c.bf16 %v8766, %v8765
  %v8774 = vpack.c.bf16 %v8767, %v8767
  %v8775 = vld [vmem:[%s7] sm:$0xf]
  %v8776 = vld [vmem:[%s7 + $0x4] sm:$0xf]
  %v8777 = vld [vmem:[%s7 + $0x8] sm:$0xf]
  %v8778 = vld [vmem:[%s7 + $0xc] sm:$0x1]
  %v8783 = vunpack.c.l.b16 %v8775
  %v8784 = vunpack.c.l.b16 %v8776
  %v8785 = vunpack.c.l.b16 %v8777
  %v8786 = vunpack.c.l.b16 %v8778
  %v8787 = vpack.c.b16 %v8784, %v8783
  %v8788 = vpack.c.b16 %v8786, %v8785
  %v8790 = vsel %vm6512, %v8787, 0
  %v8793 = vsel %vm6512, %v8788, 0
  %v8796 = vsel %vm2089, %v8774, 0
  %8798 = vmatprep.subr.bf16.mxu0 0
  %8799 = vmatpush1.bf16.msra.mxu0 %v8768
  %8800 = vmatprep.subr.bf16.mxu0 0
  %8801 = vmatpush1.bf16.msra.mxu0 %v8769
  %8802 = vmatprep.subr.bf16.mxu0 0
  %8803 = vmatpush1.bf16.msra.mxu0 %v8770
  %8804 = vmatprep.subr.bf16.mxu0 0
  %8805 = vmatpush1.bf16.msra.mxu0 %v8771
  %8806 = vmatprep.subr.bf16.mxu0 0
  %8807 = vmatpush1.bf16.msra.mxu0 %v8772
  %8808 = vmatprep.subr.bf16.mxu0 0
  %8809 = vmatpush1.bf16.msra.mxu0 %v8773
  %8810 = vmatprep.subr.bf16.mxu0 0
  %8811 = vmatpush1.bf16.msra.mxu0 %v8796
  %8812 = vmatprep.subr.bf16.mxu0 0
  %8813 = vmatpush1.bf16.msra.mxu0 0
  %8814 = vmatprep.subr.bf16.mxu0 0
  %8815 = vmatpush1.bf16.msra.mxu0 0
  %8816 = vmatprep.subr.bf16.mxu0 0
  %8817 = vmatpush1.bf16.msra.mxu0 0
  %8818 = vmatprep.subr.bf16.mxu0 0
  %8819 = vmatpush1.bf16.msra.mxu0 0
  %8820 = vmatprep.subr.bf16.mxu0 0
  %8821 = vmatpush1.bf16.msra.mxu0 0
  %8822 = vmatprep.subr.bf16.mxu0 0
  %8823 = vmatpush1.bf16.msra.mxu0 0
  %8824 = vmatprep.subr.bf16.mxu0 0
  %8825 = vmatpush1.bf16.msra.mxu0 0
  %8826 = vmatprep.subr.bf16.mxu0 0
  %8827 = vmatpush1.bf16.msra.mxu0 0
  %8828 = vmatprep.subr.bf16.mxu0 0
  %8829 = vmatpush1.bf16.msra.mxu0 0
  %8830 = vmatprep.mubr.bf16.mxu0 0
  %8831 = vmatmul.mubr.bf16.gmra.mrb[0].mxu0 %v8790
  %v8832 = vpop.f32.mrb[0].mxu0
  %v8833 = vadd.f32 0.0, %v8832
  %v8834 = vpop.f32.mrb[0].mxu0
  %v8835 = vpop.f32.mrb[0].mxu0
  %v8836 = vadd.f32 0.0, %v8835
  %v8837 = vpop.f32.mrb[0].mxu0
  %8838 = vmatprep.mubr.bf16.mxu0 0
  %8839 = vmatmul.mubr.bf16.gmra.mrb[0].mxu0 %v8793
  %v8840 = vpop.f32.mrb[0].mxu0
  %v8841 = vadd.f32 0.0, %v8840
  %v8842 = vpop.f32.mrb[0].mxu0
  %v8843 = vpop.f32.mrb[0].mxu0
  %v8844 = vadd.f32 0.0, %v8843
  %v8845 = vpop.f32.mrb[0].mxu0
  %8846 = vdwg.mxu0
  %v8847 = vpack.c.bf16 %v8836, %v8833
  %v8848 = vpack.c.bf16 %v8844, %v8841
  %v8851 = vunpack.c.l.b16 %v8847
  %v8852 = vunpack.c.h.b16 %v8847
  %v8853 = vunpack.c.l.b16 %v8848
  %v8854 = vunpack.c.h.b16 %v8848
  %v8855 = vpack.c.b16 %v8851, %v8851
  %v8856 = vpack.c.b16 %v8852, %v8852
  %v8857 = vpack.c.b16 %v8853, %v8853
  %v8858 = vpack.c.b16 %v8854, %v8854
  %s8863 = scalar_lea.vmem %s8, 96
  %8864 = vst [vmem:[%s8863] sm:$0xf] %v8855
  %8865 = vst [vmem:[%s8863 + $0x4] sm:$0xf] %v8856
  %8866 = vst [vmem:[%s8863 + $0x8] sm:$0xf] %v8857
  %v8867 = vld [vmem:[%s8863 + $0xc] sm:$0x1]
  %v8868 = vsel %vm6592, %v8858, %v8867
  %8869 = vst [vmem:[%s8863 + $0xc] sm:$0x1] %v8868
  %v8870 = vpack.c.bf16 %v2324, %v2155
  %v8871 = vpack.c.bf16 %v2662, %v2493
  %v8872 = vpack.c.bf16 %v3000, %v2831
  %v8873 = vpack.c.bf16 %v3338, %v3169
  %v8874 = vpack.c.bf16 %v3676, %v3507
  %v8875 = vpack.c.bf16 %v4014, %v3845
  %v8876 = vpack.c.bf16 %v4352, %v4183
  %v8877 = vpack.c.bf16 %v4690, %v4521
  %v8878 = vpack.c.bf16 %v5028, %v4859
  %v8879 = vpack.c.bf16 %v5366, %v5197
  %v8880 = vpack.c.bf16 %v5704, %v5535
  %v8881 = vpack.c.bf16 %v6042, %v5873
  %v8882 = vpack.c.bf16 %v6211, %v6211
  %v8883 = vld [vmem:[%s5] sm:$0xf]
  %v8884 = vld [vmem:[%s5 + $0x4] sm:$0xf]
  %v8885 = vld [vmem:[%s5 + $0x8] sm:$0xf]
  %v8886 = vld [vmem:[%s5 + $0xc] sm:$0xf]
  %v8887 = vld [vmem:[%s5 + $0x10] sm:$0xf]
  %v8888 = vld [vmem:[%s5 + $0x14] sm:$0xf]
  %v8889 = vld [vmem:[%s5 + $0x18] sm:$0xf]
  %v8890 = vld [vmem:[%s5 + $0x1c] sm:$0xf]
  %v8891 = vld [vmem:[%s5 + $0x20] sm:$0xf]
  %v8892 = vld [vmem:[%s5 + $0x24] sm:$0xf]
  %v8893 = vld [vmem:[%s5 + $0x28] sm:$0xf]
  %v8894 = vld [vmem:[%s5 + $0x2c] sm:$0xf]
  %v8895 = vld [vmem:[%s5 + $0x30] sm:$0xf]
  %v8896 = vld [vmem:[%s5 + $0x34] sm:$0xf]
  %v8897 = vld [vmem:[%s5 + $0x38] sm:$0xf]
  %v8898 = vld [vmem:[%s5 + $0x3c] sm:$0xf]
  %v8899 = vld [vmem:[%s5 + $0x40] sm:$0xf]
  %v8900 = vld [vmem:[%s5 + $0x44] sm:$0xf]
  %v8901 = vld [vmem:[%s5 + $0x48] sm:$0xf]
  %v8902 = vld [vmem:[%s5 + $0x4c] sm:$0xf]
  %v8903 = vld [vmem:[%s5 + $0x50] sm:$0xf]
  %v8904 = vld [vmem:[%s5 + $0x54] sm:$0xf]
  %v8905 = vld [vmem:[%s5 + $0x58] sm:$0xf]
  %v8906 = vld [vmem:[%s5 + $0x5c] sm:$0xf]
  %v8907 = vld [vmem:[%s5 + $0x60] sm:$0xf]
  %v8908 = vld [vmem:[%s6] sm:$0x1]
  %v8910 = vlaneseq
  %v8911 = vshrl.u32 %v8910, 7
  %v8912 = vsub.s32 0, %v8911
  %v8913 = vrot.slane %v8908, %v8912
  %8915 = vxpose.xlu0.c.b16.start [1/8] %v8870, 128
  %8916 = vxpose.xlu0.c.b16.cont [2/8] %v8871, 128
  %8917 = vxpose.xlu0.c.b16.cont [3/8] %v8872, 128
  %8918 = vxpose.xlu0.c.b16.cont [4/8] %v8873, 128
  %8919 = vxpose.xlu0.c.b16.cont [5/8] %v8874, 128
  %8920 = vxpose.xlu0.c.b16.cont [6/8] %v8875, 128
  %8921 = vxpose.xlu0.c.b16.cont [7/8] %v8876, 128
  %8922 = vxpose.xlu0.c.b16.end [8/8] %v8877, 128
  %v8923 = vpop.trf.xlu0
  %v8924 = vpop.trf.xlu0
  %v8925 = vpop.trf.xlu0
  %v8926 = vpop.trf.xlu0
  %v8927 = vpop.trf.xlu0
  %v8928 = vpop.trf.xlu0
  %v8929 = vpop.trf.xlu0
  %v8930 = vpop.trf.xlu0
  %8931 = vxpose.xlu0.c.b16.start [1/8] %v8878, 128
  %8932 = vxpose.xlu0.c.b16.cont [2/8] %v8879, 128
  %8933 = vxpose.xlu0.c.b16.cont [3/8] %v8880, 128
  %8934 = vxpose.xlu0.c.b16.cont [4/8] %v8881, 128
  %8935 = vxpose.xlu0.c.b16.cont [5/8] %v8882, 128
  %8936 = vxpose.xlu0.c.b16.cont [6/8] 0, 128
  %8937 = vxpose.xlu0.c.b16.cont [7/8] 0, 128
  %8938 = vxpose.xlu0.c.b16.end [8/8] 0, 128
  %v8939 = vpop.trf.xlu0
  %v8940 = vpop.trf.xlu0
  %v8941 = vpop.trf.xlu0
  %v8942 = vpop.trf.xlu0
  %v8943 = vpop.trf.xlu0
  %v8944 = vpop.trf.xlu0
  %v8945 = vpop.trf.xlu0
  %v8946 = vpop.trf.xlu0
  %v8972 = vunpack.c.l.b16 %v8883
  %v8973 = vunpack.c.l.b16 %v8884
  %v8974 = vunpack.c.l.b16 %v8885
  %v8975 = vunpack.c.l.b16 %v8886
  %v8976 = vunpack.c.l.b16 %v8887
  %v8977 = vunpack.c.l.b16 %v8888
  %v8978 = vunpack.c.l.b16 %v8889
  %v8979 = vunpack.c.l.b16 %v8890
  %v8980 = vunpack.c.l.b16 %v8891
  %v8981 = vunpack.c.l.b16 %v8892
  %v8982 = vunpack.c.l.b16 %v8893
  %v8983 = vunpack.c.l.b16 %v8894
  %v8984 = vunpack.c.l.b16 %v8895
  %v8985 = vunpack.c.l.b16 %v8896
  %v8986 = vunpack.c.l.b16 %v8897
  %v8987 = vunpack.c.l.b16 %v8898
  %v8988 = vunpack.c.l.b16 %v8899
  %v8989 = vunpack.c.l.b16 %v8900
  %v8990 = vunpack.c.l.b16 %v8901
  %v8991 = vunpack.c.l.b16 %v8902
  %v8992 = vunpack.c.l.b16 %v8903
  %v8993 = vunpack.c.l.b16 %v8904
  %v8994 = vunpack.c.l.b16 %v8905
  %v8995 = vunpack.c.l.b16 %v8906
  %v8996 = vunpack.c.l.b16 %v8907
  %v8997 = vpack.c.b16 %v8973, %v8972
  %v8998 = vpack.c.b16 %v8975, %v8974
  %v8999 = vpack.c.b16 %v8977, %v8976
  %v9000 = vpack.c.b16 %v8979, %v8978
  %v9001 = vpack.c.b16 %v8981, %v8980
  %v9002 = vpack.c.b16 %v8983, %v8982
  %v9003 = vpack.c.b16 %v8985, %v8984
  %v9004 = vpack.c.b16 %v8987, %v8986
  %v9005 = vpack.c.b16 %v8989, %v8988
  %v9006 = vpack.c.b16 %v8991, %v8990
  %v9007 = vpack.c.b16 %v8993, %v8992
  %v9008 = vpack.c.b16 %v8995, %v8994
  %v9009 = vpack.c.b16 %v8996, %v8996
  %v9023 = vsel %vm672, %v8939, 0
  %v9026 = vsel %vm672, %v8940, 0
  %v9029 = vsel %vm672, %v8941, 0
  %v9032 = vsel %vm672, %v8942, 0
  %v9035 = vsel %vm672, %v8943, 0
  %v9038 = vsel %vm672, %v8944, 0
  %v9041 = vsel %vm672, %v8945, 0
  %v9044 = vsel %vm685, %v9009, 0
  %9046 = vmatprep.subr.bf16.mxu0 0
  %9047 = vmatpush1.bf16.msra.mxu0 %v8997
  %9048 = vmatprep.subr.bf16.mxu0 0
  %9049 = vmatpush1.bf16.msra.mxu0 %v8998
  %9050 = vmatprep.subr.bf16.mxu0 0
  %9051 = vmatpush1.bf16.msra.mxu0 %v8999
  %9052 = vmatprep.subr.bf16.mxu0 0
  %9053 = vmatpush1.bf16.msra.mxu0 %v9000
  %9054 = vmatprep.subr.bf16.mxu0 0
  %9055 = vmatpush1.bf16.msra.mxu0 %v9001
  %9056 = vmatprep.subr.bf16.mxu0 0
  %9057 = vmatpush1.bf16.msra.mxu0 %v9002
  %9058 = vmatprep.subr.bf16.mxu0 0
  %9059 = vmatpush1.bf16.msra.mxu0 %v9003
  %9060 = vmatprep.subr.bf16.mxu0 0
  %9061 = vmatpush1.bf16.msra.mxu0 %v9004
  %9062 = vmatprep.subr.bf16.mxu0 0
  %9063 = vmatpush1.bf16.msra.mxu0 %v9005
  %9064 = vmatprep.subr.bf16.mxu0 0
  %9065 = vmatpush1.bf16.msra.mxu0 %v9006
  %9066 = vmatprep.subr.bf16.mxu0 0
  %9067 = vmatpush1.bf16.msra.mxu0 %v9007
  %9068 = vmatprep.subr.bf16.mxu0 0
  %9069 = vmatpush1.bf16.msra.mxu0 %v9008
  %9070 = vmatprep.subr.bf16.mxu0 0
  %9071 = vmatpush1.bf16.msra.mxu0 %v9044
  %9072 = vmatprep.subr.bf16.mxu0 0
  %9073 = vmatpush1.bf16.msra.mxu0 0
  %9074 = vmatprep.subr.bf16.mxu0 0
  %9075 = vmatpush1.bf16.msra.mxu0 0
  %9076 = vmatprep.subr.bf16.mxu0 0
  %9077 = vmatpush1.bf16.msra.mxu0 0
  %9078 = vmatprep.mubr.bf16.mxu0 %v9023
  %9079 = vmatmul.mubr.bf16.gmra.mrb[0].mxu0 %v8923
  %v9080 = vpop.f32.mrb[0].mxu0
  %v9081 = vadd.f32 %v8913, %v9080
  %v9082 = vpop.f32.mrb[0].mxu0
  %v9083 = vpop.f32.mrb[0].mxu0
  %v9084 = vadd.f32 %v8913, %v9083
  %v9085 = vpop.f32.mrb[0].mxu0
  %9086 = vmatprep.mubr.bf16.mxu0 %v9026
  %9087 = vmatmul.mubr.bf16.gmra.mrb[0].mxu0 %v8924
  %v9088 = vpop.f32.mrb[0].mxu0
  %v9089 = vadd.f32 %v8913, %v9088
  %v9090 = vpop.f32.mrb[0].mxu0
  %v9091 = vpop.f32.mrb[0].mxu0
  %v9092 = vadd.f32 %v8913, %v9091
  %v9093 = vpop.f32.mrb[0].mxu0
  %9094 = vmatprep.mubr.bf16.mxu0 %v9029
  %9095 = vmatmul.mubr.bf16.gmra.mrb[0].mxu0 %v8925
  %v9096 = vpop.f32.mrb[0].mxu0
  %v9097 = vadd.f32 %v8913, %v9096
  %v9098 = vpop.f32.mrb[0].mxu0
  %v9099 = vpop.f32.mrb[0].mxu0
  %v9100 = vadd.f32 %v8913, %v9099
  %v9101 = vpop.f32.mrb[0].mxu0
  %9102 = vmatprep.mubr.bf16.mxu0 %v9032
  %9103 = vmatmul.mubr.bf16.gmra.mrb[0].mxu0 %v8926
  %v9104 = vpop.f32.mrb[0].mxu0
  %v9105 = vadd.f32 %v8913, %v9104
  %v9106 = vpop.f32.mrb[0].mxu0
  %v9107 = vpop.f32.mrb[0].mxu0
  %v9108 = vadd.f32 %v8913, %v9107
  %v9109 = vpop.f32.mrb[0].mxu0
  %9110 = vmatprep.mubr.bf16.mxu0 %v9035
  %9111 = vmatmul.mubr.bf16.gmra.mrb[0].mxu0 %v8927
  %v9112 = vpop.f32.mrb[0].mxu0
  %v9113 = vadd.f32 %v8913, %v9112
  %v9114 = vpop.f32.mrb[0].mxu0
  %v9115 = vpop.f32.mrb[0].mxu0
  %v9116 = vadd.f32 %v8913, %v9115
  %v9117 = vpop.f32.mrb[0].mxu0
  %9118 = vmatprep.mubr.bf16.mxu0 %v9038
  %9119 = vmatmul.mubr.bf16.gmra.mrb[0].mxu0 %v8928
  %v9120 = vpop.f32.mrb[0].mxu0
  %v9121 = vadd.f32 %v8913, %v9120
  %v9122 = vpop.f32.mrb[0].mxu0
  %v9123 = vpop.f32.mrb[0].mxu0
  %v9124 = vadd.f32 %v8913, %v9123
  %v9125 = vpop.f32.mrb[0].mxu0
  %9126 = vmatprep.mubr.bf16.mxu0 %v9041
  %9127 = vmatmul.mubr.bf16.gmra.mrb[0].mxu0 %v8929
  %v9128 = vpop.f32.mrb[0].mxu0
  %v9129 = vadd.f32 %v8913, %v9128
  %v9130 = vpop.f32.mrb[0].mxu0
  %v9131 = vpop.f32.mrb[0].mxu0
  %v9132 = vpop.f32.mrb[0].mxu0
  %9133 = vdwg.mxu0
  %v9134 = vmax.f32 %v9081, 0.0
  %v9135 = vmax.f32 %v9084, 0.0
  %v9136 = vmax.f32 %v9089, 0.0
  %v9137 = vmax.f32 %v9092, 0.0
  %v9138 = vmax.f32 %v9097, 0.0
  %v9139 = vmax.f32 %v9100, 0.0
  %v9140 = vmax.f32 %v9105, 0.0
  %v9141 = vmax.f32 %v9108, 0.0
  %v9142 = vmax.f32 %v9113, 0.0
  %v9143 = vmax.f32 %v9116, 0.0
  %v9144 = vmax.f32 %v9121, 0.0
  %v9145 = vmax.f32 %v9124, 0.0
  %v9146 = vmax.f32 %v9129, 0.0
  %v9147 = vpack.c.bf16 %v9135, %v9134
  %v9148 = vpack.c.bf16 %v9137, %v9136
  %v9149 = vpack.c.bf16 %v9139, %v9138
  %v9150 = vpack.c.bf16 %v9141, %v9140
  %v9151 = vpack.c.bf16 %v9143, %v9142
  %v9152 = vpack.c.bf16 %v9145, %v9144
  %v9153 = vpack.c.bf16 %v9146, %v9146
  %v9154 = vld [vmem:[%s7] sm:$0xf]
  %v9155 = vld [vmem:[%s7 + $0x4] sm:$0xf]
  %v9156 = vld [vmem:[%s7 + $0x8] sm:$0xf]
  %v9157 = vld [vmem:[%s7 + $0xc] sm:$0x1]
  %v9162 = vunpack.c.l.b16 %v9154
  %v9163 = vunpack.c.l.b16 %v9155
  %v9164 = vunpack.c.l.b16 %v9156
  %v9165 = vunpack.c.l.b16 %v9157
  %v9166 = vpack.c.b16 %v9163, %v9162
  %v9167 = vpack.c.b16 %v9165, %v9164
  %v9169 = vsel %vm6512, %v9166, 0
  %v9172 = vsel %vm6512, %v9167, 0
  %v9175 = vsel %vm2089, %v9153, 0
  %9177 = vmatprep.subr.bf16.mxu0 0
  %9178 = vmatpush1.bf16.msra.mxu0 %v9147
  %9179 = vmatprep.subr.bf16.mxu0 0
  %9180 = vmatpush1.bf16.msra.mxu0 %v9148
  %9181 = vmatprep.subr.bf16.mxu0 0
  %9182 = vmatpush1.bf16.msra.mxu0 %v9149
  %9183 = vmatprep.subr.bf16.mxu0 0
  %9184 = vmatpush1.bf16.msra.mxu0 %v9150
  %9185 = vmatprep.subr.bf16.mxu0 0
  %9186 = vmatpush1.bf16.msra.mxu0 %v9151
  %9187 = vmatprep.subr.bf16.mxu0 0
  %9188 = vmatpush1.bf16.msra.mxu0 %v9152
  %9189 = vmatprep.subr.bf16.mxu0 0
  %9190 = vmatpush1.bf16.msra.mxu0 %v9175
  %9191 = vmatprep.subr.bf16.mxu0 0
  %9192 = vmatpush1.bf16.msra.mxu0 0
  %9193 = vmatprep.subr.bf16.mxu0 0
  %9194 = vmatpush1.bf16.msra.mxu0 0
  %9195 = vmatprep.subr.bf16.mxu0 0
  %9196 = vmatpush1.bf16.msra.mxu0 0
  %9197 = vmatprep.subr.bf16.mxu0 0
  %9198 = vmatpush1.bf16.msra.mxu0 0
  %9199 = vmatprep.subr.bf16.mxu0 0
  %9200 = vmatpush1.bf16.msra.mxu0 0
  %9201 = vmatprep.subr.bf16.mxu0 0
  %9202 = vmatpush1.bf16.msra.mxu0 0
  %9203 = vmatprep.subr.bf16.mxu0 0
  %9204 = vmatpush1.bf16.msra.mxu0 0
  %9205 = vmatprep.subr.bf16.mxu0 0
  %9206 = vmatpush1.bf16.msra.mxu0 0
  %9207 = vmatprep.subr.bf16.mxu0 0
  %9208 = vmatpush1.bf16.msra.mxu0 0
  %9209 = vmatprep.mubr.bf16.mxu0 0
  %9210 = vmatmul.mubr.bf16.gmra.mrb[0].mxu0 %v9169
  %v9211 = vpop.f32.mrb[0].mxu0
  %v9212 = vadd.f32 0.0, %v9211
  %v9213 = vpop.f32.mrb[0].mxu0
  %v9214 = vpop.f32.mrb[0].mxu0
  %v9215 = vadd.f32 0.0, %v9214
  %v9216 = vpop.f32.mrb[0].mxu0
  %9217 = vmatprep.mubr.bf16.mxu0 0
  %9218 = vmatmul.mubr.bf16.gmra.mrb[0].mxu0 %v9172
  %v9219 = vpop.f32.mrb[0].mxu0
  %v9220 = vadd.f32 0.0, %v9219
  %v9221 = vpop.f32.mrb[0].mxu0
  %v9222 = vpop.f32.mrb[0].mxu0
  %v9223 = vadd.f32 0.0, %v9222
  %v9224 = vpop.f32.mrb[0].mxu0
  %9225 = vdwg.mxu0
  %v9226 = vpack.c.bf16 %v9215, %v9212
  %v9227 = vpack.c.bf16 %v9223, %v9220
  %v9230 = vunpack.c.l.b16 %v9226
  %v9231 = vunpack.c.h.b16 %v9226
  %v9232 = vunpack.c.l.b16 %v9227
  %v9233 = vunpack.c.h.b16 %v9227
  %v9234 = vpack.c.b16 %v9230, %v9230
  %v9235 = vpack.c.b16 %v9231, %v9231
  %v9236 = vpack.c.b16 %v9232, %v9232
  %v9237 = vpack.c.b16 %v9233, %v9233
  %s9242 = scalar_lea.vmem %s8, 112
  %9243 = vst [vmem:[%s9242] sm:$0xf] %v9234
  %9244 = vst [vmem:[%s9242 + $0x4] sm:$0xf] %v9235
  %9245 = vst [vmem:[%s9242 + $0x8] sm:$0xf] %v9236
  %v9246 = vld [vmem:[%s9242 + $0xc] sm:$0x1]
  %v9247 = vsel %vm6592, %v9237, %v9246
  %9248 = vst [vmem:[%s9242 + $0xc] sm:$0x1] %v9247
  // Predicated region
  $region34: #{lenet_forward.2} parent=0 // pred_check
    _
  $region35: #{lenet_forward.2} parent=0 // pred_check_branch
    %9250 = sbr.rel (0) target = $region37
  $region36: #{lenet_forward.2} parent=0 // pred_region
    _
  $region37: #{lenet_forward.2} parent=0 // pred_fallthru
    _
  // Predicated region
  $region38: #{lenet_forward.2} parent=0 // pred_check
    _
  $region39: #{lenet_forward.2} parent=0 // pred_check_branch
    %9252 = sbr.rel (0) target = $region41
  $region40: #{lenet_forward.2} parent=0 // pred_region
    _
  $region41: #{lenet_forward.2} parent=0 // pred_fallthru
    _

</llo_original>
